<compile_context>
chip_gen: v7x
topology: tpu7x:2x2x1
jax: 0.10.0
libtpu: 0.0.40
codegen_flags: <defaults>
</compile_context>

<pallas_src>
import jax
import jax.numpy as jnp
from jax.experimental import pallas as pl
from jax.experimental.pallas import tpu as pltpu


def _round_up(x, m):
    return ((x + m - 1) // m) * m


def _meta_agg_kernel(e_ref, v_ref, w1e_t_ref, w1v_t_ref, b1_ref,
                     w2_t_ref, b2_ref, w3_c_ref, o_ref):
    # e_ref:  (K, NB, D)  neighbor embeddings for this block of NB nodes (neighbor-major)
    # v_ref:  (NB, D)     node embeddings
    # o_ref:  (NB, D)     aggregated output
    K, NB, D = e_ref.shape

    v = v_ref[...]                                   # (NB, D)
    w1e_t = w1e_t_ref[...]                           # (D, D)  == W1[:, :D].T
    w2_t = w2_t_ref[...]                             # (D, D)  == W2.T
    w3_c = w3_c_ref[...]                             # (D, 1)  == W3.T
    b2 = b2_ref[...]                                 # (1, D)

    # v_rep half of att1, computed once per node (K x less MXU work), bias folded in.
    hv = jnp.dot(v, w1v_t_ref[...],
                 preferred_element_type=jnp.float32) + b1_ref[...]        # (NB, D)

    # Online softmax over the K neighbors, fused with the weighted e_m sum.
    m = jnp.full((NB, 1), -jnp.inf, dtype=jnp.float32)
    den = jnp.zeros((NB, 1), dtype=jnp.float32)
    num = jnp.zeros((NB, D), dtype=jnp.float32)
    for k in range(K):                               # K is small & static -> unrolled
        e_k = e_ref[k]                               # (NB, D)
        h1 = jnp.maximum(
            jnp.dot(e_k, w1e_t, preferred_element_type=jnp.float32) + hv, 0.0)
        h2 = jnp.maximum(
            jnp.dot(h1, w2_t, preferred_element_type=jnp.float32) + b2, 0.0)
        # b3 is omitted: it cancels exactly under the softmax (shift invariance).
        lg = jnp.dot(h2, w3_c, preferred_element_type=jnp.float32)        # (NB, 1)

        m_new = jnp.maximum(m, lg)
        alpha = jnp.exp(m - m_new)
        p = jnp.exp(lg - m_new)
        den = alpha * den + p
        num = alpha * num + p * e_k
        m = m_new

    # att_history[n] = sum_k softmax(logits)[n, k] * e_m[n, k]  ==  num / den
    # (approx=True would push the divide onto the EUP, but exact reciprocal is kept to
    #  hold the tight verification tolerance; the denominator is negligible work.)
    o_ref[...] = (num * pl.reciprocal(den, approx=False)).astype(o_ref.dtype)


def meta_aggregator(nodes, history_m, v2e_weight, m2e_weight,
                    W1, b1, W2, b2, W3, b3, *, node_block=128):
    """Meta_Aggregator.forward with a fixed neighbor count K per node.

    nodes:      (N,)   int ids into v2e_weight
    history_m:  (N, K) int ids into m2e_weight
    returns:    (N, D) float32 aggregated embeddings
    """
    del b3  # softmax is shift-invariant -> b3 cancels exactly; drop the operand stream.
    N, K = history_m.shape
    D = v2e_weight.shape[1]

    # Embedding gathers (plain-JAX glue, mirrors m2e.weight[...] / v2e.weight[...]).
    # Gathered neighbor-major so the kernel sees clean (NB, D) 2-D slabs per neighbor slot.
    e_m_t = jnp.take(m2e_weight, history_m.T, axis=0).astype(jnp.float32)   # (K, N, D)
    v_rep = jnp.take(v2e_weight, nodes, axis=0).astype(jnp.float32)         # (N, D)

    # Pre-transposed / split weights:
    #   concat([e_m, v_rep], -1) @ W1.T == e_m @ W1[:, :D].T + v_rep @ W1[:, D:].T
    w1e_t = W1[:, :D].T                      # (D, D)
    w1v_t = W1[:, D:].T                      # (D, D)
    w2_t = W2.T                              # (D, D)
    w3_c = W3.reshape(1, D).T                # (D, 1)
    b1r = b1.reshape(1, D)
    b2r = b2.reshape(1, D)

    # Node-block size: big enough to amortize per-step overhead, multiple of 8 sublanes.
    NB = min(node_block, _round_up(N, 8))
    Np = _round_up(N, NB)
    if Np != N:
        # Zero padding: padded rows produce a uniform softmax over zero embeddings
        # (finite, no NaNs) and are sliced off below.
        e_m_t = jnp.pad(e_m_t, ((0, 0), (0, Np - N), (0, 0)))
        v_rep = jnp.pad(v_rep, ((0, Np - N), (0, 0)))

    grid_spec = pltpu.PrefetchScalarGridSpec(
        num_scalar_prefetch=0,
        grid=(Np // NB,),
        in_specs=[
            pl.BlockSpec((K, NB, D), lambda i: (0, i, 0)),   # e_m (neighbor-major)
            pl.BlockSpec((NB, D),    lambda i: (i, 0)),      # v_rep
            pl.BlockSpec((D, D),     lambda i: (0, 0)),      # W1e^T (resident)
            pl.BlockSpec((D, D),     lambda i: (0, 0)),      # W1v^T
            pl.BlockSpec((1, D),     lambda i: (0, 0)),      # b1
            pl.BlockSpec((D, D),     lambda i: (0, 0)),      # W2^T
            pl.BlockSpec((1, D),     lambda i: (0, 0)),      # b2
            pl.BlockSpec((D, 1),     lambda i: (0, 0)),      # W3 column
        ],
        out_specs=pl.BlockSpec((NB, D), lambda i: (i, 0)),
    )

    out = pl.pallas_call(
        _meta_agg_kernel,
        out_shape=jax.ShapeDtypeStruct((Np, D), jnp.float32),
        grid_spec=grid_spec,
        compiler_params=pltpu.CompilerParams(
            dimension_semantics=("parallel",)),
    )(e_m_t, v_rep, w1e_t, w1v_t, b1r, w2_t, b2r, w3_c)
    return out[:N]


def meta_aggregator_ref(nodes, history_m, v2e_weight, m2e_weight,
                        W1, b1, W2, b2, W3, b3):
    """Pure-JAX reference mirroring the PyTorch forward (eval mode)."""
    e_m = m2e_weight[history_m]                               # (N, K, D)
    v_rep = v2e_weight[nodes]                                 # (N, D)
    N, K, D = e_m.shape
    v_b = jnp.broadcast_to(v_rep[:, None, :], (N, K, D))
    x = jnp.concatenate([e_m, v_b], axis=-1)                  # (N, K, 2D)
    h1 = jax.nn.relu(jnp.einsum("nkf,df->nkd", x, W1) + b1)
    h2 = jax.nn.relu(jnp.einsum("nkd,ed->nke", h1, W2) + b2)
    logits = jnp.einsum("nkd,od->nko", h2, W3) + b3           # (N, K, 1)
    att = jax.nn.softmax(logits, axis=1)
    return jnp.sum(att * e_m, axis=1)                         # (N, D)


if __name__ == "__main__":
    N = 256        # nodes (2 grid blocks of NB=128 -> both v7x TensorCores get work)
    K = 8          # meta-neighbors per node (fixed width)
    D = 32         # embed_dim
    NUM_V = 64     # v2e vocabulary size
    NUM_M = 96     # m2e vocabulary size

    key = jax.random.PRNGKey(0)
    ks = jax.random.split(key, 10)

    # Embedding tables (nn.Embedding weights), deterministic init.
    v2e_weight = jax.random.normal(ks[0], (NUM_V, D), jnp.float32) * 0.1
    m2e_weight = jax.random.normal(ks[1], (NUM_M, D), jnp.float32) * 0.1

    # Attention MLP parameters (att1: 2D->D, att2: D->D, att3: D->1).
    W1 = jax.random.normal(ks[2], (D, 2 * D), jnp.float32) * 0.1
    b1 = jax.random.normal(ks[3], (D,), jnp.float32) * 0.01
    W2 = jax.random.normal(ks[4], (D, D), jnp.float32) * 0.1
    b2 = jax.random.normal(ks[5], (D,), jnp.float32) * 0.01
    W3 = jax.random.normal(ks[6], (1, D), jnp.float32) * 0.1
    b3 = jax.random.normal(ks[7], (1,), jnp.float32) * 0.01   # nonzero; cancels in softmax

    nodes = jax.random.randint(ks[8], (N,), 0, NUM_V)
    history_m = jax.random.randint(ks[9], (N, K), 0, NUM_M)

    out = meta_aggregator(nodes, history_m, v2e_weight, m2e_weight,
                          W1, b1, W2, b2, W3, b3)
    out = jax.block_until_ready(out)

    ref = meta_aggregator_ref(nodes, history_m, v2e_weight, m2e_weight,
                              W1, b1, W2, b2, W3, b3)
    assert out.shape == (N, D)
    assert jnp.allclose(out, ref, atol=1e-5, rtol=1e-5), "mismatch vs reference"

    print("KERNEL_OK")
</pallas_src>

<mosaic_0001>
module attributes {stable_mosaic.version = 11 : i64} {
  func.func @_meta_agg_kernel(%arg0: i32, %arg1: memref<8x128x32xf32, #tpu.memory_space<vmem>>, %arg2: memref<128x32xf32, #tpu.memory_space<vmem>>, %arg3: memref<32x32xf32, #tpu.memory_space<vmem>>, %arg4: memref<32x32xf32, #tpu.memory_space<vmem>>, %arg5: memref<1x32xf32, #tpu.memory_space<vmem>>, %arg6: memref<32x32xf32, #tpu.memory_space<vmem>>, %arg7: memref<1x32xf32, #tpu.memory_space<vmem>>, %arg8: memref<32x1xf32, #tpu.memory_space<vmem>>, %arg9: memref<128x32xf32, #tpu.memory_space<vmem>>) attributes {dimension_semantics = [#tpu.dimension_semantics<parallel>], iteration_bounds = array<i64: 2>, scalar_prefetch = 0 : i64, scratch_operands = 0 : i64, tpu.core_type = #tpu.core_type<tc>, window_params = [{transform_indices = @transform_0, window_bounds = array<i64: 8, 128, 32>}, {transform_indices = @transform_1, window_bounds = array<i64: 128, 32>}, {pipeline_mode = #tpu.pipeline_mode<synchronous>, transform_indices = @transform_2, window_bounds = array<i64: 32, 32>}, {pipeline_mode = #tpu.pipeline_mode<synchronous>, transform_indices = @transform_3, window_bounds = array<i64: 32, 32>}, {pipeline_mode = #tpu.pipeline_mode<synchronous>, transform_indices = @transform_4, window_bounds = array<i64: 1, 32>}, {pipeline_mode = #tpu.pipeline_mode<synchronous>, transform_indices = @transform_5, window_bounds = array<i64: 32, 32>}, {pipeline_mode = #tpu.pipeline_mode<synchronous>, transform_indices = @transform_6, window_bounds = array<i64: 1, 32>}, {pipeline_mode = #tpu.pipeline_mode<synchronous>, transform_indices = @transform_7, window_bounds = array<i64: 32, 1>}, {transform_indices = @transform_8, window_bounds = array<i64: 128, 32>}]} {
    %c0 = arith.constant 0 : index
    %c0_0 = arith.constant 0 : index
    %0 = vector.load %arg2[%c0, %c0_0] : memref<128x32xf32, #tpu.memory_space<vmem>>, vector<128x32xf32>
    %c0_1 = arith.constant 0 : index
    %c0_2 = arith.constant 0 : index
    %1 = vector.load %arg3[%c0_1, %c0_2] : memref<32x32xf32, #tpu.memory_space<vmem>>, vector<32x32xf32>
    %c0_3 = arith.constant 0 : index
    %c0_4 = arith.constant 0 : index
    %2 = vector.load %arg6[%c0_3, %c0_4] : memref<32x32xf32, #tpu.memory_space<vmem>>, vector<32x32xf32>
    %c0_5 = arith.constant 0 : index
    %c0_6 = arith.constant 0 : index
    %3 = vector.load %arg8[%c0_5, %c0_6] : memref<32x1xf32, #tpu.memory_space<vmem>>, vector<32x1xf32>
    %c0_7 = arith.constant 0 : index
    %c0_8 = arith.constant 0 : index
    %4 = vector.load %arg7[%c0_7, %c0_8] : memref<1x32xf32, #tpu.memory_space<vmem>>, vector<1x32xf32>
    %c0_9 = arith.constant 0 : index
    %c0_10 = arith.constant 0 : index
    %5 = vector.load %arg4[%c0_9, %c0_10] : memref<32x32xf32, #tpu.memory_space<vmem>>, vector<32x32xf32>
    %cst = arith.constant dense<0.000000e+00> : vector<128x32xf32>
    %6 = tpu.matmul %0, %5, %cst {dimension_numbers = #tpu.dot_dimension_numbers<[1], [0], [0], [1], [0, 0, 1, 1], [], []>} : vector<128x32xf32>, vector<32x32xf32>, vector<128x32xf32> -> vector<128x32xf32>
    %c0_11 = arith.constant 0 : index
    %c0_12 = arith.constant 0 : index
    %7 = vector.load %arg5[%c0_11, %c0_12] : memref<1x32xf32, #tpu.memory_space<vmem>>, vector<1x32xf32>
    %8 = vector.broadcast %7 : vector<1x32xf32> to vector<128x32xf32>
    %9 = arith.addf %6, %8 : vector<128x32xf32>
    %cst_13 = arith.constant 0xFF800000 : f32
    %10 = vector.broadcast %cst_13 : f32 to vector<128x1xf32>
    %cst_14 = arith.constant 0.000000e+00 : f32
    %11 = vector.broadcast %cst_14 : f32 to vector<128x1xf32>
    %cst_15 = arith.constant 0.000000e+00 : f32
    %12 = vector.broadcast %cst_15 : f32 to vector<128x32xf32>
    %c0_16 = arith.constant 0 : index
    %c0_17 = arith.constant 0 : index
    %c0_18 = arith.constant 0 : index
    %13 = vector.load %arg1[%c0_16, %c0_17, %c0_18] : memref<8x128x32xf32, #tpu.memory_space<vmem>>, vector<1x128x32xf32>
    %14 = vector.shape_cast %13 : vector<1x128x32xf32> to vector<128x32xf32>
    %cst_19 = arith.constant dense<0.000000e+00> : vector<128x32xf32>
    %15 = tpu.matmul %14, %1, %cst_19 {dimension_numbers = #tpu.dot_dimension_numbers<[1], [0], [0], [1], [0, 0, 1, 1], [], []>} : vector<128x32xf32>, vector<32x32xf32>, vector<128x32xf32> -> vector<128x32xf32>
    %16 = arith.addf %15, %9 : vector<128x32xf32>
    %cst_20 = arith.constant 0.000000e+00 : f32
    %17 = vector.broadcast %cst_20 : f32 to vector<128x32xf32>
    %18 = arith.maximumf %16, %17 : vector<128x32xf32>
    %cst_21 = arith.constant dense<0.000000e+00> : vector<128x32xf32>
    %19 = tpu.matmul %18, %2, %cst_21 {dimension_numbers = #tpu.dot_dimension_numbers<[1], [0], [0], [1], [0, 0, 1, 1], [], []>} : vector<128x32xf32>, vector<32x32xf32>, vector<128x32xf32> -> vector<128x32xf32>
    %20 = vector.broadcast %4 : vector<1x32xf32> to vector<128x32xf32>
    %21 = arith.addf %19, %20 : vector<128x32xf32>
    %cst_22 = arith.constant 0.000000e+00 : f32
    %22 = vector.broadcast %cst_22 : f32 to vector<128x32xf32>
    %23 = arith.maximumf %21, %22 : vector<128x32xf32>
    %cst_23 = arith.constant dense<0.000000e+00> : vector<128x1xf32>
    %24 = tpu.matmul %23, %3, %cst_23 {dimension_numbers = #tpu.dot_dimension_numbers<[1], [0], [0], [1], [0, 0, 1, 1], [], []>} : vector<128x32xf32>, vector<32x1xf32>, vector<128x1xf32> -> vector<128x1xf32>
    %25 = arith.maximumf %10, %24 : vector<128x1xf32>
    %26 = arith.subf %10, %25 : vector<128x1xf32>
    %27 = math.exp %26 : vector<128x1xf32>
    %28 = arith.subf %24, %25 : vector<128x1xf32>
    %29 = math.exp %28 : vector<128x1xf32>
    %30 = arith.mulf %27, %11 : vector<128x1xf32>
    %31 = arith.addf %30, %29 : vector<128x1xf32>
    %32 = vector.broadcast %27 : vector<128x1xf32> to vector<128x32xf32>
    %33 = arith.mulf %32, %12 : vector<128x32xf32>
    %34 = vector.broadcast %29 : vector<128x1xf32> to vector<128x32xf32>
    %35 = arith.mulf %34, %14 : vector<128x32xf32>
    %36 = arith.addf %33, %35 : vector<128x32xf32>
    %c1 = arith.constant 1 : index
    %c0_24 = arith.constant 0 : index
    %c0_25 = arith.constant 0 : index
    %37 = vector.load %arg1[%c1, %c0_24, %c0_25] : memref<8x128x32xf32, #tpu.memory_space<vmem>>, vector<1x128x32xf32>
    %38 = vector.shape_cast %37 : vector<1x128x32xf32> to vector<128x32xf32>
    %cst_26 = arith.constant dense<0.000000e+00> : vector<128x32xf32>
    %39 = tpu.matmul %38, %1, %cst_26 {dimension_numbers = #tpu.dot_dimension_numbers<[1], [0], [0], [1], [0, 0, 1, 1], [], []>} : vector<128x32xf32>, vector<32x32xf32>, vector<128x32xf32> -> vector<128x32xf32>
    %40 = arith.addf %39, %9 : vector<128x32xf32>
    %cst_27 = arith.constant 0.000000e+00 : f32
    %41 = vector.broadcast %cst_27 : f32 to vector<128x32xf32>
    %42 = arith.maximumf %40, %41 : vector<128x32xf32>
    %cst_28 = arith.constant dense<0.000000e+00> : vector<128x32xf32>
    %43 = tpu.matmul %42, %2, %cst_28 {dimension_numbers = #tpu.dot_dimension_numbers<[1], [0], [0], [1], [0, 0, 1, 1], [], []>} : vector<128x32xf32>, vector<32x32xf32>, vector<128x32xf32> -> vector<128x32xf32>
    %44 = vector.broadcast %4 : vector<1x32xf32> to vector<128x32xf32>
    %45 = arith.addf %43, %44 : vector<128x32xf32>
    %cst_29 = arith.constant 0.000000e+00 : f32
    %46 = vector.broadcast %cst_29 : f32 to vector<128x32xf32>
    %47 = arith.maximumf %45, %46 : vector<128x32xf32>
    %cst_30 = arith.constant dense<0.000000e+00> : vector<128x1xf32>
    %48 = tpu.matmul %47, %3, %cst_30 {dimension_numbers = #tpu.dot_dimension_numbers<[1], [0], [0], [1], [0, 0, 1, 1], [], []>} : vector<128x32xf32>, vector<32x1xf32>, vector<128x1xf32> -> vector<128x1xf32>
    %49 = arith.maximumf %25, %48 : vector<128x1xf32>
    %50 = arith.subf %25, %49 : vector<128x1xf32>
    %51 = math.exp %50 : vector<128x1xf32>
    %52 = arith.subf %48, %49 : vector<128x1xf32>
    %53 = math.exp %52 : vector<128x1xf32>
    %54 = arith.mulf %51, %31 : vector<128x1xf32>
    %55 = arith.addf %54, %53 : vector<128x1xf32>
    %56 = vector.broadcast %51 : vector<128x1xf32> to vector<128x32xf32>
    %57 = arith.mulf %56, %36 : vector<128x32xf32>
    %58 = vector.broadcast %53 : vector<128x1xf32> to vector<128x32xf32>
    %59 = arith.mulf %58, %38 : vector<128x32xf32>
    %60 = arith.addf %57, %59 : vector<128x32xf32>
    %c2 = arith.constant 2 : index
    %c0_31 = arith.constant 0 : index
    %c0_32 = arith.constant 0 : index
    %61 = vector.load %arg1[%c2, %c0_31, %c0_32] : memref<8x128x32xf32, #tpu.memory_space<vmem>>, vector<1x128x32xf32>
    %62 = vector.shape_cast %61 : vector<1x128x32xf32> to vector<128x32xf32>
    %cst_33 = arith.constant dense<0.000000e+00> : vector<128x32xf32>
    %63 = tpu.matmul %62, %1, %cst_33 {dimension_numbers = #tpu.dot_dimension_numbers<[1], [0], [0], [1], [0, 0, 1, 1], [], []>} : vector<128x32xf32>, vector<32x32xf32>, vector<128x32xf32> -> vector<128x32xf32>
    %64 = arith.addf %63, %9 : vector<128x32xf32>
    %cst_34 = arith.constant 0.000000e+00 : f32
    %65 = vector.broadcast %cst_34 : f32 to vector<128x32xf32>
    %66 = arith.maximumf %64, %65 : vector<128x32xf32>
    %cst_35 = arith.constant dense<0.000000e+00> : vector<128x32xf32>
    %67 = tpu.matmul %66, %2, %cst_35 {dimension_numbers = #tpu.dot_dimension_numbers<[1], [0], [0], [1], [0, 0, 1, 1], [], []>} : vector<128x32xf32>, vector<32x32xf32>, vector<128x32xf32> -> vector<128x32xf32>
    %68 = vector.broadcast %4 : vector<1x32xf32> to vector<128x32xf32>
    %69 = arith.addf %67, %68 : vector<128x32xf32>
    %cst_36 = arith.constant 0.000000e+00 : f32
    %70 = vector.broadcast %cst_36 : f32 to vector<128x32xf32>
    %71 = arith.maximumf %69, %70 : vector<128x32xf32>
    %cst_37 = arith.constant dense<0.000000e+00> : vector<128x1xf32>
    %72 = tpu.matmul %71, %3, %cst_37 {dimension_numbers = #tpu.dot_dimension_numbers<[1], [0], [0], [1], [0, 0, 1, 1], [], []>} : vector<128x32xf32>, vector<32x1xf32>, vector<128x1xf32> -> vector<128x1xf32>
    %73 = arith.maximumf %49, %72 : vector<128x1xf32>
    %74 = arith.subf %49, %73 : vector<128x1xf32>
    %75 = math.exp %74 : vector<128x1xf32>
    %76 = arith.subf %72, %73 : vector<128x1xf32>
    %77 = math.exp %76 : vector<128x1xf32>
    %78 = arith.mulf %75, %55 : vector<128x1xf32>
    %79 = arith.addf %78, %77 : vector<128x1xf32>
    %80 = vector.broadcast %75 : vector<128x1xf32> to vector<128x32xf32>
    %81 = arith.mulf %80, %60 : vector<128x32xf32>
    %82 = vector.broadcast %77 : vector<128x1xf32> to vector<128x32xf32>
    %83 = arith.mulf %82, %62 : vector<128x32xf32>
    %84 = arith.addf %81, %83 : vector<128x32xf32>
    %c3 = arith.constant 3 : index
    %c0_38 = arith.constant 0 : index
    %c0_39 = arith.constant 0 : index
    %85 = vector.load %arg1[%c3, %c0_38, %c0_39] : memref<8x128x32xf32, #tpu.memory_space<vmem>>, vector<1x128x32xf32>
    %86 = vector.shape_cast %85 : vector<1x128x32xf32> to vector<128x32xf32>
    %cst_40 = arith.constant dense<0.000000e+00> : vector<128x32xf32>
    %87 = tpu.matmul %86, %1, %cst_40 {dimension_numbers = #tpu.dot_dimension_numbers<[1], [0], [0], [1], [0, 0, 1, 1], [], []>} : vector<128x32xf32>, vector<32x32xf32>, vector<128x32xf32> -> vector<128x32xf32>
    %88 = arith.addf %87, %9 : vector<128x32xf32>
    %cst_41 = arith.constant 0.000000e+00 : f32
    %89 = vector.broadcast %cst_41 : f32 to vector<128x32xf32>
    %90 = arith.maximumf %88, %89 : vector<128x32xf32>
    %cst_42 = arith.constant dense<0.000000e+00> : vector<128x32xf32>
    %91 = tpu.matmul %90, %2, %cst_42 {dimension_numbers = #tpu.dot_dimension_numbers<[1], [0], [0], [1], [0, 0, 1, 1], [], []>} : vector<128x32xf32>, vector<32x32xf32>, vector<128x32xf32> -> vector<128x32xf32>
    %92 = vector.broadcast %4 : vector<1x32xf32> to vector<128x32xf32>
    %93 = arith.addf %91, %92 : vector<128x32xf32>
    %cst_43 = arith.constant 0.000000e+00 : f32
    %94 = vector.broadcast %cst_43 : f32 to vector<128x32xf32>
    %95 = arith.maximumf %93, %94 : vector<128x32xf32>
    %cst_44 = arith.constant dense<0.000000e+00> : vector<128x1xf32>
    %96 = tpu.matmul %95, %3, %cst_44 {dimension_numbers = #tpu.dot_dimension_numbers<[1], [0], [0], [1], [0, 0, 1, 1], [], []>} : vector<128x32xf32>, vector<32x1xf32>, vector<128x1xf32> -> vector<128x1xf32>
    %97 = arith.maximumf %73, %96 : vector<128x1xf32>
    %98 = arith.subf %73, %97 : vector<128x1xf32>
    %99 = math.exp %98 : vector<128x1xf32>
    %100 = arith.subf %96, %97 : vector<128x1xf32>
    %101 = math.exp %100 : vector<128x1xf32>
    %102 = arith.mulf %99, %79 : vector<128x1xf32>
    %103 = arith.addf %102, %101 : vector<128x1xf32>
    %104 = vector.broadcast %99 : vector<128x1xf32> to vector<128x32xf32>
    %105 = arith.mulf %104, %84 : vector<128x32xf32>
    %106 = vector.broadcast %101 : vector<128x1xf32> to vector<128x32xf32>
    %107 = arith.mulf %106, %86 : vector<128x32xf32>
    %108 = arith.addf %105, %107 : vector<128x32xf32>
    %c4 = arith.constant 4 : index
    %c0_45 = arith.constant 0 : index
    %c0_46 = arith.constant 0 : index
    %109 = vector.load %arg1[%c4, %c0_45, %c0_46] : memref<8x128x32xf32, #tpu.memory_space<vmem>>, vector<1x128x32xf32>
    %110 = vector.shape_cast %109 : vector<1x128x32xf32> to vector<128x32xf32>
    %cst_47 = arith.constant dense<0.000000e+00> : vector<128x32xf32>
    %111 = tpu.matmul %110, %1, %cst_47 {dimension_numbers = #tpu.dot_dimension_numbers<[1], [0], [0], [1], [0, 0, 1, 1], [], []>} : vector<128x32xf32>, vector<32x32xf32>, vector<128x32xf32> -> vector<128x32xf32>
    %112 = arith.addf %111, %9 : vector<128x32xf32>
    %cst_48 = arith.constant 0.000000e+00 : f32
    %113 = vector.broadcast %cst_48 : f32 to vector<128x32xf32>
    %114 = arith.maximumf %112, %113 : vector<128x32xf32>
    %cst_49 = arith.constant dense<0.000000e+00> : vector<128x32xf32>
    %115 = tpu.matmul %114, %2, %cst_49 {dimension_numbers = #tpu.dot_dimension_numbers<[1], [0], [0], [1], [0, 0, 1, 1], [], []>} : vector<128x32xf32>, vector<32x32xf32>, vector<128x32xf32> -> vector<128x32xf32>
    %116 = vector.broadcast %4 : vector<1x32xf32> to vector<128x32xf32>
    %117 = arith.addf %115, %116 : vector<128x32xf32>
    %cst_50 = arith.constant 0.000000e+00 : f32
    %118 = vector.broadcast %cst_50 : f32 to vector<128x32xf32>
    %119 = arith.maximumf %117, %118 : vector<128x32xf32>
    %cst_51 = arith.constant dense<0.000000e+00> : vector<128x1xf32>
    %120 = tpu.matmul %119, %3, %cst_51 {dimension_numbers = #tpu.dot_dimension_numbers<[1], [0], [0], [1], [0, 0, 1, 1], [], []>} : vector<128x32xf32>, vector<32x1xf32>, vector<128x1xf32> -> vector<128x1xf32>
    %121 = arith.maximumf %97, %120 : vector<128x1xf32>
    %122 = arith.subf %97, %121 : vector<128x1xf32>
    %123 = math.exp %122 : vector<128x1xf32>
    %124 = arith.subf %120, %121 : vector<128x1xf32>
    %125 = math.exp %124 : vector<128x1xf32>
    %126 = arith.mulf %123, %103 : vector<128x1xf32>
    %127 = arith.addf %126, %125 : vector<128x1xf32>
    %128 = vector.broadcast %123 : vector<128x1xf32> to vector<128x32xf32>
    %129 = arith.mulf %128, %108 : vector<128x32xf32>
    %130 = vector.broadcast %125 : vector<128x1xf32> to vector<128x32xf32>
    %131 = arith.mulf %130, %110 : vector<128x32xf32>
    %132 = arith.addf %129, %131 : vector<128x32xf32>
    %c5 = arith.constant 5 : index
    %c0_52 = arith.constant 0 : index
    %c0_53 = arith.constant 0 : index
    %133 = vector.load %arg1[%c5, %c0_52, %c0_53] : memref<8x128x32xf32, #tpu.memory_space<vmem>>, vector<1x128x32xf32>
    %134 = vector.shape_cast %133 : vector<1x128x32xf32> to vector<128x32xf32>
    %cst_54 = arith.constant dense<0.000000e+00> : vector<128x32xf32>
    %135 = tpu.matmul %134, %1, %cst_54 {dimension_numbers = #tpu.dot_dimension_numbers<[1], [0], [0], [1], [0, 0, 1, 1], [], []>} : vector<128x32xf32>, vector<32x32xf32>, vector<128x32xf32> -> vector<128x32xf32>
    %136 = arith.addf %135, %9 : vector<128x32xf32>
    %cst_55 = arith.constant 0.000000e+00 : f32
    %137 = vector.broadcast %cst_55 : f32 to vector<128x32xf32>
    %138 = arith.maximumf %136, %137 : vector<128x32xf32>
    %cst_56 = arith.constant dense<0.000000e+00> : vector<128x32xf32>
    %139 = tpu.matmul %138, %2, %cst_56 {dimension_numbers = #tpu.dot_dimension_numbers<[1], [0], [0], [1], [0, 0, 1, 1], [], []>} : vector<128x32xf32>, vector<32x32xf32>, vector<128x32xf32> -> vector<128x32xf32>
    %140 = vector.broadcast %4 : vector<1x32xf32> to vector<128x32xf32>
    %141 = arith.addf %139, %140 : vector<128x32xf32>
    %cst_57 = arith.constant 0.000000e+00 : f32
    %142 = vector.broadcast %cst_57 : f32 to vector<128x32xf32>
    %143 = arith.maximumf %141, %142 : vector<128x32xf32>
    %cst_58 = arith.constant dense<0.000000e+00> : vector<128x1xf32>
    %144 = tpu.matmul %143, %3, %cst_58 {dimension_numbers = #tpu.dot_dimension_numbers<[1], [0], [0], [1], [0, 0, 1, 1], [], []>} : vector<128x32xf32>, vector<32x1xf32>, vector<128x1xf32> -> vector<128x1xf32>
    %145 = arith.maximumf %121, %144 : vector<128x1xf32>
    %146 = arith.subf %121, %145 : vector<128x1xf32>
    %147 = math.exp %146 : vector<128x1xf32>
    %148 = arith.subf %144, %145 : vector<128x1xf32>
    %149 = math.exp %148 : vector<128x1xf32>
    %150 = arith.mulf %147, %127 : vector<128x1xf32>
    %151 = arith.addf %150, %149 : vector<128x1xf32>
    %152 = vector.broadcast %147 : vector<128x1xf32> to vector<128x32xf32>
    %153 = arith.mulf %152, %132 : vector<128x32xf32>
    %154 = vector.broadcast %149 : vector<128x1xf32> to vector<128x32xf32>
    %155 = arith.mulf %154, %134 : vector<128x32xf32>
    %156 = arith.addf %153, %155 : vector<128x32xf32>
    %c6 = arith.constant 6 : index
    %c0_59 = arith.constant 0 : index
    %c0_60 = arith.constant 0 : index
    %157 = vector.load %arg1[%c6, %c0_59, %c0_60] : memref<8x128x32xf32, #tpu.memory_space<vmem>>, vector<1x128x32xf32>
    %158 = vector.shape_cast %157 : vector<1x128x32xf32> to vector<128x32xf32>
    %cst_61 = arith.constant dense<0.000000e+00> : vector<128x32xf32>
    %159 = tpu.matmul %158, %1, %cst_61 {dimension_numbers = #tpu.dot_dimension_numbers<[1], [0], [0], [1], [0, 0, 1, 1], [], []>} : vector<128x32xf32>, vector<32x32xf32>, vector<128x32xf32> -> vector<128x32xf32>
    %160 = arith.addf %159, %9 : vector<128x32xf32>
    %cst_62 = arith.constant 0.000000e+00 : f32
    %161 = vector.broadcast %cst_62 : f32 to vector<128x32xf32>
    %162 = arith.maximumf %160, %161 : vector<128x32xf32>
    %cst_63 = arith.constant dense<0.000000e+00> : vector<128x32xf32>
    %163 = tpu.matmul %162, %2, %cst_63 {dimension_numbers = #tpu.dot_dimension_numbers<[1], [0], [0], [1], [0, 0, 1, 1], [], []>} : vector<128x32xf32>, vector<32x32xf32>, vector<128x32xf32> -> vector<128x32xf32>
    %164 = vector.broadcast %4 : vector<1x32xf32> to vector<128x32xf32>
    %165 = arith.addf %163, %164 : vector<128x32xf32>
    %cst_64 = arith.constant 0.000000e+00 : f32
    %166 = vector.broadcast %cst_64 : f32 to vector<128x32xf32>
    %167 = arith.maximumf %165, %166 : vector<128x32xf32>
    %cst_65 = arith.constant dense<0.000000e+00> : vector<128x1xf32>
    %168 = tpu.matmul %167, %3, %cst_65 {dimension_numbers = #tpu.dot_dimension_numbers<[1], [0], [0], [1], [0, 0, 1, 1], [], []>} : vector<128x32xf32>, vector<32x1xf32>, vector<128x1xf32> -> vector<128x1xf32>
    %169 = arith.maximumf %145, %168 : vector<128x1xf32>
    %170 = arith.subf %145, %169 : vector<128x1xf32>
    %171 = math.exp %170 : vector<128x1xf32>
    %172 = arith.subf %168, %169 : vector<128x1xf32>
    %173 = math.exp %172 : vector<128x1xf32>
    %174 = arith.mulf %171, %151 : vector<128x1xf32>
    %175 = arith.addf %174, %173 : vector<128x1xf32>
    %176 = vector.broadcast %171 : vector<128x1xf32> to vector<128x32xf32>
    %177 = arith.mulf %176, %156 : vector<128x32xf32>
    %178 = vector.broadcast %173 : vector<128x1xf32> to vector<128x32xf32>
    %179 = arith.mulf %178, %158 : vector<128x32xf32>
    %180 = arith.addf %177, %179 : vector<128x32xf32>
    %c7 = arith.constant 7 : index
    %c0_66 = arith.constant 0 : index
    %c0_67 = arith.constant 0 : index
    %181 = vector.load %arg1[%c7, %c0_66, %c0_67] : memref<8x128x32xf32, #tpu.memory_space<vmem>>, vector<1x128x32xf32>
    %182 = vector.shape_cast %181 : vector<1x128x32xf32> to vector<128x32xf32>
    %cst_68 = arith.constant dense<0.000000e+00> : vector<128x32xf32>
    %183 = tpu.matmul %182, %1, %cst_68 {dimension_numbers = #tpu.dot_dimension_numbers<[1], [0], [0], [1], [0, 0, 1, 1], [], []>} : vector<128x32xf32>, vector<32x32xf32>, vector<128x32xf32> -> vector<128x32xf32>
    %184 = arith.addf %183, %9 : vector<128x32xf32>
    %cst_69 = arith.constant 0.000000e+00 : f32
    %185 = vector.broadcast %cst_69 : f32 to vector<128x32xf32>
    %186 = arith.maximumf %184, %185 : vector<128x32xf32>
    %cst_70 = arith.constant dense<0.000000e+00> : vector<128x32xf32>
    %187 = tpu.matmul %186, %2, %cst_70 {dimension_numbers = #tpu.dot_dimension_numbers<[1], [0], [0], [1], [0, 0, 1, 1], [], []>} : vector<128x32xf32>, vector<32x32xf32>, vector<128x32xf32> -> vector<128x32xf32>
    %188 = vector.broadcast %4 : vector<1x32xf32> to vector<128x32xf32>
    %189 = arith.addf %187, %188 : vector<128x32xf32>
    %cst_71 = arith.constant 0.000000e+00 : f32
    %190 = vector.broadcast %cst_71 : f32 to vector<128x32xf32>
    %191 = arith.maximumf %189, %190 : vector<128x32xf32>
    %cst_72 = arith.constant dense<0.000000e+00> : vector<128x1xf32>
    %192 = tpu.matmul %191, %3, %cst_72 {dimension_numbers = #tpu.dot_dimension_numbers<[1], [0], [0], [1], [0, 0, 1, 1], [], []>} : vector<128x32xf32>, vector<32x1xf32>, vector<128x1xf32> -> vector<128x1xf32>
    %193 = arith.maximumf %169, %192 : vector<128x1xf32>
    %194 = arith.subf %169, %193 : vector<128x1xf32>
    %195 = math.exp %194 : vector<128x1xf32>
    %196 = arith.subf %192, %193 : vector<128x1xf32>
    %197 = math.exp %196 : vector<128x1xf32>
    %198 = arith.mulf %195, %175 : vector<128x1xf32>
    %199 = arith.addf %198, %197 : vector<128x1xf32>
    %200 = vector.broadcast %195 : vector<128x1xf32> to vector<128x32xf32>
    %201 = arith.mulf %200, %180 : vector<128x32xf32>
    %202 = vector.broadcast %197 : vector<128x1xf32> to vector<128x32xf32>
    %203 = arith.mulf %202, %182 : vector<128x32xf32>
    %204 = arith.addf %201, %203 : vector<128x32xf32>
    %205 = tpu.reciprocal %199 : vector<128x1xf32> -> vector<128x1xf32>
    %206 = vector.broadcast %205 : vector<128x1xf32> to vector<128x32xf32>
    %207 = arith.mulf %204, %206 : vector<128x32xf32>
    %c0_73 = arith.constant 0 : index
    %c0_74 = arith.constant 0 : index
    %208 = vector.load %arg9[%c0_73, %c0_74] : memref<128x32xf32, #tpu.memory_space<vmem>>, vector<128x32xf32>
    tpu.vector_store %arg9[%c0_73, %c0_74], %207 {strides = array<i32>} : memref<128x32xf32, #tpu.memory_space<vmem>>, vector<128x32xf32>,
    return
  }
  func.func @transform_0(%arg0: i32) -> (i32, i32, i32) {
    %c0_i32 = arith.constant 0 : i32
    %c0_i32_0 = arith.constant 0 : i32
    %c0_i32_1 = arith.constant 0 : i32
    return %c0_i32, %arg0, %c0_i32_0 : i32, i32, i32
  }
  func.func @transform_1(%arg0: i32) -> (i32, i32) {
    %c0_i32 = arith.constant 0 : i32
    %c0_i32_0 = arith.constant 0 : i32
    return %arg0, %c0_i32 : i32, i32
  }
  func.func @transform_2(%arg0: i32) -> (i32, i32) {
    %c0_i32 = arith.constant 0 : i32
    %c0_i32_0 = arith.constant 0 : i32
    %c0_i32_1 = arith.constant 0 : i32
    return %c0_i32, %c0_i32_0 : i32, i32
  }
  func.func @transform_3(%arg0: i32) -> (i32, i32) {
    %c0_i32 = arith.constant 0 : i32
    %c0_i32_0 = arith.constant 0 : i32
    %c0_i32_1 = arith.constant 0 : i32
    return %c0_i32, %c0_i32_0 : i32, i32
  }
  func.func @transform_4(%arg0: i32) -> (i32, i32) {
    %c0_i32 = arith.constant 0 : i32
    %c0_i32_0 = arith.constant 0 : i32
    %c0_i32_1 = arith.constant 0 : i32
    return %c0_i32, %c0_i32_0 : i32, i32
  }
  func.func @transform_5(%arg0: i32) -> (i32, i32) {
    %c0_i32 = arith.constant 0 : i32
    %c0_i32_0 = arith.constant 0 : i32
    %c0_i32_1 = arith.constant 0 : i32
    return %c0_i32, %c0_i32_0 : i32, i32
  }
  func.func @transform_6(%arg0: i32) -> (i32, i32) {
    %c0_i32 = arith.constant 0 : i32
    %c0_i32_0 = arith.constant 0 : i32
    %c0_i32_1 = arith.constant 0 : i32
    return %c0_i32, %c0_i32_0 : i32, i32
  }
  func.func @transform_7(%arg0: i32) -> (i32, i32) {
    %c0_i32 = arith.constant 0 : i32
    %c0_i32_0 = arith.constant 0 : i32
    %c0_i32_1 = arith.constant 0 : i32
    return %c0_i32, %c0_i32_0 : i32, i32
  }
  func.func @transform_8(%arg0: i32) -> (i32, i32) {
    %c0_i32 = arith.constant 0 : i32
    %c0_i32_0 = arith.constant 0 : i32
    return %arg0, %c0_i32 : i32, i32
  }
}

</mosaic_0001>

<llo_original>
// kernel: tpu_custom_call.1
$region0: #{tpu_custom_call.1}
  #allocation0 [shape = 'u32[]', space=smem, size = 0x4, offset = 0x4, fixed_abs, tag = 'smem constant byte address 0x4 - core index']
  #allocation1 [shape = 'u32[144,128]{1,0:T(1,128)}', space=vmem, size = 0x12000, scoped, tag = 'internal scratch']
  %s0 = inlined_call_operand.vmem [shape: f32[8,256,32], index: 0, kind: input, shape index: {}]
  %s1 = inlined_call_operand.vmem [shape: f32[256,32], index: 1, kind: input, shape index: {}]
  %s2 = inlined_call_operand.vmem [shape: f32[32,32], index: 2, kind: input, shape index: {}]
  %s3 = inlined_call_operand.vmem [shape: f32[32,32], index: 3, kind: input, shape index: {}]
  %s4 = inlined_call_operand.vmem [shape: f32[1,32], index: 4, kind: input, shape index: {}]
  %s5 = inlined_call_operand.vmem [shape: f32[32,32], index: 5, kind: input, shape index: {}]
  %s6 = inlined_call_operand.vmem [shape: f32[1,32], index: 6, kind: input, shape index: {}]
  %s7 = inlined_call_operand.vmem [shape: f32[32,1], index: 7, kind: input, shape index: {}]
  %s8 = inlined_call_operand.vmem [shape: f32[256,32], index: 8, kind: output, shape index: {}]
  %s9 = sld [smem:[#allocation0]]
  $region103: #{tpu_custom_call.1} parent=0
    _
  %s11 = ssub.s32 1, %s9
  %s12 = scalar_select 0, %s11, %s9
  $region1: #{tpu_custom_call.1} parent=0
    #allocation2 [shape = 'u8[1048576]{0}', space=vmem, size = 0x100000, scoped, tag = 'input window, operand 0']
    loop: start=0, step=1, limit=4
    $region2: #{tpu_custom_call.1} parent=1 // loop_pre_header
      _
    $region3: #{tpu_custom_call.1} parent=1 // loop_header
      %s14 = sphi 0, %s18
      %p15 = scmp.ge.s32.totalorder %s14, 4
      %s24 = sphi 0, %s26
      %s27 = sphi 0, %s24
      %s28 = sphi 0, %s27
      %s44 = sphi 0, %s28
      %s50 = sphi 0, %s52
      %s53 = sphi 0, %s50
      %s54 = sphi 0, %s53
      %s70 = sphi 0, %s54
      %s74 = sphi 0, %s74
      %s76 = sphi 0, %s74
      %s77 = sphi 0, %s76
      %s91 = sphi 0, %s77
      %s95 = sphi 0, %s95
      %s97 = sphi 0, %s95
      %s98 = sphi 0, %s97
      %s112 = sphi 0, %s98
      %s116 = sphi 0, %s116
      %s118 = sphi 0, %s116
      %s119 = sphi 0, %s118
      %s133 = sphi 0, %s119
      %s137 = sphi 0, %s137
      %s139 = sphi 0, %s137
      %s140 = sphi 0, %s139
      %s154 = sphi 0, %s140
      %s158 = sphi 0, %s158
      %s160 = sphi 0, %s158
      %s161 = sphi 0, %s160
      %s175 = sphi 0, %s161
      %s179 = sphi 0, %s179
      %s181 = sphi 0, %s179
      %s182 = sphi 0, %s181
      %s196 = sphi 0, %s182
      %s202 = sphi 0, %s204
      %s205 = sphi 0, %s202
      %s206 = sphi 0, %s205
      %s222 = sphi 0, %s206
    $region4: #{tpu_custom_call.1} parent=1 // loop_header_branch
      %17 = sbr.rel (%p15) target = $region8
    $region5: #{tpu_custom_call.1} parent=1 // loop_body
      %s19 = ssub.s32 %s14, 1
      %s20 = ssub.s32 %s14, 2
      %s21 = sadd.s32 %s14, 1
      %s22 = ssub.s32 %s14, %s21
      %p23 = scmp.eq.s32.totalorder %s22, 0
      %s25 = sadd.s32 %s24, 1
      %s26 = scalar_select %p23, %s24, %s25
      %p29 = pneg %p23
      %p30 = scmp.eq.s32.totalorder %s14, 1
      %p31 = por %p29, %p30
      %p32 = scmp.ne.s32.totalorder %s24, %s27
      %p33 = scmp.eq.s32.totalorder %s14, 0
      %p34 = por %p32, %p33
      %p35 = scmp.ne.s32.totalorder %s24, %s27
      %p36 = scmp.eq.s32.totalorder %s19, 1
      %p37 = por %p35, %p36
      %p38 = scmp.ne.s32.totalorder %s27, %s28
      %p39 = scmp.eq.s32.totalorder %s19, 0
      %p40 = por %p38, %p39
      %p41 = scmp.ne.s32.totalorder %s27, %s28
      %p42 = scmp.eq.s32.totalorder %s20, 1
      %p43 = por %p41, %p42
      %p45 = scmp.ne.s32.totalorder %s28, %s44
      %p46 = scmp.eq.s32.totalorder %s20, 0
      %p47 = por %p45, %p46
      %s48 = ssub.s32 %s14, %s21
      %p49 = scmp.eq.s32.totalorder %s48, 0
      %s51 = sadd.s32 %s50, 1
      %s52 = scalar_select %p49, %s50, %s51
      %p55 = pneg %p49
      %p56 = scmp.eq.s32.totalorder %s14, 1
      %p57 = por %p55, %p56
      %p58 = scmp.ne.s32.totalorder %s50, %s53
      %p59 = scmp.eq.s32.totalorder %s14, 0
      %p60 = por %p58, %p59
      %p61 = scmp.ne.s32.totalorder %s50, %s53
      %p62 = scmp.eq.s32.totalorder %s19, 1
      %p63 = por %p61, %p62
      %p64 = scmp.ne.s32.totalorder %s53, %s54
      %p65 = scmp.eq.s32.totalorder %s19, 0
      %p66 = por %p64, %p65
      %p67 = scmp.ne.s32.totalorder %s53, %s54
      %p68 = scmp.eq.s32.totalorder %s20, 1
      %p69 = por %p67, %p68
      %p71 = scmp.ne.s32.totalorder %s54, %s70
      %p72 = scmp.eq.s32.totalorder %s20, 0
      %p73 = por %p71, %p72
      %s75 = sadd.s32 %s74, 1
      %p78 = scmp.eq.s32.totalorder %s14, 1
      %p79 = scmp.ne.s32.totalorder %s74, %s76
      %p80 = scmp.eq.s32.totalorder %s14, 0
      %p81 = por %p79, %p80
      %p82 = scmp.ne.s32.totalorder %s74, %s76
      %p83 = scmp.eq.s32.totalorder %s19, 1
      %p84 = por %p82, %p83
      %p85 = scmp.ne.s32.totalorder %s76, %s77
      %p86 = scmp.eq.s32.totalorder %s19, 0
      %p87 = por %p85, %p86
      %p88 = scmp.ne.s32.totalorder %s76, %s77
      %p89 = scmp.eq.s32.totalorder %s20, 1
      %p90 = por %p88, %p89
      %p92 = scmp.ne.s32.totalorder %s77, %s91
      %p93 = scmp.eq.s32.totalorder %s20, 0
      %p94 = por %p92, %p93
      %s96 = sadd.s32 %s95, 1
      %p99 = scmp.eq.s32.totalorder %s14, 1
      %p100 = scmp.ne.s32.totalorder %s95, %s97
      %p101 = scmp.eq.s32.totalorder %s14, 0
      %p102 = por %p100, %p101
      %p103 = scmp.ne.s32.totalorder %s95, %s97
      %p104 = scmp.eq.s32.totalorder %s19, 1
      %p105 = por %p103, %p104
      %p106 = scmp.ne.s32.totalorder %s97, %s98
      %p107 = scmp.eq.s32.totalorder %s19, 0
      %p108 = por %p106, %p107
      %p109 = scmp.ne.s32.totalorder %s97, %s98
      %p110 = scmp.eq.s32.totalorder %s20, 1
      %p111 = por %p109, %p110
      %p113 = scmp.ne.s32.totalorder %s98, %s112
      %p114 = scmp.eq.s32.totalorder %s20, 0
      %p115 = por %p113, %p114
      %s117 = sadd.s32 %s116, 1
      %p120 = scmp.eq.s32.totalorder %s14, 1
      %p121 = scmp.ne.s32.totalorder %s116, %s118
      %p122 = scmp.eq.s32.totalorder %s14, 0
      %p123 = por %p121, %p122
      %p124 = scmp.ne.s32.totalorder %s116, %s118
      %p125 = scmp.eq.s32.totalorder %s19, 1
      %p126 = por %p124, %p125
      %p127 = scmp.ne.s32.totalorder %s118, %s119
      %p128 = scmp.eq.s32.totalorder %s19, 0
      %p129 = por %p127, %p128
      %p130 = scmp.ne.s32.totalorder %s118, %s119
      %p131 = scmp.eq.s32.totalorder %s20, 1
      %p132 = por %p130, %p131
      %p134 = scmp.ne.s32.totalorder %s119, %s133
      %p135 = scmp.eq.s32.totalorder %s20, 0
      %p136 = por %p134, %p135
      %s138 = sadd.s32 %s137, 1
      %p141 = scmp.eq.s32.totalorder %s14, 1
      %p142 = scmp.ne.s32.totalorder %s137, %s139
      %p143 = scmp.eq.s32.totalorder %s14, 0
      %p144 = por %p142, %p143
      %p145 = scmp.ne.s32.totalorder %s137, %s139
      %p146 = scmp.eq.s32.totalorder %s19, 1
      %p147 = por %p145, %p146
      %p148 = scmp.ne.s32.totalorder %s139, %s140
      %p149 = scmp.eq.s32.totalorder %s19, 0
      %p150 = por %p148, %p149
      %p151 = scmp.ne.s32.totalorder %s139, %s140
      %p152 = scmp.eq.s32.totalorder %s20, 1
      %p153 = por %p151, %p152
      %p155 = scmp.ne.s32.totalorder %s140, %s154
      %p156 = scmp.eq.s32.totalorder %s20, 0
      %p157 = por %p155, %p156
      %s159 = sadd.s32 %s158, 1
      %p162 = scmp.eq.s32.totalorder %s14, 1
      %p163 = scmp.ne.s32.totalorder %s158, %s160
      %p164 = scmp.eq.s32.totalorder %s14, 0
      %p165 = por %p163, %p164
      %p166 = scmp.ne.s32.totalorder %s158, %s160
      %p167 = scmp.eq.s32.totalorder %s19, 1
      %p168 = por %p166, %p167
      %p169 = scmp.ne.s32.totalorder %s160, %s161
      %p170 = scmp.eq.s32.totalorder %s19, 0
      %p171 = por %p169, %p170
      %p172 = scmp.ne.s32.totalorder %s160, %s161
      %p173 = scmp.eq.s32.totalorder %s20, 1
      %p174 = por %p172, %p173
      %p176 = scmp.ne.s32.totalorder %s161, %s175
      %p177 = scmp.eq.s32.totalorder %s20, 0
      %p178 = por %p176, %p177
      %s180 = sadd.s32 %s179, 1
      %p183 = scmp.eq.s32.totalorder %s14, 1
      %p184 = scmp.ne.s32.totalorder %s179, %s181
      %p185 = scmp.eq.s32.totalorder %s14, 0
      %p186 = por %p184, %p185
      %p187 = scmp.ne.s32.totalorder %s179, %s181
      %p188 = scmp.eq.s32.totalorder %s19, 1
      %p189 = por %p187, %p188
      %p190 = scmp.ne.s32.totalorder %s181, %s182
      %p191 = scmp.eq.s32.totalorder %s19, 0
      %p192 = por %p190, %p191
      %p193 = scmp.ne.s32.totalorder %s181, %s182
      %p194 = scmp.eq.s32.totalorder %s20, 1
      %p195 = por %p193, %p194
      %p197 = scmp.ne.s32.totalorder %s182, %s196
      %p198 = scmp.eq.s32.totalorder %s20, 0
      %p199 = por %p197, %p198
      %s200 = ssub.s32 %s14, %s21
      %p201 = scmp.eq.s32.totalorder %s200, 0
      %s203 = sadd.s32 %s202, 1
      %s204 = scalar_select %p201, %s202, %s203
      %p207 = pneg %p201
      %p208 = scmp.eq.s32.totalorder %s14, 1
      %p209 = por %p207, %p208
      %p210 = scmp.ne.s32.totalorder %s202, %s205
      %p211 = scmp.eq.s32.totalorder %s14, 0
      %p212 = por %p210, %p211
      %p213 = scmp.ne.s32.totalorder %s202, %s205
      %p214 = scmp.eq.s32.totalorder %s19, 1
      %p215 = por %p213, %p214
      %p216 = scmp.ne.s32.totalorder %s205, %s206
      %p217 = scmp.eq.s32.totalorder %s19, 0
      %p218 = por %p216, %p217
      %p219 = scmp.ne.s32.totalorder %s205, %s206
      %p220 = scmp.eq.s32.totalorder %s20, 1
      %p221 = por %p219, %p220
      %p223 = scmp.ne.s32.totalorder %s206, %s222
      %p224 = scmp.eq.s32.totalorder %s20, 0
      %p225 = por %p223, %p224
      %p226 = scmp.le.s32.totalorder 1, %s14
      %p227 = scmp.lt.s32.totalorder %s14, 3
      %p228 = pnand %p226, %p227
      %p229 = pneg %p228
      // Predicated region
      $region9: #{tpu_custom_call.1} parent=5 // pred_check
        _
      $region10: #{tpu_custom_call.1} parent=5 // pred_check_branch
        %231 = sbr.rel (%p228) target = $region12
      $region11: #{tpu_custom_call.1} parent=5 // pred_region
        %s232 = ssub.s32 %s14, 1
        // Predicated region
        $region13: #{tpu_custom_call.1} parent=11 // pred_check
          %p233 = pneg %p87
        $region14: #{tpu_custom_call.1} parent=11 // pred_check_branch
          %235 = sbr.rel (%p233) target = $region16
        $region15: #{tpu_custom_call.1} parent=11 // pred_region
          _
        $region16: #{tpu_custom_call.1} parent=11 // pred_fallthru
          _
        // Predicated region
        $region17: #{tpu_custom_call.1} parent=11 // pred_check
          %p236 = pneg %p108
        $region18: #{tpu_custom_call.1} parent=11 // pred_check_branch
          %238 = sbr.rel (%p236) target = $region20
        $region19: #{tpu_custom_call.1} parent=11 // pred_region
          _
        $region20: #{tpu_custom_call.1} parent=11 // pred_fallthru
          _
        // Predicated region
        $region21: #{tpu_custom_call.1} parent=11 // pred_check
          %p239 = pneg %p129
        $region22: #{tpu_custom_call.1} parent=11 // pred_check_branch
          %241 = sbr.rel (%p239) target = $region24
        $region23: #{tpu_custom_call.1} parent=11 // pred_region
          _
        $region24: #{tpu_custom_call.1} parent=11 // pred_fallthru
          _
        // Predicated region
        $region25: #{tpu_custom_call.1} parent=11 // pred_check
          %p242 = pneg %p150
        $region26: #{tpu_custom_call.1} parent=11 // pred_check_branch
          %244 = sbr.rel (%p242) target = $region28
        $region27: #{tpu_custom_call.1} parent=11 // pred_region
          _
        $region28: #{tpu_custom_call.1} parent=11 // pred_fallthru
          _
        // Predicated region
        $region29: #{tpu_custom_call.1} parent=11 // pred_check
          %p245 = pneg %p171
        $region30: #{tpu_custom_call.1} parent=11 // pred_check_branch
          %247 = sbr.rel (%p245) target = $region32
        $region31: #{tpu_custom_call.1} parent=11 // pred_region
          _
        $region32: #{tpu_custom_call.1} parent=11 // pred_fallthru
          _
        // Predicated region
        $region33: #{tpu_custom_call.1} parent=11 // pred_check
          %p248 = pneg %p192
        $region34: #{tpu_custom_call.1} parent=11 // pred_check_branch
          %250 = sbr.rel (%p248) target = $region36
        $region35: #{tpu_custom_call.1} parent=11 // pred_region
          _
        $region36: #{tpu_custom_call.1} parent=11 // pred_fallthru
          _
      $region12: #{tpu_custom_call.1} parent=5 // pred_fallthru
        _
      %p251 = scmp.lt.s32.totalorder %s14, 2
      // Predicated region
      $region37: #{tpu_custom_call.1} parent=5 // pred_check
        %p252 = pneg %p251
      $region38: #{tpu_custom_call.1} parent=5 // pred_check_branch
        %254 = sbr.rel (%p252) target = $region40
      $region39: #{tpu_custom_call.1} parent=5 // pred_region
        // Predicated region
        $region41: #{tpu_custom_call.1} parent=39 // pred_check
          %p255 = pneg %p34
        $region42: #{tpu_custom_call.1} parent=39 // pred_check_branch
          %257 = sbr.rel (%p255) target = $region44
        $region43: #{tpu_custom_call.1} parent=39 // pred_region
          %s258 = sand.u32 %s24, 1
          %s259 = sand.u32 %s24, 1
          %s260 = smul.addr %s259, 1024
          %s261 = scalar_lea.vmem [#allocation2], %s260
          %s262 = smul.u32 16, %s14
          %s263 = smul.addr %s262, 8
          %s264 = scalar_lea.vmem %s0, %s263
          // Predicated region
          $region45: #{tpu_custom_call.1} parent=43 // pred_check
            _
          $region46: #{tpu_custom_call.1} parent=43 // pred_check_branch
            %266 = sbr.rel (0) target = $region48
          $region47: #{tpu_custom_call.1} parent=43 // pred_region
            // Predicated region
            $region49: #{tpu_custom_call.1} parent=47 // pred_check
              _
            $region50: #{tpu_custom_call.1} parent=47 // pred_check_branch
              %268 = sbr.rel (0) target = $region52
            $region51: #{tpu_custom_call.1} parent=47 // pred_region
              // Predicated region
              $region64: #{tpu_custom_call.1} parent=51 // pred_check
                _
              $region65: #{tpu_custom_call.1} parent=51 // pred_check_branch
                %537 = sbr.rel (0) target = $region67
              $region66: #{tpu_custom_call.1} parent=51 // pred_region
                loop: start=0, step=1, limit=1
                $region68: #{tpu_custom_call.1} parent=66 // loop_pre_header
                  _
                $region69: #{tpu_custom_call.1} parent=66 // loop_header
                  %s539 = sphi 0, %s543
                  %p540 = scmp.ge.s32.totalorder %s539, 1
                  %s544 = sphi %s264, %s264
                  %s545 = sphi %s261, %s261
                $region70: #{tpu_custom_call.1} parent=66 // loop_header_branch
                  %542 = sbr.rel (%p540) target = $region74
                $region71: #{tpu_custom_call.1} parent=66 // loop_body
                  %v546 = vld [vmem:[%s544] sm:$0xff]
                  %547 = vst [vmem:[%s545] sm:$0xff] %v546
                  %v548 = vld [vmem:[%s544 + $0x8] sm:$0xff]
                  %549 = vst [vmem:[%s545 + $0x8] sm:$0xff] %v548
                  %v550 = vld [vmem:[%s544 + $0x10] sm:$0xff]
                  %551 = vst [vmem:[%s545 + $0x10] sm:$0xff] %v550
                  %v552 = vld [vmem:[%s544 + $0x18] sm:$0xff]
                  %553 = vst [vmem:[%s545 + $0x18] sm:$0xff] %v552
                  %v554 = vld [vmem:[%s544 + $0x20] sm:$0xff]
                  %555 = vst [vmem:[%s545 + $0x20] sm:$0xff] %v554
                  %v556 = vld [vmem:[%s544 + $0x28] sm:$0xff]
                  %557 = vst [vmem:[%s545 + $0x28] sm:$0xff] %v556
                  %v558 = vld [vmem:[%s544 + $0x30] sm:$0xff]
                  %559 = vst [vmem:[%s545 + $0x30] sm:$0xff] %v558
                  %v560 = vld [vmem:[%s544 + $0x38] sm:$0xff]
                  %561 = vst [vmem:[%s545 + $0x38] sm:$0xff] %v560
                  %v562 = vld [vmem:[%s544 + $0x40] sm:$0xff]
                  %563 = vst [vmem:[%s545 + $0x40] sm:$0xff] %v562
                  %v564 = vld [vmem:[%s544 + $0x48] sm:$0xff]
                  %565 = vst [vmem:[%s545 + $0x48] sm:$0xff] %v564
                  %v566 = vld [vmem:[%s544 + $0x50] sm:$0xff]
                  %567 = vst [vmem:[%s545 + $0x50] sm:$0xff] %v566
                  %v568 = vld [vmem:[%s544 + $0x58] sm:$0xff]
                  %569 = vst [vmem:[%s545 + $0x58] sm:$0xff] %v568
                  %v570 = vld [vmem:[%s544 + $0x60] sm:$0xff]
                  %571 = vst [vmem:[%s545 + $0x60] sm:$0xff] %v570
                  %v572 = vld [vmem:[%s544 + $0x68] sm:$0xff]
                  %573 = vst [vmem:[%s545 + $0x68] sm:$0xff] %v572
                  %v574 = vld [vmem:[%s544 + $0x70] sm:$0xff]
                  %575 = vst [vmem:[%s545 + $0x70] sm:$0xff] %v574
                  %v576 = vld [vmem:[%s544 + $0x78] sm:$0xff]
                  %577 = vst [vmem:[%s545 + $0x78] sm:$0xff] %v576
                  %v578 = vld [vmem:[%s544 + $0x100] sm:$0xff]
                  %579 = vst [vmem:[%s545 + $0x80] sm:$0xff] %v578
                  %v580 = vld [vmem:[%s544 + $0x108] sm:$0xff]
                  %581 = vst [vmem:[%s545 + $0x88] sm:$0xff] %v580
                  %v582 = vld [vmem:[%s544 + $0x110] sm:$0xff]
                  %583 = vst [vmem:[%s545 + $0x90] sm:$0xff] %v582
                  %v584 = vld [vmem:[%s544 + $0x118] sm:$0xff]
                  %585 = vst [vmem:[%s545 + $0x98] sm:$0xff] %v584
                  %v586 = vld [vmem:[%s544 + $0x120] sm:$0xff]
                  %587 = vst [vmem:[%s545 + $0xa0] sm:$0xff] %v586
                  %v588 = vld [vmem:[%s544 + $0x128] sm:$0xff]
                  %589 = vst [vmem:[%s545 + $0xa8] sm:$0xff] %v588
                  %v590 = vld [vmem:[%s544 + $0x130] sm:$0xff]
                  %591 = vst [vmem:[%s545 + $0xb0] sm:$0xff] %v590
                  %v592 = vld [vmem:[%s544 + $0x138] sm:$0xff]
                  %593 = vst [vmem:[%s545 + $0xb8] sm:$0xff] %v592
                  %v594 = vld [vmem:[%s544 + $0x140] sm:$0xff]
                  %595 = vst [vmem:[%s545 + $0xc0] sm:$0xff] %v594
                  %v596 = vld [vmem:[%s544 + $0x148] sm:$0xff]
                  %597 = vst [vmem:[%s545 + $0xc8] sm:$0xff] %v596
                  %v598 = vld [vmem:[%s544 + $0x150] sm:$0xff]
                  %599 = vst [vmem:[%s545 + $0xd0] sm:$0xff] %v598
                  %v600 = vld [vmem:[%s544 + $0x158] sm:$0xff]
                  %601 = vst [vmem:[%s545 + $0xd8] sm:$0xff] %v600
                  %v602 = vld [vmem:[%s544 + $0x160] sm:$0xff]
                  %603 = vst [vmem:[%s545 + $0xe0] sm:$0xff] %v602
                  %v604 = vld [vmem:[%s544 + $0x168] sm:$0xff]
                  %605 = vst [vmem:[%s545 + $0xe8] sm:$0xff] %v604
                  %v606 = vld [vmem:[%s544 + $0x170] sm:$0xff]
                  %607 = vst [vmem:[%s545 + $0xf0] sm:$0xff] %v606
                  %v608 = vld [vmem:[%s544 + $0x178] sm:$0xff]
                  %609 = vst [vmem:[%s545 + $0xf8] sm:$0xff] %v608
                  %v610 = vld [vmem:[%s544 + $0x200] sm:$0xff]
                  %611 = vst [vmem:[%s545 + $0x100] sm:$0xff] %v610
                  %v612 = vld [vmem:[%s544 + $0x208] sm:$0xff]
                  %613 = vst [vmem:[%s545 + $0x108] sm:$0xff] %v612
                  %v614 = vld [vmem:[%s544 + $0x210] sm:$0xff]
                  %615 = vst [vmem:[%s545 + $0x110] sm:$0xff] %v614
                  %v616 = vld [vmem:[%s544 + $0x218] sm:$0xff]
                  %617 = vst [vmem:[%s545 + $0x118] sm:$0xff] %v616
                  %v618 = vld [vmem:[%s544 + $0x220] sm:$0xff]
                  %619 = vst [vmem:[%s545 + $0x120] sm:$0xff] %v618
                  %v620 = vld [vmem:[%s544 + $0x228] sm:$0xff]
                  %621 = vst [vmem:[%s545 + $0x128] sm:$0xff] %v620
                  %v622 = vld [vmem:[%s544 + $0x230] sm:$0xff]
                  %623 = vst [vmem:[%s545 + $0x130] sm:$0xff] %v622
                  %v624 = vld [vmem:[%s544 + $0x238] sm:$0xff]
                  %625 = vst [vmem:[%s545 + $0x138] sm:$0xff] %v624
                  %v626 = vld [vmem:[%s544 + $0x240] sm:$0xff]
                  %627 = vst [vmem:[%s545 + $0x140] sm:$0xff] %v626
                  %v628 = vld [vmem:[%s544 + $0x248] sm:$0xff]
                  %629 = vst [vmem:[%s545 + $0x148] sm:$0xff] %v628
                  %v630 = vld [vmem:[%s544 + $0x250] sm:$0xff]
                  %631 = vst [vmem:[%s545 + $0x150] sm:$0xff] %v630
                  %v632 = vld [vmem:[%s544 + $0x258] sm:$0xff]
                  %633 = vst [vmem:[%s545 + $0x158] sm:$0xff] %v632
                  %v634 = vld [vmem:[%s544 + $0x260] sm:$0xff]
                  %635 = vst [vmem:[%s545 + $0x160] sm:$0xff] %v634
                  %v636 = vld [vmem:[%s544 + $0x268] sm:$0xff]
                  %637 = vst [vmem:[%s545 + $0x168] sm:$0xff] %v636
                  %v638 = vld [vmem:[%s544 + $0x270] sm:$0xff]
                  %639 = vst [vmem:[%s545 + $0x170] sm:$0xff] %v638
                  %v640 = vld [vmem:[%s544 + $0x278] sm:$0xff]
                  %641 = vst [vmem:[%s545 + $0x178] sm:$0xff] %v640
                  %v642 = vld [vmem:[%s544 + $0x300] sm:$0xff]
                  %643 = vst [vmem:[%s545 + $0x180] sm:$0xff] %v642
                  %v644 = vld [vmem:[%s544 + $0x308] sm:$0xff]
                  %645 = vst [vmem:[%s545 + $0x188] sm:$0xff] %v644
                  %v646 = vld [vmem:[%s544 + $0x310] sm:$0xff]
                  %647 = vst [vmem:[%s545 + $0x190] sm:$0xff] %v646
                  %v648 = vld [vmem:[%s544 + $0x318] sm:$0xff]
                  %649 = vst [vmem:[%s545 + $0x198] sm:$0xff] %v648
                  %v650 = vld [vmem:[%s544 + $0x320] sm:$0xff]
                  %651 = vst [vmem:[%s545 + $0x1a0] sm:$0xff] %v650
                  %v652 = vld [vmem:[%s544 + $0x328] sm:$0xff]
                  %653 = vst [vmem:[%s545 + $0x1a8] sm:$0xff] %v652
                  %v654 = vld [vmem:[%s544 + $0x330] sm:$0xff]
                  %655 = vst [vmem:[%s545 + $0x1b0] sm:$0xff] %v654
                  %v656 = vld [vmem:[%s544 + $0x338] sm:$0xff]
                  %657 = vst [vmem:[%s545 + $0x1b8] sm:$0xff] %v656
                  %v658 = vld [vmem:[%s544 + $0x340] sm:$0xff]
                  %659 = vst [vmem:[%s545 + $0x1c0] sm:$0xff] %v658
                  %v660 = vld [vmem:[%s544 + $0x348] sm:$0xff]
                  %661 = vst [vmem:[%s545 + $0x1c8] sm:$0xff] %v660
                  %v662 = vld [vmem:[%s544 + $0x350] sm:$0xff]
                  %663 = vst [vmem:[%s545 + $0x1d0] sm:$0xff] %v662
                  %v664 = vld [vmem:[%s544 + $0x358] sm:$0xff]
                  %665 = vst [vmem:[%s545 + $0x1d8] sm:$0xff] %v664
                  %v666 = vld [vmem:[%s544 + $0x360] sm:$0xff]
                  %667 = vst [vmem:[%s545 + $0x1e0] sm:$0xff] %v666
                  %v668 = vld [vmem:[%s544 + $0x368] sm:$0xff]
                  %669 = vst [vmem:[%s545 + $0x1e8] sm:$0xff] %v668
                  %v670 = vld [vmem:[%s544 + $0x370] sm:$0xff]
                  %671 = vst [vmem:[%s545 + $0x1f0] sm:$0xff] %v670
                  %v672 = vld [vmem:[%s544 + $0x378] sm:$0xff]
                  %673 = vst [vmem:[%s545 + $0x1f8] sm:$0xff] %v672
                  %v674 = vld [vmem:[%s544 + $0x400] sm:$0xff]
                  %675 = vst [vmem:[%s545 + $0x200] sm:$0xff] %v674
                  %v676 = vld [vmem:[%s544 + $0x408] sm:$0xff]
                  %677 = vst [vmem:[%s545 + $0x208] sm:$0xff] %v676
                  %v678 = vld [vmem:[%s544 + $0x410] sm:$0xff]
                  %679 = vst [vmem:[%s545 + $0x210] sm:$0xff] %v678
                  %v680 = vld [vmem:[%s544 + $0x418] sm:$0xff]
                  %681 = vst [vmem:[%s545 + $0x218] sm:$0xff] %v680
                  %v682 = vld [vmem:[%s544 + $0x420] sm:$0xff]
                  %683 = vst [vmem:[%s545 + $0x220] sm:$0xff] %v682
                  %v684 = vld [vmem:[%s544 + $0x428] sm:$0xff]
                  %685 = vst [vmem:[%s545 + $0x228] sm:$0xff] %v684
                  %v686 = vld [vmem:[%s544 + $0x430] sm:$0xff]
                  %687 = vst [vmem:[%s545 + $0x230] sm:$0xff] %v686
                  %v688 = vld [vmem:[%s544 + $0x438] sm:$0xff]
                  %689 = vst [vmem:[%s545 + $0x238] sm:$0xff] %v688
                  %v690 = vld [vmem:[%s544 + $0x440] sm:$0xff]
                  %691 = vst [vmem:[%s545 + $0x240] sm:$0xff] %v690
                  %v692 = vld [vmem:[%s544 + $0x448] sm:$0xff]
                  %693 = vst [vmem:[%s545 + $0x248] sm:$0xff] %v692
                  %v694 = vld [vmem:[%s544 + $0x450] sm:$0xff]
                  %695 = vst [vmem:[%s545 + $0x250] sm:$0xff] %v694
                  %v696 = vld [vmem:[%s544 + $0x458] sm:$0xff]
                  %697 = vst [vmem:[%s545 + $0x258] sm:$0xff] %v696
                  %v698 = vld [vmem:[%s544 + $0x460] sm:$0xff]
                  %699 = vst [vmem:[%s545 + $0x260] sm:$0xff] %v698
                  %v700 = vld [vmem:[%s544 + $0x468] sm:$0xff]
                  %701 = vst [vmem:[%s545 + $0x268] sm:$0xff] %v700
                  %v702 = vld [vmem:[%s544 + $0x470] sm:$0xff]
                  %703 = vst [vmem:[%s545 + $0x270] sm:$0xff] %v702
                  %v704 = vld [vmem:[%s544 + $0x478] sm:$0xff]
                  %705 = vst [vmem:[%s545 + $0x278] sm:$0xff] %v704
                  %v706 = vld [vmem:[%s544 + $0x500] sm:$0xff]
                  %707 = vst [vmem:[%s545 + $0x280] sm:$0xff] %v706
                  %v708 = vld [vmem:[%s544 + $0x508] sm:$0xff]
                  %709 = vst [vmem:[%s545 + $0x288] sm:$0xff] %v708
                  %v710 = vld [vmem:[%s544 + $0x510] sm:$0xff]
                  %711 = vst [vmem:[%s545 + $0x290] sm:$0xff] %v710
                  %v712 = vld [vmem:[%s544 + $0x518] sm:$0xff]
                  %713 = vst [vmem:[%s545 + $0x298] sm:$0xff] %v712
                  %v714 = vld [vmem:[%s544 + $0x520] sm:$0xff]
                  %715 = vst [vmem:[%s545 + $0x2a0] sm:$0xff] %v714
                  %v716 = vld [vmem:[%s544 + $0x528] sm:$0xff]
                  %717 = vst [vmem:[%s545 + $0x2a8] sm:$0xff] %v716
                  %v718 = vld [vmem:[%s544 + $0x530] sm:$0xff]
                  %719 = vst [vmem:[%s545 + $0x2b0] sm:$0xff] %v718
                  %v720 = vld [vmem:[%s544 + $0x538] sm:$0xff]
                  %721 = vst [vmem:[%s545 + $0x2b8] sm:$0xff] %v720
                  %v722 = vld [vmem:[%s544 + $0x540] sm:$0xff]
                  %723 = vst [vmem:[%s545 + $0x2c0] sm:$0xff] %v722
                  %v724 = vld [vmem:[%s544 + $0x548] sm:$0xff]
                  %725 = vst [vmem:[%s545 + $0x2c8] sm:$0xff] %v724
                  %v726 = vld [vmem:[%s544 + $0x550] sm:$0xff]
                  %727 = vst [vmem:[%s545 + $0x2d0] sm:$0xff] %v726
                  %v728 = vld [vmem:[%s544 + $0x558] sm:$0xff]
                  %729 = vst [vmem:[%s545 + $0x2d8] sm:$0xff] %v728
                  %v730 = vld [vmem:[%s544 + $0x560] sm:$0xff]
                  %731 = vst [vmem:[%s545 + $0x2e0] sm:$0xff] %v730
                  %v732 = vld [vmem:[%s544 + $0x568] sm:$0xff]
                  %733 = vst [vmem:[%s545 + $0x2e8] sm:$0xff] %v732
                  %v734 = vld [vmem:[%s544 + $0x570] sm:$0xff]
                  %735 = vst [vmem:[%s545 + $0x2f0] sm:$0xff] %v734
                  %v736 = vld [vmem:[%s544 + $0x578] sm:$0xff]
                  %737 = vst [vmem:[%s545 + $0x2f8] sm:$0xff] %v736
                  %v738 = vld [vmem:[%s544 + $0x600] sm:$0xff]
                  %739 = vst [vmem:[%s545 + $0x300] sm:$0xff] %v738
                  %v740 = vld [vmem:[%s544 + $0x608] sm:$0xff]
                  %741 = vst [vmem:[%s545 + $0x308] sm:$0xff] %v740
                  %v742 = vld [vmem:[%s544 + $0x610] sm:$0xff]
                  %743 = vst [vmem:[%s545 + $0x310] sm:$0xff] %v742
                  %v744 = vld [vmem:[%s544 + $0x618] sm:$0xff]
                  %745 = vst [vmem:[%s545 + $0x318] sm:$0xff] %v744
                  %v746 = vld [vmem:[%s544 + $0x620] sm:$0xff]
                  %747 = vst [vmem:[%s545 + $0x320] sm:$0xff] %v746
                  %v748 = vld [vmem:[%s544 + $0x628] sm:$0xff]
                  %749 = vst [vmem:[%s545 + $0x328] sm:$0xff] %v748
                  %v750 = vld [vmem:[%s544 + $0x630] sm:$0xff]
                  %751 = vst [vmem:[%s545 + $0x330] sm:$0xff] %v750
                  %v752 = vld [vmem:[%s544 + $0x638] sm:$0xff]
                  %753 = vst [vmem:[%s545 + $0x338] sm:$0xff] %v752
                  %v754 = vld [vmem:[%s544 + $0x640] sm:$0xff]
                  %755 = vst [vmem:[%s545 + $0x340] sm:$0xff] %v754
                  %v756 = vld [vmem:[%s544 + $0x648] sm:$0xff]
                  %757 = vst [vmem:[%s545 + $0x348] sm:$0xff] %v756
                  %v758 = vld [vmem:[%s544 + $0x650] sm:$0xff]
                  %759 = vst [vmem:[%s545 + $0x350] sm:$0xff] %v758
                  %v760 = vld [vmem:[%s544 + $0x658] sm:$0xff]
                  %761 = vst [vmem:[%s545 + $0x358] sm:$0xff] %v760
                  %v762 = vld [vmem:[%s544 + $0x660] sm:$0xff]
                  %763 = vst [vmem:[%s545 + $0x360] sm:$0xff] %v762
                  %v764 = vld [vmem:[%s544 + $0x668] sm:$0xff]
                  %765 = vst [vmem:[%s545 + $0x368] sm:$0xff] %v764
                  %v766 = vld [vmem:[%s544 + $0x670] sm:$0xff]
                  %767 = vst [vmem:[%s545 + $0x370] sm:$0xff] %v766
                  %v768 = vld [vmem:[%s544 + $0x678] sm:$0xff]
                  %769 = vst [vmem:[%s545 + $0x378] sm:$0xff] %v768
                  %v770 = vld [vmem:[%s544 + $0x700] sm:$0xff]
                  %771 = vst [vmem:[%s545 + $0x380] sm:$0xff] %v770
                  %v772 = vld [vmem:[%s544 + $0x708] sm:$0xff]
                  %773 = vst [vmem:[%s545 + $0x388] sm:$0xff] %v772
                  %v774 = vld [vmem:[%s544 + $0x710] sm:$0xff]
                  %775 = vst [vmem:[%s545 + $0x390] sm:$0xff] %v774
                  %v776 = vld [vmem:[%s544 + $0x718] sm:$0xff]
                  %777 = vst [vmem:[%s545 + $0x398] sm:$0xff] %v776
                  %v778 = vld [vmem:[%s544 + $0x720] sm:$0xff]
                  %779 = vst [vmem:[%s545 + $0x3a0] sm:$0xff] %v778
                  %v780 = vld [vmem:[%s544 + $0x728] sm:$0xff]
                  %781 = vst [vmem:[%s545 + $0x3a8] sm:$0xff] %v780
                  %v782 = vld [vmem:[%s544 + $0x730] sm:$0xff]
                  %783 = vst [vmem:[%s545 + $0x3b0] sm:$0xff] %v782
                  %v784 = vld [vmem:[%s544 + $0x738] sm:$0xff]
                  %785 = vst [vmem:[%s545 + $0x3b8] sm:$0xff] %v784
                  %v786 = vld [vmem:[%s544 + $0x740] sm:$0xff]
                  %787 = vst [vmem:[%s545 + $0x3c0] sm:$0xff] %v786
                  %v788 = vld [vmem:[%s544 + $0x748] sm:$0xff]
                  %789 = vst [vmem:[%s545 + $0x3c8] sm:$0xff] %v788
                  %v790 = vld [vmem:[%s544 + $0x750] sm:$0xff]
                  %791 = vst [vmem:[%s545 + $0x3d0] sm:$0xff] %v790
                  %v792 = vld [vmem:[%s544 + $0x758] sm:$0xff]
                  %793 = vst [vmem:[%s545 + $0x3d8] sm:$0xff] %v792
                  %v794 = vld [vmem:[%s544 + $0x760] sm:$0xff]
                  %795 = vst [vmem:[%s545 + $0x3e0] sm:$0xff] %v794
                  %v796 = vld [vmem:[%s544 + $0x768] sm:$0xff]
                  %797 = vst [vmem:[%s545 + $0x3e8] sm:$0xff] %v796
                  %v798 = vld [vmem:[%s544 + $0x770] sm:$0xff]
                  %799 = vst [vmem:[%s545 + $0x3f0] sm:$0xff] %v798
                  %v800 = vld [vmem:[%s544 + $0x778] sm:$0xff]
                  %801 = vst [vmem:[%s545 + $0x3f8] sm:$0xff] %v800
                $region72: #{tpu_custom_call.1} parent=66 // loop_footer
                  %s543 = sadd.s32 1, %s539
                $region73: #{tpu_custom_call.1} parent=66 // loop_footer_branch
                  %538 = sbr.rel target = $region69
                $region74: #{tpu_custom_call.1} parent=66 // loop_exit
                  _
              $region67: #{tpu_custom_call.1} parent=51 // pred_fallthru
                _
              // Predicated region
              $region75: #{tpu_custom_call.1} parent=51 // pred_check
                _
              $region76: #{tpu_custom_call.1} parent=51 // pred_check_branch
                %803 = sbr.rel target = $region78
              $region77: #{tpu_custom_call.1} parent=51 // pred_region
                _
              $region78: #{tpu_custom_call.1} parent=51 // pred_fallthru
                _
            $region52: #{tpu_custom_call.1} parent=47 // pred_fallthru
              _
            // Predicated region
            $region53: #{tpu_custom_call.1} parent=47 // pred_check
              _
            $region54: #{tpu_custom_call.1} parent=47 // pred_check_branch
              %270 = sbr.rel target = $region56
            $region55: #{tpu_custom_call.1} parent=47 // pred_region
              loop: start=0, step=1, limit=1
              $region57: #{tpu_custom_call.1} parent=55 // loop_pre_header
                _
              $region58: #{tpu_custom_call.1} parent=55 // loop_header
                %s273 = sphi 0, %s277
                %p274 = scmp.ge.s32.totalorder %s273, 1
                %s278 = sphi %s264, %s264
                %s279 = sphi %s261, %s261
              $region59: #{tpu_custom_call.1} parent=55 // loop_header_branch
                %276 = sbr.rel (%p274) target = $region63
              $region60: #{tpu_custom_call.1} parent=55 // loop_body
                %v280 = vld [vmem:[%s278] sm:$0xff]
                %281 = vst [vmem:[%s279] sm:$0xff] %v280
                %v282 = vld [vmem:[%s278 + $0x8] sm:$0xff]
                %283 = vst [vmem:[%s279 + $0x8] sm:$0xff] %v282
                %v284 = vld [vmem:[%s278 + $0x10] sm:$0xff]
                %285 = vst [vmem:[%s279 + $0x10] sm:$0xff] %v284
                %v286 = vld [vmem:[%s278 + $0x18] sm:$0xff]
                %287 = vst [vmem:[%s279 + $0x18] sm:$0xff] %v286
                %v288 = vld [vmem:[%s278 + $0x20] sm:$0xff]
                %289 = vst [vmem:[%s279 + $0x20] sm:$0xff] %v288
                %v290 = vld [vmem:[%s278 + $0x28] sm:$0xff]
                %291 = vst [vmem:[%s279 + $0x28] sm:$0xff] %v290
                %v292 = vld [vmem:[%s278 + $0x30] sm:$0xff]
                %293 = vst [vmem:[%s279 + $0x30] sm:$0xff] %v292
                %v294 = vld [vmem:[%s278 + $0x38] sm:$0xff]
                %295 = vst [vmem:[%s279 + $0x38] sm:$0xff] %v294
                %v296 = vld [vmem:[%s278 + $0x40] sm:$0xff]
                %297 = vst [vmem:[%s279 + $0x40] sm:$0xff] %v296
                %v298 = vld [vmem:[%s278 + $0x48] sm:$0xff]
                %299 = vst [vmem:[%s279 + $0x48] sm:$0xff] %v298
                %v300 = vld [vmem:[%s278 + $0x50] sm:$0xff]
                %301 = vst [vmem:[%s279 + $0x50] sm:$0xff] %v300
                %v302 = vld [vmem:[%s278 + $0x58] sm:$0xff]
                %303 = vst [vmem:[%s279 + $0x58] sm:$0xff] %v302
                %v304 = vld [vmem:[%s278 + $0x60] sm:$0xff]
                %305 = vst [vmem:[%s279 + $0x60] sm:$0xff] %v304
                %v306 = vld [vmem:[%s278 + $0x68] sm:$0xff]
                %307 = vst [vmem:[%s279 + $0x68] sm:$0xff] %v306
                %v308 = vld [vmem:[%s278 + $0x70] sm:$0xff]
                %309 = vst [vmem:[%s279 + $0x70] sm:$0xff] %v308
                %v310 = vld [vmem:[%s278 + $0x78] sm:$0xff]
                %311 = vst [vmem:[%s279 + $0x78] sm:$0xff] %v310
                %v312 = vld [vmem:[%s278 + $0x100] sm:$0xff]
                %313 = vst [vmem:[%s279 + $0x80] sm:$0xff] %v312
                %v314 = vld [vmem:[%s278 + $0x108] sm:$0xff]
                %315 = vst [vmem:[%s279 + $0x88] sm:$0xff] %v314
                %v316 = vld [vmem:[%s278 + $0x110] sm:$0xff]
                %317 = vst [vmem:[%s279 + $0x90] sm:$0xff] %v316
                %v318 = vld [vmem:[%s278 + $0x118] sm:$0xff]
                %319 = vst [vmem:[%s279 + $0x98] sm:$0xff] %v318
                %v320 = vld [vmem:[%s278 + $0x120] sm:$0xff]
                %321 = vst [vmem:[%s279 + $0xa0] sm:$0xff] %v320
                %v322 = vld [vmem:[%s278 + $0x128] sm:$0xff]
                %323 = vst [vmem:[%s279 + $0xa8] sm:$0xff] %v322
                %v324 = vld [vmem:[%s278 + $0x130] sm:$0xff]
                %325 = vst [vmem:[%s279 + $0xb0] sm:$0xff] %v324
                %v326 = vld [vmem:[%s278 + $0x138] sm:$0xff]
                %327 = vst [vmem:[%s279 + $0xb8] sm:$0xff] %v326
                %v328 = vld [vmem:[%s278 + $0x140] sm:$0xff]
                %329 = vst [vmem:[%s279 + $0xc0] sm:$0xff] %v328
                %v330 = vld [vmem:[%s278 + $0x148] sm:$0xff]
                %331 = vst [vmem:[%s279 + $0xc8] sm:$0xff] %v330
                %v332 = vld [vmem:[%s278 + $0x150] sm:$0xff]
                %333 = vst [vmem:[%s279 + $0xd0] sm:$0xff] %v332
                %v334 = vld [vmem:[%s278 + $0x158] sm:$0xff]
                %335 = vst [vmem:[%s279 + $0xd8] sm:$0xff] %v334
                %v336 = vld [vmem:[%s278 + $0x160] sm:$0xff]
                %337 = vst [vmem:[%s279 + $0xe0] sm:$0xff] %v336
                %v338 = vld [vmem:[%s278 + $0x168] sm:$0xff]
                %339 = vst [vmem:[%s279 + $0xe8] sm:$0xff] %v338
                %v340 = vld [vmem:[%s278 + $0x170] sm:$0xff]
                %341 = vst [vmem:[%s279 + $0xf0] sm:$0xff] %v340
                %v342 = vld [vmem:[%s278 + $0x178] sm:$0xff]
                %343 = vst [vmem:[%s279 + $0xf8] sm:$0xff] %v342
                %v344 = vld [vmem:[%s278 + $0x200] sm:$0xff]
                %345 = vst [vmem:[%s279 + $0x100] sm:$0xff] %v344
                %v346 = vld [vmem:[%s278 + $0x208] sm:$0xff]
                %347 = vst [vmem:[%s279 + $0x108] sm:$0xff] %v346
                %v348 = vld [vmem:[%s278 + $0x210] sm:$0xff]
                %349 = vst [vmem:[%s279 + $0x110] sm:$0xff] %v348
                %v350 = vld [vmem:[%s278 + $0x218] sm:$0xff]
                %351 = vst [vmem:[%s279 + $0x118] sm:$0xff] %v350
                %v352 = vld [vmem:[%s278 + $0x220] sm:$0xff]
                %353 = vst [vmem:[%s279 + $0x120] sm:$0xff] %v352
                %v354 = vld [vmem:[%s278 + $0x228] sm:$0xff]
                %355 = vst [vmem:[%s279 + $0x128] sm:$0xff] %v354
                %v356 = vld [vmem:[%s278 + $0x230] sm:$0xff]
                %357 = vst [vmem:[%s279 + $0x130] sm:$0xff] %v356
                %v358 = vld [vmem:[%s278 + $0x238] sm:$0xff]
                %359 = vst [vmem:[%s279 + $0x138] sm:$0xff] %v358
                %v360 = vld [vmem:[%s278 + $0x240] sm:$0xff]
                %361 = vst [vmem:[%s279 + $0x140] sm:$0xff] %v360
                %v362 = vld [vmem:[%s278 + $0x248] sm:$0xff]
                %363 = vst [vmem:[%s279 + $0x148] sm:$0xff] %v362
                %v364 = vld [vmem:[%s278 + $0x250] sm:$0xff]
                %365 = vst [vmem:[%s279 + $0x150] sm:$0xff] %v364
                %v366 = vld [vmem:[%s278 + $0x258] sm:$0xff]
                %367 = vst [vmem:[%s279 + $0x158] sm:$0xff] %v366
                %v368 = vld [vmem:[%s278 + $0x260] sm:$0xff]
                %369 = vst [vmem:[%s279 + $0x160] sm:$0xff] %v368
                %v370 = vld [vmem:[%s278 + $0x268] sm:$0xff]
                %371 = vst [vmem:[%s279 + $0x168] sm:$0xff] %v370
                %v372 = vld [vmem:[%s278 + $0x270] sm:$0xff]
                %373 = vst [vmem:[%s279 + $0x170] sm:$0xff] %v372
                %v374 = vld [vmem:[%s278 + $0x278] sm:$0xff]
                %375 = vst [vmem:[%s279 + $0x178] sm:$0xff] %v374
                %v376 = vld [vmem:[%s278 + $0x300] sm:$0xff]
                %377 = vst [vmem:[%s279 + $0x180] sm:$0xff] %v376
                %v378 = vld [vmem:[%s278 + $0x308] sm:$0xff]
                %379 = vst [vmem:[%s279 + $0x188] sm:$0xff] %v378
                %v380 = vld [vmem:[%s278 + $0x310] sm:$0xff]
                %381 = vst [vmem:[%s279 + $0x190] sm:$0xff] %v380
                %v382 = vld [vmem:[%s278 + $0x318] sm:$0xff]
                %383 = vst [vmem:[%s279 + $0x198] sm:$0xff] %v382
                %v384 = vld [vmem:[%s278 + $0x320] sm:$0xff]
                %385 = vst [vmem:[%s279 + $0x1a0] sm:$0xff] %v384
                %v386 = vld [vmem:[%s278 + $0x328] sm:$0xff]
                %387 = vst [vmem:[%s279 + $0x1a8] sm:$0xff] %v386
                %v388 = vld [vmem:[%s278 + $0x330] sm:$0xff]
                %389 = vst [vmem:[%s279 + $0x1b0] sm:$0xff] %v388
                %v390 = vld [vmem:[%s278 + $0x338] sm:$0xff]
                %391 = vst [vmem:[%s279 + $0x1b8] sm:$0xff] %v390
                %v392 = vld [vmem:[%s278 + $0x340] sm:$0xff]
                %393 = vst [vmem:[%s279 + $0x1c0] sm:$0xff] %v392
                %v394 = vld [vmem:[%s278 + $0x348] sm:$0xff]
                %395 = vst [vmem:[%s279 + $0x1c8] sm:$0xff] %v394
                %v396 = vld [vmem:[%s278 + $0x350] sm:$0xff]
                %397 = vst [vmem:[%s279 + $0x1d0] sm:$0xff] %v396
                %v398 = vld [vmem:[%s278 + $0x358] sm:$0xff]
                %399 = vst [vmem:[%s279 + $0x1d8] sm:$0xff] %v398
                %v400 = vld [vmem:[%s278 + $0x360] sm:$0xff]
                %401 = vst [vmem:[%s279 + $0x1e0] sm:$0xff] %v400
                %v402 = vld [vmem:[%s278 + $0x368] sm:$0xff]
                %403 = vst [vmem:[%s279 + $0x1e8] sm:$0xff] %v402
                %v404 = vld [vmem:[%s278 + $0x370] sm:$0xff]
                %405 = vst [vmem:[%s279 + $0x1f0] sm:$0xff] %v404
                %v406 = vld [vmem:[%s278 + $0x378] sm:$0xff]
                %407 = vst [vmem:[%s279 + $0x1f8] sm:$0xff] %v406
                %v408 = vld [vmem:[%s278 + $0x400] sm:$0xff]
                %409 = vst [vmem:[%s279 + $0x200] sm:$0xff] %v408
                %v410 = vld [vmem:[%s278 + $0x408] sm:$0xff]
                %411 = vst [vmem:[%s279 + $0x208] sm:$0xff] %v410
                %v412 = vld [vmem:[%s278 + $0x410] sm:$0xff]
                %413 = vst [vmem:[%s279 + $0x210] sm:$0xff] %v412
                %v414 = vld [vmem:[%s278 + $0x418] sm:$0xff]
                %415 = vst [vmem:[%s279 + $0x218] sm:$0xff] %v414
                %v416 = vld [vmem:[%s278 + $0x420] sm:$0xff]
                %417 = vst [vmem:[%s279 + $0x220] sm:$0xff] %v416
                %v418 = vld [vmem:[%s278 + $0x428] sm:$0xff]
                %419 = vst [vmem:[%s279 + $0x228] sm:$0xff] %v418
                %v420 = vld [vmem:[%s278 + $0x430] sm:$0xff]
                %421 = vst [vmem:[%s279 + $0x230] sm:$0xff] %v420
                %v422 = vld [vmem:[%s278 + $0x438] sm:$0xff]
                %423 = vst [vmem:[%s279 + $0x238] sm:$0xff] %v422
                %v424 = vld [vmem:[%s278 + $0x440] sm:$0xff]
                %425 = vst [vmem:[%s279 + $0x240] sm:$0xff] %v424
                %v426 = vld [vmem:[%s278 + $0x448] sm:$0xff]
                %427 = vst [vmem:[%s279 + $0x248] sm:$0xff] %v426
                %v428 = vld [vmem:[%s278 + $0x450] sm:$0xff]
                %429 = vst [vmem:[%s279 + $0x250] sm:$0xff] %v428
                %v430 = vld [vmem:[%s278 + $0x458] sm:$0xff]
                %431 = vst [vmem:[%s279 + $0x258] sm:$0xff] %v430
                %v432 = vld [vmem:[%s278 + $0x460] sm:$0xff]
                %433 = vst [vmem:[%s279 + $0x260] sm:$0xff] %v432
                %v434 = vld [vmem:[%s278 + $0x468] sm:$0xff]
                %435 = vst [vmem:[%s279 + $0x268] sm:$0xff] %v434
                %v436 = vld [vmem:[%s278 + $0x470] sm:$0xff]
                %437 = vst [vmem:[%s279 + $0x270] sm:$0xff] %v436
                %v438 = vld [vmem:[%s278 + $0x478] sm:$0xff]
                %439 = vst [vmem:[%s279 + $0x278] sm:$0xff] %v438
                %v440 = vld [vmem:[%s278 + $0x500] sm:$0xff]
                %441 = vst [vmem:[%s279 + $0x280] sm:$0xff] %v440
                %v442 = vld [vmem:[%s278 + $0x508] sm:$0xff]
                %443 = vst [vmem:[%s279 + $0x288] sm:$0xff] %v442
                %v444 = vld [vmem:[%s278 + $0x510] sm:$0xff]
                %445 = vst [vmem:[%s279 + $0x290] sm:$0xff] %v444
                %v446 = vld [vmem:[%s278 + $0x518] sm:$0xff]
                %447 = vst [vmem:[%s279 + $0x298] sm:$0xff] %v446
                %v448 = vld [vmem:[%s278 + $0x520] sm:$0xff]
                %449 = vst [vmem:[%s279 + $0x2a0] sm:$0xff] %v448
                %v450 = vld [vmem:[%s278 + $0x528] sm:$0xff]
                %451 = vst [vmem:[%s279 + $0x2a8] sm:$0xff] %v450
                %v452 = vld [vmem:[%s278 + $0x530] sm:$0xff]
                %453 = vst [vmem:[%s279 + $0x2b0] sm:$0xff] %v452
                %v454 = vld [vmem:[%s278 + $0x538] sm:$0xff]
                %455 = vst [vmem:[%s279 + $0x2b8] sm:$0xff] %v454
                %v456 = vld [vmem:[%s278 + $0x540] sm:$0xff]
                %457 = vst [vmem:[%s279 + $0x2c0] sm:$0xff] %v456
                %v458 = vld [vmem:[%s278 + $0x548] sm:$0xff]
                %459 = vst [vmem:[%s279 + $0x2c8] sm:$0xff] %v458
                %v460 = vld [vmem:[%s278 + $0x550] sm:$0xff]
                %461 = vst [vmem:[%s279 + $0x2d0] sm:$0xff] %v460
                %v462 = vld [vmem:[%s278 + $0x558] sm:$0xff]
                %463 = vst [vmem:[%s279 + $0x2d8] sm:$0xff] %v462
                %v464 = vld [vmem:[%s278 + $0x560] sm:$0xff]
                %465 = vst [vmem:[%s279 + $0x2e0] sm:$0xff] %v464
                %v466 = vld [vmem:[%s278 + $0x568] sm:$0xff]
                %467 = vst [vmem:[%s279 + $0x2e8] sm:$0xff] %v466
                %v468 = vld [vmem:[%s278 + $0x570] sm:$0xff]
                %469 = vst [vmem:[%s279 + $0x2f0] sm:$0xff] %v468
                %v470 = vld [vmem:[%s278 + $0x578] sm:$0xff]
                %471 = vst [vmem:[%s279 + $0x2f8] sm:$0xff] %v470
                %v472 = vld [vmem:[%s278 + $0x600] sm:$0xff]
                %473 = vst [vmem:[%s279 + $0x300] sm:$0xff] %v472
                %v474 = vld [vmem:[%s278 + $0x608] sm:$0xff]
                %475 = vst [vmem:[%s279 + $0x308] sm:$0xff] %v474
                %v476 = vld [vmem:[%s278 + $0x610] sm:$0xff]
                %477 = vst [vmem:[%s279 + $0x310] sm:$0xff] %v476
                %v478 = vld [vmem:[%s278 + $0x618] sm:$0xff]
                %479 = vst [vmem:[%s279 + $0x318] sm:$0xff] %v478
                %v480 = vld [vmem:[%s278 + $0x620] sm:$0xff]
                %481 = vst [vmem:[%s279 + $0x320] sm:$0xff] %v480
                %v482 = vld [vmem:[%s278 + $0x628] sm:$0xff]
                %483 = vst [vmem:[%s279 + $0x328] sm:$0xff] %v482
                %v484 = vld [vmem:[%s278 + $0x630] sm:$0xff]
                %485 = vst [vmem:[%s279 + $0x330] sm:$0xff] %v484
                %v486 = vld [vmem:[%s278 + $0x638] sm:$0xff]
                %487 = vst [vmem:[%s279 + $0x338] sm:$0xff] %v486
                %v488 = vld [vmem:[%s278 + $0x640] sm:$0xff]
                %489 = vst [vmem:[%s279 + $0x340] sm:$0xff] %v488
                %v490 = vld [vmem:[%s278 + $0x648] sm:$0xff]
                %491 = vst [vmem:[%s279 + $0x348] sm:$0xff] %v490
                %v492 = vld [vmem:[%s278 + $0x650] sm:$0xff]
                %493 = vst [vmem:[%s279 + $0x350] sm:$0xff] %v492
                %v494 = vld [vmem:[%s278 + $0x658] sm:$0xff]
                %495 = vst [vmem:[%s279 + $0x358] sm:$0xff] %v494
                %v496 = vld [vmem:[%s278 + $0x660] sm:$0xff]
                %497 = vst [vmem:[%s279 + $0x360] sm:$0xff] %v496
                %v498 = vld [vmem:[%s278 + $0x668] sm:$0xff]
                %499 = vst [vmem:[%s279 + $0x368] sm:$0xff] %v498
                %v500 = vld [vmem:[%s278 + $0x670] sm:$0xff]
                %501 = vst [vmem:[%s279 + $0x370] sm:$0xff] %v500
                %v502 = vld [vmem:[%s278 + $0x678] sm:$0xff]
                %503 = vst [vmem:[%s279 + $0x378] sm:$0xff] %v502
                %v504 = vld [vmem:[%s278 + $0x700] sm:$0xff]
                %505 = vst [vmem:[%s279 + $0x380] sm:$0xff] %v504
                %v506 = vld [vmem:[%s278 + $0x708] sm:$0xff]
                %507 = vst [vmem:[%s279 + $0x388] sm:$0xff] %v506
                %v508 = vld [vmem:[%s278 + $0x710] sm:$0xff]
                %509 = vst [vmem:[%s279 + $0x390] sm:$0xff] %v508
                %v510 = vld [vmem:[%s278 + $0x718] sm:$0xff]
                %511 = vst [vmem:[%s279 + $0x398] sm:$0xff] %v510
                %v512 = vld [vmem:[%s278 + $0x720] sm:$0xff]
                %513 = vst [vmem:[%s279 + $0x3a0] sm:$0xff] %v512
                %v514 = vld [vmem:[%s278 + $0x728] sm:$0xff]
                %515 = vst [vmem:[%s279 + $0x3a8] sm:$0xff] %v514
                %v516 = vld [vmem:[%s278 + $0x730] sm:$0xff]
                %517 = vst [vmem:[%s279 + $0x3b0] sm:$0xff] %v516
                %v518 = vld [vmem:[%s278 + $0x738] sm:$0xff]
                %519 = vst [vmem:[%s279 + $0x3b8] sm:$0xff] %v518
                %v520 = vld [vmem:[%s278 + $0x740] sm:$0xff]
                %521 = vst [vmem:[%s279 + $0x3c0] sm:$0xff] %v520
                %v522 = vld [vmem:[%s278 + $0x748] sm:$0xff]
                %523 = vst [vmem:[%s279 + $0x3c8] sm:$0xff] %v522
                %v524 = vld [vmem:[%s278 + $0x750] sm:$0xff]
                %525 = vst [vmem:[%s279 + $0x3d0] sm:$0xff] %v524
                %v526 = vld [vmem:[%s278 + $0x758] sm:$0xff]
                %527 = vst [vmem:[%s279 + $0x3d8] sm:$0xff] %v526
                %v528 = vld [vmem:[%s278 + $0x760] sm:$0xff]
                %529 = vst [vmem:[%s279 + $0x3e0] sm:$0xff] %v528
                %v530 = vld [vmem:[%s278 + $0x768] sm:$0xff]
                %531 = vst [vmem:[%s279 + $0x3e8] sm:$0xff] %v530
                %v532 = vld [vmem:[%s278 + $0x770] sm:$0xff]
                %533 = vst [vmem:[%s279 + $0x3f0] sm:$0xff] %v532
                %v534 = vld [vmem:[%s278 + $0x778] sm:$0xff]
                %535 = vst [vmem:[%s279 + $0x3f8] sm:$0xff] %v534
              $region61: #{tpu_custom_call.1} parent=55 // loop_footer
                %s277 = sadd.s32 1, %s273
              $region62: #{tpu_custom_call.1} parent=55 // loop_footer_branch
                %272 = sbr.rel target = $region58
              $region63: #{tpu_custom_call.1} parent=55 // loop_exit
                _
            $region56: #{tpu_custom_call.1} parent=47 // pred_fallthru
              _
          $region48: #{tpu_custom_call.1} parent=43 // pred_fallthru
            _
          %804 = vnop
        $region44: #{tpu_custom_call.1} parent=39 // pred_fallthru
          _
        // Predicated region
        $region79: #{tpu_custom_call.1} parent=39 // pred_check
          %p805 = pneg %p60
        $region80: #{tpu_custom_call.1} parent=39 // pred_check_branch
          %807 = sbr.rel (%p805) target = $region82
        $region81: #{tpu_custom_call.1} parent=39 // pred_region
          %s808 = smul.u32 16, %s14
          %p809 = scmp.lt.s32.totalorder %s808, 31
          %s810 = scalar_select %p809, %s808, 31
          %s811 = smul.addr %s810, 8
          %s812 = scalar_lea.vmem %s1, %s811
          %s813 = smul.u32 16, %s14
        $region82: #{tpu_custom_call.1} parent=39 // pred_fallthru
          _
      $region40: #{tpu_custom_call.1} parent=5 // pred_fallthru
        _
      %p814 = scmp.le.s32.totalorder 1, %s14
      %p815 = scmp.lt.s32.totalorder %s14, 3
      %p816 = pnand %p814, %p815
      %p817 = pneg %p816
      // Predicated region
      $region83: #{tpu_custom_call.1} parent=5 // pred_check
        _
      $region84: #{tpu_custom_call.1} parent=5 // pred_check_branch
        %819 = sbr.rel (%p816) target = $region86
      $region85: #{tpu_custom_call.1} parent=5 // pred_region
        %s820 = ssub.s32 %s14, 1
        %s821 = sand.u32 %s27, 1
        %s822 = sand.u32 %s27, 1
        %s823 = smul.addr %s822, 1024
        %s824 = scalar_lea.vmem [#allocation2], %s823
        // Predicated region
        $region87: #{tpu_custom_call.1} parent=85 // pred_check
          %p825 = pneg %p40
        $region88: #{tpu_custom_call.1} parent=85 // pred_check_branch
          %827 = sbr.rel (%p825) target = $region90
        $region89: #{tpu_custom_call.1} parent=85 // pred_region
          _
        $region90: #{tpu_custom_call.1} parent=85 // pred_fallthru
          _
        %s828 = sand.u32 %s27, 1
        %s829 = sand.u32 %s27, 1
        %s830 = smul.addr %s829, 1024
        %s831 = scalar_lea.vmem [#allocation2], %s830
        %p832 = pneg %p40
        %p833 = pneg %p37
        %s834 = smul.u32 16, %s19
        %p835 = scmp.lt.s32.totalorder %s834, 31
        %s836 = scalar_select %p835, %s834, 31
        %s837 = smul.addr %s836, 8
        %s838 = scalar_lea.vmem %s1, %s837
        %p839 = pneg %p66
        %p840 = pneg %p63
        %p841 = pneg %p87
        %p842 = pneg %p84
        %p843 = pneg %p108
        %p844 = pneg %p105
        %p845 = pneg %p129
        %p846 = pneg %p126
        %p847 = pneg %p150
        %p848 = pneg %p147
        %p849 = pneg %p171
        %p850 = pneg %p168
        %p851 = pneg %p192
        %p852 = pneg %p189
        %p853 = pneg %p218
        %p854 = pneg %p215
        %s855 = smul.u32 16, %s19
        %p856 = scmp.lt.s32.totalorder %s855, 31
        %s857 = scalar_select %p856, %s855, 31
        %s858 = smul.addr %s857, 8
        %s859 = scalar_lea.vmem %s8, %s858
        %s860 = smul.u32 16, %s19
        %s861 = smul.u32 16, %s19
        %p862 = scmp.lt.s32.totalorder %s861, 31
        %s863 = scalar_select %p862, %s861, 31
        %s864 = smul.addr %s863, 8
        %s865 = scalar_lea.vmem %s1, %s864
        %s866 = smul.u32 16, %s19
        %s867 = smul.u32 16, %s19
        %p868 = scmp.lt.s32.totalorder %s867, 31
        %s869 = scalar_select %p868, %s867, 31
        %s870 = smul.addr %s869, 8
        %s871 = scalar_lea.vmem %s8, %s870
        %s872 = smul.u32 16, %s19
        %v873 = vld [vmem:[%s865] sm:$0xff]
        %v874 = vld [vmem:[%s865 + $0x8] sm:$0xff]
        %v875 = vld [vmem:[%s865 + $0x10] sm:$0xff]
        %v876 = vld [vmem:[%s865 + $0x18] sm:$0xff]
        %v877 = vld [vmem:[%s865 + $0x20] sm:$0xff]
        %v878 = vld [vmem:[%s865 + $0x28] sm:$0xff]
        %v879 = vld [vmem:[%s865 + $0x30] sm:$0xff]
        %v880 = vld [vmem:[%s865 + $0x38] sm:$0xff]
        %v881 = vld [vmem:[%s865 + $0x40] sm:$0xff]
        %v882 = vld [vmem:[%s865 + $0x48] sm:$0xff]
        %v883 = vld [vmem:[%s865 + $0x50] sm:$0xff]
        %v884 = vld [vmem:[%s865 + $0x58] sm:$0xff]
        %v885 = vld [vmem:[%s865 + $0x60] sm:$0xff]
        %v886 = vld [vmem:[%s865 + $0x68] sm:$0xff]
        %v887 = vld [vmem:[%s865 + $0x70] sm:$0xff]
        %v888 = vld [vmem:[%s865 + $0x78] sm:$0xff]
        %v889 = vld [vmem:[%s2] sm:$0xff]
        %v890 = vld [vmem:[%s2 + $0x8] sm:$0xff]
        %v891 = vld [vmem:[%s2 + $0x10] sm:$0xff]
        %v892 = vld [vmem:[%s2 + $0x18] sm:$0xff]
        %v893 = vld [vmem:[%s5] sm:$0xff]
        %v894 = vld [vmem:[%s5 + $0x8] sm:$0xff]
        %v895 = vld [vmem:[%s5 + $0x10] sm:$0xff]
        %v896 = vld [vmem:[%s5 + $0x18] sm:$0xff]
        %v897 = vld [vmem:[%s7] sm:$0xff]
        %v898 = vld [vmem:[%s7 + $0x8] sm:$0xff]
        %v899 = vld [vmem:[%s7 + $0x10] sm:$0xff]
        %v900 = vld [vmem:[%s7 + $0x18] sm:$0xff]
        %v901 = vld [vmem:[%s6] sm:$0x1]
        %v902 = vld [vmem:[%s3] sm:$0xff]
        %v903 = vld [vmem:[%s3 + $0x8] sm:$0xff]
        %v904 = vld [vmem:[%s3 + $0x10] sm:$0xff]
        %v905 = vld [vmem:[%s3 + $0x18] sm:$0xff]
        %v906 = vld [vmem:[%s4] sm:$0x1]
        %v908 = vlaneseq
        %v909 = vshrl.u32 %v908, 7
        %v910 = vsub.s32 0, %v909
        %v911 = vrot.slane %v906, %v910
        %vm913 = vcmask 261120
        %v915 = vsel %vm913, %v873, 0
        %v918 = vsel %vm913, %v874, 0
        %v921 = vsel %vm913, %v875, 0
        %v924 = vsel %vm913, %v876, 0
        %v927 = vsel %vm913, %v877, 0
        %v930 = vsel %vm913, %v878, 0
        %v933 = vsel %vm913, %v879, 0
        %v936 = vsel %vm913, %v880, 0
        %v939 = vsel %vm913, %v881, 0
        %v942 = vsel %vm913, %v882, 0
        %v945 = vsel %vm913, %v883, 0
        %v948 = vsel %vm913, %v884, 0
        %v951 = vsel %vm913, %v885, 0
        %v954 = vsel %vm913, %v886, 0
        %v957 = vsel %vm913, %v887, 0
        %v960 = vsel %vm913, %v888, 0
        %962 = vmatprep.subr.mxu0 0.0
        %963 = vmatpush1.msra.mxu0 %v902
        %964 = vmatprep.subr.mxu0 0.0
        %965 = vmatpush1.msra.mxu0 %v903
        %966 = vmatprep.subr.mxu0 0.0
        %967 = vmatpush1.msra.mxu0 %v904
        %968 = vmatprep.subr.mxu0 0.0
        %969 = vmatpush1.msra.mxu0 %v905
        %970 = vmatprep.subr.mxu0 0.0
        %971 = vmatpush1.msra.mxu0 0.0
        %972 = vmatprep.subr.mxu0 0.0
        %973 = vmatpush1.msra.mxu0 0.0
        %974 = vmatprep.subr.mxu0 0.0
        %975 = vmatpush1.msra.mxu0 0.0
        %976 = vmatprep.subr.mxu0 0.0
        %977 = vmatpush1.msra.mxu0 0.0
        %978 = vmatprep.subr.mxu0 0.0
        %979 = vmatpush1.msra.mxu0 0.0
        %980 = vmatprep.subr.mxu0 0.0
        %981 = vmatpush1.msra.mxu0 0.0
        %982 = vmatprep.subr.mxu0 0.0
        %983 = vmatpush1.msra.mxu0 0.0
        %984 = vmatprep.subr.mxu0 0.0
        %985 = vmatpush1.msra.mxu0 0.0
        %986 = vmatprep.subr.mxu0 0.0
        %987 = vmatpush1.msra.mxu0 0.0
        %988 = vmatprep.subr.mxu0 0.0
        %989 = vmatpush1.msra.mxu0 0.0
        %990 = vmatprep.subr.mxu0 0.0
        %991 = vmatpush1.msra.mxu0 0.0
        %992 = vmatprep.subr.mxu0 0.0
        %993 = vmatpush1.msra.mxu0 0.0
        %994 = vmatprep.subr.mxu0 0.0
        %995 = vmatpush1.msra.mxu0 0.0
        %996 = vmatprep.subr.mxu0 0.0
        %997 = vmatpush1.msra.mxu0 0.0
        %998 = vmatprep.subr.mxu0 0.0
        %999 = vmatpush1.msra.mxu0 0.0
        %1000 = vmatprep.subr.mxu0 0.0
        %1001 = vmatpush1.msra.mxu0 0.0
        %1002 = vmatprep.subr.mxu0 0.0
        %1003 = vmatpush1.msra.mxu0 0.0
        %1004 = vmatprep.subr.mxu0 0.0
        %1005 = vmatpush1.msra.mxu0 0.0
        %1006 = vmatprep.subr.mxu0 0.0
        %1007 = vmatpush1.msra.mxu0 0.0
        %1008 = vmatprep.subr.mxu0 0.0
        %1009 = vmatpush1.msra.mxu0 0.0
        %1010 = vmatprep.subr.mxu0 0.0
        %1011 = vmatpush1.msra.mxu0 0.0
        %1012 = vmatprep.subr.mxu0 0.0
        %1013 = vmatpush1.msra.mxu0 0.0
        %1014 = vmatprep.subr.mxu0 0.0
        %1015 = vmatpush1.msra.mxu0 0.0
        %1016 = vmatprep.subr.mxu0 0.0
        %1017 = vmatpush1.msra.mxu0 0.0
        %1018 = vmatprep.subr.mxu0 0.0
        %1019 = vmatpush1.msra.mxu0 0.0
        %1020 = vmatprep.subr.mxu0 0.0
        %1021 = vmatpush1.msra.mxu0 0.0
        %1022 = vmatprep.subr.mxu0 0.0
        %1023 = vmatpush1.msra.mxu0 0.0
        %1024 = vmatprep.subr.mxu0 0.0
        %1025 = vmatpush1.msra.mxu0 0.0
        %1026 = vmatprep.mubr.f32.mxu0 0.0
        %1027 = vmatmul.mubr.f32.gmra.mrb[0].mxu0 %v915
        %v1028 = vpop.f32.mrb[0].mxu0
        %v1029 = vadd.f32 %v911, %v1028
        %v1030 = vpop.f32.mrb[0].mxu0
        %1031 = vmatprep.mubr.f32.mxu0 0.0
        %1032 = vmatmul.mubr.f32.gmra.mrb[0].mxu0 %v918
        %v1033 = vpop.f32.mrb[0].mxu0
        %v1034 = vadd.f32 %v911, %v1033
        %v1035 = vpop.f32.mrb[0].mxu0
        %1036 = vmatprep.mubr.f32.mxu0 0.0
        %1037 = vmatmul.mubr.f32.gmra.mrb[0].mxu0 %v921
        %v1038 = vpop.f32.mrb[0].mxu0
        %v1039 = vadd.f32 %v911, %v1038
        %v1040 = vpop.f32.mrb[0].mxu0
        %1041 = vmatprep.mubr.f32.mxu0 0.0
        %1042 = vmatmul.mubr.f32.gmra.mrb[0].mxu0 %v924
        %v1043 = vpop.f32.mrb[0].mxu0
        %v1044 = vadd.f32 %v911, %v1043
        %v1045 = vpop.f32.mrb[0].mxu0
        %1046 = vmatprep.mubr.f32.mxu0 0.0
        %1047 = vmatmul.mubr.f32.gmra.mrb[0].mxu0 %v927
        %v1048 = vpop.f32.mrb[0].mxu0
        %v1049 = vadd.f32 %v911, %v1048
        %v1050 = vpop.f32.mrb[0].mxu0
        %1051 = vmatprep.mubr.f32.mxu0 0.0
        %1052 = vmatmul.mubr.f32.gmra.mrb[0].mxu0 %v930
        %v1053 = vpop.f32.mrb[0].mxu0
        %v1054 = vadd.f32 %v911, %v1053
        %v1055 = vpop.f32.mrb[0].mxu0
        %1056 = vmatprep.mubr.f32.mxu0 0.0
        %1057 = vmatmul.mubr.f32.gmra.mrb[0].mxu0 %v933
        %v1058 = vpop.f32.mrb[0].mxu0
        %v1059 = vadd.f32 %v911, %v1058
        %v1060 = vpop.f32.mrb[0].mxu0
        %1061 = vmatprep.mubr.f32.mxu0 0.0
        %1062 = vmatmul.mubr.f32.gmra.mrb[0].mxu0 %v936
        %v1063 = vpop.f32.mrb[0].mxu0
        %v1064 = vadd.f32 %v911, %v1063
        %v1065 = vpop.f32.mrb[0].mxu0
        %1066 = vmatprep.mubr.f32.mxu0 0.0
        %1067 = vmatmul.mubr.f32.gmra.mrb[0].mxu0 %v939
        %v1068 = vpop.f32.mrb[0].mxu0
        %v1069 = vadd.f32 %v911, %v1068
        %v1070 = vpop.f32.mrb[0].mxu0
        %1071 = vmatprep.mubr.f32.mxu0 0.0
        %1072 = vmatmul.mubr.f32.gmra.mrb[0].mxu0 %v942
        %v1073 = vpop.f32.mrb[0].mxu0
        %v1074 = vadd.f32 %v911, %v1073
        %v1075 = vpop.f32.mrb[0].mxu0
        %1076 = vmatprep.mubr.f32.mxu0 0.0
        %1077 = vmatmul.mubr.f32.gmra.mrb[0].mxu0 %v945
        %v1078 = vpop.f32.mrb[0].mxu0
        %v1079 = vadd.f32 %v911, %v1078
        %v1080 = vpop.f32.mrb[0].mxu0
        %1081 = vmatprep.mubr.f32.mxu0 0.0
        %1082 = vmatmul.mubr.f32.gmra.mrb[0].mxu0 %v948
        %v1083 = vpop.f32.mrb[0].mxu0
        %v1084 = vadd.f32 %v911, %v1083
        %v1085 = vpop.f32.mrb[0].mxu0
        %1086 = vmatprep.mubr.f32.mxu0 0.0
        %1087 = vmatmul.mubr.f32.gmra.mrb[0].mxu0 %v951
        %v1088 = vpop.f32.mrb[0].mxu0
        %v1089 = vadd.f32 %v911, %v1088
        %v1090 = vpop.f32.mrb[0].mxu0
        %1091 = vmatprep.mubr.f32.mxu0 0.0
        %1092 = vmatmul.mubr.f32.gmra.mrb[0].mxu0 %v954
        %v1093 = vpop.f32.mrb[0].mxu0
        %v1094 = vadd.f32 %v911, %v1093
        %v1095 = vpop.f32.mrb[0].mxu0
        %1096 = vmatprep.mubr.f32.mxu0 0.0
        %1097 = vmatmul.mubr.f32.gmra.mrb[0].mxu0 %v957
        %v1098 = vpop.f32.mrb[0].mxu0
        %v1099 = vadd.f32 %v911, %v1098
        %v1100 = vpop.f32.mrb[0].mxu0
        %1101 = vmatprep.mubr.f32.mxu0 0.0
        %1102 = vmatmul.mubr.f32.gmra.mrb[0].mxu0 %v960
        %v1103 = vpop.f32.mrb[0].mxu0
        %v1104 = vadd.f32 %v911, %v1103
        %v1105 = vpop.f32.mrb[0].mxu0
        %1106 = vdwg.mxu0
        %v1107 = vld [vmem:[%s824] sm:$0xff]
        %v1108 = vld [vmem:[%s824 + $0x8] sm:$0xff]
        %v1109 = vld [vmem:[%s824 + $0x10] sm:$0xff]
        %v1110 = vld [vmem:[%s824 + $0x18] sm:$0xff]
        %v1111 = vld [vmem:[%s824 + $0x20] sm:$0xff]
        %v1112 = vld [vmem:[%s824 + $0x28] sm:$0xff]
        %v1113 = vld [vmem:[%s824 + $0x30] sm:$0xff]
        %v1114 = vld [vmem:[%s824 + $0x38] sm:$0xff]
        %v1115 = vld [vmem:[%s824 + $0x40] sm:$0xff]
        %v1116 = vld [vmem:[%s824 + $0x48] sm:$0xff]
        %v1117 = vld [vmem:[%s824 + $0x50] sm:$0xff]
        %v1118 = vld [vmem:[%s824 + $0x58] sm:$0xff]
        %v1119 = vld [vmem:[%s824 + $0x60] sm:$0xff]
        %v1120 = vld [vmem:[%s824 + $0x68] sm:$0xff]
        %v1121 = vld [vmem:[%s824 + $0x70] sm:$0xff]
        %v1122 = vld [vmem:[%s824 + $0x78] sm:$0xff]
        %v1124 = vsel %vm913, %v1107, 0
        %v1127 = vsel %vm913, %v1108, 0
        %v1130 = vsel %vm913, %v1109, 0
        %v1133 = vsel %vm913, %v1110, 0
        %v1136 = vsel %vm913, %v1111, 0
        %v1139 = vsel %vm913, %v1112, 0
        %v1142 = vsel %vm913, %v1113, 0
        %v1145 = vsel %vm913, %v1114, 0
        %v1148 = vsel %vm913, %v1115, 0
        %v1151 = vsel %vm913, %v1116, 0
        %v1154 = vsel %vm913, %v1117, 0
        %v1157 = vsel %vm913, %v1118, 0
        %v1160 = vsel %vm913, %v1119, 0
        %v1163 = vsel %vm913, %v1120, 0
        %v1166 = vsel %vm913, %v1121, 0
        %v1169 = vsel %vm913, %v1122, 0
        %1171 = vmatprep.subr.mxu0 0.0
        %1172 = vmatpush1.msra.mxu0 %v889
        %1173 = vmatprep.subr.mxu0 0.0
        %1174 = vmatpush1.msra.mxu0 %v890
        %1175 = vmatprep.subr.mxu0 0.0
        %1176 = vmatpush1.msra.mxu0 %v891
        %1177 = vmatprep.subr.mxu0 0.0
        %1178 = vmatpush1.msra.mxu0 %v892
        %1179 = vmatprep.subr.mxu0 0.0
        %1180 = vmatpush1.msra.mxu0 0.0
        %1181 = vmatprep.subr.mxu0 0.0
        %1182 = vmatpush1.msra.mxu0 0.0
        %1183 = vmatprep.subr.mxu0 0.0
        %1184 = vmatpush1.msra.mxu0 0.0
        %1185 = vmatprep.subr.mxu0 0.0
        %1186 = vmatpush1.msra.mxu0 0.0
        %1187 = vmatprep.subr.mxu0 0.0
        %1188 = vmatpush1.msra.mxu0 0.0
        %1189 = vmatprep.subr.mxu0 0.0
        %1190 = vmatpush1.msra.mxu0 0.0
        %1191 = vmatprep.subr.mxu0 0.0
        %1192 = vmatpush1.msra.mxu0 0.0
        %1193 = vmatprep.subr.mxu0 0.0
        %1194 = vmatpush1.msra.mxu0 0.0
        %1195 = vmatprep.subr.mxu0 0.0
        %1196 = vmatpush1.msra.mxu0 0.0
        %1197 = vmatprep.subr.mxu0 0.0
        %1198 = vmatpush1.msra.mxu0 0.0
        %1199 = vmatprep.subr.mxu0 0.0
        %1200 = vmatpush1.msra.mxu0 0.0
        %1201 = vmatprep.subr.mxu0 0.0
        %1202 = vmatpush1.msra.mxu0 0.0
        %1203 = vmatprep.subr.mxu0 0.0
        %1204 = vmatpush1.msra.mxu0 0.0
        %1205 = vmatprep.subr.mxu0 0.0
        %1206 = vmatpush1.msra.mxu0 0.0
        %1207 = vmatprep.subr.mxu0 0.0
        %1208 = vmatpush1.msra.mxu0 0.0
        %1209 = vmatprep.subr.mxu0 0.0
        %1210 = vmatpush1.msra.mxu0 0.0
        %1211 = vmatprep.subr.mxu0 0.0
        %1212 = vmatpush1.msra.mxu0 0.0
        %1213 = vmatprep.subr.mxu0 0.0
        %1214 = vmatpush1.msra.mxu0 0.0
        %1215 = vmatprep.subr.mxu0 0.0
        %1216 = vmatpush1.msra.mxu0 0.0
        %1217 = vmatprep.subr.mxu0 0.0
        %1218 = vmatpush1.msra.mxu0 0.0
        %1219 = vmatprep.subr.mxu0 0.0
        %1220 = vmatpush1.msra.mxu0 0.0
        %1221 = vmatprep.subr.mxu0 0.0
        %1222 = vmatpush1.msra.mxu0 0.0
        %1223 = vmatprep.subr.mxu0 0.0
        %1224 = vmatpush1.msra.mxu0 0.0
        %1225 = vmatprep.subr.mxu0 0.0
        %1226 = vmatpush1.msra.mxu0 0.0
        %1227 = vmatprep.subr.mxu0 0.0
        %1228 = vmatpush1.msra.mxu0 0.0
        %1229 = vmatprep.subr.mxu0 0.0
        %1230 = vmatpush1.msra.mxu0 0.0
        %1231 = vmatprep.subr.mxu0 0.0
        %1232 = vmatpush1.msra.mxu0 0.0
        %1233 = vmatprep.subr.mxu0 0.0
        %1234 = vmatpush1.msra.mxu0 0.0
        %1235 = vmatprep.mubr.f32.mxu0 0.0
        %1236 = vmatmul.mubr.f32.gmra.mrb[0].mxu0 %v1124
        %v1237 = vpop.f32.mrb[0].mxu0
        %v1238 = vadd.f32 %v1029, %v1237
        %v1239 = vpop.f32.mrb[0].mxu0
        %1240 = vmatprep.mubr.f32.mxu0 0.0
        %1241 = vmatmul.mubr.f32.gmra.mrb[0].mxu0 %v1127
        %v1242 = vpop.f32.mrb[0].mxu0
        %v1243 = vadd.f32 %v1034, %v1242
        %v1244 = vpop.f32.mrb[0].mxu0
        %1245 = vmatprep.mubr.f32.mxu0 0.0
        %1246 = vmatmul.mubr.f32.gmra.mrb[0].mxu0 %v1130
        %v1247 = vpop.f32.mrb[0].mxu0
        %v1248 = vadd.f32 %v1039, %v1247
        %v1249 = vpop.f32.mrb[0].mxu0
        %1250 = vmatprep.mubr.f32.mxu0 0.0
        %1251 = vmatmul.mubr.f32.gmra.mrb[0].mxu0 %v1133
        %v1252 = vpop.f32.mrb[0].mxu0
        %v1253 = vadd.f32 %v1044, %v1252
        %v1254 = vpop.f32.mrb[0].mxu0
        %1255 = vmatprep.mubr.f32.mxu0 0.0
        %1256 = vmatmul.mubr.f32.gmra.mrb[0].mxu0 %v1136
        %v1257 = vpop.f32.mrb[0].mxu0
        %v1258 = vadd.f32 %v1049, %v1257
        %v1259 = vpop.f32.mrb[0].mxu0
        %1260 = vmatprep.mubr.f32.mxu0 0.0
        %1261 = vmatmul.mubr.f32.gmra.mrb[0].mxu0 %v1139
        %v1262 = vpop.f32.mrb[0].mxu0
        %v1263 = vadd.f32 %v1054, %v1262
        %v1264 = vpop.f32.mrb[0].mxu0
        %1265 = vmatprep.mubr.f32.mxu0 0.0
        %1266 = vmatmul.mubr.f32.gmra.mrb[0].mxu0 %v1142
        %v1267 = vpop.f32.mrb[0].mxu0
        %v1268 = vadd.f32 %v1059, %v1267
        %v1269 = vpop.f32.mrb[0].mxu0
        %1270 = vmatprep.mubr.f32.mxu0 0.0
        %1271 = vmatmul.mubr.f32.gmra.mrb[0].mxu0 %v1145
        %v1272 = vpop.f32.mrb[0].mxu0
        %v1273 = vadd.f32 %v1064, %v1272
        %v1274 = vpop.f32.mrb[0].mxu0
        %1275 = vmatprep.mubr.f32.mxu0 0.0
        %1276 = vmatmul.mubr.f32.gmra.mrb[0].mxu0 %v1148
        %v1277 = vpop.f32.mrb[0].mxu0
        %v1278 = vadd.f32 %v1069, %v1277
        %v1279 = vpop.f32.mrb[0].mxu0
        %1280 = vmatprep.mubr.f32.mxu0 0.0
        %1281 = vmatmul.mubr.f32.gmra.mrb[0].mxu0 %v1151
        %v1282 = vpop.f32.mrb[0].mxu0
        %v1283 = vadd.f32 %v1074, %v1282
        %v1284 = vpop.f32.mrb[0].mxu0
        %1285 = vmatprep.mubr.f32.mxu0 0.0
        %1286 = vmatmul.mubr.f32.gmra.mrb[0].mxu0 %v1154
        %v1287 = vpop.f32.mrb[0].mxu0
        %v1288 = vadd.f32 %v1079, %v1287
        %v1289 = vpop.f32.mrb[0].mxu0
        %1290 = vmatprep.mubr.f32.mxu0 0.0
        %1291 = vmatmul.mubr.f32.gmra.mrb[0].mxu0 %v1157
        %v1292 = vpop.f32.mrb[0].mxu0
        %v1293 = vadd.f32 %v1084, %v1292
        %v1294 = vpop.f32.mrb[0].mxu0
        %1295 = vmatprep.mubr.f32.mxu0 0.0
        %1296 = vmatmul.mubr.f32.gmra.mrb[0].mxu0 %v1160
        %v1297 = vpop.f32.mrb[0].mxu0
        %v1298 = vadd.f32 %v1089, %v1297
        %v1299 = vpop.f32.mrb[0].mxu0
        %1300 = vmatprep.mubr.f32.mxu0 0.0
        %1301 = vmatmul.mubr.f32.gmra.mrb[0].mxu0 %v1163
        %v1302 = vpop.f32.mrb[0].mxu0
        %v1303 = vadd.f32 %v1094, %v1302
        %v1304 = vpop.f32.mrb[0].mxu0
        %1305 = vmatprep.mubr.f32.mxu0 0.0
        %1306 = vmatmul.mubr.f32.gmra.mrb[0].mxu0 %v1166
        %v1307 = vpop.f32.mrb[0].mxu0
        %v1308 = vadd.f32 %v1099, %v1307
        %v1309 = vpop.f32.mrb[0].mxu0
        %1310 = vmatprep.mubr.f32.mxu0 0.0
        %1311 = vmatmul.mubr.f32.gmra.mrb[0].mxu0 %v1169
        %v1312 = vpop.f32.mrb[0].mxu0
        %v1313 = vadd.f32 %v1104, %v1312
        %v1314 = vpop.f32.mrb[0].mxu0
        %1315 = vdwg.mxu0
        %v1316 = vmax.f32 %v1238, 0.0
        %v1317 = vmax.f32 %v1243, 0.0
        %v1318 = vmax.f32 %v1248, 0.0
        %v1319 = vmax.f32 %v1253, 0.0
        %v1320 = vmax.f32 %v1258, 0.0
        %v1321 = vmax.f32 %v1263, 0.0
        %v1322 = vmax.f32 %v1268, 0.0
        %v1323 = vmax.f32 %v1273, 0.0
        %v1324 = vmax.f32 %v1278, 0.0
        %v1325 = vmax.f32 %v1283, 0.0
        %v1326 = vmax.f32 %v1288, 0.0
        %v1327 = vmax.f32 %v1293, 0.0
        %v1328 = vmax.f32 %v1298, 0.0
        %v1329 = vmax.f32 %v1303, 0.0
        %v1330 = vmax.f32 %v1308, 0.0
        %v1331 = vmax.f32 %v1313, 0.0
        %v1333 = vlaneseq
        %v1334 = vshrl.u32 %v1333, 7
        %v1335 = vsub.s32 0, %v1334
        %v1336 = vrot.slane %v901, %v1335
        %v1339 = vsel %vm913, %v1316, 0
        %v1342 = vsel %vm913, %v1317, 0
        %v1345 = vsel %vm913, %v1318, 0
        %v1348 = vsel %vm913, %v1319, 0
        %v1351 = vsel %vm913, %v1320, 0
        %v1354 = vsel %vm913, %v1321, 0
        %v1357 = vsel %vm913, %v1322, 0
        %v1360 = vsel %vm913, %v1323, 0
        %v1363 = vsel %vm913, %v1324, 0
        %v1366 = vsel %vm913, %v1325, 0
        %v1369 = vsel %vm913, %v1326, 0
        %v1372 = vsel %vm913, %v1327, 0
        %v1375 = vsel %vm913, %v1328, 0
        %v1378 = vsel %vm913, %v1329, 0
        %v1381 = vsel %vm913, %v1330, 0
        %v1384 = vsel %vm913, %v1331, 0
        %1386 = vmatprep.subr.mxu0 0.0
        %1387 = vmatpush1.msra.mxu0 %v893
        %1388 = vmatprep.subr.mxu0 0.0
        %1389 = vmatpush1.msra.mxu0 %v894
        %1390 = vmatprep.subr.mxu0 0.0
        %1391 = vmatpush1.msra.mxu0 %v895
        %1392 = vmatprep.subr.mxu0 0.0
        %1393 = vmatpush1.msra.mxu0 %v896
        %1394 = vmatprep.subr.mxu0 0.0
        %1395 = vmatpush1.msra.mxu0 0.0
        %1396 = vmatprep.subr.mxu0 0.0
        %1397 = vmatpush1.msra.mxu0 0.0
        %1398 = vmatprep.subr.mxu0 0.0
        %1399 = vmatpush1.msra.mxu0 0.0
        %1400 = vmatprep.subr.mxu0 0.0
        %1401 = vmatpush1.msra.mxu0 0.0
        %1402 = vmatprep.subr.mxu0 0.0
        %1403 = vmatpush1.msra.mxu0 0.0
        %1404 = vmatprep.subr.mxu0 0.0
        %1405 = vmatpush1.msra.mxu0 0.0
        %1406 = vmatprep.subr.mxu0 0.0
        %1407 = vmatpush1.msra.mxu0 0.0
        %1408 = vmatprep.subr.mxu0 0.0
        %1409 = vmatpush1.msra.mxu0 0.0
        %1410 = vmatprep.subr.mxu0 0.0
        %1411 = vmatpush1.msra.mxu0 0.0
        %1412 = vmatprep.subr.mxu0 0.0
        %1413 = vmatpush1.msra.mxu0 0.0
        %1414 = vmatprep.subr.mxu0 0.0
        %1415 = vmatpush1.msra.mxu0 0.0
        %1416 = vmatprep.subr.mxu0 0.0
        %1417 = vmatpush1.msra.mxu0 0.0
        %1418 = vmatprep.subr.mxu0 0.0
        %1419 = vmatpush1.msra.mxu0 0.0
        %1420 = vmatprep.subr.mxu0 0.0
        %1421 = vmatpush1.msra.mxu0 0.0
        %1422 = vmatprep.subr.mxu0 0.0
        %1423 = vmatpush1.msra.mxu0 0.0
        %1424 = vmatprep.subr.mxu0 0.0
        %1425 = vmatpush1.msra.mxu0 0.0
        %1426 = vmatprep.subr.mxu0 0.0
        %1427 = vmatpush1.msra.mxu0 0.0
        %1428 = vmatprep.subr.mxu0 0.0
        %1429 = vmatpush1.msra.mxu0 0.0
        %1430 = vmatprep.subr.mxu0 0.0
        %1431 = vmatpush1.msra.mxu0 0.0
        %1432 = vmatprep.subr.mxu0 0.0
        %1433 = vmatpush1.msra.mxu0 0.0
        %1434 = vmatprep.subr.mxu0 0.0
        %1435 = vmatpush1.msra.mxu0 0.0
        %1436 = vmatprep.subr.mxu0 0.0
        %1437 = vmatpush1.msra.mxu0 0.0
        %1438 = vmatprep.subr.mxu0 0.0
        %1439 = vmatpush1.msra.mxu0 0.0
        %1440 = vmatprep.subr.mxu0 0.0
        %1441 = vmatpush1.msra.mxu0 0.0
        %1442 = vmatprep.subr.mxu0 0.0
        %1443 = vmatpush1.msra.mxu0 0.0
        %1444 = vmatprep.subr.mxu0 0.0
        %1445 = vmatpush1.msra.mxu0 0.0
        %1446 = vmatprep.subr.mxu0 0.0
        %1447 = vmatpush1.msra.mxu0 0.0
        %1448 = vmatprep.subr.mxu0 0.0
        %1449 = vmatpush1.msra.mxu0 0.0
        %1450 = vmatprep.mubr.f32.mxu0 0.0
        %1451 = vmatmul.mubr.f32.gmra.mrb[0].mxu0 %v1339
        %v1452 = vpop.f32.mrb[0].mxu0
        %v1453 = vadd.f32 %v1336, %v1452
        %v1454 = vpop.f32.mrb[0].mxu0
        %1455 = vmatprep.mubr.f32.mxu0 0.0
        %1456 = vmatmul.mubr.f32.gmra.mrb[0].mxu0 %v1342
        %v1457 = vpop.f32.mrb[0].mxu0
        %v1458 = vadd.f32 %v1336, %v1457
        %v1459 = vpop.f32.mrb[0].mxu0
        %1460 = vmatprep.mubr.f32.mxu0 0.0
        %1461 = vmatmul.mubr.f32.gmra.mrb[0].mxu0 %v1345
        %v1462 = vpop.f32.mrb[0].mxu0
        %v1463 = vadd.f32 %v1336, %v1462
        %v1464 = vpop.f32.mrb[0].mxu0
        %1465 = vmatprep.mubr.f32.mxu0 0.0
        %1466 = vmatmul.mubr.f32.gmra.mrb[0].mxu0 %v1348
        %v1467 = vpop.f32.mrb[0].mxu0
        %v1468 = vadd.f32 %v1336, %v1467
        %v1469 = vpop.f32.mrb[0].mxu0
        %1470 = vmatprep.mubr.f32.mxu0 0.0
        %1471 = vmatmul.mubr.f32.gmra.mrb[0].mxu0 %v1351
        %v1472 = vpop.f32.mrb[0].mxu0
        %v1473 = vadd.f32 %v1336, %v1472
        %v1474 = vpop.f32.mrb[0].mxu0
        %1475 = vmatprep.mubr.f32.mxu0 0.0
        %1476 = vmatmul.mubr.f32.gmra.mrb[0].mxu0 %v1354
        %v1477 = vpop.f32.mrb[0].mxu0
        %v1478 = vadd.f32 %v1336, %v1477
        %v1479 = vpop.f32.mrb[0].mxu0
        %1480 = vmatprep.mubr.f32.mxu0 0.0
        %1481 = vmatmul.mubr.f32.gmra.mrb[0].mxu0 %v1357
        %v1482 = vpop.f32.mrb[0].mxu0
        %v1483 = vadd.f32 %v1336, %v1482
        %v1484 = vpop.f32.mrb[0].mxu0
        %1485 = vmatprep.mubr.f32.mxu0 0.0
        %1486 = vmatmul.mubr.f32.gmra.mrb[0].mxu0 %v1360
        %v1487 = vpop.f32.mrb[0].mxu0
        %v1488 = vadd.f32 %v1336, %v1487
        %v1489 = vpop.f32.mrb[0].mxu0
        %1490 = vmatprep.mubr.f32.mxu0 0.0
        %1491 = vmatmul.mubr.f32.gmra.mrb[0].mxu0 %v1363
        %v1492 = vpop.f32.mrb[0].mxu0
        %v1493 = vadd.f32 %v1336, %v1492
        %v1494 = vpop.f32.mrb[0].mxu0
        %1495 = vmatprep.mubr.f32.mxu0 0.0
        %1496 = vmatmul.mubr.f32.gmra.mrb[0].mxu0 %v1366
        %v1497 = vpop.f32.mrb[0].mxu0
        %v1498 = vadd.f32 %v1336, %v1497
        %v1499 = vpop.f32.mrb[0].mxu0
        %1500 = vmatprep.mubr.f32.mxu0 0.0
        %1501 = vmatmul.mubr.f32.gmra.mrb[0].mxu0 %v1369
        %v1502 = vpop.f32.mrb[0].mxu0
        %v1503 = vadd.f32 %v1336, %v1502
        %v1504 = vpop.f32.mrb[0].mxu0
        %1505 = vmatprep.mubr.f32.mxu0 0.0
        %1506 = vmatmul.mubr.f32.gmra.mrb[0].mxu0 %v1372
        %v1507 = vpop.f32.mrb[0].mxu0
        %v1508 = vadd.f32 %v1336, %v1507
        %v1509 = vpop.f32.mrb[0].mxu0
        %1510 = vmatprep.mubr.f32.mxu0 0.0
        %1511 = vmatmul.mubr.f32.gmra.mrb[0].mxu0 %v1375
        %v1512 = vpop.f32.mrb[0].mxu0
        %v1513 = vadd.f32 %v1336, %v1512
        %v1514 = vpop.f32.mrb[0].mxu0
        %1515 = vmatprep.mubr.f32.mxu0 0.0
        %1516 = vmatmul.mubr.f32.gmra.mrb[0].mxu0 %v1378
        %v1517 = vpop.f32.mrb[0].mxu0
        %v1518 = vadd.f32 %v1336, %v1517
        %v1519 = vpop.f32.mrb[0].mxu0
        %1520 = vmatprep.mubr.f32.mxu0 0.0
        %1521 = vmatmul.mubr.f32.gmra.mrb[0].mxu0 %v1381
        %v1522 = vpop.f32.mrb[0].mxu0
        %v1523 = vadd.f32 %v1336, %v1522
        %v1524 = vpop.f32.mrb[0].mxu0
        %1525 = vmatprep.mubr.f32.mxu0 0.0
        %1526 = vmatmul.mubr.f32.gmra.mrb[0].mxu0 %v1384
        %v1527 = vpop.f32.mrb[0].mxu0
        %v1528 = vadd.f32 %v1336, %v1527
        %v1529 = vpop.f32.mrb[0].mxu0
        %1530 = vdwg.mxu0
        %v1531 = vmax.f32 %v1453, 0.0
        %v1532 = vmax.f32 %v1458, 0.0
        %v1533 = vmax.f32 %v1463, 0.0
        %v1534 = vmax.f32 %v1468, 0.0
        %v1535 = vmax.f32 %v1473, 0.0
        %v1536 = vmax.f32 %v1478, 0.0
        %v1537 = vmax.f32 %v1483, 0.0
        %v1538 = vmax.f32 %v1488, 0.0
        %v1539 = vmax.f32 %v1493, 0.0
        %v1540 = vmax.f32 %v1498, 0.0
        %v1541 = vmax.f32 %v1503, 0.0
        %v1542 = vmax.f32 %v1508, 0.0
        %v1543 = vmax.f32 %v1513, 0.0
        %v1544 = vmax.f32 %v1518, 0.0
        %v1545 = vmax.f32 %v1523, 0.0
        %v1546 = vmax.f32 %v1528, 0.0
        %v1548 = vsel %vm913, %v1531, 0
        %v1551 = vsel %vm913, %v1532, 0
        %v1554 = vsel %vm913, %v1533, 0
        %v1557 = vsel %vm913, %v1534, 0
        %v1560 = vsel %vm913, %v1535, 0
        %v1563 = vsel %vm913, %v1536, 0
        %v1566 = vsel %vm913, %v1537, 0
        %v1569 = vsel %vm913, %v1538, 0
        %v1572 = vsel %vm913, %v1539, 0
        %v1575 = vsel %vm913, %v1540, 0
        %v1578 = vsel %vm913, %v1541, 0
        %v1581 = vsel %vm913, %v1542, 0
        %v1584 = vsel %vm913, %v1543, 0
        %v1587 = vsel %vm913, %v1544, 0
        %v1590 = vsel %vm913, %v1545, 0
        %v1593 = vsel %vm913, %v1546, 0
        %1595 = vmatprep.subr.mxu0 0.0
        %1596 = vmatpush1.msra.mxu0 %v897
        %1597 = vmatprep.subr.mxu0 0.0
        %1598 = vmatpush1.msra.mxu0 %v898
        %1599 = vmatprep.subr.mxu0 0.0
        %1600 = vmatpush1.msra.mxu0 %v899
        %1601 = vmatprep.subr.mxu0 0.0
        %1602 = vmatpush1.msra.mxu0 %v900
        %1603 = vmatprep.subr.mxu0 0.0
        %1604 = vmatpush1.msra.mxu0 0.0
        %1605 = vmatprep.subr.mxu0 0.0
        %1606 = vmatpush1.msra.mxu0 0.0
        %1607 = vmatprep.subr.mxu0 0.0
        %1608 = vmatpush1.msra.mxu0 0.0
        %1609 = vmatprep.subr.mxu0 0.0
        %1610 = vmatpush1.msra.mxu0 0.0
        %1611 = vmatprep.subr.mxu0 0.0
        %1612 = vmatpush1.msra.mxu0 0.0
        %1613 = vmatprep.subr.mxu0 0.0
        %1614 = vmatpush1.msra.mxu0 0.0
        %1615 = vmatprep.subr.mxu0 0.0
        %1616 = vmatpush1.msra.mxu0 0.0
        %1617 = vmatprep.subr.mxu0 0.0
        %1618 = vmatpush1.msra.mxu0 0.0
        %1619 = vmatprep.subr.mxu0 0.0
        %1620 = vmatpush1.msra.mxu0 0.0
        %1621 = vmatprep.subr.mxu0 0.0
        %1622 = vmatpush1.msra.mxu0 0.0
        %1623 = vmatprep.subr.mxu0 0.0
        %1624 = vmatpush1.msra.mxu0 0.0
        %1625 = vmatprep.subr.mxu0 0.0
        %1626 = vmatpush1.msra.mxu0 0.0
        %1627 = vmatprep.subr.mxu0 0.0
        %1628 = vmatpush1.msra.mxu0 0.0
        %1629 = vmatprep.subr.mxu0 0.0
        %1630 = vmatpush1.msra.mxu0 0.0
        %1631 = vmatprep.subr.mxu0 0.0
        %1632 = vmatpush1.msra.mxu0 0.0
        %1633 = vmatprep.subr.mxu0 0.0
        %1634 = vmatpush1.msra.mxu0 0.0
        %1635 = vmatprep.subr.mxu0 0.0
        %1636 = vmatpush1.msra.mxu0 0.0
        %1637 = vmatprep.subr.mxu0 0.0
        %1638 = vmatpush1.msra.mxu0 0.0
        %1639 = vmatprep.subr.mxu0 0.0
        %1640 = vmatpush1.msra.mxu0 0.0
        %1641 = vmatprep.subr.mxu0 0.0
        %1642 = vmatpush1.msra.mxu0 0.0
        %1643 = vmatprep.subr.mxu0 0.0
        %1644 = vmatpush1.msra.mxu0 0.0
        %1645 = vmatprep.subr.mxu0 0.0
        %1646 = vmatpush1.msra.mxu0 0.0
        %1647 = vmatprep.subr.mxu0 0.0
        %1648 = vmatpush1.msra.mxu0 0.0
        %1649 = vmatprep.subr.mxu0 0.0
        %1650 = vmatpush1.msra.mxu0 0.0
        %1651 = vmatprep.subr.mxu0 0.0
        %1652 = vmatpush1.msra.mxu0 0.0
        %1653 = vmatprep.subr.mxu0 0.0
        %1654 = vmatpush1.msra.mxu0 0.0
        %1655 = vmatprep.subr.mxu0 0.0
        %1656 = vmatpush1.msra.mxu0 0.0
        %1657 = vmatprep.subr.mxu0 0.0
        %1658 = vmatpush1.msra.mxu0 0.0
        %1659 = vmatprep.mubr.f32.mxu0 0.0
        %1660 = vmatmul.mubr.f32.gmra.mrb[0].mxu0 %v1548
        %v1661 = vpop.f32.mrb[0].mxu0
        %v1662 = vadd.f32 0.0, %v1661
        %v1663 = vpop.f32.mrb[0].mxu0
        %1664 = vmatprep.mubr.f32.mxu0 0.0
        %1665 = vmatmul.mubr.f32.gmra.mrb[0].mxu0 %v1551
        %v1666 = vpop.f32.mrb[0].mxu0
        %v1667 = vadd.f32 0.0, %v1666
        %v1668 = vpop.f32.mrb[0].mxu0
        %1669 = vmatprep.mubr.f32.mxu0 0.0
        %1670 = vmatmul.mubr.f32.gmra.mrb[0].mxu0 %v1554
        %v1671 = vpop.f32.mrb[0].mxu0
        %v1672 = vadd.f32 0.0, %v1671
        %v1673 = vpop.f32.mrb[0].mxu0
        %1674 = vmatprep.mubr.f32.mxu0 0.0
        %1675 = vmatmul.mubr.f32.gmra.mrb[0].mxu0 %v1557
        %v1676 = vpop.f32.mrb[0].mxu0
        %v1677 = vadd.f32 0.0, %v1676
        %v1678 = vpop.f32.mrb[0].mxu0
        %1679 = vmatprep.mubr.f32.mxu0 0.0
        %1680 = vmatmul.mubr.f32.gmra.mrb[0].mxu0 %v1560
        %v1681 = vpop.f32.mrb[0].mxu0
        %v1682 = vadd.f32 0.0, %v1681
        %v1683 = vpop.f32.mrb[0].mxu0
        %1684 = vmatprep.mubr.f32.mxu0 0.0
        %1685 = vmatmul.mubr.f32.gmra.mrb[0].mxu0 %v1563
        %v1686 = vpop.f32.mrb[0].mxu0
        %v1687 = vadd.f32 0.0, %v1686
        %v1688 = vpop.f32.mrb[0].mxu0
        %1689 = vmatprep.mubr.f32.mxu0 0.0
        %1690 = vmatmul.mubr.f32.gmra.mrb[0].mxu0 %v1566
        %v1691 = vpop.f32.mrb[0].mxu0
        %v1692 = vadd.f32 0.0, %v1691
        %v1693 = vpop.f32.mrb[0].mxu0
        %1694 = vmatprep.mubr.f32.mxu0 0.0
        %1695 = vmatmul.mubr.f32.gmra.mrb[0].mxu0 %v1569
        %v1696 = vpop.f32.mrb[0].mxu0
        %v1697 = vadd.f32 0.0, %v1696
        %v1698 = vpop.f32.mrb[0].mxu0
        %1699 = vmatprep.mubr.f32.mxu0 0.0
        %1700 = vmatmul.mubr.f32.gmra.mrb[0].mxu0 %v1572
        %v1701 = vpop.f32.mrb[0].mxu0
        %v1702 = vadd.f32 0.0, %v1701
        %v1703 = vpop.f32.mrb[0].mxu0
        %1704 = vmatprep.mubr.f32.mxu0 0.0
        %1705 = vmatmul.mubr.f32.gmra.mrb[0].mxu0 %v1575
        %v1706 = vpop.f32.mrb[0].mxu0
        %v1707 = vadd.f32 0.0, %v1706
        %v1708 = vpop.f32.mrb[0].mxu0
        %1709 = vmatprep.mubr.f32.mxu0 0.0
        %1710 = vmatmul.mubr.f32.gmra.mrb[0].mxu0 %v1578
        %v1711 = vpop.f32.mrb[0].mxu0
        %v1712 = vadd.f32 0.0, %v1711
        %v1713 = vpop.f32.mrb[0].mxu0
        %1714 = vmatprep.mubr.f32.mxu0 0.0
        %1715 = vmatmul.mubr.f32.gmra.mrb[0].mxu0 %v1581
        %v1716 = vpop.f32.mrb[0].mxu0
        %v1717 = vadd.f32 0.0, %v1716
        %v1718 = vpop.f32.mrb[0].mxu0
        %1719 = vmatprep.mubr.f32.mxu0 0.0
        %1720 = vmatmul.mubr.f32.gmra.mrb[0].mxu0 %v1584
        %v1721 = vpop.f32.mrb[0].mxu0
        %v1722 = vadd.f32 0.0, %v1721
        %v1723 = vpop.f32.mrb[0].mxu0
        %1724 = vmatprep.mubr.f32.mxu0 0.0
        %1725 = vmatmul.mubr.f32.gmra.mrb[0].mxu0 %v1587
        %v1726 = vpop.f32.mrb[0].mxu0
        %v1727 = vadd.f32 0.0, %v1726
        %v1728 = vpop.f32.mrb[0].mxu0
        %1729 = vmatprep.mubr.f32.mxu0 0.0
        %1730 = vmatmul.mubr.f32.gmra.mrb[0].mxu0 %v1590
        %v1731 = vpop.f32.mrb[0].mxu0
        %v1732 = vadd.f32 0.0, %v1731
        %v1733 = vpop.f32.mrb[0].mxu0
        %1734 = vmatprep.mubr.f32.mxu0 0.0
        %1735 = vmatmul.mubr.f32.gmra.mrb[0].mxu0 %v1593
        %v1736 = vpop.f32.mrb[0].mxu0
        %v1737 = vadd.f32 0.0, %v1736
        %v1738 = vpop.f32.mrb[0].mxu0
        %1739 = vdwg.mxu0
        %v1740 = vsub.f32 -inf, %v1662
        %v1741 = vsub.f32 -inf, %v1667
        %v1742 = vsub.f32 -inf, %v1672
        %v1743 = vsub.f32 -inf, %v1677
        %v1744 = vsub.f32 -inf, %v1682
        %v1745 = vsub.f32 -inf, %v1687
        %v1746 = vsub.f32 -inf, %v1692
        %v1747 = vsub.f32 -inf, %v1697
        %v1748 = vsub.f32 -inf, %v1702
        %v1749 = vsub.f32 -inf, %v1707
        %v1750 = vsub.f32 -inf, %v1712
        %v1751 = vsub.f32 -inf, %v1717
        %v1752 = vsub.f32 -inf, %v1722
        %v1753 = vsub.f32 -inf, %v1727
        %v1754 = vsub.f32 -inf, %v1732
        %v1755 = vsub.f32 -inf, %v1737
        %v1756 = vmul.f32 %v1740, 1.442695
        %v1757 = vpow.pop %v1756
        %v1758 = vmul.f32 %v1741, 1.442695
        %v1759 = vpow.pop %v1758
        %v1760 = vmul.f32 %v1742, 1.442695
        %v1761 = vpow.pop %v1760
        %v1762 = vmul.f32 %v1743, 1.442695
        %v1763 = vpow.pop %v1762
        %v1764 = vmul.f32 %v1744, 1.442695
        %v1765 = vpow.pop %v1764
        %v1766 = vmul.f32 %v1745, 1.442695
        %v1767 = vpow.pop %v1766
        %v1768 = vmul.f32 %v1746, 1.442695
        %v1769 = vpow.pop %v1768
        %v1770 = vmul.f32 %v1747, 1.442695
        %v1771 = vpow.pop %v1770
        %v1772 = vmul.f32 %v1748, 1.442695
        %v1773 = vpow.pop %v1772
        %v1774 = vmul.f32 %v1749, 1.442695
        %v1775 = vpow.pop %v1774
        %v1776 = vmul.f32 %v1750, 1.442695
        %v1777 = vpow.pop %v1776
        %v1778 = vmul.f32 %v1751, 1.442695
        %v1779 = vpow.pop %v1778
        %v1780 = vmul.f32 %v1752, 1.442695
        %v1781 = vpow.pop %v1780
        %v1782 = vmul.f32 %v1753, 1.442695
        %v1783 = vpow.pop %v1782
        %v1784 = vmul.f32 %v1754, 1.442695
        %v1785 = vpow.pop %v1784
        %v1786 = vmul.f32 %v1755, 1.442695
        %v1787 = vpow.pop %v1786
        %v1788 = vsub.f32 %v1662, %v1662
        %v1789 = vsub.f32 %v1667, %v1667
        %v1790 = vsub.f32 %v1672, %v1672
        %v1791 = vsub.f32 %v1677, %v1677
        %v1792 = vsub.f32 %v1682, %v1682
        %v1793 = vsub.f32 %v1687, %v1687
        %v1794 = vsub.f32 %v1692, %v1692
        %v1795 = vsub.f32 %v1697, %v1697
        %v1796 = vsub.f32 %v1702, %v1702
        %v1797 = vsub.f32 %v1707, %v1707
        %v1798 = vsub.f32 %v1712, %v1712
        %v1799 = vsub.f32 %v1717, %v1717
        %v1800 = vsub.f32 %v1722, %v1722
        %v1801 = vsub.f32 %v1727, %v1727
        %v1802 = vsub.f32 %v1732, %v1732
        %v1803 = vsub.f32 %v1737, %v1737
        %v1804 = vmul.f32 %v1788, 1.442695
        %v1805 = vpow.pop %v1804
        %v1806 = vmul.f32 %v1789, 1.442695
        %v1807 = vpow.pop %v1806
        %v1808 = vmul.f32 %v1790, 1.442695
        %v1809 = vpow.pop %v1808
        %v1810 = vmul.f32 %v1791, 1.442695
        %v1811 = vpow.pop %v1810
        %v1812 = vmul.f32 %v1792, 1.442695
        %v1813 = vpow.pop %v1812
        %v1814 = vmul.f32 %v1793, 1.442695
        %v1815 = vpow.pop %v1814
        %v1816 = vmul.f32 %v1794, 1.442695
        %v1817 = vpow.pop %v1816
        %v1818 = vmul.f32 %v1795, 1.442695
        %v1819 = vpow.pop %v1818
        %v1820 = vmul.f32 %v1796, 1.442695
        %v1821 = vpow.pop %v1820
        %v1822 = vmul.f32 %v1797, 1.442695
        %v1823 = vpow.pop %v1822
        %v1824 = vmul.f32 %v1798, 1.442695
        %v1825 = vpow.pop %v1824
        %v1826 = vmul.f32 %v1799, 1.442695
        %v1827 = vpow.pop %v1826
        %v1828 = vmul.f32 %v1800, 1.442695
        %v1829 = vpow.pop %v1828
        %v1830 = vmul.f32 %v1801, 1.442695
        %v1831 = vpow.pop %v1830
        %v1832 = vmul.f32 %v1802, 1.442695
        %v1833 = vpow.pop %v1832
        %v1834 = vmul.f32 %v1803, 1.442695
        %v1835 = vpow.pop %v1834
        %v1836 = vmul.f32 %v1757, 0.0
        %v1837 = vmul.f32 %v1759, 0.0
        %v1838 = vmul.f32 %v1761, 0.0
        %v1839 = vmul.f32 %v1763, 0.0
        %v1840 = vmul.f32 %v1765, 0.0
        %v1841 = vmul.f32 %v1767, 0.0
        %v1842 = vmul.f32 %v1769, 0.0
        %v1843 = vmul.f32 %v1771, 0.0
        %v1844 = vmul.f32 %v1773, 0.0
        %v1845 = vmul.f32 %v1775, 0.0
        %v1846 = vmul.f32 %v1777, 0.0
        %v1847 = vmul.f32 %v1779, 0.0
        %v1848 = vmul.f32 %v1781, 0.0
        %v1849 = vmul.f32 %v1783, 0.0
        %v1850 = vmul.f32 %v1785, 0.0
        %v1851 = vmul.f32 %v1787, 0.0
        %v1852 = vadd.f32 %v1836, %v1805
        %v1853 = vadd.f32 %v1837, %v1807
        %v1854 = vadd.f32 %v1838, %v1809
        %v1855 = vadd.f32 %v1839, %v1811
        %v1856 = vadd.f32 %v1840, %v1813
        %v1857 = vadd.f32 %v1841, %v1815
        %v1858 = vadd.f32 %v1842, %v1817
        %v1859 = vadd.f32 %v1843, %v1819
        %v1860 = vadd.f32 %v1844, %v1821
        %v1861 = vadd.f32 %v1845, %v1823
        %v1862 = vadd.f32 %v1846, %v1825
        %v1863 = vadd.f32 %v1847, %v1827
        %v1864 = vadd.f32 %v1848, %v1829
        %v1865 = vadd.f32 %v1849, %v1831
        %v1866 = vadd.f32 %v1850, %v1833
        %v1867 = vadd.f32 %v1851, %v1835
        %1869 = vset.pattern.permute.xlu0 0
        %1870 = vperm.xlu0 %1869, %v1757
        %v1871 = vpop.permute.xlu0 %1870
        %1874 = vset.pattern.permute.xlu0 0
        %1875 = vperm.xlu0 %1874, %v1759
        %v1876 = vpop.permute.xlu0 %1875
        %1879 = vset.pattern.permute.xlu0 0
        %1880 = vperm.xlu0 %1879, %v1761
        %v1881 = vpop.permute.xlu0 %1880
        %1884 = vset.pattern.permute.xlu0 0
        %1885 = vperm.xlu0 %1884, %v1763
        %v1886 = vpop.permute.xlu0 %1885
        %1889 = vset.pattern.permute.xlu0 0
        %1890 = vperm.xlu0 %1889, %v1765
        %v1891 = vpop.permute.xlu0 %1890
        %1894 = vset.pattern.permute.xlu0 0
        %1895 = vperm.xlu0 %1894, %v1767
        %v1896 = vpop.permute.xlu0 %1895
        %1899 = vset.pattern.permute.xlu0 0
        %1900 = vperm.xlu0 %1899, %v1769
        %v1901 = vpop.permute.xlu0 %1900
        %1904 = vset.pattern.permute.xlu0 0
        %1905 = vperm.xlu0 %1904, %v1771
        %v1906 = vpop.permute.xlu0 %1905
        %1909 = vset.pattern.permute.xlu0 0
        %1910 = vperm.xlu0 %1909, %v1773
        %v1911 = vpop.permute.xlu0 %1910
        %1914 = vset.pattern.permute.xlu0 0
        %1915 = vperm.xlu0 %1914, %v1775
        %v1916 = vpop.permute.xlu0 %1915
        %1919 = vset.pattern.permute.xlu0 0
        %1920 = vperm.xlu0 %1919, %v1777
        %v1921 = vpop.permute.xlu0 %1920
        %1924 = vset.pattern.permute.xlu0 0
        %1925 = vperm.xlu0 %1924, %v1779
        %v1926 = vpop.permute.xlu0 %1925
        %1929 = vset.pattern.permute.xlu0 0
        %1930 = vperm.xlu0 %1929, %v1781
        %v1931 = vpop.permute.xlu0 %1930
        %1934 = vset.pattern.permute.xlu0 0
        %1935 = vperm.xlu0 %1934, %v1783
        %v1936 = vpop.permute.xlu0 %1935
        %1939 = vset.pattern.permute.xlu0 0
        %1940 = vperm.xlu0 %1939, %v1785
        %v1941 = vpop.permute.xlu0 %1940
        %1944 = vset.pattern.permute.xlu0 0
        %1945 = vperm.xlu0 %1944, %v1787
        %v1946 = vpop.permute.xlu0 %1945
        %v1948 = vmul.f32 %v1871, 0.0
        %v1949 = vmul.f32 %v1876, 0.0
        %v1950 = vmul.f32 %v1881, 0.0
        %v1951 = vmul.f32 %v1886, 0.0
        %v1952 = vmul.f32 %v1891, 0.0
        %v1953 = vmul.f32 %v1896, 0.0
        %v1954 = vmul.f32 %v1901, 0.0
        %v1955 = vmul.f32 %v1906, 0.0
        %v1956 = vmul.f32 %v1911, 0.0
        %v1957 = vmul.f32 %v1916, 0.0
        %v1958 = vmul.f32 %v1921, 0.0
        %v1959 = vmul.f32 %v1926, 0.0
        %v1960 = vmul.f32 %v1931, 0.0
        %v1961 = vmul.f32 %v1936, 0.0
        %v1962 = vmul.f32 %v1941, 0.0
        %v1963 = vmul.f32 %v1946, 0.0
        %1965 = vset.pattern.permute.xlu0 0
        %1966 = vperm.xlu0 %1965, %v1805
        %v1967 = vpop.permute.xlu0 %1966
        %1970 = vset.pattern.permute.xlu0 0
        %1971 = vperm.xlu0 %1970, %v1807
        %v1972 = vpop.permute.xlu0 %1971
        %1975 = vset.pattern.permute.xlu0 0
        %1976 = vperm.xlu0 %1975, %v1809
        %v1977 = vpop.permute.xlu0 %1976
        %1980 = vset.pattern.permute.xlu0 0
        %1981 = vperm.xlu0 %1980, %v1811
        %v1982 = vpop.permute.xlu0 %1981
        %1985 = vset.pattern.permute.xlu0 0
        %1986 = vperm.xlu0 %1985, %v1813
        %v1987 = vpop.permute.xlu0 %1986
        %1990 = vset.pattern.permute.xlu0 0
        %1991 = vperm.xlu0 %1990, %v1815
        %v1992 = vpop.permute.xlu0 %1991
        %1995 = vset.pattern.permute.xlu0 0
        %1996 = vperm.xlu0 %1995, %v1817
        %v1997 = vpop.permute.xlu0 %1996
        %2000 = vset.pattern.permute.xlu0 0
        %2001 = vperm.xlu0 %2000, %v1819
        %v2002 = vpop.permute.xlu0 %2001
        %2005 = vset.pattern.permute.xlu0 0
        %2006 = vperm.xlu0 %2005, %v1821
        %v2007 = vpop.permute.xlu0 %2006
        %2010 = vset.pattern.permute.xlu0 0
        %2011 = vperm.xlu0 %2010, %v1823
        %v2012 = vpop.permute.xlu0 %2011
        %2015 = vset.pattern.permute.xlu0 0
        %2016 = vperm.xlu0 %2015, %v1825
        %v2017 = vpop.permute.xlu0 %2016
        %2020 = vset.pattern.permute.xlu0 0
        %2021 = vperm.xlu0 %2020, %v1827
        %v2022 = vpop.permute.xlu0 %2021
        %2025 = vset.pattern.permute.xlu0 0
        %2026 = vperm.xlu0 %2025, %v1829
        %v2027 = vpop.permute.xlu0 %2026
        %2030 = vset.pattern.permute.xlu0 0
        %2031 = vperm.xlu0 %2030, %v1831
        %v2032 = vpop.permute.xlu0 %2031
        %2035 = vset.pattern.permute.xlu0 0
        %2036 = vperm.xlu0 %2035, %v1833
        %v2037 = vpop.permute.xlu0 %2036
        %2040 = vset.pattern.permute.xlu0 0
        %2041 = vperm.xlu0 %2040, %v1835
        %v2042 = vpop.permute.xlu0 %2041
        %v2044 = vmul.f32 %v1967, %v1107
        %v2045 = vmul.f32 %v1972, %v1108
        %v2046 = vmul.f32 %v1977, %v1109
        %v2047 = vmul.f32 %v1982, %v1110
        %v2048 = vmul.f32 %v1987, %v1111
        %v2049 = vmul.f32 %v1992, %v1112
        %v2050 = vmul.f32 %v1997, %v1113
        %v2051 = vmul.f32 %v2002, %v1114
        %v2052 = vmul.f32 %v2007, %v1115
        %v2053 = vmul.f32 %v2012, %v1116
        %v2054 = vmul.f32 %v2017, %v1117
        %v2055 = vmul.f32 %v2022, %v1118
        %v2056 = vmul.f32 %v2027, %v1119
        %v2057 = vmul.f32 %v2032, %v1120
        %v2058 = vmul.f32 %v2037, %v1121
        %v2059 = vmul.f32 %v2042, %v1122
        %v2060 = vadd.f32 %v1948, %v2044
        %v2061 = vadd.f32 %v1949, %v2045
        %v2062 = vadd.f32 %v1950, %v2046
        %v2063 = vadd.f32 %v1951, %v2047
        %v2064 = vadd.f32 %v1952, %v2048
        %v2065 = vadd.f32 %v1953, %v2049
        %v2066 = vadd.f32 %v1954, %v2050
        %v2067 = vadd.f32 %v1955, %v2051
        %v2068 = vadd.f32 %v1956, %v2052
        %v2069 = vadd.f32 %v1957, %v2053
        %v2070 = vadd.f32 %v1958, %v2054
        %v2071 = vadd.f32 %v1959, %v2055
        %v2072 = vadd.f32 %v1960, %v2056
        %v2073 = vadd.f32 %v1961, %v2057
        %v2074 = vadd.f32 %v1962, %v2058
        %v2075 = vadd.f32 %v1963, %v2059
        %s2076 = scalar_lea.vmem %s824, 128 [#allocation2]
        %v2077 = vld [vmem:[%s2076] sm:$0xff]
        %v2078 = vld [vmem:[%s2076 + $0x8] sm:$0xff]
        %v2079 = vld [vmem:[%s2076 + $0x10] sm:$0xff]
        %v2080 = vld [vmem:[%s2076 + $0x18] sm:$0xff]
        %v2081 = vld [vmem:[%s2076 + $0x20] sm:$0xff]
        %v2082 = vld [vmem:[%s2076 + $0x28] sm:$0xff]
        %v2083 = vld [vmem:[%s2076 + $0x30] sm:$0xff]
        %v2084 = vld [vmem:[%s2076 + $0x38] sm:$0xff]
        %v2085 = vld [vmem:[%s2076 + $0x40] sm:$0xff]
        %v2086 = vld [vmem:[%s2076 + $0x48] sm:$0xff]
        %v2087 = vld [vmem:[%s2076 + $0x50] sm:$0xff]
        %v2088 = vld [vmem:[%s2076 + $0x58] sm:$0xff]
        %v2089 = vld [vmem:[%s2076 + $0x60] sm:$0xff]
        %v2090 = vld [vmem:[%s2076 + $0x68] sm:$0xff]
        %v2091 = vld [vmem:[%s2076 + $0x70] sm:$0xff]
        %v2092 = vld [vmem:[%s2076 + $0x78] sm:$0xff]
        %v2094 = vsel %vm913, %v2077, 0
        %v2097 = vsel %vm913, %v2078, 0
        %v2100 = vsel %vm913, %v2079, 0
        %v2103 = vsel %vm913, %v2080, 0
        %v2106 = vsel %vm913, %v2081, 0
        %v2109 = vsel %vm913, %v2082, 0
        %v2112 = vsel %vm913, %v2083, 0
        %v2115 = vsel %vm913, %v2084, 0
        %v2118 = vsel %vm913, %v2085, 0
        %v2121 = vsel %vm913, %v2086, 0
        %v2124 = vsel %vm913, %v2087, 0
        %v2127 = vsel %vm913, %v2088, 0
        %v2130 = vsel %vm913, %v2089, 0
        %v2133 = vsel %vm913, %v2090, 0
        %v2136 = vsel %vm913, %v2091, 0
        %v2139 = vsel %vm913, %v2092, 0
        %2141 = vmatprep.subr.mxu0 0.0
        %2142 = vmatpush1.msra.mxu0 %v889
        %2143 = vmatprep.subr.mxu0 0.0
        %2144 = vmatpush1.msra.mxu0 %v890
        %2145 = vmatprep.subr.mxu0 0.0
        %2146 = vmatpush1.msra.mxu0 %v891
        %2147 = vmatprep.subr.mxu0 0.0
        %2148 = vmatpush1.msra.mxu0 %v892
        %2149 = vmatprep.subr.mxu0 0.0
        %2150 = vmatpush1.msra.mxu0 0.0
        %2151 = vmatprep.subr.mxu0 0.0
        %2152 = vmatpush1.msra.mxu0 0.0
        %2153 = vmatprep.subr.mxu0 0.0
        %2154 = vmatpush1.msra.mxu0 0.0
        %2155 = vmatprep.subr.mxu0 0.0
        %2156 = vmatpush1.msra.mxu0 0.0
        %2157 = vmatprep.subr.mxu0 0.0
        %2158 = vmatpush1.msra.mxu0 0.0
        %2159 = vmatprep.subr.mxu0 0.0
        %2160 = vmatpush1.msra.mxu0 0.0
        %2161 = vmatprep.subr.mxu0 0.0
        %2162 = vmatpush1.msra.mxu0 0.0
        %2163 = vmatprep.subr.mxu0 0.0
        %2164 = vmatpush1.msra.mxu0 0.0
        %2165 = vmatprep.subr.mxu0 0.0
        %2166 = vmatpush1.msra.mxu0 0.0
        %2167 = vmatprep.subr.mxu0 0.0
        %2168 = vmatpush1.msra.mxu0 0.0
        %2169 = vmatprep.subr.mxu0 0.0
        %2170 = vmatpush1.msra.mxu0 0.0
        %2171 = vmatprep.subr.mxu0 0.0
        %2172 = vmatpush1.msra.mxu0 0.0
        %2173 = vmatprep.subr.mxu0 0.0
        %2174 = vmatpush1.msra.mxu0 0.0
        %2175 = vmatprep.subr.mxu0 0.0
        %2176 = vmatpush1.msra.mxu0 0.0
        %2177 = vmatprep.subr.mxu0 0.0
        %2178 = vmatpush1.msra.mxu0 0.0
        %2179 = vmatprep.subr.mxu0 0.0
        %2180 = vmatpush1.msra.mxu0 0.0
        %2181 = vmatprep.subr.mxu0 0.0
        %2182 = vmatpush1.msra.mxu0 0.0
        %2183 = vmatprep.subr.mxu0 0.0
        %2184 = vmatpush1.msra.mxu0 0.0
        %2185 = vmatprep.subr.mxu0 0.0
        %2186 = vmatpush1.msra.mxu0 0.0
        %2187 = vmatprep.subr.mxu0 0.0
        %2188 = vmatpush1.msra.mxu0 0.0
        %2189 = vmatprep.subr.mxu0 0.0
        %2190 = vmatpush1.msra.mxu0 0.0
        %2191 = vmatprep.subr.mxu0 0.0
        %2192 = vmatpush1.msra.mxu0 0.0
        %2193 = vmatprep.subr.mxu0 0.0
        %2194 = vmatpush1.msra.mxu0 0.0
        %2195 = vmatprep.subr.mxu0 0.0
        %2196 = vmatpush1.msra.mxu0 0.0
        %2197 = vmatprep.subr.mxu0 0.0
        %2198 = vmatpush1.msra.mxu0 0.0
        %2199 = vmatprep.subr.mxu0 0.0
        %2200 = vmatpush1.msra.mxu0 0.0
        %2201 = vmatprep.subr.mxu0 0.0
        %2202 = vmatpush1.msra.mxu0 0.0
        %2203 = vmatprep.subr.mxu0 0.0
        %2204 = vmatpush1.msra.mxu0 0.0
        %2205 = vmatprep.mubr.f32.mxu0 0.0
        %2206 = vmatmul.mubr.f32.gmra.mrb[0].mxu0 %v2094
        %v2207 = vpop.f32.mrb[0].mxu0
        %v2208 = vadd.f32 %v1029, %v2207
        %v2209 = vpop.f32.mrb[0].mxu0
        %2210 = vmatprep.mubr.f32.mxu0 0.0
        %2211 = vmatmul.mubr.f32.gmra.mrb[0].mxu0 %v2097
        %v2212 = vpop.f32.mrb[0].mxu0
        %v2213 = vadd.f32 %v1034, %v2212
        %v2214 = vpop.f32.mrb[0].mxu0
        %2215 = vmatprep.mubr.f32.mxu0 0.0
        %2216 = vmatmul.mubr.f32.gmra.mrb[0].mxu0 %v2100
        %v2217 = vpop.f32.mrb[0].mxu0
        %v2218 = vadd.f32 %v1039, %v2217
        %v2219 = vpop.f32.mrb[0].mxu0
        %2220 = vmatprep.mubr.f32.mxu0 0.0
        %2221 = vmatmul.mubr.f32.gmra.mrb[0].mxu0 %v2103
        %v2222 = vpop.f32.mrb[0].mxu0
        %v2223 = vadd.f32 %v1044, %v2222
        %v2224 = vpop.f32.mrb[0].mxu0
        %2225 = vmatprep.mubr.f32.mxu0 0.0
        %2226 = vmatmul.mubr.f32.gmra.mrb[0].mxu0 %v2106
        %v2227 = vpop.f32.mrb[0].mxu0
        %v2228 = vadd.f32 %v1049, %v2227
        %v2229 = vpop.f32.mrb[0].mxu0
        %2230 = vmatprep.mubr.f32.mxu0 0.0
        %2231 = vmatmul.mubr.f32.gmra.mrb[0].mxu0 %v2109
        %v2232 = vpop.f32.mrb[0].mxu0
        %v2233 = vadd.f32 %v1054, %v2232
        %v2234 = vpop.f32.mrb[0].mxu0
        %2235 = vmatprep.mubr.f32.mxu0 0.0
        %2236 = vmatmul.mubr.f32.gmra.mrb[0].mxu0 %v2112
        %v2237 = vpop.f32.mrb[0].mxu0
        %v2238 = vadd.f32 %v1059, %v2237
        %v2239 = vpop.f32.mrb[0].mxu0
        %2240 = vmatprep.mubr.f32.mxu0 0.0
        %2241 = vmatmul.mubr.f32.gmra.mrb[0].mxu0 %v2115
        %v2242 = vpop.f32.mrb[0].mxu0
        %v2243 = vadd.f32 %v1064, %v2242
        %v2244 = vpop.f32.mrb[0].mxu0
        %2245 = vmatprep.mubr.f32.mxu0 0.0
        %2246 = vmatmul.mubr.f32.gmra.mrb[0].mxu0 %v2118
        %v2247 = vpop.f32.mrb[0].mxu0
        %v2248 = vadd.f32 %v1069, %v2247
        %v2249 = vpop.f32.mrb[0].mxu0
        %2250 = vmatprep.mubr.f32.mxu0 0.0
        %2251 = vmatmul.mubr.f32.gmra.mrb[0].mxu0 %v2121
        %v2252 = vpop.f32.mrb[0].mxu0
        %v2253 = vadd.f32 %v1074, %v2252
        %v2254 = vpop.f32.mrb[0].mxu0
        %2255 = vmatprep.mubr.f32.mxu0 0.0
        %2256 = vmatmul.mubr.f32.gmra.mrb[0].mxu0 %v2124
        %v2257 = vpop.f32.mrb[0].mxu0
        %v2258 = vadd.f32 %v1079, %v2257
        %v2259 = vpop.f32.mrb[0].mxu0
        %2260 = vmatprep.mubr.f32.mxu0 0.0
        %2261 = vmatmul.mubr.f32.gmra.mrb[0].mxu0 %v2127
        %v2262 = vpop.f32.mrb[0].mxu0
        %v2263 = vadd.f32 %v1084, %v2262
        %v2264 = vpop.f32.mrb[0].mxu0
        %2265 = vmatprep.mubr.f32.mxu0 0.0
        %2266 = vmatmul.mubr.f32.gmra.mrb[0].mxu0 %v2130
        %v2267 = vpop.f32.mrb[0].mxu0
        %v2268 = vadd.f32 %v1089, %v2267
        %v2269 = vpop.f32.mrb[0].mxu0
        %2270 = vmatprep.mubr.f32.mxu0 0.0
        %2271 = vmatmul.mubr.f32.gmra.mrb[0].mxu0 %v2133
        %v2272 = vpop.f32.mrb[0].mxu0
        %v2273 = vadd.f32 %v1094, %v2272
        %v2274 = vpop.f32.mrb[0].mxu0
        %2275 = vmatprep.mubr.f32.mxu0 0.0
        %2276 = vmatmul.mubr.f32.gmra.mrb[0].mxu0 %v2136
        %v2277 = vpop.f32.mrb[0].mxu0
        %v2278 = vadd.f32 %v1099, %v2277
        %v2279 = vpop.f32.mrb[0].mxu0
        %2280 = vmatprep.mubr.f32.mxu0 0.0
        %2281 = vmatmul.mubr.f32.gmra.mrb[0].mxu0 %v2139
        %v2282 = vpop.f32.mrb[0].mxu0
        %v2283 = vadd.f32 %v1104, %v2282
        %v2284 = vpop.f32.mrb[0].mxu0
        %2285 = vdwg.mxu0
        %v2286 = vmax.f32 %v2208, 0.0
        %v2287 = vmax.f32 %v2213, 0.0
        %v2288 = vmax.f32 %v2218, 0.0
        %v2289 = vmax.f32 %v2223, 0.0
        %v2290 = vmax.f32 %v2228, 0.0
        %v2291 = vmax.f32 %v2233, 0.0
        %v2292 = vmax.f32 %v2238, 0.0
        %v2293 = vmax.f32 %v2243, 0.0
        %v2294 = vmax.f32 %v2248, 0.0
        %v2295 = vmax.f32 %v2253, 0.0
        %v2296 = vmax.f32 %v2258, 0.0
        %v2297 = vmax.f32 %v2263, 0.0
        %v2298 = vmax.f32 %v2268, 0.0
        %v2299 = vmax.f32 %v2273, 0.0
        %v2300 = vmax.f32 %v2278, 0.0
        %v2301 = vmax.f32 %v2283, 0.0
        %v2303 = vsel %vm913, %v2286, 0
        %v2306 = vsel %vm913, %v2287, 0
        %v2309 = vsel %vm913, %v2288, 0
        %v2312 = vsel %vm913, %v2289, 0
        %v2315 = vsel %vm913, %v2290, 0
        %v2318 = vsel %vm913, %v2291, 0
        %v2321 = vsel %vm913, %v2292, 0
        %v2324 = vsel %vm913, %v2293, 0
        %v2327 = vsel %vm913, %v2294, 0
        %v2330 = vsel %vm913, %v2295, 0
        %v2333 = vsel %vm913, %v2296, 0
        %v2336 = vsel %vm913, %v2297, 0
        %v2339 = vsel %vm913, %v2298, 0
        %v2342 = vsel %vm913, %v2299, 0
        %v2345 = vsel %vm913, %v2300, 0
        %v2348 = vsel %vm913, %v2301, 0
        %2350 = vmatprep.subr.mxu0 0.0
        %2351 = vmatpush1.msra.mxu0 %v893
        %2352 = vmatprep.subr.mxu0 0.0
        %2353 = vmatpush1.msra.mxu0 %v894
        %2354 = vmatprep.subr.mxu0 0.0
        %2355 = vmatpush1.msra.mxu0 %v895
        %2356 = vmatprep.subr.mxu0 0.0
        %2357 = vmatpush1.msra.mxu0 %v896
        %2358 = vmatprep.subr.mxu0 0.0
        %2359 = vmatpush1.msra.mxu0 0.0
        %2360 = vmatprep.subr.mxu0 0.0
        %2361 = vmatpush1.msra.mxu0 0.0
        %2362 = vmatprep.subr.mxu0 0.0
        %2363 = vmatpush1.msra.mxu0 0.0
        %2364 = vmatprep.subr.mxu0 0.0
        %2365 = vmatpush1.msra.mxu0 0.0
        %2366 = vmatprep.subr.mxu0 0.0
        %2367 = vmatpush1.msra.mxu0 0.0
        %2368 = vmatprep.subr.mxu0 0.0
        %2369 = vmatpush1.msra.mxu0 0.0
        %2370 = vmatprep.subr.mxu0 0.0
        %2371 = vmatpush1.msra.mxu0 0.0
        %2372 = vmatprep.subr.mxu0 0.0
        %2373 = vmatpush1.msra.mxu0 0.0
        %2374 = vmatprep.subr.mxu0 0.0
        %2375 = vmatpush1.msra.mxu0 0.0
        %2376 = vmatprep.subr.mxu0 0.0
        %2377 = vmatpush1.msra.mxu0 0.0
        %2378 = vmatprep.subr.mxu0 0.0
        %2379 = vmatpush1.msra.mxu0 0.0
        %2380 = vmatprep.subr.mxu0 0.0
        %2381 = vmatpush1.msra.mxu0 0.0
        %2382 = vmatprep.subr.mxu0 0.0
        %2383 = vmatpush1.msra.mxu0 0.0
        %2384 = vmatprep.subr.mxu0 0.0
        %2385 = vmatpush1.msra.mxu0 0.0
        %2386 = vmatprep.subr.mxu0 0.0
        %2387 = vmatpush1.msra.mxu0 0.0
        %2388 = vmatprep.subr.mxu0 0.0
        %2389 = vmatpush1.msra.mxu0 0.0
        %2390 = vmatprep.subr.mxu0 0.0
        %2391 = vmatpush1.msra.mxu0 0.0
        %2392 = vmatprep.subr.mxu0 0.0
        %2393 = vmatpush1.msra.mxu0 0.0
        %2394 = vmatprep.subr.mxu0 0.0
        %2395 = vmatpush1.msra.mxu0 0.0
        %2396 = vmatprep.subr.mxu0 0.0
        %2397 = vmatpush1.msra.mxu0 0.0
        %2398 = vmatprep.subr.mxu0 0.0
        %2399 = vmatpush1.msra.mxu0 0.0
        %2400 = vmatprep.subr.mxu0 0.0
        %2401 = vmatpush1.msra.mxu0 0.0
        %2402 = vmatprep.subr.mxu0 0.0
        %2403 = vmatpush1.msra.mxu0 0.0
        %2404 = vmatprep.subr.mxu0 0.0
        %2405 = vmatpush1.msra.mxu0 0.0
        %2406 = vmatprep.subr.mxu0 0.0
        %2407 = vmatpush1.msra.mxu0 0.0
        %2408 = vmatprep.subr.mxu0 0.0
        %2409 = vmatpush1.msra.mxu0 0.0
        %2410 = vmatprep.subr.mxu0 0.0
        %2411 = vmatpush1.msra.mxu0 0.0
        %2412 = vmatprep.subr.mxu0 0.0
        %2413 = vmatpush1.msra.mxu0 0.0
        %2414 = vmatprep.mubr.f32.mxu0 0.0
        %2415 = vmatmul.mubr.f32.gmra.mrb[0].mxu0 %v2303
        %v2416 = vpop.f32.mrb[0].mxu0
        %v2417 = vadd.f32 %v1336, %v2416
        %v2418 = vpop.f32.mrb[0].mxu0
        %2419 = vmatprep.mubr.f32.mxu0 0.0
        %2420 = vmatmul.mubr.f32.gmra.mrb[0].mxu0 %v2306
        %v2421 = vpop.f32.mrb[0].mxu0
        %v2422 = vadd.f32 %v1336, %v2421
        %v2423 = vpop.f32.mrb[0].mxu0
        %2424 = vmatprep.mubr.f32.mxu0 0.0
        %2425 = vmatmul.mubr.f32.gmra.mrb[0].mxu0 %v2309
        %v2426 = vpop.f32.mrb[0].mxu0
        %v2427 = vadd.f32 %v1336, %v2426
        %v2428 = vpop.f32.mrb[0].mxu0
        %2429 = vmatprep.mubr.f32.mxu0 0.0
        %2430 = vmatmul.mubr.f32.gmra.mrb[0].mxu0 %v2312
        %v2431 = vpop.f32.mrb[0].mxu0
        %v2432 = vadd.f32 %v1336, %v2431
        %v2433 = vpop.f32.mrb[0].mxu0
        %2434 = vmatprep.mubr.f32.mxu0 0.0
        %2435 = vmatmul.mubr.f32.gmra.mrb[0].mxu0 %v2315
        %v2436 = vpop.f32.mrb[0].mxu0
        %v2437 = vadd.f32 %v1336, %v2436
        %v2438 = vpop.f32.mrb[0].mxu0
        %2439 = vmatprep.mubr.f32.mxu0 0.0
        %2440 = vmatmul.mubr.f32.gmra.mrb[0].mxu0 %v2318
        %v2441 = vpop.f32.mrb[0].mxu0
        %v2442 = vadd.f32 %v1336, %v2441
        %v2443 = vpop.f32.mrb[0].mxu0
        %2444 = vmatprep.mubr.f32.mxu0 0.0
        %2445 = vmatmul.mubr.f32.gmra.mrb[0].mxu0 %v2321
        %v2446 = vpop.f32.mrb[0].mxu0
        %v2447 = vadd.f32 %v1336, %v2446
        %v2448 = vpop.f32.mrb[0].mxu0
        %2449 = vmatprep.mubr.f32.mxu0 0.0
        %2450 = vmatmul.mubr.f32.gmra.mrb[0].mxu0 %v2324
        %v2451 = vpop.f32.mrb[0].mxu0
        %v2452 = vadd.f32 %v1336, %v2451
        %v2453 = vpop.f32.mrb[0].mxu0
        %2454 = vmatprep.mubr.f32.mxu0 0.0
        %2455 = vmatmul.mubr.f32.gmra.mrb[0].mxu0 %v2327
        %v2456 = vpop.f32.mrb[0].mxu0
        %v2457 = vadd.f32 %v1336, %v2456
        %v2458 = vpop.f32.mrb[0].mxu0
        %2459 = vmatprep.mubr.f32.mxu0 0.0
        %2460 = vmatmul.mubr.f32.gmra.mrb[0].mxu0 %v2330
        %v2461 = vpop.f32.mrb[0].mxu0
        %v2462 = vadd.f32 %v1336, %v2461
        %v2463 = vpop.f32.mrb[0].mxu0
        %2464 = vmatprep.mubr.f32.mxu0 0.0
        %2465 = vmatmul.mubr.f32.gmra.mrb[0].mxu0 %v2333
        %v2466 = vpop.f32.mrb[0].mxu0
        %v2467 = vadd.f32 %v1336, %v2466
        %v2468 = vpop.f32.mrb[0].mxu0
        %2469 = vmatprep.mubr.f32.mxu0 0.0
        %2470 = vmatmul.mubr.f32.gmra.mrb[0].mxu0 %v2336
        %v2471 = vpop.f32.mrb[0].mxu0
        %v2472 = vadd.f32 %v1336, %v2471
        %v2473 = vpop.f32.mrb[0].mxu0
        %2474 = vmatprep.mubr.f32.mxu0 0.0
        %2475 = vmatmul.mubr.f32.gmra.mrb[0].mxu0 %v2339
        %v2476 = vpop.f32.mrb[0].mxu0
        %v2477 = vadd.f32 %v1336, %v2476
        %v2478 = vpop.f32.mrb[0].mxu0
        %2479 = vmatprep.mubr.f32.mxu0 0.0
        %2480 = vmatmul.mubr.f32.gmra.mrb[0].mxu0 %v2342
        %v2481 = vpop.f32.mrb[0].mxu0
        %v2482 = vadd.f32 %v1336, %v2481
        %v2483 = vpop.f32.mrb[0].mxu0
        %2484 = vmatprep.mubr.f32.mxu0 0.0
        %2485 = vmatmul.mubr.f32.gmra.mrb[0].mxu0 %v2345
        %v2486 = vpop.f32.mrb[0].mxu0
        %v2487 = vadd.f32 %v1336, %v2486
        %v2488 = vpop.f32.mrb[0].mxu0
        %2489 = vmatprep.mubr.f32.mxu0 0.0
        %2490 = vmatmul.mubr.f32.gmra.mrb[0].mxu0 %v2348
        %v2491 = vpop.f32.mrb[0].mxu0
        %v2492 = vadd.f32 %v1336, %v2491
        %v2493 = vpop.f32.mrb[0].mxu0
        %2494 = vdwg.mxu0
        %v2495 = vmax.f32 %v2417, 0.0
        %v2496 = vmax.f32 %v2422, 0.0
        %v2497 = vmax.f32 %v2427, 0.0
        %v2498 = vmax.f32 %v2432, 0.0
        %v2499 = vmax.f32 %v2437, 0.0
        %v2500 = vmax.f32 %v2442, 0.0
        %v2501 = vmax.f32 %v2447, 0.0
        %v2502 = vmax.f32 %v2452, 0.0
        %v2503 = vmax.f32 %v2457, 0.0
        %v2504 = vmax.f32 %v2462, 0.0
        %v2505 = vmax.f32 %v2467, 0.0
        %v2506 = vmax.f32 %v2472, 0.0
        %v2507 = vmax.f32 %v2477, 0.0
        %v2508 = vmax.f32 %v2482, 0.0
        %v2509 = vmax.f32 %v2487, 0.0
        %v2510 = vmax.f32 %v2492, 0.0
        %v2512 = vsel %vm913, %v2495, 0
        %v2515 = vsel %vm913, %v2496, 0
        %v2518 = vsel %vm913, %v2497, 0
        %v2521 = vsel %vm913, %v2498, 0
        %v2524 = vsel %vm913, %v2499, 0
        %v2527 = vsel %vm913, %v2500, 0
        %v2530 = vsel %vm913, %v2501, 0
        %v2533 = vsel %vm913, %v2502, 0
        %v2536 = vsel %vm913, %v2503, 0
        %v2539 = vsel %vm913, %v2504, 0
        %v2542 = vsel %vm913, %v2505, 0
        %v2545 = vsel %vm913, %v2506, 0
        %v2548 = vsel %vm913, %v2507, 0
        %v2551 = vsel %vm913, %v2508, 0
        %v2554 = vsel %vm913, %v2509, 0
        %v2557 = vsel %vm913, %v2510, 0
        %2559 = vmatprep.subr.mxu0 0.0
        %2560 = vmatpush1.msra.mxu0 %v897
        %2561 = vmatprep.subr.mxu0 0.0
        %2562 = vmatpush1.msra.mxu0 %v898
        %2563 = vmatprep.subr.mxu0 0.0
        %2564 = vmatpush1.msra.mxu0 %v899
        %2565 = vmatprep.subr.mxu0 0.0
        %2566 = vmatpush1.msra.mxu0 %v900
        %2567 = vmatprep.subr.mxu0 0.0
        %2568 = vmatpush1.msra.mxu0 0.0
        %2569 = vmatprep.subr.mxu0 0.0
        %2570 = vmatpush1.msra.mxu0 0.0
        %2571 = vmatprep.subr.mxu0 0.0
        %2572 = vmatpush1.msra.mxu0 0.0
        %2573 = vmatprep.subr.mxu0 0.0
        %2574 = vmatpush1.msra.mxu0 0.0
        %2575 = vmatprep.subr.mxu0 0.0
        %2576 = vmatpush1.msra.mxu0 0.0
        %2577 = vmatprep.subr.mxu0 0.0
        %2578 = vmatpush1.msra.mxu0 0.0
        %2579 = vmatprep.subr.mxu0 0.0
        %2580 = vmatpush1.msra.mxu0 0.0
        %2581 = vmatprep.subr.mxu0 0.0
        %2582 = vmatpush1.msra.mxu0 0.0
        %2583 = vmatprep.subr.mxu0 0.0
        %2584 = vmatpush1.msra.mxu0 0.0
        %2585 = vmatprep.subr.mxu0 0.0
        %2586 = vmatpush1.msra.mxu0 0.0
        %2587 = vmatprep.subr.mxu0 0.0
        %2588 = vmatpush1.msra.mxu0 0.0
        %2589 = vmatprep.subr.mxu0 0.0
        %2590 = vmatpush1.msra.mxu0 0.0
        %2591 = vmatprep.subr.mxu0 0.0
        %2592 = vmatpush1.msra.mxu0 0.0
        %2593 = vmatprep.subr.mxu0 0.0
        %2594 = vmatpush1.msra.mxu0 0.0
        %2595 = vmatprep.subr.mxu0 0.0
        %2596 = vmatpush1.msra.mxu0 0.0
        %2597 = vmatprep.subr.mxu0 0.0
        %2598 = vmatpush1.msra.mxu0 0.0
        %2599 = vmatprep.subr.mxu0 0.0
        %2600 = vmatpush1.msra.mxu0 0.0
        %2601 = vmatprep.subr.mxu0 0.0
        %2602 = vmatpush1.msra.mxu0 0.0
        %2603 = vmatprep.subr.mxu0 0.0
        %2604 = vmatpush1.msra.mxu0 0.0
        %2605 = vmatprep.subr.mxu0 0.0
        %2606 = vmatpush1.msra.mxu0 0.0
        %2607 = vmatprep.subr.mxu0 0.0
        %2608 = vmatpush1.msra.mxu0 0.0
        %2609 = vmatprep.subr.mxu0 0.0
        %2610 = vmatpush1.msra.mxu0 0.0
        %2611 = vmatprep.subr.mxu0 0.0
        %2612 = vmatpush1.msra.mxu0 0.0
        %2613 = vmatprep.subr.mxu0 0.0
        %2614 = vmatpush1.msra.mxu0 0.0
        %2615 = vmatprep.subr.mxu0 0.0
        %2616 = vmatpush1.msra.mxu0 0.0
        %2617 = vmatprep.subr.mxu0 0.0
        %2618 = vmatpush1.msra.mxu0 0.0
        %2619 = vmatprep.subr.mxu0 0.0
        %2620 = vmatpush1.msra.mxu0 0.0
        %2621 = vmatprep.subr.mxu0 0.0
        %2622 = vmatpush1.msra.mxu0 0.0
        %2623 = vmatprep.mubr.f32.mxu0 0.0
        %2624 = vmatmul.mubr.f32.gmra.mrb[0].mxu0 %v2512
        %v2625 = vpop.f32.mrb[0].mxu0
        %v2626 = vadd.f32 0.0, %v2625
        %v2627 = vpop.f32.mrb[0].mxu0
        %2628 = vmatprep.mubr.f32.mxu0 0.0
        %2629 = vmatmul.mubr.f32.gmra.mrb[0].mxu0 %v2515
        %v2630 = vpop.f32.mrb[0].mxu0
        %v2631 = vadd.f32 0.0, %v2630
        %v2632 = vpop.f32.mrb[0].mxu0
        %2633 = vmatprep.mubr.f32.mxu0 0.0
        %2634 = vmatmul.mubr.f32.gmra.mrb[0].mxu0 %v2518
        %v2635 = vpop.f32.mrb[0].mxu0
        %v2636 = vadd.f32 0.0, %v2635
        %v2637 = vpop.f32.mrb[0].mxu0
        %2638 = vmatprep.mubr.f32.mxu0 0.0
        %2639 = vmatmul.mubr.f32.gmra.mrb[0].mxu0 %v2521
        %v2640 = vpop.f32.mrb[0].mxu0
        %v2641 = vadd.f32 0.0, %v2640
        %v2642 = vpop.f32.mrb[0].mxu0
        %2643 = vmatprep.mubr.f32.mxu0 0.0
        %2644 = vmatmul.mubr.f32.gmra.mrb[0].mxu0 %v2524
        %v2645 = vpop.f32.mrb[0].mxu0
        %v2646 = vadd.f32 0.0, %v2645
        %v2647 = vpop.f32.mrb[0].mxu0
        %2648 = vmatprep.mubr.f32.mxu0 0.0
        %2649 = vmatmul.mubr.f32.gmra.mrb[0].mxu0 %v2527
        %v2650 = vpop.f32.mrb[0].mxu0
        %v2651 = vadd.f32 0.0, %v2650
        %v2652 = vpop.f32.mrb[0].mxu0
        %2653 = vmatprep.mubr.f32.mxu0 0.0
        %2654 = vmatmul.mubr.f32.gmra.mrb[0].mxu0 %v2530
        %v2655 = vpop.f32.mrb[0].mxu0
        %v2656 = vadd.f32 0.0, %v2655
        %v2657 = vpop.f32.mrb[0].mxu0
        %2658 = vmatprep.mubr.f32.mxu0 0.0
        %2659 = vmatmul.mubr.f32.gmra.mrb[0].mxu0 %v2533
        %v2660 = vpop.f32.mrb[0].mxu0
        %v2661 = vadd.f32 0.0, %v2660
        %v2662 = vpop.f32.mrb[0].mxu0
        %2663 = vmatprep.mubr.f32.mxu0 0.0
        %2664 = vmatmul.mubr.f32.gmra.mrb[0].mxu0 %v2536
        %v2665 = vpop.f32.mrb[0].mxu0
        %v2666 = vadd.f32 0.0, %v2665
        %v2667 = vpop.f32.mrb[0].mxu0
        %2668 = vmatprep.mubr.f32.mxu0 0.0
        %2669 = vmatmul.mubr.f32.gmra.mrb[0].mxu0 %v2539
        %v2670 = vpop.f32.mrb[0].mxu0
        %v2671 = vadd.f32 0.0, %v2670
        %v2672 = vpop.f32.mrb[0].mxu0
        %2673 = vmatprep.mubr.f32.mxu0 0.0
        %2674 = vmatmul.mubr.f32.gmra.mrb[0].mxu0 %v2542
        %v2675 = vpop.f32.mrb[0].mxu0
        %v2676 = vadd.f32 0.0, %v2675
        %v2677 = vpop.f32.mrb[0].mxu0
        %2678 = vmatprep.mubr.f32.mxu0 0.0
        %2679 = vmatmul.mubr.f32.gmra.mrb[0].mxu0 %v2545
        %v2680 = vpop.f32.mrb[0].mxu0
        %v2681 = vadd.f32 0.0, %v2680
        %v2682 = vpop.f32.mrb[0].mxu0
        %2683 = vmatprep.mubr.f32.mxu0 0.0
        %2684 = vmatmul.mubr.f32.gmra.mrb[0].mxu0 %v2548
        %v2685 = vpop.f32.mrb[0].mxu0
        %v2686 = vadd.f32 0.0, %v2685
        %v2687 = vpop.f32.mrb[0].mxu0
        %2688 = vmatprep.mubr.f32.mxu0 0.0
        %2689 = vmatmul.mubr.f32.gmra.mrb[0].mxu0 %v2551
        %v2690 = vpop.f32.mrb[0].mxu0
        %v2691 = vadd.f32 0.0, %v2690
        %v2692 = vpop.f32.mrb[0].mxu0
        %2693 = vmatprep.mubr.f32.mxu0 0.0
        %2694 = vmatmul.mubr.f32.gmra.mrb[0].mxu0 %v2554
        %v2695 = vpop.f32.mrb[0].mxu0
        %v2696 = vadd.f32 0.0, %v2695
        %v2697 = vpop.f32.mrb[0].mxu0
        %2698 = vmatprep.mubr.f32.mxu0 0.0
        %2699 = vmatmul.mubr.f32.gmra.mrb[0].mxu0 %v2557
        %v2700 = vpop.f32.mrb[0].mxu0
        %v2701 = vadd.f32 0.0, %v2700
        %v2702 = vpop.f32.mrb[0].mxu0
        %2703 = vdwg.mxu0
        %v2704 = vmax.f32 %v1662, %v2626
        %v2705 = vmax.f32 %v1667, %v2631
        %v2706 = vmax.f32 %v1672, %v2636
        %v2707 = vmax.f32 %v1677, %v2641
        %v2708 = vmax.f32 %v1682, %v2646
        %v2709 = vmax.f32 %v1687, %v2651
        %v2710 = vmax.f32 %v1692, %v2656
        %v2711 = vmax.f32 %v1697, %v2661
        %v2712 = vmax.f32 %v1702, %v2666
        %v2713 = vmax.f32 %v1707, %v2671
        %v2714 = vmax.f32 %v1712, %v2676
        %v2715 = vmax.f32 %v1717, %v2681
        %v2716 = vmax.f32 %v1722, %v2686
        %v2717 = vmax.f32 %v1727, %v2691
        %v2718 = vmax.f32 %v1732, %v2696
        %v2719 = vmax.f32 %v1737, %v2701
        %v2720 = vsub.f32 %v1662, %v2704
        %v2721 = vsub.f32 %v1667, %v2705
        %v2722 = vsub.f32 %v1672, %v2706
        %v2723 = vsub.f32 %v1677, %v2707
        %v2724 = vsub.f32 %v1682, %v2708
        %v2725 = vsub.f32 %v1687, %v2709
        %v2726 = vsub.f32 %v1692, %v2710
        %v2727 = vsub.f32 %v1697, %v2711
        %v2728 = vsub.f32 %v1702, %v2712
        %v2729 = vsub.f32 %v1707, %v2713
        %v2730 = vsub.f32 %v1712, %v2714
        %v2731 = vsub.f32 %v1717, %v2715
        %v2732 = vsub.f32 %v1722, %v2716
        %v2733 = vsub.f32 %v1727, %v2717
        %v2734 = vsub.f32 %v1732, %v2718
        %v2735 = vsub.f32 %v1737, %v2719
        %v2736 = vmul.f32 %v2720, 1.442695
        %v2737 = vpow.pop %v2736
        %v2738 = vmul.f32 %v2721, 1.442695
        %v2739 = vpow.pop %v2738
        %v2740 = vmul.f32 %v2722, 1.442695
        %v2741 = vpow.pop %v2740
        %v2742 = vmul.f32 %v2723, 1.442695
        %v2743 = vpow.pop %v2742
        %v2744 = vmul.f32 %v2724, 1.442695
        %v2745 = vpow.pop %v2744
        %v2746 = vmul.f32 %v2725, 1.442695
        %v2747 = vpow.pop %v2746
        %v2748 = vmul.f32 %v2726, 1.442695
        %v2749 = vpow.pop %v2748
        %v2750 = vmul.f32 %v2727, 1.442695
        %v2751 = vpow.pop %v2750
        %v2752 = vmul.f32 %v2728, 1.442695
        %v2753 = vpow.pop %v2752
        %v2754 = vmul.f32 %v2729, 1.442695
        %v2755 = vpow.pop %v2754
        %v2756 = vmul.f32 %v2730, 1.442695
        %v2757 = vpow.pop %v2756
        %v2758 = vmul.f32 %v2731, 1.442695
        %v2759 = vpow.pop %v2758
        %v2760 = vmul.f32 %v2732, 1.442695
        %v2761 = vpow.pop %v2760
        %v2762 = vmul.f32 %v2733, 1.442695
        %v2763 = vpow.pop %v2762
        %v2764 = vmul.f32 %v2734, 1.442695
        %v2765 = vpow.pop %v2764
        %v2766 = vmul.f32 %v2735, 1.442695
        %v2767 = vpow.pop %v2766
        %v2768 = vsub.f32 %v2626, %v2704
        %v2769 = vsub.f32 %v2631, %v2705
        %v2770 = vsub.f32 %v2636, %v2706
        %v2771 = vsub.f32 %v2641, %v2707
        %v2772 = vsub.f32 %v2646, %v2708
        %v2773 = vsub.f32 %v2651, %v2709
        %v2774 = vsub.f32 %v2656, %v2710
        %v2775 = vsub.f32 %v2661, %v2711
        %v2776 = vsub.f32 %v2666, %v2712
        %v2777 = vsub.f32 %v2671, %v2713
        %v2778 = vsub.f32 %v2676, %v2714
        %v2779 = vsub.f32 %v2681, %v2715
        %v2780 = vsub.f32 %v2686, %v2716
        %v2781 = vsub.f32 %v2691, %v2717
        %v2782 = vsub.f32 %v2696, %v2718
        %v2783 = vsub.f32 %v2701, %v2719
        %v2784 = vmul.f32 %v2768, 1.442695
        %v2785 = vpow.pop %v2784
        %v2786 = vmul.f32 %v2769, 1.442695
        %v2787 = vpow.pop %v2786
        %v2788 = vmul.f32 %v2770, 1.442695
        %v2789 = vpow.pop %v2788
        %v2790 = vmul.f32 %v2771, 1.442695
        %v2791 = vpow.pop %v2790
        %v2792 = vmul.f32 %v2772, 1.442695
        %v2793 = vpow.pop %v2792
        %v2794 = vmul.f32 %v2773, 1.442695
        %v2795 = vpow.pop %v2794
        %v2796 = vmul.f32 %v2774, 1.442695
        %v2797 = vpow.pop %v2796
        %v2798 = vmul.f32 %v2775, 1.442695
        %v2799 = vpow.pop %v2798
        %v2800 = vmul.f32 %v2776, 1.442695
        %v2801 = vpow.pop %v2800
        %v2802 = vmul.f32 %v2777, 1.442695
        %v2803 = vpow.pop %v2802
        %v2804 = vmul.f32 %v2778, 1.442695
        %v2805 = vpow.pop %v2804
        %v2806 = vmul.f32 %v2779, 1.442695
        %v2807 = vpow.pop %v2806
        %v2808 = vmul.f32 %v2780, 1.442695
        %v2809 = vpow.pop %v2808
        %v2810 = vmul.f32 %v2781, 1.442695
        %v2811 = vpow.pop %v2810
        %v2812 = vmul.f32 %v2782, 1.442695
        %v2813 = vpow.pop %v2812
        %v2814 = vmul.f32 %v2783, 1.442695
        %v2815 = vpow.pop %v2814
        %v2816 = vmul.f32 %v2737, %v1852
        %v2817 = vmul.f32 %v2739, %v1853
        %v2818 = vmul.f32 %v2741, %v1854
        %v2819 = vmul.f32 %v2743, %v1855
        %v2820 = vmul.f32 %v2745, %v1856
        %v2821 = vmul.f32 %v2747, %v1857
        %v2822 = vmul.f32 %v2749, %v1858
        %v2823 = vmul.f32 %v2751, %v1859
        %v2824 = vmul.f32 %v2753, %v1860
        %v2825 = vmul.f32 %v2755, %v1861
        %v2826 = vmul.f32 %v2757, %v1862
        %v2827 = vmul.f32 %v2759, %v1863
        %v2828 = vmul.f32 %v2761, %v1864
        %v2829 = vmul.f32 %v2763, %v1865
        %v2830 = vmul.f32 %v2765, %v1866
        %v2831 = vmul.f32 %v2767, %v1867
        %v2832 = vadd.f32 %v2816, %v2785
        %v2833 = vadd.f32 %v2817, %v2787
        %v2834 = vadd.f32 %v2818, %v2789
        %v2835 = vadd.f32 %v2819, %v2791
        %v2836 = vadd.f32 %v2820, %v2793
        %v2837 = vadd.f32 %v2821, %v2795
        %v2838 = vadd.f32 %v2822, %v2797
        %v2839 = vadd.f32 %v2823, %v2799
        %v2840 = vadd.f32 %v2824, %v2801
        %v2841 = vadd.f32 %v2825, %v2803
        %v2842 = vadd.f32 %v2826, %v2805
        %v2843 = vadd.f32 %v2827, %v2807
        %v2844 = vadd.f32 %v2828, %v2809
        %v2845 = vadd.f32 %v2829, %v2811
        %v2846 = vadd.f32 %v2830, %v2813
        %v2847 = vadd.f32 %v2831, %v2815
        %2849 = vset.pattern.permute.xlu0 0
        %2850 = vperm.xlu0 %2849, %v2737
        %v2851 = vpop.permute.xlu0 %2850
        %2854 = vset.pattern.permute.xlu0 0
        %2855 = vperm.xlu0 %2854, %v2739
        %v2856 = vpop.permute.xlu0 %2855
        %2859 = vset.pattern.permute.xlu0 0
        %2860 = vperm.xlu0 %2859, %v2741
        %v2861 = vpop.permute.xlu0 %2860
        %2864 = vset.pattern.permute.xlu0 0
        %2865 = vperm.xlu0 %2864, %v2743
        %v2866 = vpop.permute.xlu0 %2865
        %2869 = vset.pattern.permute.xlu0 0
        %2870 = vperm.xlu0 %2869, %v2745
        %v2871 = vpop.permute.xlu0 %2870
        %2874 = vset.pattern.permute.xlu0 0
        %2875 = vperm.xlu0 %2874, %v2747
        %v2876 = vpop.permute.xlu0 %2875
        %2879 = vset.pattern.permute.xlu0 0
        %2880 = vperm.xlu0 %2879, %v2749
        %v2881 = vpop.permute.xlu0 %2880
        %2884 = vset.pattern.permute.xlu0 0
        %2885 = vperm.xlu0 %2884, %v2751
        %v2886 = vpop.permute.xlu0 %2885
        %2889 = vset.pattern.permute.xlu0 0
        %2890 = vperm.xlu0 %2889, %v2753
        %v2891 = vpop.permute.xlu0 %2890
        %2894 = vset.pattern.permute.xlu0 0
        %2895 = vperm.xlu0 %2894, %v2755
        %v2896 = vpop.permute.xlu0 %2895
        %2899 = vset.pattern.permute.xlu0 0
        %2900 = vperm.xlu0 %2899, %v2757
        %v2901 = vpop.permute.xlu0 %2900
        %2904 = vset.pattern.permute.xlu0 0
        %2905 = vperm.xlu0 %2904, %v2759
        %v2906 = vpop.permute.xlu0 %2905
        %2909 = vset.pattern.permute.xlu0 0
        %2910 = vperm.xlu0 %2909, %v2761
        %v2911 = vpop.permute.xlu0 %2910
        %2914 = vset.pattern.permute.xlu0 0
        %2915 = vperm.xlu0 %2914, %v2763
        %v2916 = vpop.permute.xlu0 %2915
        %2919 = vset.pattern.permute.xlu0 0
        %2920 = vperm.xlu0 %2919, %v2765
        %v2921 = vpop.permute.xlu0 %2920
        %2924 = vset.pattern.permute.xlu0 0
        %2925 = vperm.xlu0 %2924, %v2767
        %v2926 = vpop.permute.xlu0 %2925
        %v2928 = vmul.f32 %v2851, %v2060
        %v2929 = vmul.f32 %v2856, %v2061
        %v2930 = vmul.f32 %v2861, %v2062
        %v2931 = vmul.f32 %v2866, %v2063
        %v2932 = vmul.f32 %v2871, %v2064
        %v2933 = vmul.f32 %v2876, %v2065
        %v2934 = vmul.f32 %v2881, %v2066
        %v2935 = vmul.f32 %v2886, %v2067
        %v2936 = vmul.f32 %v2891, %v2068
        %v2937 = vmul.f32 %v2896, %v2069
        %v2938 = vmul.f32 %v2901, %v2070
        %v2939 = vmul.f32 %v2906, %v2071
        %v2940 = vmul.f32 %v2911, %v2072
        %v2941 = vmul.f32 %v2916, %v2073
        %v2942 = vmul.f32 %v2921, %v2074
        %v2943 = vmul.f32 %v2926, %v2075
        %2945 = vset.pattern.permute.xlu0 0
        %2946 = vperm.xlu0 %2945, %v2785
        %v2947 = vpop.permute.xlu0 %2946
        %2950 = vset.pattern.permute.xlu0 0
        %2951 = vperm.xlu0 %2950, %v2787
        %v2952 = vpop.permute.xlu0 %2951
        %2955 = vset.pattern.permute.xlu0 0
        %2956 = vperm.xlu0 %2955, %v2789
        %v2957 = vpop.permute.xlu0 %2956
        %2960 = vset.pattern.permute.xlu0 0
        %2961 = vperm.xlu0 %2960, %v2791
        %v2962 = vpop.permute.xlu0 %2961
        %2965 = vset.pattern.permute.xlu0 0
        %2966 = vperm.xlu0 %2965, %v2793
        %v2967 = vpop.permute.xlu0 %2966
        %2970 = vset.pattern.permute.xlu0 0
        %2971 = vperm.xlu0 %2970, %v2795
        %v2972 = vpop.permute.xlu0 %2971
        %2975 = vset.pattern.permute.xlu0 0
        %2976 = vperm.xlu0 %2975, %v2797
        %v2977 = vpop.permute.xlu0 %2976
        %2980 = vset.pattern.permute.xlu0 0
        %2981 = vperm.xlu0 %2980, %v2799
        %v2982 = vpop.permute.xlu0 %2981
        %2985 = vset.pattern.permute.xlu0 0
        %2986 = vperm.xlu0 %2985, %v2801
        %v2987 = vpop.permute.xlu0 %2986
        %2990 = vset.pattern.permute.xlu0 0
        %2991 = vperm.xlu0 %2990, %v2803
        %v2992 = vpop.permute.xlu0 %2991
        %2995 = vset.pattern.permute.xlu0 0
        %2996 = vperm.xlu0 %2995, %v2805
        %v2997 = vpop.permute.xlu0 %2996
        %3000 = vset.pattern.permute.xlu0 0
        %3001 = vperm.xlu0 %3000, %v2807
        %v3002 = vpop.permute.xlu0 %3001
        %3005 = vset.pattern.permute.xlu0 0
        %3006 = vperm.xlu0 %3005, %v2809
        %v3007 = vpop.permute.xlu0 %3006
        %3010 = vset.pattern.permute.xlu0 0
        %3011 = vperm.xlu0 %3010, %v2811
        %v3012 = vpop.permute.xlu0 %3011
        %3015 = vset.pattern.permute.xlu0 0
        %3016 = vperm.xlu0 %3015, %v2813
        %v3017 = vpop.permute.xlu0 %3016
        %3020 = vset.pattern.permute.xlu0 0
        %3021 = vperm.xlu0 %3020, %v2815
        %v3022 = vpop.permute.xlu0 %3021
        %v3024 = vmul.f32 %v2947, %v2077
        %v3025 = vmul.f32 %v2952, %v2078
        %v3026 = vmul.f32 %v2957, %v2079
        %v3027 = vmul.f32 %v2962, %v2080
        %v3028 = vmul.f32 %v2967, %v2081
        %v3029 = vmul.f32 %v2972, %v2082
        %v3030 = vmul.f32 %v2977, %v2083
        %v3031 = vmul.f32 %v2982, %v2084
        %v3032 = vmul.f32 %v2987, %v2085
        %v3033 = vmul.f32 %v2992, %v2086
        %v3034 = vmul.f32 %v2997, %v2087
        %v3035 = vmul.f32 %v3002, %v2088
        %v3036 = vmul.f32 %v3007, %v2089
        %v3037 = vmul.f32 %v3012, %v2090
        %v3038 = vmul.f32 %v3017, %v2091
        %v3039 = vmul.f32 %v3022, %v2092
        %v3040 = vadd.f32 %v2928, %v3024
        %v3041 = vadd.f32 %v2929, %v3025
        %v3042 = vadd.f32 %v2930, %v3026
        %v3043 = vadd.f32 %v2931, %v3027
        %v3044 = vadd.f32 %v2932, %v3028
        %v3045 = vadd.f32 %v2933, %v3029
        %v3046 = vadd.f32 %v2934, %v3030
        %v3047 = vadd.f32 %v2935, %v3031
        %v3048 = vadd.f32 %v2936, %v3032
        %v3049 = vadd.f32 %v2937, %v3033
        %v3050 = vadd.f32 %v2938, %v3034
        %v3051 = vadd.f32 %v2939, %v3035
        %v3052 = vadd.f32 %v2940, %v3036
        %v3053 = vadd.f32 %v2941, %v3037
        %v3054 = vadd.f32 %v2942, %v3038
        %v3055 = vadd.f32 %v2943, %v3039
        %s3056 = scalar_lea.vmem %s824, 256 [#allocation2]
        %v3057 = vld [vmem:[%s3056] sm:$0xff]
        %v3058 = vld [vmem:[%s3056 + $0x8] sm:$0xff]
        %v3059 = vld [vmem:[%s3056 + $0x10] sm:$0xff]
        %v3060 = vld [vmem:[%s3056 + $0x18] sm:$0xff]
        %v3061 = vld [vmem:[%s3056 + $0x20] sm:$0xff]
        %v3062 = vld [vmem:[%s3056 + $0x28] sm:$0xff]
        %v3063 = vld [vmem:[%s3056 + $0x30] sm:$0xff]
        %v3064 = vld [vmem:[%s3056 + $0x38] sm:$0xff]
        %v3065 = vld [vmem:[%s3056 + $0x40] sm:$0xff]
        %v3066 = vld [vmem:[%s3056 + $0x48] sm:$0xff]
        %v3067 = vld [vmem:[%s3056 + $0x50] sm:$0xff]
        %v3068 = vld [vmem:[%s3056 + $0x58] sm:$0xff]
        %v3069 = vld [vmem:[%s3056 + $0x60] sm:$0xff]
        %v3070 = vld [vmem:[%s3056 + $0x68] sm:$0xff]
        %v3071 = vld [vmem:[%s3056 + $0x70] sm:$0xff]
        %v3072 = vld [vmem:[%s3056 + $0x78] sm:$0xff]
        %v3074 = vsel %vm913, %v3057, 0
        %v3077 = vsel %vm913, %v3058, 0
        %v3080 = vsel %vm913, %v3059, 0
        %v3083 = vsel %vm913, %v3060, 0
        %v3086 = vsel %vm913, %v3061, 0
        %v3089 = vsel %vm913, %v3062, 0
        %v3092 = vsel %vm913, %v3063, 0
        %v3095 = vsel %vm913, %v3064, 0
        %v3098 = vsel %vm913, %v3065, 0
        %v3101 = vsel %vm913, %v3066, 0
        %v3104 = vsel %vm913, %v3067, 0
        %v3107 = vsel %vm913, %v3068, 0
        %v3110 = vsel %vm913, %v3069, 0
        %v3113 = vsel %vm913, %v3070, 0
        %v3116 = vsel %vm913, %v3071, 0
        %v3119 = vsel %vm913, %v3072, 0
        %3121 = vmatprep.subr.mxu0 0.0
        %3122 = vmatpush1.msra.mxu0 %v889
        %3123 = vmatprep.subr.mxu0 0.0
        %3124 = vmatpush1.msra.mxu0 %v890
        %3125 = vmatprep.subr.mxu0 0.0
        %3126 = vmatpush1.msra.mxu0 %v891
        %3127 = vmatprep.subr.mxu0 0.0
        %3128 = vmatpush1.msra.mxu0 %v892
        %3129 = vmatprep.subr.mxu0 0.0
        %3130 = vmatpush1.msra.mxu0 0.0
        %3131 = vmatprep.subr.mxu0 0.0
        %3132 = vmatpush1.msra.mxu0 0.0
        %3133 = vmatprep.subr.mxu0 0.0
        %3134 = vmatpush1.msra.mxu0 0.0
        %3135 = vmatprep.subr.mxu0 0.0
        %3136 = vmatpush1.msra.mxu0 0.0
        %3137 = vmatprep.subr.mxu0 0.0
        %3138 = vmatpush1.msra.mxu0 0.0
        %3139 = vmatprep.subr.mxu0 0.0
        %3140 = vmatpush1.msra.mxu0 0.0
        %3141 = vmatprep.subr.mxu0 0.0
        %3142 = vmatpush1.msra.mxu0 0.0
        %3143 = vmatprep.subr.mxu0 0.0
        %3144 = vmatpush1.msra.mxu0 0.0
        %3145 = vmatprep.subr.mxu0 0.0
        %3146 = vmatpush1.msra.mxu0 0.0
        %3147 = vmatprep.subr.mxu0 0.0
        %3148 = vmatpush1.msra.mxu0 0.0
        %3149 = vmatprep.subr.mxu0 0.0
        %3150 = vmatpush1.msra.mxu0 0.0
        %3151 = vmatprep.subr.mxu0 0.0
        %3152 = vmatpush1.msra.mxu0 0.0
        %3153 = vmatprep.subr.mxu0 0.0
        %3154 = vmatpush1.msra.mxu0 0.0
        %3155 = vmatprep.subr.mxu0 0.0
        %3156 = vmatpush1.msra.mxu0 0.0
        %3157 = vmatprep.subr.mxu0 0.0
        %3158 = vmatpush1.msra.mxu0 0.0
        %3159 = vmatprep.subr.mxu0 0.0
        %3160 = vmatpush1.msra.mxu0 0.0
        %3161 = vmatprep.subr.mxu0 0.0
        %3162 = vmatpush1.msra.mxu0 0.0
        %3163 = vmatprep.subr.mxu0 0.0
        %3164 = vmatpush1.msra.mxu0 0.0
        %3165 = vmatprep.subr.mxu0 0.0
        %3166 = vmatpush1.msra.mxu0 0.0
        %3167 = vmatprep.subr.mxu0 0.0
        %3168 = vmatpush1.msra.mxu0 0.0
        %3169 = vmatprep.subr.mxu0 0.0
        %3170 = vmatpush1.msra.mxu0 0.0
        %3171 = vmatprep.subr.mxu0 0.0
        %3172 = vmatpush1.msra.mxu0 0.0
        %3173 = vmatprep.subr.mxu0 0.0
        %3174 = vmatpush1.msra.mxu0 0.0
        %3175 = vmatprep.subr.mxu0 0.0
        %3176 = vmatpush1.msra.mxu0 0.0
        %3177 = vmatprep.subr.mxu0 0.0
        %3178 = vmatpush1.msra.mxu0 0.0
        %3179 = vmatprep.subr.mxu0 0.0
        %3180 = vmatpush1.msra.mxu0 0.0
        %3181 = vmatprep.subr.mxu0 0.0
        %3182 = vmatpush1.msra.mxu0 0.0
        %3183 = vmatprep.subr.mxu0 0.0
        %3184 = vmatpush1.msra.mxu0 0.0
        %3185 = vmatprep.mubr.f32.mxu0 0.0
        %3186 = vmatmul.mubr.f32.gmra.mrb[0].mxu0 %v3074
        %v3187 = vpop.f32.mrb[0].mxu0
        %v3188 = vadd.f32 %v1029, %v3187
        %v3189 = vpop.f32.mrb[0].mxu0
        %3190 = vmatprep.mubr.f32.mxu0 0.0
        %3191 = vmatmul.mubr.f32.gmra.mrb[0].mxu0 %v3077
        %v3192 = vpop.f32.mrb[0].mxu0
        %v3193 = vadd.f32 %v1034, %v3192
        %v3194 = vpop.f32.mrb[0].mxu0
        %3195 = vmatprep.mubr.f32.mxu0 0.0
        %3196 = vmatmul.mubr.f32.gmra.mrb[0].mxu0 %v3080
        %v3197 = vpop.f32.mrb[0].mxu0
        %v3198 = vadd.f32 %v1039, %v3197
        %v3199 = vpop.f32.mrb[0].mxu0
        %3200 = vmatprep.mubr.f32.mxu0 0.0
        %3201 = vmatmul.mubr.f32.gmra.mrb[0].mxu0 %v3083
        %v3202 = vpop.f32.mrb[0].mxu0
        %v3203 = vadd.f32 %v1044, %v3202
        %v3204 = vpop.f32.mrb[0].mxu0
        %3205 = vmatprep.mubr.f32.mxu0 0.0
        %3206 = vmatmul.mubr.f32.gmra.mrb[0].mxu0 %v3086
        %v3207 = vpop.f32.mrb[0].mxu0
        %v3208 = vadd.f32 %v1049, %v3207
        %v3209 = vpop.f32.mrb[0].mxu0
        %3210 = vmatprep.mubr.f32.mxu0 0.0
        %3211 = vmatmul.mubr.f32.gmra.mrb[0].mxu0 %v3089
        %v3212 = vpop.f32.mrb[0].mxu0
        %v3213 = vadd.f32 %v1054, %v3212
        %v3214 = vpop.f32.mrb[0].mxu0
        %3215 = vmatprep.mubr.f32.mxu0 0.0
        %3216 = vmatmul.mubr.f32.gmra.mrb[0].mxu0 %v3092
        %v3217 = vpop.f32.mrb[0].mxu0
        %v3218 = vadd.f32 %v1059, %v3217
        %v3219 = vpop.f32.mrb[0].mxu0
        %3220 = vmatprep.mubr.f32.mxu0 0.0
        %3221 = vmatmul.mubr.f32.gmra.mrb[0].mxu0 %v3095
        %v3222 = vpop.f32.mrb[0].mxu0
        %v3223 = vadd.f32 %v1064, %v3222
        %v3224 = vpop.f32.mrb[0].mxu0
        %3225 = vmatprep.mubr.f32.mxu0 0.0
        %3226 = vmatmul.mubr.f32.gmra.mrb[0].mxu0 %v3098
        %v3227 = vpop.f32.mrb[0].mxu0
        %v3228 = vadd.f32 %v1069, %v3227
        %v3229 = vpop.f32.mrb[0].mxu0
        %3230 = vmatprep.mubr.f32.mxu0 0.0
        %3231 = vmatmul.mubr.f32.gmra.mrb[0].mxu0 %v3101
        %v3232 = vpop.f32.mrb[0].mxu0
        %v3233 = vadd.f32 %v1074, %v3232
        %v3234 = vpop.f32.mrb[0].mxu0
        %3235 = vmatprep.mubr.f32.mxu0 0.0
        %3236 = vmatmul.mubr.f32.gmra.mrb[0].mxu0 %v3104
        %v3237 = vpop.f32.mrb[0].mxu0
        %v3238 = vadd.f32 %v1079, %v3237
        %v3239 = vpop.f32.mrb[0].mxu0
        %3240 = vmatprep.mubr.f32.mxu0 0.0
        %3241 = vmatmul.mubr.f32.gmra.mrb[0].mxu0 %v3107
        %v3242 = vpop.f32.mrb[0].mxu0
        %v3243 = vadd.f32 %v1084, %v3242
        %v3244 = vpop.f32.mrb[0].mxu0
        %3245 = vmatprep.mubr.f32.mxu0 0.0
        %3246 = vmatmul.mubr.f32.gmra.mrb[0].mxu0 %v3110
        %v3247 = vpop.f32.mrb[0].mxu0
        %v3248 = vadd.f32 %v1089, %v3247
        %v3249 = vpop.f32.mrb[0].mxu0
        %3250 = vmatprep.mubr.f32.mxu0 0.0
        %3251 = vmatmul.mubr.f32.gmra.mrb[0].mxu0 %v3113
        %v3252 = vpop.f32.mrb[0].mxu0
        %v3253 = vadd.f32 %v1094, %v3252
        %v3254 = vpop.f32.mrb[0].mxu0
        %3255 = vmatprep.mubr.f32.mxu0 0.0
        %3256 = vmatmul.mubr.f32.gmra.mrb[0].mxu0 %v3116
        %v3257 = vpop.f32.mrb[0].mxu0
        %v3258 = vadd.f32 %v1099, %v3257
        %v3259 = vpop.f32.mrb[0].mxu0
        %3260 = vmatprep.mubr.f32.mxu0 0.0
        %3261 = vmatmul.mubr.f32.gmra.mrb[0].mxu0 %v3119
        %v3262 = vpop.f32.mrb[0].mxu0
        %v3263 = vadd.f32 %v1104, %v3262
        %v3264 = vpop.f32.mrb[0].mxu0
        %3265 = vdwg.mxu0
        %v3266 = vmax.f32 %v3188, 0.0
        %v3267 = vmax.f32 %v3193, 0.0
        %v3268 = vmax.f32 %v3198, 0.0
        %v3269 = vmax.f32 %v3203, 0.0
        %v3270 = vmax.f32 %v3208, 0.0
        %v3271 = vmax.f32 %v3213, 0.0
        %v3272 = vmax.f32 %v3218, 0.0
        %v3273 = vmax.f32 %v3223, 0.0
        %v3274 = vmax.f32 %v3228, 0.0
        %v3275 = vmax.f32 %v3233, 0.0
        %v3276 = vmax.f32 %v3238, 0.0
        %v3277 = vmax.f32 %v3243, 0.0
        %v3278 = vmax.f32 %v3248, 0.0
        %v3279 = vmax.f32 %v3253, 0.0
        %v3280 = vmax.f32 %v3258, 0.0
        %v3281 = vmax.f32 %v3263, 0.0
        %v3283 = vsel %vm913, %v3266, 0
        %v3286 = vsel %vm913, %v3267, 0
        %v3289 = vsel %vm913, %v3268, 0
        %v3292 = vsel %vm913, %v3269, 0
        %v3295 = vsel %vm913, %v3270, 0
        %v3298 = vsel %vm913, %v3271, 0
        %v3301 = vsel %vm913, %v3272, 0
        %v3304 = vsel %vm913, %v3273, 0
        %v3307 = vsel %vm913, %v3274, 0
        %v3310 = vsel %vm913, %v3275, 0
        %v3313 = vsel %vm913, %v3276, 0
        %v3316 = vsel %vm913, %v3277, 0
        %v3319 = vsel %vm913, %v3278, 0
        %v3322 = vsel %vm913, %v3279, 0
        %v3325 = vsel %vm913, %v3280, 0
        %v3328 = vsel %vm913, %v3281, 0
        %3330 = vmatprep.subr.mxu0 0.0
        %3331 = vmatpush1.msra.mxu0 %v893
        %3332 = vmatprep.subr.mxu0 0.0
        %3333 = vmatpush1.msra.mxu0 %v894
        %3334 = vmatprep.subr.mxu0 0.0
        %3335 = vmatpush1.msra.mxu0 %v895
        %3336 = vmatprep.subr.mxu0 0.0
        %3337 = vmatpush1.msra.mxu0 %v896
        %3338 = vmatprep.subr.mxu0 0.0
        %3339 = vmatpush1.msra.mxu0 0.0
        %3340 = vmatprep.subr.mxu0 0.0
        %3341 = vmatpush1.msra.mxu0 0.0
        %3342 = vmatprep.subr.mxu0 0.0
        %3343 = vmatpush1.msra.mxu0 0.0
        %3344 = vmatprep.subr.mxu0 0.0
        %3345 = vmatpush1.msra.mxu0 0.0
        %3346 = vmatprep.subr.mxu0 0.0
        %3347 = vmatpush1.msra.mxu0 0.0
        %3348 = vmatprep.subr.mxu0 0.0
        %3349 = vmatpush1.msra.mxu0 0.0
        %3350 = vmatprep.subr.mxu0 0.0
        %3351 = vmatpush1.msra.mxu0 0.0
        %3352 = vmatprep.subr.mxu0 0.0
        %3353 = vmatpush1.msra.mxu0 0.0
        %3354 = vmatprep.subr.mxu0 0.0
        %3355 = vmatpush1.msra.mxu0 0.0
        %3356 = vmatprep.subr.mxu0 0.0
        %3357 = vmatpush1.msra.mxu0 0.0
        %3358 = vmatprep.subr.mxu0 0.0
        %3359 = vmatpush1.msra.mxu0 0.0
        %3360 = vmatprep.subr.mxu0 0.0
        %3361 = vmatpush1.msra.mxu0 0.0
        %3362 = vmatprep.subr.mxu0 0.0
        %3363 = vmatpush1.msra.mxu0 0.0
        %3364 = vmatprep.subr.mxu0 0.0
        %3365 = vmatpush1.msra.mxu0 0.0
        %3366 = vmatprep.subr.mxu0 0.0
        %3367 = vmatpush1.msra.mxu0 0.0
        %3368 = vmatprep.subr.mxu0 0.0
        %3369 = vmatpush1.msra.mxu0 0.0
        %3370 = vmatprep.subr.mxu0 0.0
        %3371 = vmatpush1.msra.mxu0 0.0
        %3372 = vmatprep.subr.mxu0 0.0
        %3373 = vmatpush1.msra.mxu0 0.0
        %3374 = vmatprep.subr.mxu0 0.0
        %3375 = vmatpush1.msra.mxu0 0.0
        %3376 = vmatprep.subr.mxu0 0.0
        %3377 = vmatpush1.msra.mxu0 0.0
        %3378 = vmatprep.subr.mxu0 0.0
        %3379 = vmatpush1.msra.mxu0 0.0
        %3380 = vmatprep.subr.mxu0 0.0
        %3381 = vmatpush1.msra.mxu0 0.0
        %3382 = vmatprep.subr.mxu0 0.0
        %3383 = vmatpush1.msra.mxu0 0.0
        %3384 = vmatprep.subr.mxu0 0.0
        %3385 = vmatpush1.msra.mxu0 0.0
        %3386 = vmatprep.subr.mxu0 0.0
        %3387 = vmatpush1.msra.mxu0 0.0
        %3388 = vmatprep.subr.mxu0 0.0
        %3389 = vmatpush1.msra.mxu0 0.0
        %3390 = vmatprep.subr.mxu0 0.0
        %3391 = vmatpush1.msra.mxu0 0.0
        %3392 = vmatprep.subr.mxu0 0.0
        %3393 = vmatpush1.msra.mxu0 0.0
        %3394 = vmatprep.mubr.f32.mxu0 0.0
        %3395 = vmatmul.mubr.f32.gmra.mrb[0].mxu0 %v3283
        %v3396 = vpop.f32.mrb[0].mxu0
        %v3397 = vadd.f32 %v1336, %v3396
        %v3398 = vpop.f32.mrb[0].mxu0
        %3399 = vmatprep.mubr.f32.mxu0 0.0
        %3400 = vmatmul.mubr.f32.gmra.mrb[0].mxu0 %v3286
        %v3401 = vpop.f32.mrb[0].mxu0
        %v3402 = vadd.f32 %v1336, %v3401
        %v3403 = vpop.f32.mrb[0].mxu0
        %3404 = vmatprep.mubr.f32.mxu0 0.0
        %3405 = vmatmul.mubr.f32.gmra.mrb[0].mxu0 %v3289
        %v3406 = vpop.f32.mrb[0].mxu0
        %v3407 = vadd.f32 %v1336, %v3406
        %v3408 = vpop.f32.mrb[0].mxu0
        %3409 = vmatprep.mubr.f32.mxu0 0.0
        %3410 = vmatmul.mubr.f32.gmra.mrb[0].mxu0 %v3292
        %v3411 = vpop.f32.mrb[0].mxu0
        %v3412 = vadd.f32 %v1336, %v3411
        %v3413 = vpop.f32.mrb[0].mxu0
        %3414 = vmatprep.mubr.f32.mxu0 0.0
        %3415 = vmatmul.mubr.f32.gmra.mrb[0].mxu0 %v3295
        %v3416 = vpop.f32.mrb[0].mxu0
        %v3417 = vadd.f32 %v1336, %v3416
        %v3418 = vpop.f32.mrb[0].mxu0
        %3419 = vmatprep.mubr.f32.mxu0 0.0
        %3420 = vmatmul.mubr.f32.gmra.mrb[0].mxu0 %v3298
        %v3421 = vpop.f32.mrb[0].mxu0
        %v3422 = vadd.f32 %v1336, %v3421
        %v3423 = vpop.f32.mrb[0].mxu0
        %3424 = vmatprep.mubr.f32.mxu0 0.0
        %3425 = vmatmul.mubr.f32.gmra.mrb[0].mxu0 %v3301
        %v3426 = vpop.f32.mrb[0].mxu0
        %v3427 = vadd.f32 %v1336, %v3426
        %v3428 = vpop.f32.mrb[0].mxu0
        %3429 = vmatprep.mubr.f32.mxu0 0.0
        %3430 = vmatmul.mubr.f32.gmra.mrb[0].mxu0 %v3304
        %v3431 = vpop.f32.mrb[0].mxu0
        %v3432 = vadd.f32 %v1336, %v3431
        %v3433 = vpop.f32.mrb[0].mxu0
        %3434 = vmatprep.mubr.f32.mxu0 0.0
        %3435 = vmatmul.mubr.f32.gmra.mrb[0].mxu0 %v3307
        %v3436 = vpop.f32.mrb[0].mxu0
        %v3437 = vadd.f32 %v1336, %v3436
        %v3438 = vpop.f32.mrb[0].mxu0
        %3439 = vmatprep.mubr.f32.mxu0 0.0
        %3440 = vmatmul.mubr.f32.gmra.mrb[0].mxu0 %v3310
        %v3441 = vpop.f32.mrb[0].mxu0
        %v3442 = vadd.f32 %v1336, %v3441
        %v3443 = vpop.f32.mrb[0].mxu0
        %3444 = vmatprep.mubr.f32.mxu0 0.0
        %3445 = vmatmul.mubr.f32.gmra.mrb[0].mxu0 %v3313
        %v3446 = vpop.f32.mrb[0].mxu0
        %v3447 = vadd.f32 %v1336, %v3446
        %v3448 = vpop.f32.mrb[0].mxu0
        %3449 = vmatprep.mubr.f32.mxu0 0.0
        %3450 = vmatmul.mubr.f32.gmra.mrb[0].mxu0 %v3316
        %v3451 = vpop.f32.mrb[0].mxu0
        %v3452 = vadd.f32 %v1336, %v3451
        %v3453 = vpop.f32.mrb[0].mxu0
        %3454 = vmatprep.mubr.f32.mxu0 0.0
        %3455 = vmatmul.mubr.f32.gmra.mrb[0].mxu0 %v3319
        %v3456 = vpop.f32.mrb[0].mxu0
        %v3457 = vadd.f32 %v1336, %v3456
        %v3458 = vpop.f32.mrb[0].mxu0
        %3459 = vmatprep.mubr.f32.mxu0 0.0
        %3460 = vmatmul.mubr.f32.gmra.mrb[0].mxu0 %v3322
        %v3461 = vpop.f32.mrb[0].mxu0
        %v3462 = vadd.f32 %v1336, %v3461
        %v3463 = vpop.f32.mrb[0].mxu0
        %3464 = vmatprep.mubr.f32.mxu0 0.0
        %3465 = vmatmul.mubr.f32.gmra.mrb[0].mxu0 %v3325
        %v3466 = vpop.f32.mrb[0].mxu0
        %v3467 = vadd.f32 %v1336, %v3466
        %v3468 = vpop.f32.mrb[0].mxu0
        %3469 = vmatprep.mubr.f32.mxu0 0.0
        %3470 = vmatmul.mubr.f32.gmra.mrb[0].mxu0 %v3328
        %v3471 = vpop.f32.mrb[0].mxu0
        %v3472 = vadd.f32 %v1336, %v3471
        %v3473 = vpop.f32.mrb[0].mxu0
        %3474 = vdwg.mxu0
        %v3475 = vmax.f32 %v3397, 0.0
        %v3476 = vmax.f32 %v3402, 0.0
        %v3477 = vmax.f32 %v3407, 0.0
        %v3478 = vmax.f32 %v3412, 0.0
        %v3479 = vmax.f32 %v3417, 0.0
        %v3480 = vmax.f32 %v3422, 0.0
        %v3481 = vmax.f32 %v3427, 0.0
        %v3482 = vmax.f32 %v3432, 0.0
        %v3483 = vmax.f32 %v3437, 0.0
        %v3484 = vmax.f32 %v3442, 0.0
        %v3485 = vmax.f32 %v3447, 0.0
        %v3486 = vmax.f32 %v3452, 0.0
        %v3487 = vmax.f32 %v3457, 0.0
        %v3488 = vmax.f32 %v3462, 0.0
        %v3489 = vmax.f32 %v3467, 0.0
        %v3490 = vmax.f32 %v3472, 0.0
        %v3492 = vsel %vm913, %v3475, 0
        %v3495 = vsel %vm913, %v3476, 0
        %v3498 = vsel %vm913, %v3477, 0
        %v3501 = vsel %vm913, %v3478, 0
        %v3504 = vsel %vm913, %v3479, 0
        %v3507 = vsel %vm913, %v3480, 0
        %v3510 = vsel %vm913, %v3481, 0
        %v3513 = vsel %vm913, %v3482, 0
        %v3516 = vsel %vm913, %v3483, 0
        %v3519 = vsel %vm913, %v3484, 0
        %v3522 = vsel %vm913, %v3485, 0
        %v3525 = vsel %vm913, %v3486, 0
        %v3528 = vsel %vm913, %v3487, 0
        %v3531 = vsel %vm913, %v3488, 0
        %v3534 = vsel %vm913, %v3489, 0
        %v3537 = vsel %vm913, %v3490, 0
        %3539 = vmatprep.subr.mxu0 0.0
        %3540 = vmatpush1.msra.mxu0 %v897
        %3541 = vmatprep.subr.mxu0 0.0
        %3542 = vmatpush1.msra.mxu0 %v898
        %3543 = vmatprep.subr.mxu0 0.0
        %3544 = vmatpush1.msra.mxu0 %v899
        %3545 = vmatprep.subr.mxu0 0.0
        %3546 = vmatpush1.msra.mxu0 %v900
        %3547 = vmatprep.subr.mxu0 0.0
        %3548 = vmatpush1.msra.mxu0 0.0
        %3549 = vmatprep.subr.mxu0 0.0
        %3550 = vmatpush1.msra.mxu0 0.0
        %3551 = vmatprep.subr.mxu0 0.0
        %3552 = vmatpush1.msra.mxu0 0.0
        %3553 = vmatprep.subr.mxu0 0.0
        %3554 = vmatpush1.msra.mxu0 0.0
        %3555 = vmatprep.subr.mxu0 0.0
        %3556 = vmatpush1.msra.mxu0 0.0
        %3557 = vmatprep.subr.mxu0 0.0
        %3558 = vmatpush1.msra.mxu0 0.0
        %3559 = vmatprep.subr.mxu0 0.0
        %3560 = vmatpush1.msra.mxu0 0.0
        %3561 = vmatprep.subr.mxu0 0.0
        %3562 = vmatpush1.msra.mxu0 0.0
        %3563 = vmatprep.subr.mxu0 0.0
        %3564 = vmatpush1.msra.mxu0 0.0
        %3565 = vmatprep.subr.mxu0 0.0
        %3566 = vmatpush1.msra.mxu0 0.0
        %3567 = vmatprep.subr.mxu0 0.0
        %3568 = vmatpush1.msra.mxu0 0.0
        %3569 = vmatprep.subr.mxu0 0.0
        %3570 = vmatpush1.msra.mxu0 0.0
        %3571 = vmatprep.subr.mxu0 0.0
        %3572 = vmatpush1.msra.mxu0 0.0
        %3573 = vmatprep.subr.mxu0 0.0
        %3574 = vmatpush1.msra.mxu0 0.0
        %3575 = vmatprep.subr.mxu0 0.0
        %3576 = vmatpush1.msra.mxu0 0.0
        %3577 = vmatprep.subr.mxu0 0.0
        %3578 = vmatpush1.msra.mxu0 0.0
        %3579 = vmatprep.subr.mxu0 0.0
        %3580 = vmatpush1.msra.mxu0 0.0
        %3581 = vmatprep.subr.mxu0 0.0
        %3582 = vmatpush1.msra.mxu0 0.0
        %3583 = vmatprep.subr.mxu0 0.0
        %3584 = vmatpush1.msra.mxu0 0.0
        %3585 = vmatprep.subr.mxu0 0.0
        %3586 = vmatpush1.msra.mxu0 0.0
        %3587 = vmatprep.subr.mxu0 0.0
        %3588 = vmatpush1.msra.mxu0 0.0
        %3589 = vmatprep.subr.mxu0 0.0
        %3590 = vmatpush1.msra.mxu0 0.0
        %3591 = vmatprep.subr.mxu0 0.0
        %3592 = vmatpush1.msra.mxu0 0.0
        %3593 = vmatprep.subr.mxu0 0.0
        %3594 = vmatpush1.msra.mxu0 0.0
        %3595 = vmatprep.subr.mxu0 0.0
        %3596 = vmatpush1.msra.mxu0 0.0
        %3597 = vmatprep.subr.mxu0 0.0
        %3598 = vmatpush1.msra.mxu0 0.0
        %3599 = vmatprep.subr.mxu0 0.0
        %3600 = vmatpush1.msra.mxu0 0.0
        %3601 = vmatprep.subr.mxu0 0.0
        %3602 = vmatpush1.msra.mxu0 0.0
        %3603 = vmatprep.mubr.f32.mxu0 0.0
        %3604 = vmatmul.mubr.f32.gmra.mrb[0].mxu0 %v3492
        %v3605 = vpop.f32.mrb[0].mxu0
        %v3606 = vadd.f32 0.0, %v3605
        %v3607 = vpop.f32.mrb[0].mxu0
        %3608 = vmatprep.mubr.f32.mxu0 0.0
        %3609 = vmatmul.mubr.f32.gmra.mrb[0].mxu0 %v3495
        %v3610 = vpop.f32.mrb[0].mxu0
        %v3611 = vadd.f32 0.0, %v3610
        %v3612 = vpop.f32.mrb[0].mxu0
        %3613 = vmatprep.mubr.f32.mxu0 0.0
        %3614 = vmatmul.mubr.f32.gmra.mrb[0].mxu0 %v3498
        %v3615 = vpop.f32.mrb[0].mxu0
        %v3616 = vadd.f32 0.0, %v3615
        %v3617 = vpop.f32.mrb[0].mxu0
        %3618 = vmatprep.mubr.f32.mxu0 0.0
        %3619 = vmatmul.mubr.f32.gmra.mrb[0].mxu0 %v3501
        %v3620 = vpop.f32.mrb[0].mxu0
        %v3621 = vadd.f32 0.0, %v3620
        %v3622 = vpop.f32.mrb[0].mxu0
        %3623 = vmatprep.mubr.f32.mxu0 0.0
        %3624 = vmatmul.mubr.f32.gmra.mrb[0].mxu0 %v3504
        %v3625 = vpop.f32.mrb[0].mxu0
        %v3626 = vadd.f32 0.0, %v3625
        %v3627 = vpop.f32.mrb[0].mxu0
        %3628 = vmatprep.mubr.f32.mxu0 0.0
        %3629 = vmatmul.mubr.f32.gmra.mrb[0].mxu0 %v3507
        %v3630 = vpop.f32.mrb[0].mxu0
        %v3631 = vadd.f32 0.0, %v3630
        %v3632 = vpop.f32.mrb[0].mxu0
        %3633 = vmatprep.mubr.f32.mxu0 0.0
        %3634 = vmatmul.mubr.f32.gmra.mrb[0].mxu0 %v3510
        %v3635 = vpop.f32.mrb[0].mxu0
        %v3636 = vadd.f32 0.0, %v3635
        %v3637 = vpop.f32.mrb[0].mxu0
        %3638 = vmatprep.mubr.f32.mxu0 0.0
        %3639 = vmatmul.mubr.f32.gmra.mrb[0].mxu0 %v3513
        %v3640 = vpop.f32.mrb[0].mxu0
        %v3641 = vadd.f32 0.0, %v3640
        %v3642 = vpop.f32.mrb[0].mxu0
        %3643 = vmatprep.mubr.f32.mxu0 0.0
        %3644 = vmatmul.mubr.f32.gmra.mrb[0].mxu0 %v3516
        %v3645 = vpop.f32.mrb[0].mxu0
        %v3646 = vadd.f32 0.0, %v3645
        %v3647 = vpop.f32.mrb[0].mxu0
        %3648 = vmatprep.mubr.f32.mxu0 0.0
        %3649 = vmatmul.mubr.f32.gmra.mrb[0].mxu0 %v3519
        %v3650 = vpop.f32.mrb[0].mxu0
        %v3651 = vadd.f32 0.0, %v3650
        %v3652 = vpop.f32.mrb[0].mxu0
        %3653 = vmatprep.mubr.f32.mxu0 0.0
        %3654 = vmatmul.mubr.f32.gmra.mrb[0].mxu0 %v3522
        %v3655 = vpop.f32.mrb[0].mxu0
        %v3656 = vadd.f32 0.0, %v3655
        %v3657 = vpop.f32.mrb[0].mxu0
        %3658 = vmatprep.mubr.f32.mxu0 0.0
        %3659 = vmatmul.mubr.f32.gmra.mrb[0].mxu0 %v3525
        %v3660 = vpop.f32.mrb[0].mxu0
        %v3661 = vadd.f32 0.0, %v3660
        %v3662 = vpop.f32.mrb[0].mxu0
        %3663 = vmatprep.mubr.f32.mxu0 0.0
        %3664 = vmatmul.mubr.f32.gmra.mrb[0].mxu0 %v3528
        %v3665 = vpop.f32.mrb[0].mxu0
        %v3666 = vadd.f32 0.0, %v3665
        %v3667 = vpop.f32.mrb[0].mxu0
        %3668 = vmatprep.mubr.f32.mxu0 0.0
        %3669 = vmatmul.mubr.f32.gmra.mrb[0].mxu0 %v3531
        %v3670 = vpop.f32.mrb[0].mxu0
        %v3671 = vadd.f32 0.0, %v3670
        %v3672 = vpop.f32.mrb[0].mxu0
        %3673 = vmatprep.mubr.f32.mxu0 0.0
        %3674 = vmatmul.mubr.f32.gmra.mrb[0].mxu0 %v3534
        %v3675 = vpop.f32.mrb[0].mxu0
        %v3676 = vadd.f32 0.0, %v3675
        %v3677 = vpop.f32.mrb[0].mxu0
        %3678 = vmatprep.mubr.f32.mxu0 0.0
        %3679 = vmatmul.mubr.f32.gmra.mrb[0].mxu0 %v3537
        %v3680 = vpop.f32.mrb[0].mxu0
        %v3681 = vadd.f32 0.0, %v3680
        %v3682 = vpop.f32.mrb[0].mxu0
        %3683 = vdwg.mxu0
        %v3684 = vmax.f32 %v2704, %v3606
        %v3685 = vmax.f32 %v2705, %v3611
        %v3686 = vmax.f32 %v2706, %v3616
        %v3687 = vmax.f32 %v2707, %v3621
        %v3688 = vmax.f32 %v2708, %v3626
        %v3689 = vmax.f32 %v2709, %v3631
        %v3690 = vmax.f32 %v2710, %v3636
        %v3691 = vmax.f32 %v2711, %v3641
        %v3692 = vmax.f32 %v2712, %v3646
        %v3693 = vmax.f32 %v2713, %v3651
        %v3694 = vmax.f32 %v2714, %v3656
        %v3695 = vmax.f32 %v2715, %v3661
        %v3696 = vmax.f32 %v2716, %v3666
        %v3697 = vmax.f32 %v2717, %v3671
        %v3698 = vmax.f32 %v2718, %v3676
        %v3699 = vmax.f32 %v2719, %v3681
        %v3700 = vsub.f32 %v2704, %v3684
        %v3701 = vsub.f32 %v2705, %v3685
        %v3702 = vsub.f32 %v2706, %v3686
        %v3703 = vsub.f32 %v2707, %v3687
        %v3704 = vsub.f32 %v2708, %v3688
        %v3705 = vsub.f32 %v2709, %v3689
        %v3706 = vsub.f32 %v2710, %v3690
        %v3707 = vsub.f32 %v2711, %v3691
        %v3708 = vsub.f32 %v2712, %v3692
        %v3709 = vsub.f32 %v2713, %v3693
        %v3710 = vsub.f32 %v2714, %v3694
        %v3711 = vsub.f32 %v2715, %v3695
        %v3712 = vsub.f32 %v2716, %v3696
        %v3713 = vsub.f32 %v2717, %v3697
        %v3714 = vsub.f32 %v2718, %v3698
        %v3715 = vsub.f32 %v2719, %v3699
        %v3716 = vmul.f32 %v3700, 1.442695
        %v3717 = vpow.pop %v3716
        %v3718 = vmul.f32 %v3701, 1.442695
        %v3719 = vpow.pop %v3718
        %v3720 = vmul.f32 %v3702, 1.442695
        %v3721 = vpow.pop %v3720
        %v3722 = vmul.f32 %v3703, 1.442695
        %v3723 = vpow.pop %v3722
        %v3724 = vmul.f32 %v3704, 1.442695
        %v3725 = vpow.pop %v3724
        %v3726 = vmul.f32 %v3705, 1.442695
        %v3727 = vpow.pop %v3726
        %v3728 = vmul.f32 %v3706, 1.442695
        %v3729 = vpow.pop %v3728
        %v3730 = vmul.f32 %v3707, 1.442695
        %v3731 = vpow.pop %v3730
        %v3732 = vmul.f32 %v3708, 1.442695
        %v3733 = vpow.pop %v3732
        %v3734 = vmul.f32 %v3709, 1.442695
        %v3735 = vpow.pop %v3734
        %v3736 = vmul.f32 %v3710, 1.442695
        %v3737 = vpow.pop %v3736
        %v3738 = vmul.f32 %v3711, 1.442695
        %v3739 = vpow.pop %v3738
        %v3740 = vmul.f32 %v3712, 1.442695
        %v3741 = vpow.pop %v3740
        %v3742 = vmul.f32 %v3713, 1.442695
        %v3743 = vpow.pop %v3742
        %v3744 = vmul.f32 %v3714, 1.442695
        %v3745 = vpow.pop %v3744
        %v3746 = vmul.f32 %v3715, 1.442695
        %v3747 = vpow.pop %v3746
        %v3748 = vsub.f32 %v3606, %v3684
        %v3749 = vsub.f32 %v3611, %v3685
        %v3750 = vsub.f32 %v3616, %v3686
        %v3751 = vsub.f32 %v3621, %v3687
        %v3752 = vsub.f32 %v3626, %v3688
        %v3753 = vsub.f32 %v3631, %v3689
        %v3754 = vsub.f32 %v3636, %v3690
        %v3755 = vsub.f32 %v3641, %v3691
        %v3756 = vsub.f32 %v3646, %v3692
        %v3757 = vsub.f32 %v3651, %v3693
        %v3758 = vsub.f32 %v3656, %v3694
        %v3759 = vsub.f32 %v3661, %v3695
        %v3760 = vsub.f32 %v3666, %v3696
        %v3761 = vsub.f32 %v3671, %v3697
        %v3762 = vsub.f32 %v3676, %v3698
        %v3763 = vsub.f32 %v3681, %v3699
        %v3764 = vmul.f32 %v3748, 1.442695
        %v3765 = vpow.pop %v3764
        %v3766 = vmul.f32 %v3749, 1.442695
        %v3767 = vpow.pop %v3766
        %v3768 = vmul.f32 %v3750, 1.442695
        %v3769 = vpow.pop %v3768
        %v3770 = vmul.f32 %v3751, 1.442695
        %v3771 = vpow.pop %v3770
        %v3772 = vmul.f32 %v3752, 1.442695
        %v3773 = vpow.pop %v3772
        %v3774 = vmul.f32 %v3753, 1.442695
        %v3775 = vpow.pop %v3774
        %v3776 = vmul.f32 %v3754, 1.442695
        %v3777 = vpow.pop %v3776
        %v3778 = vmul.f32 %v3755, 1.442695
        %v3779 = vpow.pop %v3778
        %v3780 = vmul.f32 %v3756, 1.442695
        %v3781 = vpow.pop %v3780
        %v3782 = vmul.f32 %v3757, 1.442695
        %v3783 = vpow.pop %v3782
        %v3784 = vmul.f32 %v3758, 1.442695
        %v3785 = vpow.pop %v3784
        %v3786 = vmul.f32 %v3759, 1.442695
        %v3787 = vpow.pop %v3786
        %v3788 = vmul.f32 %v3760, 1.442695
        %v3789 = vpow.pop %v3788
        %v3790 = vmul.f32 %v3761, 1.442695
        %v3791 = vpow.pop %v3790
        %v3792 = vmul.f32 %v3762, 1.442695
        %v3793 = vpow.pop %v3792
        %v3794 = vmul.f32 %v3763, 1.442695
        %v3795 = vpow.pop %v3794
        %v3796 = vmul.f32 %v3717, %v2832
        %v3797 = vmul.f32 %v3719, %v2833
        %v3798 = vmul.f32 %v3721, %v2834
        %v3799 = vmul.f32 %v3723, %v2835
        %v3800 = vmul.f32 %v3725, %v2836
        %v3801 = vmul.f32 %v3727, %v2837
        %v3802 = vmul.f32 %v3729, %v2838
        %v3803 = vmul.f32 %v3731, %v2839
        %v3804 = vmul.f32 %v3733, %v2840
        %v3805 = vmul.f32 %v3735, %v2841
        %v3806 = vmul.f32 %v3737, %v2842
        %v3807 = vmul.f32 %v3739, %v2843
        %v3808 = vmul.f32 %v3741, %v2844
        %v3809 = vmul.f32 %v3743, %v2845
        %v3810 = vmul.f32 %v3745, %v2846
        %v3811 = vmul.f32 %v3747, %v2847
        %v3812 = vadd.f32 %v3796, %v3765
        %v3813 = vadd.f32 %v3797, %v3767
        %v3814 = vadd.f32 %v3798, %v3769
        %v3815 = vadd.f32 %v3799, %v3771
        %v3816 = vadd.f32 %v3800, %v3773
        %v3817 = vadd.f32 %v3801, %v3775
        %v3818 = vadd.f32 %v3802, %v3777
        %v3819 = vadd.f32 %v3803, %v3779
        %v3820 = vadd.f32 %v3804, %v3781
        %v3821 = vadd.f32 %v3805, %v3783
        %v3822 = vadd.f32 %v3806, %v3785
        %v3823 = vadd.f32 %v3807, %v3787
        %v3824 = vadd.f32 %v3808, %v3789
        %v3825 = vadd.f32 %v3809, %v3791
        %v3826 = vadd.f32 %v3810, %v3793
        %v3827 = vadd.f32 %v3811, %v3795
        %3829 = vset.pattern.permute.xlu0 0
        %3830 = vperm.xlu0 %3829, %v3717
        %v3831 = vpop.permute.xlu0 %3830
        %3834 = vset.pattern.permute.xlu0 0
        %3835 = vperm.xlu0 %3834, %v3719
        %v3836 = vpop.permute.xlu0 %3835
        %3839 = vset.pattern.permute.xlu0 0
        %3840 = vperm.xlu0 %3839, %v3721
        %v3841 = vpop.permute.xlu0 %3840
        %3844 = vset.pattern.permute.xlu0 0
        %3845 = vperm.xlu0 %3844, %v3723
        %v3846 = vpop.permute.xlu0 %3845
        %3849 = vset.pattern.permute.xlu0 0
        %3850 = vperm.xlu0 %3849, %v3725
        %v3851 = vpop.permute.xlu0 %3850
        %3854 = vset.pattern.permute.xlu0 0
        %3855 = vperm.xlu0 %3854, %v3727
        %v3856 = vpop.permute.xlu0 %3855
        %3859 = vset.pattern.permute.xlu0 0
        %3860 = vperm.xlu0 %3859, %v3729
        %v3861 = vpop.permute.xlu0 %3860
        %3864 = vset.pattern.permute.xlu0 0
        %3865 = vperm.xlu0 %3864, %v3731
        %v3866 = vpop.permute.xlu0 %3865
        %3869 = vset.pattern.permute.xlu0 0
        %3870 = vperm.xlu0 %3869, %v3733
        %v3871 = vpop.permute.xlu0 %3870
        %3874 = vset.pattern.permute.xlu0 0
        %3875 = vperm.xlu0 %3874, %v3735
        %v3876 = vpop.permute.xlu0 %3875
        %3879 = vset.pattern.permute.xlu0 0
        %3880 = vperm.xlu0 %3879, %v3737
        %v3881 = vpop.permute.xlu0 %3880
        %3884 = vset.pattern.permute.xlu0 0
        %3885 = vperm.xlu0 %3884, %v3739
        %v3886 = vpop.permute.xlu0 %3885
        %3889 = vset.pattern.permute.xlu0 0
        %3890 = vperm.xlu0 %3889, %v3741
        %v3891 = vpop.permute.xlu0 %3890
        %3894 = vset.pattern.permute.xlu0 0
        %3895 = vperm.xlu0 %3894, %v3743
        %v3896 = vpop.permute.xlu0 %3895
        %3899 = vset.pattern.permute.xlu0 0
        %3900 = vperm.xlu0 %3899, %v3745
        %v3901 = vpop.permute.xlu0 %3900
        %3904 = vset.pattern.permute.xlu0 0
        %3905 = vperm.xlu0 %3904, %v3747
        %v3906 = vpop.permute.xlu0 %3905
        %v3908 = vmul.f32 %v3831, %v3040
        %v3909 = vmul.f32 %v3836, %v3041
        %v3910 = vmul.f32 %v3841, %v3042
        %v3911 = vmul.f32 %v3846, %v3043
        %v3912 = vmul.f32 %v3851, %v3044
        %v3913 = vmul.f32 %v3856, %v3045
        %v3914 = vmul.f32 %v3861, %v3046
        %v3915 = vmul.f32 %v3866, %v3047
        %v3916 = vmul.f32 %v3871, %v3048
        %v3917 = vmul.f32 %v3876, %v3049
        %v3918 = vmul.f32 %v3881, %v3050
        %v3919 = vmul.f32 %v3886, %v3051
        %v3920 = vmul.f32 %v3891, %v3052
        %v3921 = vmul.f32 %v3896, %v3053
        %v3922 = vmul.f32 %v3901, %v3054
        %v3923 = vmul.f32 %v3906, %v3055
        %3925 = vset.pattern.permute.xlu0 0
        %3926 = vperm.xlu0 %3925, %v3765
        %v3927 = vpop.permute.xlu0 %3926
        %3930 = vset.pattern.permute.xlu0 0
        %3931 = vperm.xlu0 %3930, %v3767
        %v3932 = vpop.permute.xlu0 %3931
        %3935 = vset.pattern.permute.xlu0 0
        %3936 = vperm.xlu0 %3935, %v3769
        %v3937 = vpop.permute.xlu0 %3936
        %3940 = vset.pattern.permute.xlu0 0
        %3941 = vperm.xlu0 %3940, %v3771
        %v3942 = vpop.permute.xlu0 %3941
        %3945 = vset.pattern.permute.xlu0 0
        %3946 = vperm.xlu0 %3945, %v3773
        %v3947 = vpop.permute.xlu0 %3946
        %3950 = vset.pattern.permute.xlu0 0
        %3951 = vperm.xlu0 %3950, %v3775
        %v3952 = vpop.permute.xlu0 %3951
        %3955 = vset.pattern.permute.xlu0 0
        %3956 = vperm.xlu0 %3955, %v3777
        %v3957 = vpop.permute.xlu0 %3956
        %3960 = vset.pattern.permute.xlu0 0
        %3961 = vperm.xlu0 %3960, %v3779
        %v3962 = vpop.permute.xlu0 %3961
        %3965 = vset.pattern.permute.xlu0 0
        %3966 = vperm.xlu0 %3965, %v3781
        %v3967 = vpop.permute.xlu0 %3966
        %3970 = vset.pattern.permute.xlu0 0
        %3971 = vperm.xlu0 %3970, %v3783
        %v3972 = vpop.permute.xlu0 %3971
        %3975 = vset.pattern.permute.xlu0 0
        %3976 = vperm.xlu0 %3975, %v3785
        %v3977 = vpop.permute.xlu0 %3976
        %3980 = vset.pattern.permute.xlu0 0
        %3981 = vperm.xlu0 %3980, %v3787
        %v3982 = vpop.permute.xlu0 %3981
        %3985 = vset.pattern.permute.xlu0 0
        %3986 = vperm.xlu0 %3985, %v3789
        %v3987 = vpop.permute.xlu0 %3986
        %3990 = vset.pattern.permute.xlu0 0
        %3991 = vperm.xlu0 %3990, %v3791
        %v3992 = vpop.permute.xlu0 %3991
        %3995 = vset.pattern.permute.xlu0 0
        %3996 = vperm.xlu0 %3995, %v3793
        %v3997 = vpop.permute.xlu0 %3996
        %4000 = vset.pattern.permute.xlu0 0
        %4001 = vperm.xlu0 %4000, %v3795
        %v4002 = vpop.permute.xlu0 %4001
        %v4004 = vmul.f32 %v3927, %v3057
        %v4005 = vmul.f32 %v3932, %v3058
        %v4006 = vmul.f32 %v3937, %v3059
        %v4007 = vmul.f32 %v3942, %v3060
        %v4008 = vmul.f32 %v3947, %v3061
        %v4009 = vmul.f32 %v3952, %v3062
        %v4010 = vmul.f32 %v3957, %v3063
        %v4011 = vmul.f32 %v3962, %v3064
        %v4012 = vmul.f32 %v3967, %v3065
        %v4013 = vmul.f32 %v3972, %v3066
        %v4014 = vmul.f32 %v3977, %v3067
        %v4015 = vmul.f32 %v3982, %v3068
        %v4016 = vmul.f32 %v3987, %v3069
        %v4017 = vmul.f32 %v3992, %v3070
        %v4018 = vmul.f32 %v3997, %v3071
        %v4019 = vmul.f32 %v4002, %v3072
        %v4020 = vadd.f32 %v3908, %v4004
        %v4021 = vadd.f32 %v3909, %v4005
        %v4022 = vadd.f32 %v3910, %v4006
        %v4023 = vadd.f32 %v3911, %v4007
        %v4024 = vadd.f32 %v3912, %v4008
        %v4025 = vadd.f32 %v3913, %v4009
        %v4026 = vadd.f32 %v3914, %v4010
        %v4027 = vadd.f32 %v3915, %v4011
        %v4028 = vadd.f32 %v3916, %v4012
        %v4029 = vadd.f32 %v3917, %v4013
        %v4030 = vadd.f32 %v3918, %v4014
        %v4031 = vadd.f32 %v3919, %v4015
        %v4032 = vadd.f32 %v3920, %v4016
        %v4033 = vadd.f32 %v3921, %v4017
        %v4034 = vadd.f32 %v3922, %v4018
        %v4035 = vadd.f32 %v3923, %v4019
        %s4036 = scalar_lea.vmem %s824, 384 [#allocation2]
        %v4037 = vld [vmem:[%s4036] sm:$0xff]
        %v4038 = vld [vmem:[%s4036 + $0x8] sm:$0xff]
        %v4039 = vld [vmem:[%s4036 + $0x10] sm:$0xff]
        %v4040 = vld [vmem:[%s4036 + $0x18] sm:$0xff]
        %v4041 = vld [vmem:[%s4036 + $0x20] sm:$0xff]
        %v4042 = vld [vmem:[%s4036 + $0x28] sm:$0xff]
        %v4043 = vld [vmem:[%s4036 + $0x30] sm:$0xff]
        %v4044 = vld [vmem:[%s4036 + $0x38] sm:$0xff]
        %v4045 = vld [vmem:[%s4036 + $0x40] sm:$0xff]
        %v4046 = vld [vmem:[%s4036 + $0x48] sm:$0xff]
        %v4047 = vld [vmem:[%s4036 + $0x50] sm:$0xff]
        %v4048 = vld [vmem:[%s4036 + $0x58] sm:$0xff]
        %v4049 = vld [vmem:[%s4036 + $0x60] sm:$0xff]
        %v4050 = vld [vmem:[%s4036 + $0x68] sm:$0xff]
        %v4051 = vld [vmem:[%s4036 + $0x70] sm:$0xff]
        %v4052 = vld [vmem:[%s4036 + $0x78] sm:$0xff]
        %v4054 = vsel %vm913, %v4037, 0
        %v4057 = vsel %vm913, %v4038, 0
        %v4060 = vsel %vm913, %v4039, 0
        %v4063 = vsel %vm913, %v4040, 0
        %v4066 = vsel %vm913, %v4041, 0
        %v4069 = vsel %vm913, %v4042, 0
        %v4072 = vsel %vm913, %v4043, 0
        %v4075 = vsel %vm913, %v4044, 0
        %v4078 = vsel %vm913, %v4045, 0
        %v4081 = vsel %vm913, %v4046, 0
        %v4084 = vsel %vm913, %v4047, 0
        %v4087 = vsel %vm913, %v4048, 0
        %v4090 = vsel %vm913, %v4049, 0
        %v4093 = vsel %vm913, %v4050, 0
        %v4096 = vsel %vm913, %v4051, 0
        %v4099 = vsel %vm913, %v4052, 0
        %4101 = vmatprep.subr.mxu0 0.0
        %4102 = vmatpush1.msra.mxu0 %v889
        %4103 = vmatprep.subr.mxu0 0.0
        %4104 = vmatpush1.msra.mxu0 %v890
        %4105 = vmatprep.subr.mxu0 0.0
        %4106 = vmatpush1.msra.mxu0 %v891
        %4107 = vmatprep.subr.mxu0 0.0
        %4108 = vmatpush1.msra.mxu0 %v892
        %4109 = vmatprep.subr.mxu0 0.0
        %4110 = vmatpush1.msra.mxu0 0.0
        %4111 = vmatprep.subr.mxu0 0.0
        %4112 = vmatpush1.msra.mxu0 0.0
        %4113 = vmatprep.subr.mxu0 0.0
        %4114 = vmatpush1.msra.mxu0 0.0
        %4115 = vmatprep.subr.mxu0 0.0
        %4116 = vmatpush1.msra.mxu0 0.0
        %4117 = vmatprep.subr.mxu0 0.0
        %4118 = vmatpush1.msra.mxu0 0.0
        %4119 = vmatprep.subr.mxu0 0.0
        %4120 = vmatpush1.msra.mxu0 0.0
        %4121 = vmatprep.subr.mxu0 0.0
        %4122 = vmatpush1.msra.mxu0 0.0
        %4123 = vmatprep.subr.mxu0 0.0
        %4124 = vmatpush1.msra.mxu0 0.0
        %4125 = vmatprep.subr.mxu0 0.0
        %4126 = vmatpush1.msra.mxu0 0.0
        %4127 = vmatprep.subr.mxu0 0.0
        %4128 = vmatpush1.msra.mxu0 0.0
        %4129 = vmatprep.subr.mxu0 0.0
        %4130 = vmatpush1.msra.mxu0 0.0
        %4131 = vmatprep.subr.mxu0 0.0
        %4132 = vmatpush1.msra.mxu0 0.0
        %4133 = vmatprep.subr.mxu0 0.0
        %4134 = vmatpush1.msra.mxu0 0.0
        %4135 = vmatprep.subr.mxu0 0.0
        %4136 = vmatpush1.msra.mxu0 0.0
        %4137 = vmatprep.subr.mxu0 0.0
        %4138 = vmatpush1.msra.mxu0 0.0
        %4139 = vmatprep.subr.mxu0 0.0
        %4140 = vmatpush1.msra.mxu0 0.0
        %4141 = vmatprep.subr.mxu0 0.0
        %4142 = vmatpush1.msra.mxu0 0.0
        %4143 = vmatprep.subr.mxu0 0.0
        %4144 = vmatpush1.msra.mxu0 0.0
        %4145 = vmatprep.subr.mxu0 0.0
        %4146 = vmatpush1.msra.mxu0 0.0
        %4147 = vmatprep.subr.mxu0 0.0
        %4148 = vmatpush1.msra.mxu0 0.0
        %4149 = vmatprep.subr.mxu0 0.0
        %4150 = vmatpush1.msra.mxu0 0.0
        %4151 = vmatprep.subr.mxu0 0.0
        %4152 = vmatpush1.msra.mxu0 0.0
        %4153 = vmatprep.subr.mxu0 0.0
        %4154 = vmatpush1.msra.mxu0 0.0
        %4155 = vmatprep.subr.mxu0 0.0
        %4156 = vmatpush1.msra.mxu0 0.0
        %4157 = vmatprep.subr.mxu0 0.0
        %4158 = vmatpush1.msra.mxu0 0.0
        %4159 = vmatprep.subr.mxu0 0.0
        %4160 = vmatpush1.msra.mxu0 0.0
        %4161 = vmatprep.subr.mxu0 0.0
        %4162 = vmatpush1.msra.mxu0 0.0
        %4163 = vmatprep.subr.mxu0 0.0
        %4164 = vmatpush1.msra.mxu0 0.0
        %4165 = vmatprep.mubr.f32.mxu0 0.0
        %4166 = vmatmul.mubr.f32.gmra.mrb[0].mxu0 %v4054
        %v4167 = vpop.f32.mrb[0].mxu0
        %v4168 = vadd.f32 %v1029, %v4167
        %v4169 = vpop.f32.mrb[0].mxu0
        %4170 = vmatprep.mubr.f32.mxu0 0.0
        %4171 = vmatmul.mubr.f32.gmra.mrb[0].mxu0 %v4057
        %v4172 = vpop.f32.mrb[0].mxu0
        %v4173 = vadd.f32 %v1034, %v4172
        %v4174 = vpop.f32.mrb[0].mxu0
        %4175 = vmatprep.mubr.f32.mxu0 0.0
        %4176 = vmatmul.mubr.f32.gmra.mrb[0].mxu0 %v4060
        %v4177 = vpop.f32.mrb[0].mxu0
        %v4178 = vadd.f32 %v1039, %v4177
        %v4179 = vpop.f32.mrb[0].mxu0
        %4180 = vmatprep.mubr.f32.mxu0 0.0
        %4181 = vmatmul.mubr.f32.gmra.mrb[0].mxu0 %v4063
        %v4182 = vpop.f32.mrb[0].mxu0
        %v4183 = vadd.f32 %v1044, %v4182
        %v4184 = vpop.f32.mrb[0].mxu0
        %4185 = vmatprep.mubr.f32.mxu0 0.0
        %4186 = vmatmul.mubr.f32.gmra.mrb[0].mxu0 %v4066
        %v4187 = vpop.f32.mrb[0].mxu0
        %v4188 = vadd.f32 %v1049, %v4187
        %v4189 = vpop.f32.mrb[0].mxu0
        %4190 = vmatprep.mubr.f32.mxu0 0.0
        %4191 = vmatmul.mubr.f32.gmra.mrb[0].mxu0 %v4069
        %v4192 = vpop.f32.mrb[0].mxu0
        %v4193 = vadd.f32 %v1054, %v4192
        %v4194 = vpop.f32.mrb[0].mxu0
        %4195 = vmatprep.mubr.f32.mxu0 0.0
        %4196 = vmatmul.mubr.f32.gmra.mrb[0].mxu0 %v4072
        %v4197 = vpop.f32.mrb[0].mxu0
        %v4198 = vadd.f32 %v1059, %v4197
        %v4199 = vpop.f32.mrb[0].mxu0
        %4200 = vmatprep.mubr.f32.mxu0 0.0
        %4201 = vmatmul.mubr.f32.gmra.mrb[0].mxu0 %v4075
        %v4202 = vpop.f32.mrb[0].mxu0
        %v4203 = vadd.f32 %v1064, %v4202
        %v4204 = vpop.f32.mrb[0].mxu0
        %4205 = vmatprep.mubr.f32.mxu0 0.0
        %4206 = vmatmul.mubr.f32.gmra.mrb[0].mxu0 %v4078
        %v4207 = vpop.f32.mrb[0].mxu0
        %v4208 = vadd.f32 %v1069, %v4207
        %v4209 = vpop.f32.mrb[0].mxu0
        %4210 = vmatprep.mubr.f32.mxu0 0.0
        %4211 = vmatmul.mubr.f32.gmra.mrb[0].mxu0 %v4081
        %v4212 = vpop.f32.mrb[0].mxu0
        %v4213 = vadd.f32 %v1074, %v4212
        %v4214 = vpop.f32.mrb[0].mxu0
        %4215 = vmatprep.mubr.f32.mxu0 0.0
        %4216 = vmatmul.mubr.f32.gmra.mrb[0].mxu0 %v4084
        %v4217 = vpop.f32.mrb[0].mxu0
        %v4218 = vadd.f32 %v1079, %v4217
        %v4219 = vpop.f32.mrb[0].mxu0
        %4220 = vmatprep.mubr.f32.mxu0 0.0
        %4221 = vmatmul.mubr.f32.gmra.mrb[0].mxu0 %v4087
        %v4222 = vpop.f32.mrb[0].mxu0
        %v4223 = vadd.f32 %v1084, %v4222
        %v4224 = vpop.f32.mrb[0].mxu0
        %4225 = vmatprep.mubr.f32.mxu0 0.0
        %4226 = vmatmul.mubr.f32.gmra.mrb[0].mxu0 %v4090
        %v4227 = vpop.f32.mrb[0].mxu0
        %v4228 = vadd.f32 %v1089, %v4227
        %v4229 = vpop.f32.mrb[0].mxu0
        %4230 = vmatprep.mubr.f32.mxu0 0.0
        %4231 = vmatmul.mubr.f32.gmra.mrb[0].mxu0 %v4093
        %v4232 = vpop.f32.mrb[0].mxu0
        %v4233 = vadd.f32 %v1094, %v4232
        %v4234 = vpop.f32.mrb[0].mxu0
        %4235 = vmatprep.mubr.f32.mxu0 0.0
        %4236 = vmatmul.mubr.f32.gmra.mrb[0].mxu0 %v4096
        %v4237 = vpop.f32.mrb[0].mxu0
        %v4238 = vadd.f32 %v1099, %v4237
        %v4239 = vpop.f32.mrb[0].mxu0
        %4240 = vmatprep.mubr.f32.mxu0 0.0
        %4241 = vmatmul.mubr.f32.gmra.mrb[0].mxu0 %v4099
        %v4242 = vpop.f32.mrb[0].mxu0
        %v4243 = vadd.f32 %v1104, %v4242
        %v4244 = vpop.f32.mrb[0].mxu0
        %4245 = vdwg.mxu0
        %v4246 = vmax.f32 %v4168, 0.0
        %v4247 = vmax.f32 %v4173, 0.0
        %v4248 = vmax.f32 %v4178, 0.0
        %v4249 = vmax.f32 %v4183, 0.0
        %v4250 = vmax.f32 %v4188, 0.0
        %v4251 = vmax.f32 %v4193, 0.0
        %v4252 = vmax.f32 %v4198, 0.0
        %v4253 = vmax.f32 %v4203, 0.0
        %v4254 = vmax.f32 %v4208, 0.0
        %v4255 = vmax.f32 %v4213, 0.0
        %v4256 = vmax.f32 %v4218, 0.0
        %v4257 = vmax.f32 %v4223, 0.0
        %v4258 = vmax.f32 %v4228, 0.0
        %v4259 = vmax.f32 %v4233, 0.0
        %v4260 = vmax.f32 %v4238, 0.0
        %v4261 = vmax.f32 %v4243, 0.0
        %v4263 = vsel %vm913, %v4246, 0
        %v4266 = vsel %vm913, %v4247, 0
        %v4269 = vsel %vm913, %v4248, 0
        %v4272 = vsel %vm913, %v4249, 0
        %v4275 = vsel %vm913, %v4250, 0
        %v4278 = vsel %vm913, %v4251, 0
        %v4281 = vsel %vm913, %v4252, 0
        %v4284 = vsel %vm913, %v4253, 0
        %v4287 = vsel %vm913, %v4254, 0
        %v4290 = vsel %vm913, %v4255, 0
        %v4293 = vsel %vm913, %v4256, 0
        %v4296 = vsel %vm913, %v4257, 0
        %v4299 = vsel %vm913, %v4258, 0
        %v4302 = vsel %vm913, %v4259, 0
        %v4305 = vsel %vm913, %v4260, 0
        %v4308 = vsel %vm913, %v4261, 0
        %4310 = vmatprep.subr.mxu0 0.0
        %4311 = vmatpush1.msra.mxu0 %v893
        %4312 = vmatprep.subr.mxu0 0.0
        %4313 = vmatpush1.msra.mxu0 %v894
        %4314 = vmatprep.subr.mxu0 0.0
        %4315 = vmatpush1.msra.mxu0 %v895
        %4316 = vmatprep.subr.mxu0 0.0
        %4317 = vmatpush1.msra.mxu0 %v896
        %4318 = vmatprep.subr.mxu0 0.0
        %4319 = vmatpush1.msra.mxu0 0.0
        %4320 = vmatprep.subr.mxu0 0.0
        %4321 = vmatpush1.msra.mxu0 0.0
        %4322 = vmatprep.subr.mxu0 0.0
        %4323 = vmatpush1.msra.mxu0 0.0
        %4324 = vmatprep.subr.mxu0 0.0
        %4325 = vmatpush1.msra.mxu0 0.0
        %4326 = vmatprep.subr.mxu0 0.0
        %4327 = vmatpush1.msra.mxu0 0.0
        %4328 = vmatprep.subr.mxu0 0.0
        %4329 = vmatpush1.msra.mxu0 0.0
        %4330 = vmatprep.subr.mxu0 0.0
        %4331 = vmatpush1.msra.mxu0 0.0
        %4332 = vmatprep.subr.mxu0 0.0
        %4333 = vmatpush1.msra.mxu0 0.0
        %4334 = vmatprep.subr.mxu0 0.0
        %4335 = vmatpush1.msra.mxu0 0.0
        %4336 = vmatprep.subr.mxu0 0.0
        %4337 = vmatpush1.msra.mxu0 0.0
        %4338 = vmatprep.subr.mxu0 0.0
        %4339 = vmatpush1.msra.mxu0 0.0
        %4340 = vmatprep.subr.mxu0 0.0
        %4341 = vmatpush1.msra.mxu0 0.0
        %4342 = vmatprep.subr.mxu0 0.0
        %4343 = vmatpush1.msra.mxu0 0.0
        %4344 = vmatprep.subr.mxu0 0.0
        %4345 = vmatpush1.msra.mxu0 0.0
        %4346 = vmatprep.subr.mxu0 0.0
        %4347 = vmatpush1.msra.mxu0 0.0
        %4348 = vmatprep.subr.mxu0 0.0
        %4349 = vmatpush1.msra.mxu0 0.0
        %4350 = vmatprep.subr.mxu0 0.0
        %4351 = vmatpush1.msra.mxu0 0.0
        %4352 = vmatprep.subr.mxu0 0.0
        %4353 = vmatpush1.msra.mxu0 0.0
        %4354 = vmatprep.subr.mxu0 0.0
        %4355 = vmatpush1.msra.mxu0 0.0
        %4356 = vmatprep.subr.mxu0 0.0
        %4357 = vmatpush1.msra.mxu0 0.0
        %4358 = vmatprep.subr.mxu0 0.0
        %4359 = vmatpush1.msra.mxu0 0.0
        %4360 = vmatprep.subr.mxu0 0.0
        %4361 = vmatpush1.msra.mxu0 0.0
        %4362 = vmatprep.subr.mxu0 0.0
        %4363 = vmatpush1.msra.mxu0 0.0
        %4364 = vmatprep.subr.mxu0 0.0
        %4365 = vmatpush1.msra.mxu0 0.0
        %4366 = vmatprep.subr.mxu0 0.0
        %4367 = vmatpush1.msra.mxu0 0.0
        %4368 = vmatprep.subr.mxu0 0.0
        %4369 = vmatpush1.msra.mxu0 0.0
        %4370 = vmatprep.subr.mxu0 0.0
        %4371 = vmatpush1.msra.mxu0 0.0
        %4372 = vmatprep.subr.mxu0 0.0
        %4373 = vmatpush1.msra.mxu0 0.0
        %4374 = vmatprep.mubr.f32.mxu0 0.0
        %4375 = vmatmul.mubr.f32.gmra.mrb[0].mxu0 %v4263
        %v4376 = vpop.f32.mrb[0].mxu0
        %v4377 = vadd.f32 %v1336, %v4376
        %v4378 = vpop.f32.mrb[0].mxu0
        %4379 = vmatprep.mubr.f32.mxu0 0.0
        %4380 = vmatmul.mubr.f32.gmra.mrb[0].mxu0 %v4266
        %v4381 = vpop.f32.mrb[0].mxu0
        %v4382 = vadd.f32 %v1336, %v4381
        %v4383 = vpop.f32.mrb[0].mxu0
        %4384 = vmatprep.mubr.f32.mxu0 0.0
        %4385 = vmatmul.mubr.f32.gmra.mrb[0].mxu0 %v4269
        %v4386 = vpop.f32.mrb[0].mxu0
        %v4387 = vadd.f32 %v1336, %v4386
        %v4388 = vpop.f32.mrb[0].mxu0
        %4389 = vmatprep.mubr.f32.mxu0 0.0
        %4390 = vmatmul.mubr.f32.gmra.mrb[0].mxu0 %v4272
        %v4391 = vpop.f32.mrb[0].mxu0
        %v4392 = vadd.f32 %v1336, %v4391
        %v4393 = vpop.f32.mrb[0].mxu0
        %4394 = vmatprep.mubr.f32.mxu0 0.0
        %4395 = vmatmul.mubr.f32.gmra.mrb[0].mxu0 %v4275
        %v4396 = vpop.f32.mrb[0].mxu0
        %v4397 = vadd.f32 %v1336, %v4396
        %v4398 = vpop.f32.mrb[0].mxu0
        %4399 = vmatprep.mubr.f32.mxu0 0.0
        %4400 = vmatmul.mubr.f32.gmra.mrb[0].mxu0 %v4278
        %v4401 = vpop.f32.mrb[0].mxu0
        %v4402 = vadd.f32 %v1336, %v4401
        %v4403 = vpop.f32.mrb[0].mxu0
        %4404 = vmatprep.mubr.f32.mxu0 0.0
        %4405 = vmatmul.mubr.f32.gmra.mrb[0].mxu0 %v4281
        %v4406 = vpop.f32.mrb[0].mxu0
        %v4407 = vadd.f32 %v1336, %v4406
        %v4408 = vpop.f32.mrb[0].mxu0
        %4409 = vmatprep.mubr.f32.mxu0 0.0
        %4410 = vmatmul.mubr.f32.gmra.mrb[0].mxu0 %v4284
        %v4411 = vpop.f32.mrb[0].mxu0
        %v4412 = vadd.f32 %v1336, %v4411
        %v4413 = vpop.f32.mrb[0].mxu0
        %4414 = vmatprep.mubr.f32.mxu0 0.0
        %4415 = vmatmul.mubr.f32.gmra.mrb[0].mxu0 %v4287
        %v4416 = vpop.f32.mrb[0].mxu0
        %v4417 = vadd.f32 %v1336, %v4416
        %v4418 = vpop.f32.mrb[0].mxu0
        %4419 = vmatprep.mubr.f32.mxu0 0.0
        %4420 = vmatmul.mubr.f32.gmra.mrb[0].mxu0 %v4290
        %v4421 = vpop.f32.mrb[0].mxu0
        %v4422 = vadd.f32 %v1336, %v4421
        %v4423 = vpop.f32.mrb[0].mxu0
        %4424 = vmatprep.mubr.f32.mxu0 0.0
        %4425 = vmatmul.mubr.f32.gmra.mrb[0].mxu0 %v4293
        %v4426 = vpop.f32.mrb[0].mxu0
        %v4427 = vadd.f32 %v1336, %v4426
        %v4428 = vpop.f32.mrb[0].mxu0
        %4429 = vmatprep.mubr.f32.mxu0 0.0
        %4430 = vmatmul.mubr.f32.gmra.mrb[0].mxu0 %v4296
        %v4431 = vpop.f32.mrb[0].mxu0
        %v4432 = vadd.f32 %v1336, %v4431
        %v4433 = vpop.f32.mrb[0].mxu0
        %4434 = vmatprep.mubr.f32.mxu0 0.0
        %4435 = vmatmul.mubr.f32.gmra.mrb[0].mxu0 %v4299
        %v4436 = vpop.f32.mrb[0].mxu0
        %v4437 = vadd.f32 %v1336, %v4436
        %v4438 = vpop.f32.mrb[0].mxu0
        %4439 = vmatprep.mubr.f32.mxu0 0.0
        %4440 = vmatmul.mubr.f32.gmra.mrb[0].mxu0 %v4302
        %v4441 = vpop.f32.mrb[0].mxu0
        %v4442 = vadd.f32 %v1336, %v4441
        %v4443 = vpop.f32.mrb[0].mxu0
        %4444 = vmatprep.mubr.f32.mxu0 0.0
        %4445 = vmatmul.mubr.f32.gmra.mrb[0].mxu0 %v4305
        %v4446 = vpop.f32.mrb[0].mxu0
        %v4447 = vadd.f32 %v1336, %v4446
        %v4448 = vpop.f32.mrb[0].mxu0
        %4449 = vmatprep.mubr.f32.mxu0 0.0
        %4450 = vmatmul.mubr.f32.gmra.mrb[0].mxu0 %v4308
        %v4451 = vpop.f32.mrb[0].mxu0
        %v4452 = vadd.f32 %v1336, %v4451
        %v4453 = vpop.f32.mrb[0].mxu0
        %4454 = vdwg.mxu0
        %v4455 = vmax.f32 %v4377, 0.0
        %v4456 = vmax.f32 %v4382, 0.0
        %v4457 = vmax.f32 %v4387, 0.0
        %v4458 = vmax.f32 %v4392, 0.0
        %v4459 = vmax.f32 %v4397, 0.0
        %v4460 = vmax.f32 %v4402, 0.0
        %v4461 = vmax.f32 %v4407, 0.0
        %v4462 = vmax.f32 %v4412, 0.0
        %v4463 = vmax.f32 %v4417, 0.0
        %v4464 = vmax.f32 %v4422, 0.0
        %v4465 = vmax.f32 %v4427, 0.0
        %v4466 = vmax.f32 %v4432, 0.0
        %v4467 = vmax.f32 %v4437, 0.0
        %v4468 = vmax.f32 %v4442, 0.0
        %v4469 = vmax.f32 %v4447, 0.0
        %v4470 = vmax.f32 %v4452, 0.0
        %v4472 = vsel %vm913, %v4455, 0
        %v4475 = vsel %vm913, %v4456, 0
        %v4478 = vsel %vm913, %v4457, 0
        %v4481 = vsel %vm913, %v4458, 0
        %v4484 = vsel %vm913, %v4459, 0
        %v4487 = vsel %vm913, %v4460, 0
        %v4490 = vsel %vm913, %v4461, 0
        %v4493 = vsel %vm913, %v4462, 0
        %v4496 = vsel %vm913, %v4463, 0
        %v4499 = vsel %vm913, %v4464, 0
        %v4502 = vsel %vm913, %v4465, 0
        %v4505 = vsel %vm913, %v4466, 0
        %v4508 = vsel %vm913, %v4467, 0
        %v4511 = vsel %vm913, %v4468, 0
        %v4514 = vsel %vm913, %v4469, 0
        %v4517 = vsel %vm913, %v4470, 0
        %4519 = vmatprep.subr.mxu0 0.0
        %4520 = vmatpush1.msra.mxu0 %v897
        %4521 = vmatprep.subr.mxu0 0.0
        %4522 = vmatpush1.msra.mxu0 %v898
        %4523 = vmatprep.subr.mxu0 0.0
        %4524 = vmatpush1.msra.mxu0 %v899
        %4525 = vmatprep.subr.mxu0 0.0
        %4526 = vmatpush1.msra.mxu0 %v900
        %4527 = vmatprep.subr.mxu0 0.0
        %4528 = vmatpush1.msra.mxu0 0.0
        %4529 = vmatprep.subr.mxu0 0.0
        %4530 = vmatpush1.msra.mxu0 0.0
        %4531 = vmatprep.subr.mxu0 0.0
        %4532 = vmatpush1.msra.mxu0 0.0
        %4533 = vmatprep.subr.mxu0 0.0
        %4534 = vmatpush1.msra.mxu0 0.0
        %4535 = vmatprep.subr.mxu0 0.0
        %4536 = vmatpush1.msra.mxu0 0.0
        %4537 = vmatprep.subr.mxu0 0.0
        %4538 = vmatpush1.msra.mxu0 0.0
        %4539 = vmatprep.subr.mxu0 0.0
        %4540 = vmatpush1.msra.mxu0 0.0
        %4541 = vmatprep.subr.mxu0 0.0
        %4542 = vmatpush1.msra.mxu0 0.0
        %4543 = vmatprep.subr.mxu0 0.0
        %4544 = vmatpush1.msra.mxu0 0.0
        %4545 = vmatprep.subr.mxu0 0.0
        %4546 = vmatpush1.msra.mxu0 0.0
        %4547 = vmatprep.subr.mxu0 0.0
        %4548 = vmatpush1.msra.mxu0 0.0
        %4549 = vmatprep.subr.mxu0 0.0
        %4550 = vmatpush1.msra.mxu0 0.0
        %4551 = vmatprep.subr.mxu0 0.0
        %4552 = vmatpush1.msra.mxu0 0.0
        %4553 = vmatprep.subr.mxu0 0.0
        %4554 = vmatpush1.msra.mxu0 0.0
        %4555 = vmatprep.subr.mxu0 0.0
        %4556 = vmatpush1.msra.mxu0 0.0
        %4557 = vmatprep.subr.mxu0 0.0
        %4558 = vmatpush1.msra.mxu0 0.0
        %4559 = vmatprep.subr.mxu0 0.0
        %4560 = vmatpush1.msra.mxu0 0.0
        %4561 = vmatprep.subr.mxu0 0.0
        %4562 = vmatpush1.msra.mxu0 0.0
        %4563 = vmatprep.subr.mxu0 0.0
        %4564 = vmatpush1.msra.mxu0 0.0
        %4565 = vmatprep.subr.mxu0 0.0
        %4566 = vmatpush1.msra.mxu0 0.0
        %4567 = vmatprep.subr.mxu0 0.0
        %4568 = vmatpush1.msra.mxu0 0.0
        %4569 = vmatprep.subr.mxu0 0.0
        %4570 = vmatpush1.msra.mxu0 0.0
        %4571 = vmatprep.subr.mxu0 0.0
        %4572 = vmatpush1.msra.mxu0 0.0
        %4573 = vmatprep.subr.mxu0 0.0
        %4574 = vmatpush1.msra.mxu0 0.0
        %4575 = vmatprep.subr.mxu0 0.0
        %4576 = vmatpush1.msra.mxu0 0.0
        %4577 = vmatprep.subr.mxu0 0.0
        %4578 = vmatpush1.msra.mxu0 0.0
        %4579 = vmatprep.subr.mxu0 0.0
        %4580 = vmatpush1.msra.mxu0 0.0
        %4581 = vmatprep.subr.mxu0 0.0
        %4582 = vmatpush1.msra.mxu0 0.0
        %4583 = vmatprep.mubr.f32.mxu0 0.0
        %4584 = vmatmul.mubr.f32.gmra.mrb[0].mxu0 %v4472
        %v4585 = vpop.f32.mrb[0].mxu0
        %v4586 = vadd.f32 0.0, %v4585
        %v4587 = vpop.f32.mrb[0].mxu0
        %4588 = vmatprep.mubr.f32.mxu0 0.0
        %4589 = vmatmul.mubr.f32.gmra.mrb[0].mxu0 %v4475
        %v4590 = vpop.f32.mrb[0].mxu0
        %v4591 = vadd.f32 0.0, %v4590
        %v4592 = vpop.f32.mrb[0].mxu0
        %4593 = vmatprep.mubr.f32.mxu0 0.0
        %4594 = vmatmul.mubr.f32.gmra.mrb[0].mxu0 %v4478
        %v4595 = vpop.f32.mrb[0].mxu0
        %v4596 = vadd.f32 0.0, %v4595
        %v4597 = vpop.f32.mrb[0].mxu0
        %4598 = vmatprep.mubr.f32.mxu0 0.0
        %4599 = vmatmul.mubr.f32.gmra.mrb[0].mxu0 %v4481
        %v4600 = vpop.f32.mrb[0].mxu0
        %v4601 = vadd.f32 0.0, %v4600
        %v4602 = vpop.f32.mrb[0].mxu0
        %4603 = vmatprep.mubr.f32.mxu0 0.0
        %4604 = vmatmul.mubr.f32.gmra.mrb[0].mxu0 %v4484
        %v4605 = vpop.f32.mrb[0].mxu0
        %v4606 = vadd.f32 0.0, %v4605
        %v4607 = vpop.f32.mrb[0].mxu0
        %4608 = vmatprep.mubr.f32.mxu0 0.0
        %4609 = vmatmul.mubr.f32.gmra.mrb[0].mxu0 %v4487
        %v4610 = vpop.f32.mrb[0].mxu0
        %v4611 = vadd.f32 0.0, %v4610
        %v4612 = vpop.f32.mrb[0].mxu0
        %4613 = vmatprep.mubr.f32.mxu0 0.0
        %4614 = vmatmul.mubr.f32.gmra.mrb[0].mxu0 %v4490
        %v4615 = vpop.f32.mrb[0].mxu0
        %v4616 = vadd.f32 0.0, %v4615
        %v4617 = vpop.f32.mrb[0].mxu0
        %4618 = vmatprep.mubr.f32.mxu0 0.0
        %4619 = vmatmul.mubr.f32.gmra.mrb[0].mxu0 %v4493
        %v4620 = vpop.f32.mrb[0].mxu0
        %v4621 = vadd.f32 0.0, %v4620
        %v4622 = vpop.f32.mrb[0].mxu0
        %4623 = vmatprep.mubr.f32.mxu0 0.0
        %4624 = vmatmul.mubr.f32.gmra.mrb[0].mxu0 %v4496
        %v4625 = vpop.f32.mrb[0].mxu0
        %v4626 = vadd.f32 0.0, %v4625
        %v4627 = vpop.f32.mrb[0].mxu0
        %4628 = vmatprep.mubr.f32.mxu0 0.0
        %4629 = vmatmul.mubr.f32.gmra.mrb[0].mxu0 %v4499
        %v4630 = vpop.f32.mrb[0].mxu0
        %v4631 = vadd.f32 0.0, %v4630
        %v4632 = vpop.f32.mrb[0].mxu0
        %4633 = vmatprep.mubr.f32.mxu0 0.0
        %4634 = vmatmul.mubr.f32.gmra.mrb[0].mxu0 %v4502
        %v4635 = vpop.f32.mrb[0].mxu0
        %v4636 = vadd.f32 0.0, %v4635
        %v4637 = vpop.f32.mrb[0].mxu0
        %4638 = vmatprep.mubr.f32.mxu0 0.0
        %4639 = vmatmul.mubr.f32.gmra.mrb[0].mxu0 %v4505
        %v4640 = vpop.f32.mrb[0].mxu0
        %v4641 = vadd.f32 0.0, %v4640
        %v4642 = vpop.f32.mrb[0].mxu0
        %4643 = vmatprep.mubr.f32.mxu0 0.0
        %4644 = vmatmul.mubr.f32.gmra.mrb[0].mxu0 %v4508
        %v4645 = vpop.f32.mrb[0].mxu0
        %v4646 = vadd.f32 0.0, %v4645
        %v4647 = vpop.f32.mrb[0].mxu0
        %4648 = vmatprep.mubr.f32.mxu0 0.0
        %4649 = vmatmul.mubr.f32.gmra.mrb[0].mxu0 %v4511
        %v4650 = vpop.f32.mrb[0].mxu0
        %v4651 = vadd.f32 0.0, %v4650
        %v4652 = vpop.f32.mrb[0].mxu0
        %4653 = vmatprep.mubr.f32.mxu0 0.0
        %4654 = vmatmul.mubr.f32.gmra.mrb[0].mxu0 %v4514
        %v4655 = vpop.f32.mrb[0].mxu0
        %v4656 = vadd.f32 0.0, %v4655
        %v4657 = vpop.f32.mrb[0].mxu0
        %4658 = vmatprep.mubr.f32.mxu0 0.0
        %4659 = vmatmul.mubr.f32.gmra.mrb[0].mxu0 %v4517
        %v4660 = vpop.f32.mrb[0].mxu0
        %v4661 = vadd.f32 0.0, %v4660
        %v4662 = vpop.f32.mrb[0].mxu0
        %4663 = vdwg.mxu0
        %v4664 = vmax.f32 %v3684, %v4586
        %v4665 = vmax.f32 %v3685, %v4591
        %v4666 = vmax.f32 %v3686, %v4596
        %v4667 = vmax.f32 %v3687, %v4601
        %v4668 = vmax.f32 %v3688, %v4606
        %v4669 = vmax.f32 %v3689, %v4611
        %v4670 = vmax.f32 %v3690, %v4616
        %v4671 = vmax.f32 %v3691, %v4621
        %v4672 = vmax.f32 %v3692, %v4626
        %v4673 = vmax.f32 %v3693, %v4631
        %v4674 = vmax.f32 %v3694, %v4636
        %v4675 = vmax.f32 %v3695, %v4641
        %v4676 = vmax.f32 %v3696, %v4646
        %v4677 = vmax.f32 %v3697, %v4651
        %v4678 = vmax.f32 %v3698, %v4656
        %v4679 = vmax.f32 %v3699, %v4661
        %v4680 = vsub.f32 %v3684, %v4664
        %v4681 = vsub.f32 %v3685, %v4665
        %v4682 = vsub.f32 %v3686, %v4666
        %v4683 = vsub.f32 %v3687, %v4667
        %v4684 = vsub.f32 %v3688, %v4668
        %v4685 = vsub.f32 %v3689, %v4669
        %v4686 = vsub.f32 %v3690, %v4670
        %v4687 = vsub.f32 %v3691, %v4671
        %v4688 = vsub.f32 %v3692, %v4672
        %v4689 = vsub.f32 %v3693, %v4673
        %v4690 = vsub.f32 %v3694, %v4674
        %v4691 = vsub.f32 %v3695, %v4675
        %v4692 = vsub.f32 %v3696, %v4676
        %v4693 = vsub.f32 %v3697, %v4677
        %v4694 = vsub.f32 %v3698, %v4678
        %v4695 = vsub.f32 %v3699, %v4679
        %v4696 = vmul.f32 %v4680, 1.442695
        %v4697 = vpow.pop %v4696
        %v4698 = vmul.f32 %v4681, 1.442695
        %v4699 = vpow.pop %v4698
        %v4700 = vmul.f32 %v4682, 1.442695
        %v4701 = vpow.pop %v4700
        %v4702 = vmul.f32 %v4683, 1.442695
        %v4703 = vpow.pop %v4702
        %v4704 = vmul.f32 %v4684, 1.442695
        %v4705 = vpow.pop %v4704
        %v4706 = vmul.f32 %v4685, 1.442695
        %v4707 = vpow.pop %v4706
        %v4708 = vmul.f32 %v4686, 1.442695
        %v4709 = vpow.pop %v4708
        %v4710 = vmul.f32 %v4687, 1.442695
        %v4711 = vpow.pop %v4710
        %v4712 = vmul.f32 %v4688, 1.442695
        %v4713 = vpow.pop %v4712
        %v4714 = vmul.f32 %v4689, 1.442695
        %v4715 = vpow.pop %v4714
        %v4716 = vmul.f32 %v4690, 1.442695
        %v4717 = vpow.pop %v4716
        %v4718 = vmul.f32 %v4691, 1.442695
        %v4719 = vpow.pop %v4718
        %v4720 = vmul.f32 %v4692, 1.442695
        %v4721 = vpow.pop %v4720
        %v4722 = vmul.f32 %v4693, 1.442695
        %v4723 = vpow.pop %v4722
        %v4724 = vmul.f32 %v4694, 1.442695
        %v4725 = vpow.pop %v4724
        %v4726 = vmul.f32 %v4695, 1.442695
        %v4727 = vpow.pop %v4726
        %v4728 = vsub.f32 %v4586, %v4664
        %v4729 = vsub.f32 %v4591, %v4665
        %v4730 = vsub.f32 %v4596, %v4666
        %v4731 = vsub.f32 %v4601, %v4667
        %v4732 = vsub.f32 %v4606, %v4668
        %v4733 = vsub.f32 %v4611, %v4669
        %v4734 = vsub.f32 %v4616, %v4670
        %v4735 = vsub.f32 %v4621, %v4671
        %v4736 = vsub.f32 %v4626, %v4672
        %v4737 = vsub.f32 %v4631, %v4673
        %v4738 = vsub.f32 %v4636, %v4674
        %v4739 = vsub.f32 %v4641, %v4675
        %v4740 = vsub.f32 %v4646, %v4676
        %v4741 = vsub.f32 %v4651, %v4677
        %v4742 = vsub.f32 %v4656, %v4678
        %v4743 = vsub.f32 %v4661, %v4679
        %v4744 = vmul.f32 %v4728, 1.442695
        %v4745 = vpow.pop %v4744
        %v4746 = vmul.f32 %v4729, 1.442695
        %v4747 = vpow.pop %v4746
        %v4748 = vmul.f32 %v4730, 1.442695
        %v4749 = vpow.pop %v4748
        %v4750 = vmul.f32 %v4731, 1.442695
        %v4751 = vpow.pop %v4750
        %v4752 = vmul.f32 %v4732, 1.442695
        %v4753 = vpow.pop %v4752
        %v4754 = vmul.f32 %v4733, 1.442695
        %v4755 = vpow.pop %v4754
        %v4756 = vmul.f32 %v4734, 1.442695
        %v4757 = vpow.pop %v4756
        %v4758 = vmul.f32 %v4735, 1.442695
        %v4759 = vpow.pop %v4758
        %v4760 = vmul.f32 %v4736, 1.442695
        %v4761 = vpow.pop %v4760
        %v4762 = vmul.f32 %v4737, 1.442695
        %v4763 = vpow.pop %v4762
        %v4764 = vmul.f32 %v4738, 1.442695
        %v4765 = vpow.pop %v4764
        %v4766 = vmul.f32 %v4739, 1.442695
        %v4767 = vpow.pop %v4766
        %v4768 = vmul.f32 %v4740, 1.442695
        %v4769 = vpow.pop %v4768
        %v4770 = vmul.f32 %v4741, 1.442695
        %v4771 = vpow.pop %v4770
        %v4772 = vmul.f32 %v4742, 1.442695
        %v4773 = vpow.pop %v4772
        %v4774 = vmul.f32 %v4743, 1.442695
        %v4775 = vpow.pop %v4774
        %v4776 = vmul.f32 %v4697, %v3812
        %v4777 = vmul.f32 %v4699, %v3813
        %v4778 = vmul.f32 %v4701, %v3814
        %v4779 = vmul.f32 %v4703, %v3815
        %v4780 = vmul.f32 %v4705, %v3816
        %v4781 = vmul.f32 %v4707, %v3817
        %v4782 = vmul.f32 %v4709, %v3818
        %v4783 = vmul.f32 %v4711, %v3819
        %v4784 = vmul.f32 %v4713, %v3820
        %v4785 = vmul.f32 %v4715, %v3821
        %v4786 = vmul.f32 %v4717, %v3822
        %v4787 = vmul.f32 %v4719, %v3823
        %v4788 = vmul.f32 %v4721, %v3824
        %v4789 = vmul.f32 %v4723, %v3825
        %v4790 = vmul.f32 %v4725, %v3826
        %v4791 = vmul.f32 %v4727, %v3827
        %v4792 = vadd.f32 %v4776, %v4745
        %v4793 = vadd.f32 %v4777, %v4747
        %v4794 = vadd.f32 %v4778, %v4749
        %v4795 = vadd.f32 %v4779, %v4751
        %v4796 = vadd.f32 %v4780, %v4753
        %v4797 = vadd.f32 %v4781, %v4755
        %v4798 = vadd.f32 %v4782, %v4757
        %v4799 = vadd.f32 %v4783, %v4759
        %v4800 = vadd.f32 %v4784, %v4761
        %v4801 = vadd.f32 %v4785, %v4763
        %v4802 = vadd.f32 %v4786, %v4765
        %v4803 = vadd.f32 %v4787, %v4767
        %v4804 = vadd.f32 %v4788, %v4769
        %v4805 = vadd.f32 %v4789, %v4771
        %v4806 = vadd.f32 %v4790, %v4773
        %v4807 = vadd.f32 %v4791, %v4775
        %4809 = vset.pattern.permute.xlu0 0
        %4810 = vperm.xlu0 %4809, %v4697
        %v4811 = vpop.permute.xlu0 %4810
        %4814 = vset.pattern.permute.xlu0 0
        %4815 = vperm.xlu0 %4814, %v4699
        %v4816 = vpop.permute.xlu0 %4815
        %4819 = vset.pattern.permute.xlu0 0
        %4820 = vperm.xlu0 %4819, %v4701
        %v4821 = vpop.permute.xlu0 %4820
        %4824 = vset.pattern.permute.xlu0 0
        %4825 = vperm.xlu0 %4824, %v4703
        %v4826 = vpop.permute.xlu0 %4825
        %4829 = vset.pattern.permute.xlu0 0
        %4830 = vperm.xlu0 %4829, %v4705
        %v4831 = vpop.permute.xlu0 %4830
        %4834 = vset.pattern.permute.xlu0 0
        %4835 = vperm.xlu0 %4834, %v4707
        %v4836 = vpop.permute.xlu0 %4835
        %4839 = vset.pattern.permute.xlu0 0
        %4840 = vperm.xlu0 %4839, %v4709
        %v4841 = vpop.permute.xlu0 %4840
        %4844 = vset.pattern.permute.xlu0 0
        %4845 = vperm.xlu0 %4844, %v4711
        %v4846 = vpop.permute.xlu0 %4845
        %4849 = vset.pattern.permute.xlu0 0
        %4850 = vperm.xlu0 %4849, %v4713
        %v4851 = vpop.permute.xlu0 %4850
        %4854 = vset.pattern.permute.xlu0 0
        %4855 = vperm.xlu0 %4854, %v4715
        %v4856 = vpop.permute.xlu0 %4855
        %4859 = vset.pattern.permute.xlu0 0
        %4860 = vperm.xlu0 %4859, %v4717
        %v4861 = vpop.permute.xlu0 %4860
        %4864 = vset.pattern.permute.xlu0 0
        %4865 = vperm.xlu0 %4864, %v4719
        %v4866 = vpop.permute.xlu0 %4865
        %4869 = vset.pattern.permute.xlu0 0
        %4870 = vperm.xlu0 %4869, %v4721
        %v4871 = vpop.permute.xlu0 %4870
        %4874 = vset.pattern.permute.xlu0 0
        %4875 = vperm.xlu0 %4874, %v4723
        %v4876 = vpop.permute.xlu0 %4875
        %4879 = vset.pattern.permute.xlu0 0
        %4880 = vperm.xlu0 %4879, %v4725
        %v4881 = vpop.permute.xlu0 %4880
        %4884 = vset.pattern.permute.xlu0 0
        %4885 = vperm.xlu0 %4884, %v4727
        %v4886 = vpop.permute.xlu0 %4885
        %v4888 = vmul.f32 %v4811, %v4020
        %v4889 = vmul.f32 %v4816, %v4021
        %v4890 = vmul.f32 %v4821, %v4022
        %v4891 = vmul.f32 %v4826, %v4023
        %v4892 = vmul.f32 %v4831, %v4024
        %v4893 = vmul.f32 %v4836, %v4025
        %v4894 = vmul.f32 %v4841, %v4026
        %v4895 = vmul.f32 %v4846, %v4027
        %v4896 = vmul.f32 %v4851, %v4028
        %v4897 = vmul.f32 %v4856, %v4029
        %v4898 = vmul.f32 %v4861, %v4030
        %v4899 = vmul.f32 %v4866, %v4031
        %v4900 = vmul.f32 %v4871, %v4032
        %v4901 = vmul.f32 %v4876, %v4033
        %v4902 = vmul.f32 %v4881, %v4034
        %v4903 = vmul.f32 %v4886, %v4035
        %4905 = vset.pattern.permute.xlu0 0
        %4906 = vperm.xlu0 %4905, %v4745
        %v4907 = vpop.permute.xlu0 %4906
        %4910 = vset.pattern.permute.xlu0 0
        %4911 = vperm.xlu0 %4910, %v4747
        %v4912 = vpop.permute.xlu0 %4911
        %4915 = vset.pattern.permute.xlu0 0
        %4916 = vperm.xlu0 %4915, %v4749
        %v4917 = vpop.permute.xlu0 %4916
        %4920 = vset.pattern.permute.xlu0 0
        %4921 = vperm.xlu0 %4920, %v4751
        %v4922 = vpop.permute.xlu0 %4921
        %4925 = vset.pattern.permute.xlu0 0
        %4926 = vperm.xlu0 %4925, %v4753
        %v4927 = vpop.permute.xlu0 %4926
        %4930 = vset.pattern.permute.xlu0 0
        %4931 = vperm.xlu0 %4930, %v4755
        %v4932 = vpop.permute.xlu0 %4931
        %4935 = vset.pattern.permute.xlu0 0
        %4936 = vperm.xlu0 %4935, %v4757
        %v4937 = vpop.permute.xlu0 %4936
        %4940 = vset.pattern.permute.xlu0 0
        %4941 = vperm.xlu0 %4940, %v4759
        %v4942 = vpop.permute.xlu0 %4941
        %4945 = vset.pattern.permute.xlu0 0
        %4946 = vperm.xlu0 %4945, %v4761
        %v4947 = vpop.permute.xlu0 %4946
        %4950 = vset.pattern.permute.xlu0 0
        %4951 = vperm.xlu0 %4950, %v4763
        %v4952 = vpop.permute.xlu0 %4951
        %4955 = vset.pattern.permute.xlu0 0
        %4956 = vperm.xlu0 %4955, %v4765
        %v4957 = vpop.permute.xlu0 %4956
        %4960 = vset.pattern.permute.xlu0 0
        %4961 = vperm.xlu0 %4960, %v4767
        %v4962 = vpop.permute.xlu0 %4961
        %4965 = vset.pattern.permute.xlu0 0
        %4966 = vperm.xlu0 %4965, %v4769
        %v4967 = vpop.permute.xlu0 %4966
        %4970 = vset.pattern.permute.xlu0 0
        %4971 = vperm.xlu0 %4970, %v4771
        %v4972 = vpop.permute.xlu0 %4971
        %4975 = vset.pattern.permute.xlu0 0
        %4976 = vperm.xlu0 %4975, %v4773
        %v4977 = vpop.permute.xlu0 %4976
        %4980 = vset.pattern.permute.xlu0 0
        %4981 = vperm.xlu0 %4980, %v4775
        %v4982 = vpop.permute.xlu0 %4981
        %v4984 = vmul.f32 %v4907, %v4037
        %v4985 = vmul.f32 %v4912, %v4038
        %v4986 = vmul.f32 %v4917, %v4039
        %v4987 = vmul.f32 %v4922, %v4040
        %v4988 = vmul.f32 %v4927, %v4041
        %v4989 = vmul.f32 %v4932, %v4042
        %v4990 = vmul.f32 %v4937, %v4043
        %v4991 = vmul.f32 %v4942, %v4044
        %v4992 = vmul.f32 %v4947, %v4045
        %v4993 = vmul.f32 %v4952, %v4046
        %v4994 = vmul.f32 %v4957, %v4047
        %v4995 = vmul.f32 %v4962, %v4048
        %v4996 = vmul.f32 %v4967, %v4049
        %v4997 = vmul.f32 %v4972, %v4050
        %v4998 = vmul.f32 %v4977, %v4051
        %v4999 = vmul.f32 %v4982, %v4052
        %v5000 = vadd.f32 %v4888, %v4984
        %v5001 = vadd.f32 %v4889, %v4985
        %v5002 = vadd.f32 %v4890, %v4986
        %v5003 = vadd.f32 %v4891, %v4987
        %v5004 = vadd.f32 %v4892, %v4988
        %v5005 = vadd.f32 %v4893, %v4989
        %v5006 = vadd.f32 %v4894, %v4990
        %v5007 = vadd.f32 %v4895, %v4991
        %v5008 = vadd.f32 %v4896, %v4992
        %v5009 = vadd.f32 %v4897, %v4993
        %v5010 = vadd.f32 %v4898, %v4994
        %v5011 = vadd.f32 %v4899, %v4995
        %v5012 = vadd.f32 %v4900, %v4996
        %v5013 = vadd.f32 %v4901, %v4997
        %v5014 = vadd.f32 %v4902, %v4998
        %v5015 = vadd.f32 %v4903, %v4999
        %s5016 = scalar_lea.vmem %s824, 512 [#allocation2]
        %v5017 = vld [vmem:[%s5016] sm:$0xff]
        %v5018 = vld [vmem:[%s5016 + $0x8] sm:$0xff]
        %v5019 = vld [vmem:[%s5016 + $0x10] sm:$0xff]
        %v5020 = vld [vmem:[%s5016 + $0x18] sm:$0xff]
        %v5021 = vld [vmem:[%s5016 + $0x20] sm:$0xff]
        %v5022 = vld [vmem:[%s5016 + $0x28] sm:$0xff]
        %v5023 = vld [vmem:[%s5016 + $0x30] sm:$0xff]
        %v5024 = vld [vmem:[%s5016 + $0x38] sm:$0xff]
        %v5025 = vld [vmem:[%s5016 + $0x40] sm:$0xff]
        %v5026 = vld [vmem:[%s5016 + $0x48] sm:$0xff]
        %v5027 = vld [vmem:[%s5016 + $0x50] sm:$0xff]
        %v5028 = vld [vmem:[%s5016 + $0x58] sm:$0xff]
        %v5029 = vld [vmem:[%s5016 + $0x60] sm:$0xff]
        %v5030 = vld [vmem:[%s5016 + $0x68] sm:$0xff]
        %v5031 = vld [vmem:[%s5016 + $0x70] sm:$0xff]
        %v5032 = vld [vmem:[%s5016 + $0x78] sm:$0xff]
        %v5034 = vsel %vm913, %v5017, 0
        %v5037 = vsel %vm913, %v5018, 0
        %v5040 = vsel %vm913, %v5019, 0
        %v5043 = vsel %vm913, %v5020, 0
        %v5046 = vsel %vm913, %v5021, 0
        %v5049 = vsel %vm913, %v5022, 0
        %v5052 = vsel %vm913, %v5023, 0
        %v5055 = vsel %vm913, %v5024, 0
        %v5058 = vsel %vm913, %v5025, 0
        %v5061 = vsel %vm913, %v5026, 0
        %v5064 = vsel %vm913, %v5027, 0
        %v5067 = vsel %vm913, %v5028, 0
        %v5070 = vsel %vm913, %v5029, 0
        %v5073 = vsel %vm913, %v5030, 0
        %v5076 = vsel %vm913, %v5031, 0
        %v5079 = vsel %vm913, %v5032, 0
        %5081 = vmatprep.subr.mxu0 0.0
        %5082 = vmatpush1.msra.mxu0 %v889
        %5083 = vmatprep.subr.mxu0 0.0
        %5084 = vmatpush1.msra.mxu0 %v890
        %5085 = vmatprep.subr.mxu0 0.0
        %5086 = vmatpush1.msra.mxu0 %v891
        %5087 = vmatprep.subr.mxu0 0.0
        %5088 = vmatpush1.msra.mxu0 %v892
        %5089 = vmatprep.subr.mxu0 0.0
        %5090 = vmatpush1.msra.mxu0 0.0
        %5091 = vmatprep.subr.mxu0 0.0
        %5092 = vmatpush1.msra.mxu0 0.0
        %5093 = vmatprep.subr.mxu0 0.0
        %5094 = vmatpush1.msra.mxu0 0.0
        %5095 = vmatprep.subr.mxu0 0.0
        %5096 = vmatpush1.msra.mxu0 0.0
        %5097 = vmatprep.subr.mxu0 0.0
        %5098 = vmatpush1.msra.mxu0 0.0
        %5099 = vmatprep.subr.mxu0 0.0
        %5100 = vmatpush1.msra.mxu0 0.0
        %5101 = vmatprep.subr.mxu0 0.0
        %5102 = vmatpush1.msra.mxu0 0.0
        %5103 = vmatprep.subr.mxu0 0.0
        %5104 = vmatpush1.msra.mxu0 0.0
        %5105 = vmatprep.subr.mxu0 0.0
        %5106 = vmatpush1.msra.mxu0 0.0
        %5107 = vmatprep.subr.mxu0 0.0
        %5108 = vmatpush1.msra.mxu0 0.0
        %5109 = vmatprep.subr.mxu0 0.0
        %5110 = vmatpush1.msra.mxu0 0.0
        %5111 = vmatprep.subr.mxu0 0.0
        %5112 = vmatpush1.msra.mxu0 0.0
        %5113 = vmatprep.subr.mxu0 0.0
        %5114 = vmatpush1.msra.mxu0 0.0
        %5115 = vmatprep.subr.mxu0 0.0
        %5116 = vmatpush1.msra.mxu0 0.0
        %5117 = vmatprep.subr.mxu0 0.0
        %5118 = vmatpush1.msra.mxu0 0.0
        %5119 = vmatprep.subr.mxu0 0.0
        %5120 = vmatpush1.msra.mxu0 0.0
        %5121 = vmatprep.subr.mxu0 0.0
        %5122 = vmatpush1.msra.mxu0 0.0
        %5123 = vmatprep.subr.mxu0 0.0
        %5124 = vmatpush1.msra.mxu0 0.0
        %5125 = vmatprep.subr.mxu0 0.0
        %5126 = vmatpush1.msra.mxu0 0.0
        %5127 = vmatprep.subr.mxu0 0.0
        %5128 = vmatpush1.msra.mxu0 0.0
        %5129 = vmatprep.subr.mxu0 0.0
        %5130 = vmatpush1.msra.mxu0 0.0
        %5131 = vmatprep.subr.mxu0 0.0
        %5132 = vmatpush1.msra.mxu0 0.0
        %5133 = vmatprep.subr.mxu0 0.0
        %5134 = vmatpush1.msra.mxu0 0.0
        %5135 = vmatprep.subr.mxu0 0.0
        %5136 = vmatpush1.msra.mxu0 0.0
        %5137 = vmatprep.subr.mxu0 0.0
        %5138 = vmatpush1.msra.mxu0 0.0
        %5139 = vmatprep.subr.mxu0 0.0
        %5140 = vmatpush1.msra.mxu0 0.0
        %5141 = vmatprep.subr.mxu0 0.0
        %5142 = vmatpush1.msra.mxu0 0.0
        %5143 = vmatprep.subr.mxu0 0.0
        %5144 = vmatpush1.msra.mxu0 0.0
        %5145 = vmatprep.mubr.f32.mxu0 0.0
        %5146 = vmatmul.mubr.f32.gmra.mrb[0].mxu0 %v5034
        %v5147 = vpop.f32.mrb[0].mxu0
        %v5148 = vadd.f32 %v1029, %v5147
        %v5149 = vpop.f32.mrb[0].mxu0
        %5150 = vmatprep.mubr.f32.mxu0 0.0
        %5151 = vmatmul.mubr.f32.gmra.mrb[0].mxu0 %v5037
        %v5152 = vpop.f32.mrb[0].mxu0
        %v5153 = vadd.f32 %v1034, %v5152
        %v5154 = vpop.f32.mrb[0].mxu0
        %5155 = vmatprep.mubr.f32.mxu0 0.0
        %5156 = vmatmul.mubr.f32.gmra.mrb[0].mxu0 %v5040
        %v5157 = vpop.f32.mrb[0].mxu0
        %v5158 = vadd.f32 %v1039, %v5157
        %v5159 = vpop.f32.mrb[0].mxu0
        %5160 = vmatprep.mubr.f32.mxu0 0.0
        %5161 = vmatmul.mubr.f32.gmra.mrb[0].mxu0 %v5043
        %v5162 = vpop.f32.mrb[0].mxu0
        %v5163 = vadd.f32 %v1044, %v5162
        %v5164 = vpop.f32.mrb[0].mxu0
        %5165 = vmatprep.mubr.f32.mxu0 0.0
        %5166 = vmatmul.mubr.f32.gmra.mrb[0].mxu0 %v5046
        %v5167 = vpop.f32.mrb[0].mxu0
        %v5168 = vadd.f32 %v1049, %v5167
        %v5169 = vpop.f32.mrb[0].mxu0
        %5170 = vmatprep.mubr.f32.mxu0 0.0
        %5171 = vmatmul.mubr.f32.gmra.mrb[0].mxu0 %v5049
        %v5172 = vpop.f32.mrb[0].mxu0
        %v5173 = vadd.f32 %v1054, %v5172
        %v5174 = vpop.f32.mrb[0].mxu0
        %5175 = vmatprep.mubr.f32.mxu0 0.0
        %5176 = vmatmul.mubr.f32.gmra.mrb[0].mxu0 %v5052
        %v5177 = vpop.f32.mrb[0].mxu0
        %v5178 = vadd.f32 %v1059, %v5177
        %v5179 = vpop.f32.mrb[0].mxu0
        %5180 = vmatprep.mubr.f32.mxu0 0.0
        %5181 = vmatmul.mubr.f32.gmra.mrb[0].mxu0 %v5055
        %v5182 = vpop.f32.mrb[0].mxu0
        %v5183 = vadd.f32 %v1064, %v5182
        %v5184 = vpop.f32.mrb[0].mxu0
        %5185 = vmatprep.mubr.f32.mxu0 0.0
        %5186 = vmatmul.mubr.f32.gmra.mrb[0].mxu0 %v5058
        %v5187 = vpop.f32.mrb[0].mxu0
        %v5188 = vadd.f32 %v1069, %v5187
        %v5189 = vpop.f32.mrb[0].mxu0
        %5190 = vmatprep.mubr.f32.mxu0 0.0
        %5191 = vmatmul.mubr.f32.gmra.mrb[0].mxu0 %v5061
        %v5192 = vpop.f32.mrb[0].mxu0
        %v5193 = vadd.f32 %v1074, %v5192
        %v5194 = vpop.f32.mrb[0].mxu0
        %5195 = vmatprep.mubr.f32.mxu0 0.0
        %5196 = vmatmul.mubr.f32.gmra.mrb[0].mxu0 %v5064
        %v5197 = vpop.f32.mrb[0].mxu0
        %v5198 = vadd.f32 %v1079, %v5197
        %v5199 = vpop.f32.mrb[0].mxu0
        %5200 = vmatprep.mubr.f32.mxu0 0.0
        %5201 = vmatmul.mubr.f32.gmra.mrb[0].mxu0 %v5067
        %v5202 = vpop.f32.mrb[0].mxu0
        %v5203 = vadd.f32 %v1084, %v5202
        %v5204 = vpop.f32.mrb[0].mxu0
        %5205 = vmatprep.mubr.f32.mxu0 0.0
        %5206 = vmatmul.mubr.f32.gmra.mrb[0].mxu0 %v5070
        %v5207 = vpop.f32.mrb[0].mxu0
        %v5208 = vadd.f32 %v1089, %v5207
        %v5209 = vpop.f32.mrb[0].mxu0
        %5210 = vmatprep.mubr.f32.mxu0 0.0
        %5211 = vmatmul.mubr.f32.gmra.mrb[0].mxu0 %v5073
        %v5212 = vpop.f32.mrb[0].mxu0
        %v5213 = vadd.f32 %v1094, %v5212
        %v5214 = vpop.f32.mrb[0].mxu0
        %5215 = vmatprep.mubr.f32.mxu0 0.0
        %5216 = vmatmul.mubr.f32.gmra.mrb[0].mxu0 %v5076
        %v5217 = vpop.f32.mrb[0].mxu0
        %v5218 = vadd.f32 %v1099, %v5217
        %v5219 = vpop.f32.mrb[0].mxu0
        %5220 = vmatprep.mubr.f32.mxu0 0.0
        %5221 = vmatmul.mubr.f32.gmra.mrb[0].mxu0 %v5079
        %v5222 = vpop.f32.mrb[0].mxu0
        %v5223 = vadd.f32 %v1104, %v5222
        %v5224 = vpop.f32.mrb[0].mxu0
        %5225 = vdwg.mxu0
        %v5226 = vmax.f32 %v5148, 0.0
        %v5227 = vmax.f32 %v5153, 0.0
        %v5228 = vmax.f32 %v5158, 0.0
        %v5229 = vmax.f32 %v5163, 0.0
        %v5230 = vmax.f32 %v5168, 0.0
        %v5231 = vmax.f32 %v5173, 0.0
        %v5232 = vmax.f32 %v5178, 0.0
        %v5233 = vmax.f32 %v5183, 0.0
        %v5234 = vmax.f32 %v5188, 0.0
        %v5235 = vmax.f32 %v5193, 0.0
        %v5236 = vmax.f32 %v5198, 0.0
        %v5237 = vmax.f32 %v5203, 0.0
        %v5238 = vmax.f32 %v5208, 0.0
        %v5239 = vmax.f32 %v5213, 0.0
        %v5240 = vmax.f32 %v5218, 0.0
        %v5241 = vmax.f32 %v5223, 0.0
        %v5243 = vsel %vm913, %v5226, 0
        %v5246 = vsel %vm913, %v5227, 0
        %v5249 = vsel %vm913, %v5228, 0
        %v5252 = vsel %vm913, %v5229, 0
        %v5255 = vsel %vm913, %v5230, 0
        %v5258 = vsel %vm913, %v5231, 0
        %v5261 = vsel %vm913, %v5232, 0
        %v5264 = vsel %vm913, %v5233, 0
        %v5267 = vsel %vm913, %v5234, 0
        %v5270 = vsel %vm913, %v5235, 0
        %v5273 = vsel %vm913, %v5236, 0
        %v5276 = vsel %vm913, %v5237, 0
        %v5279 = vsel %vm913, %v5238, 0
        %v5282 = vsel %vm913, %v5239, 0
        %v5285 = vsel %vm913, %v5240, 0
        %v5288 = vsel %vm913, %v5241, 0
        %5290 = vmatprep.subr.mxu0 0.0
        %5291 = vmatpush1.msra.mxu0 %v893
        %5292 = vmatprep.subr.mxu0 0.0
        %5293 = vmatpush1.msra.mxu0 %v894
        %5294 = vmatprep.subr.mxu0 0.0
        %5295 = vmatpush1.msra.mxu0 %v895
        %5296 = vmatprep.subr.mxu0 0.0
        %5297 = vmatpush1.msra.mxu0 %v896
        %5298 = vmatprep.subr.mxu0 0.0
        %5299 = vmatpush1.msra.mxu0 0.0
        %5300 = vmatprep.subr.mxu0 0.0
        %5301 = vmatpush1.msra.mxu0 0.0
        %5302 = vmatprep.subr.mxu0 0.0
        %5303 = vmatpush1.msra.mxu0 0.0
        %5304 = vmatprep.subr.mxu0 0.0
        %5305 = vmatpush1.msra.mxu0 0.0
        %5306 = vmatprep.subr.mxu0 0.0
        %5307 = vmatpush1.msra.mxu0 0.0
        %5308 = vmatprep.subr.mxu0 0.0
        %5309 = vmatpush1.msra.mxu0 0.0
        %5310 = vmatprep.subr.mxu0 0.0
        %5311 = vmatpush1.msra.mxu0 0.0
        %5312 = vmatprep.subr.mxu0 0.0
        %5313 = vmatpush1.msra.mxu0 0.0
        %5314 = vmatprep.subr.mxu0 0.0
        %5315 = vmatpush1.msra.mxu0 0.0
        %5316 = vmatprep.subr.mxu0 0.0
        %5317 = vmatpush1.msra.mxu0 0.0
        %5318 = vmatprep.subr.mxu0 0.0
        %5319 = vmatpush1.msra.mxu0 0.0
        %5320 = vmatprep.subr.mxu0 0.0
        %5321 = vmatpush1.msra.mxu0 0.0
        %5322 = vmatprep.subr.mxu0 0.0
        %5323 = vmatpush1.msra.mxu0 0.0
        %5324 = vmatprep.subr.mxu0 0.0
        %5325 = vmatpush1.msra.mxu0 0.0
        %5326 = vmatprep.subr.mxu0 0.0
        %5327 = vmatpush1.msra.mxu0 0.0
        %5328 = vmatprep.subr.mxu0 0.0
        %5329 = vmatpush1.msra.mxu0 0.0
        %5330 = vmatprep.subr.mxu0 0.0
        %5331 = vmatpush1.msra.mxu0 0.0
        %5332 = vmatprep.subr.mxu0 0.0
        %5333 = vmatpush1.msra.mxu0 0.0
        %5334 = vmatprep.subr.mxu0 0.0
        %5335 = vmatpush1.msra.mxu0 0.0
        %5336 = vmatprep.subr.mxu0 0.0
        %5337 = vmatpush1.msra.mxu0 0.0
        %5338 = vmatprep.subr.mxu0 0.0
        %5339 = vmatpush1.msra.mxu0 0.0
        %5340 = vmatprep.subr.mxu0 0.0
        %5341 = vmatpush1.msra.mxu0 0.0
        %5342 = vmatprep.subr.mxu0 0.0
        %5343 = vmatpush1.msra.mxu0 0.0
        %5344 = vmatprep.subr.mxu0 0.0
        %5345 = vmatpush1.msra.mxu0 0.0
        %5346 = vmatprep.subr.mxu0 0.0
        %5347 = vmatpush1.msra.mxu0 0.0
        %5348 = vmatprep.subr.mxu0 0.0
        %5349 = vmatpush1.msra.mxu0 0.0
        %5350 = vmatprep.subr.mxu0 0.0
        %5351 = vmatpush1.msra.mxu0 0.0
        %5352 = vmatprep.subr.mxu0 0.0
        %5353 = vmatpush1.msra.mxu0 0.0
        %5354 = vmatprep.mubr.f32.mxu0 0.0
        %5355 = vmatmul.mubr.f32.gmra.mrb[0].mxu0 %v5243
        %v5356 = vpop.f32.mrb[0].mxu0
        %v5357 = vadd.f32 %v1336, %v5356
        %v5358 = vpop.f32.mrb[0].mxu0
        %5359 = vmatprep.mubr.f32.mxu0 0.0
        %5360 = vmatmul.mubr.f32.gmra.mrb[0].mxu0 %v5246
        %v5361 = vpop.f32.mrb[0].mxu0
        %v5362 = vadd.f32 %v1336, %v5361
        %v5363 = vpop.f32.mrb[0].mxu0
        %5364 = vmatprep.mubr.f32.mxu0 0.0
        %5365 = vmatmul.mubr.f32.gmra.mrb[0].mxu0 %v5249
        %v5366 = vpop.f32.mrb[0].mxu0
        %v5367 = vadd.f32 %v1336, %v5366
        %v5368 = vpop.f32.mrb[0].mxu0
        %5369 = vmatprep.mubr.f32.mxu0 0.0
        %5370 = vmatmul.mubr.f32.gmra.mrb[0].mxu0 %v5252
        %v5371 = vpop.f32.mrb[0].mxu0
        %v5372 = vadd.f32 %v1336, %v5371
        %v5373 = vpop.f32.mrb[0].mxu0
        %5374 = vmatprep.mubr.f32.mxu0 0.0
        %5375 = vmatmul.mubr.f32.gmra.mrb[0].mxu0 %v5255
        %v5376 = vpop.f32.mrb[0].mxu0
        %v5377 = vadd.f32 %v1336, %v5376
        %v5378 = vpop.f32.mrb[0].mxu0
        %5379 = vmatprep.mubr.f32.mxu0 0.0
        %5380 = vmatmul.mubr.f32.gmra.mrb[0].mxu0 %v5258
        %v5381 = vpop.f32.mrb[0].mxu0
        %v5382 = vadd.f32 %v1336, %v5381
        %v5383 = vpop.f32.mrb[0].mxu0
        %5384 = vmatprep.mubr.f32.mxu0 0.0
        %5385 = vmatmul.mubr.f32.gmra.mrb[0].mxu0 %v5261
        %v5386 = vpop.f32.mrb[0].mxu0
        %v5387 = vadd.f32 %v1336, %v5386
        %v5388 = vpop.f32.mrb[0].mxu0
        %5389 = vmatprep.mubr.f32.mxu0 0.0
        %5390 = vmatmul.mubr.f32.gmra.mrb[0].mxu0 %v5264
        %v5391 = vpop.f32.mrb[0].mxu0
        %v5392 = vadd.f32 %v1336, %v5391
        %v5393 = vpop.f32.mrb[0].mxu0
        %5394 = vmatprep.mubr.f32.mxu0 0.0
        %5395 = vmatmul.mubr.f32.gmra.mrb[0].mxu0 %v5267
        %v5396 = vpop.f32.mrb[0].mxu0
        %v5397 = vadd.f32 %v1336, %v5396
        %v5398 = vpop.f32.mrb[0].mxu0
        %5399 = vmatprep.mubr.f32.mxu0 0.0
        %5400 = vmatmul.mubr.f32.gmra.mrb[0].mxu0 %v5270
        %v5401 = vpop.f32.mrb[0].mxu0
        %v5402 = vadd.f32 %v1336, %v5401
        %v5403 = vpop.f32.mrb[0].mxu0
        %5404 = vmatprep.mubr.f32.mxu0 0.0
        %5405 = vmatmul.mubr.f32.gmra.mrb[0].mxu0 %v5273
        %v5406 = vpop.f32.mrb[0].mxu0
        %v5407 = vadd.f32 %v1336, %v5406
        %v5408 = vpop.f32.mrb[0].mxu0
        %5409 = vmatprep.mubr.f32.mxu0 0.0
        %5410 = vmatmul.mubr.f32.gmra.mrb[0].mxu0 %v5276
        %v5411 = vpop.f32.mrb[0].mxu0
        %v5412 = vadd.f32 %v1336, %v5411
        %v5413 = vpop.f32.mrb[0].mxu0
        %5414 = vmatprep.mubr.f32.mxu0 0.0
        %5415 = vmatmul.mubr.f32.gmra.mrb[0].mxu0 %v5279
        %v5416 = vpop.f32.mrb[0].mxu0
        %v5417 = vadd.f32 %v1336, %v5416
        %v5418 = vpop.f32.mrb[0].mxu0
        %5419 = vmatprep.mubr.f32.mxu0 0.0
        %5420 = vmatmul.mubr.f32.gmra.mrb[0].mxu0 %v5282
        %v5421 = vpop.f32.mrb[0].mxu0
        %v5422 = vadd.f32 %v1336, %v5421
        %v5423 = vpop.f32.mrb[0].mxu0
        %5424 = vmatprep.mubr.f32.mxu0 0.0
        %5425 = vmatmul.mubr.f32.gmra.mrb[0].mxu0 %v5285
        %v5426 = vpop.f32.mrb[0].mxu0
        %v5427 = vadd.f32 %v1336, %v5426
        %v5428 = vpop.f32.mrb[0].mxu0
        %5429 = vmatprep.mubr.f32.mxu0 0.0
        %5430 = vmatmul.mubr.f32.gmra.mrb[0].mxu0 %v5288
        %v5431 = vpop.f32.mrb[0].mxu0
        %v5432 = vadd.f32 %v1336, %v5431
        %v5433 = vpop.f32.mrb[0].mxu0
        %5434 = vdwg.mxu0
        %v5435 = vmax.f32 %v5357, 0.0
        %v5436 = vmax.f32 %v5362, 0.0
        %v5437 = vmax.f32 %v5367, 0.0
        %v5438 = vmax.f32 %v5372, 0.0
        %v5439 = vmax.f32 %v5377, 0.0
        %v5440 = vmax.f32 %v5382, 0.0
        %v5441 = vmax.f32 %v5387, 0.0
        %v5442 = vmax.f32 %v5392, 0.0
        %v5443 = vmax.f32 %v5397, 0.0
        %v5444 = vmax.f32 %v5402, 0.0
        %v5445 = vmax.f32 %v5407, 0.0
        %v5446 = vmax.f32 %v5412, 0.0
        %v5447 = vmax.f32 %v5417, 0.0
        %v5448 = vmax.f32 %v5422, 0.0
        %v5449 = vmax.f32 %v5427, 0.0
        %v5450 = vmax.f32 %v5432, 0.0
        %v5452 = vsel %vm913, %v5435, 0
        %v5455 = vsel %vm913, %v5436, 0
        %v5458 = vsel %vm913, %v5437, 0
        %v5461 = vsel %vm913, %v5438, 0
        %v5464 = vsel %vm913, %v5439, 0
        %v5467 = vsel %vm913, %v5440, 0
        %v5470 = vsel %vm913, %v5441, 0
        %v5473 = vsel %vm913, %v5442, 0
        %v5476 = vsel %vm913, %v5443, 0
        %v5479 = vsel %vm913, %v5444, 0
        %v5482 = vsel %vm913, %v5445, 0
        %v5485 = vsel %vm913, %v5446, 0
        %v5488 = vsel %vm913, %v5447, 0
        %v5491 = vsel %vm913, %v5448, 0
        %v5494 = vsel %vm913, %v5449, 0
        %v5497 = vsel %vm913, %v5450, 0
        %5499 = vmatprep.subr.mxu0 0.0
        %5500 = vmatpush1.msra.mxu0 %v897
        %5501 = vmatprep.subr.mxu0 0.0
        %5502 = vmatpush1.msra.mxu0 %v898
        %5503 = vmatprep.subr.mxu0 0.0
        %5504 = vmatpush1.msra.mxu0 %v899
        %5505 = vmatprep.subr.mxu0 0.0
        %5506 = vmatpush1.msra.mxu0 %v900
        %5507 = vmatprep.subr.mxu0 0.0
        %5508 = vmatpush1.msra.mxu0 0.0
        %5509 = vmatprep.subr.mxu0 0.0
        %5510 = vmatpush1.msra.mxu0 0.0
        %5511 = vmatprep.subr.mxu0 0.0
        %5512 = vmatpush1.msra.mxu0 0.0
        %5513 = vmatprep.subr.mxu0 0.0
        %5514 = vmatpush1.msra.mxu0 0.0
        %5515 = vmatprep.subr.mxu0 0.0
        %5516 = vmatpush1.msra.mxu0 0.0
        %5517 = vmatprep.subr.mxu0 0.0
        %5518 = vmatpush1.msra.mxu0 0.0
        %5519 = vmatprep.subr.mxu0 0.0
        %5520 = vmatpush1.msra.mxu0 0.0
        %5521 = vmatprep.subr.mxu0 0.0
        %5522 = vmatpush1.msra.mxu0 0.0
        %5523 = vmatprep.subr.mxu0 0.0
        %5524 = vmatpush1.msra.mxu0 0.0
        %5525 = vmatprep.subr.mxu0 0.0
        %5526 = vmatpush1.msra.mxu0 0.0
        %5527 = vmatprep.subr.mxu0 0.0
        %5528 = vmatpush1.msra.mxu0 0.0
        %5529 = vmatprep.subr.mxu0 0.0
        %5530 = vmatpush1.msra.mxu0 0.0
        %5531 = vmatprep.subr.mxu0 0.0
        %5532 = vmatpush1.msra.mxu0 0.0
        %5533 = vmatprep.subr.mxu0 0.0
        %5534 = vmatpush1.msra.mxu0 0.0
        %5535 = vmatprep.subr.mxu0 0.0
        %5536 = vmatpush1.msra.mxu0 0.0
        %5537 = vmatprep.subr.mxu0 0.0
        %5538 = vmatpush1.msra.mxu0 0.0
        %5539 = vmatprep.subr.mxu0 0.0
        %5540 = vmatpush1.msra.mxu0 0.0
        %5541 = vmatprep.subr.mxu0 0.0
        %5542 = vmatpush1.msra.mxu0 0.0
        %5543 = vmatprep.subr.mxu0 0.0
        %5544 = vmatpush1.msra.mxu0 0.0
        %5545 = vmatprep.subr.mxu0 0.0
        %5546 = vmatpush1.msra.mxu0 0.0
        %5547 = vmatprep.subr.mxu0 0.0
        %5548 = vmatpush1.msra.mxu0 0.0
        %5549 = vmatprep.subr.mxu0 0.0
        %5550 = vmatpush1.msra.mxu0 0.0
        %5551 = vmatprep.subr.mxu0 0.0
        %5552 = vmatpush1.msra.mxu0 0.0
        %5553 = vmatprep.subr.mxu0 0.0
        %5554 = vmatpush1.msra.mxu0 0.0
        %5555 = vmatprep.subr.mxu0 0.0
        %5556 = vmatpush1.msra.mxu0 0.0
        %5557 = vmatprep.subr.mxu0 0.0
        %5558 = vmatpush1.msra.mxu0 0.0
        %5559 = vmatprep.subr.mxu0 0.0
        %5560 = vmatpush1.msra.mxu0 0.0
        %5561 = vmatprep.subr.mxu0 0.0
        %5562 = vmatpush1.msra.mxu0 0.0
        %5563 = vmatprep.mubr.f32.mxu0 0.0
        %5564 = vmatmul.mubr.f32.gmra.mrb[0].mxu0 %v5452
        %v5565 = vpop.f32.mrb[0].mxu0
        %v5566 = vadd.f32 0.0, %v5565
        %v5567 = vpop.f32.mrb[0].mxu0
        %5568 = vmatprep.mubr.f32.mxu0 0.0
        %5569 = vmatmul.mubr.f32.gmra.mrb[0].mxu0 %v5455
        %v5570 = vpop.f32.mrb[0].mxu0
        %v5571 = vadd.f32 0.0, %v5570
        %v5572 = vpop.f32.mrb[0].mxu0
        %5573 = vmatprep.mubr.f32.mxu0 0.0
        %5574 = vmatmul.mubr.f32.gmra.mrb[0].mxu0 %v5458
        %v5575 = vpop.f32.mrb[0].mxu0
        %v5576 = vadd.f32 0.0, %v5575
        %v5577 = vpop.f32.mrb[0].mxu0
        %5578 = vmatprep.mubr.f32.mxu0 0.0
        %5579 = vmatmul.mubr.f32.gmra.mrb[0].mxu0 %v5461
        %v5580 = vpop.f32.mrb[0].mxu0
        %v5581 = vadd.f32 0.0, %v5580
        %v5582 = vpop.f32.mrb[0].mxu0
        %5583 = vmatprep.mubr.f32.mxu0 0.0
        %5584 = vmatmul.mubr.f32.gmra.mrb[0].mxu0 %v5464
        %v5585 = vpop.f32.mrb[0].mxu0
        %v5586 = vadd.f32 0.0, %v5585
        %v5587 = vpop.f32.mrb[0].mxu0
        %5588 = vmatprep.mubr.f32.mxu0 0.0
        %5589 = vmatmul.mubr.f32.gmra.mrb[0].mxu0 %v5467
        %v5590 = vpop.f32.mrb[0].mxu0
        %v5591 = vadd.f32 0.0, %v5590
        %v5592 = vpop.f32.mrb[0].mxu0
        %5593 = vmatprep.mubr.f32.mxu0 0.0
        %5594 = vmatmul.mubr.f32.gmra.mrb[0].mxu0 %v5470
        %v5595 = vpop.f32.mrb[0].mxu0
        %v5596 = vadd.f32 0.0, %v5595
        %v5597 = vpop.f32.mrb[0].mxu0
        %5598 = vmatprep.mubr.f32.mxu0 0.0
        %5599 = vmatmul.mubr.f32.gmra.mrb[0].mxu0 %v5473
        %v5600 = vpop.f32.mrb[0].mxu0
        %v5601 = vadd.f32 0.0, %v5600
        %v5602 = vpop.f32.mrb[0].mxu0
        %5603 = vmatprep.mubr.f32.mxu0 0.0
        %5604 = vmatmul.mubr.f32.gmra.mrb[0].mxu0 %v5476
        %v5605 = vpop.f32.mrb[0].mxu0
        %v5606 = vadd.f32 0.0, %v5605
        %v5607 = vpop.f32.mrb[0].mxu0
        %5608 = vmatprep.mubr.f32.mxu0 0.0
        %5609 = vmatmul.mubr.f32.gmra.mrb[0].mxu0 %v5479
        %v5610 = vpop.f32.mrb[0].mxu0
        %v5611 = vadd.f32 0.0, %v5610
        %v5612 = vpop.f32.mrb[0].mxu0
        %5613 = vmatprep.mubr.f32.mxu0 0.0
        %5614 = vmatmul.mubr.f32.gmra.mrb[0].mxu0 %v5482
        %v5615 = vpop.f32.mrb[0].mxu0
        %v5616 = vadd.f32 0.0, %v5615
        %v5617 = vpop.f32.mrb[0].mxu0
        %5618 = vmatprep.mubr.f32.mxu0 0.0
        %5619 = vmatmul.mubr.f32.gmra.mrb[0].mxu0 %v5485
        %v5620 = vpop.f32.mrb[0].mxu0
        %v5621 = vadd.f32 0.0, %v5620
        %v5622 = vpop.f32.mrb[0].mxu0
        %5623 = vmatprep.mubr.f32.mxu0 0.0
        %5624 = vmatmul.mubr.f32.gmra.mrb[0].mxu0 %v5488
        %v5625 = vpop.f32.mrb[0].mxu0
        %v5626 = vadd.f32 0.0, %v5625
        %v5627 = vpop.f32.mrb[0].mxu0
        %5628 = vmatprep.mubr.f32.mxu0 0.0
        %5629 = vmatmul.mubr.f32.gmra.mrb[0].mxu0 %v5491
        %v5630 = vpop.f32.mrb[0].mxu0
        %v5631 = vadd.f32 0.0, %v5630
        %v5632 = vpop.f32.mrb[0].mxu0
        %5633 = vmatprep.mubr.f32.mxu0 0.0
        %5634 = vmatmul.mubr.f32.gmra.mrb[0].mxu0 %v5494
        %v5635 = vpop.f32.mrb[0].mxu0
        %v5636 = vadd.f32 0.0, %v5635
        %v5637 = vpop.f32.mrb[0].mxu0
        %5638 = vmatprep.mubr.f32.mxu0 0.0
        %5639 = vmatmul.mubr.f32.gmra.mrb[0].mxu0 %v5497
        %v5640 = vpop.f32.mrb[0].mxu0
        %v5641 = vadd.f32 0.0, %v5640
        %v5642 = vpop.f32.mrb[0].mxu0
        %5643 = vdwg.mxu0
        %v5644 = vmax.f32 %v4664, %v5566
        %v5645 = vmax.f32 %v4665, %v5571
        %v5646 = vmax.f32 %v4666, %v5576
        %v5647 = vmax.f32 %v4667, %v5581
        %v5648 = vmax.f32 %v4668, %v5586
        %v5649 = vmax.f32 %v4669, %v5591
        %v5650 = vmax.f32 %v4670, %v5596
        %v5651 = vmax.f32 %v4671, %v5601
        %v5652 = vmax.f32 %v4672, %v5606
        %v5653 = vmax.f32 %v4673, %v5611
        %v5654 = vmax.f32 %v4674, %v5616
        %v5655 = vmax.f32 %v4675, %v5621
        %v5656 = vmax.f32 %v4676, %v5626
        %v5657 = vmax.f32 %v4677, %v5631
        %v5658 = vmax.f32 %v4678, %v5636
        %v5659 = vmax.f32 %v4679, %v5641
        %v5660 = vsub.f32 %v4664, %v5644
        %v5661 = vsub.f32 %v4665, %v5645
        %v5662 = vsub.f32 %v4666, %v5646
        %v5663 = vsub.f32 %v4667, %v5647
        %v5664 = vsub.f32 %v4668, %v5648
        %v5665 = vsub.f32 %v4669, %v5649
        %v5666 = vsub.f32 %v4670, %v5650
        %v5667 = vsub.f32 %v4671, %v5651
        %v5668 = vsub.f32 %v4672, %v5652
        %v5669 = vsub.f32 %v4673, %v5653
        %v5670 = vsub.f32 %v4674, %v5654
        %v5671 = vsub.f32 %v4675, %v5655
        %v5672 = vsub.f32 %v4676, %v5656
        %v5673 = vsub.f32 %v4677, %v5657
        %v5674 = vsub.f32 %v4678, %v5658
        %v5675 = vsub.f32 %v4679, %v5659
        %v5676 = vmul.f32 %v5660, 1.442695
        %v5677 = vpow.pop %v5676
        %v5678 = vmul.f32 %v5661, 1.442695
        %v5679 = vpow.pop %v5678
        %v5680 = vmul.f32 %v5662, 1.442695
        %v5681 = vpow.pop %v5680
        %v5682 = vmul.f32 %v5663, 1.442695
        %v5683 = vpow.pop %v5682
        %v5684 = vmul.f32 %v5664, 1.442695
        %v5685 = vpow.pop %v5684
        %v5686 = vmul.f32 %v5665, 1.442695
        %v5687 = vpow.pop %v5686
        %v5688 = vmul.f32 %v5666, 1.442695
        %v5689 = vpow.pop %v5688
        %v5690 = vmul.f32 %v5667, 1.442695
        %v5691 = vpow.pop %v5690
        %v5692 = vmul.f32 %v5668, 1.442695
        %v5693 = vpow.pop %v5692
        %v5694 = vmul.f32 %v5669, 1.442695
        %v5695 = vpow.pop %v5694
        %v5696 = vmul.f32 %v5670, 1.442695
        %v5697 = vpow.pop %v5696
        %v5698 = vmul.f32 %v5671, 1.442695
        %v5699 = vpow.pop %v5698
        %v5700 = vmul.f32 %v5672, 1.442695
        %v5701 = vpow.pop %v5700
        %v5702 = vmul.f32 %v5673, 1.442695
        %v5703 = vpow.pop %v5702
        %v5704 = vmul.f32 %v5674, 1.442695
        %v5705 = vpow.pop %v5704
        %v5706 = vmul.f32 %v5675, 1.442695
        %v5707 = vpow.pop %v5706
        %v5708 = vsub.f32 %v5566, %v5644
        %v5709 = vsub.f32 %v5571, %v5645
        %v5710 = vsub.f32 %v5576, %v5646
        %v5711 = vsub.f32 %v5581, %v5647
        %v5712 = vsub.f32 %v5586, %v5648
        %v5713 = vsub.f32 %v5591, %v5649
        %v5714 = vsub.f32 %v5596, %v5650
        %v5715 = vsub.f32 %v5601, %v5651
        %v5716 = vsub.f32 %v5606, %v5652
        %v5717 = vsub.f32 %v5611, %v5653
        %v5718 = vsub.f32 %v5616, %v5654
        %v5719 = vsub.f32 %v5621, %v5655
        %v5720 = vsub.f32 %v5626, %v5656
        %v5721 = vsub.f32 %v5631, %v5657
        %v5722 = vsub.f32 %v5636, %v5658
        %v5723 = vsub.f32 %v5641, %v5659
        %v5724 = vmul.f32 %v5708, 1.442695
        %v5725 = vpow.pop %v5724
        %v5726 = vmul.f32 %v5709, 1.442695
        %v5727 = vpow.pop %v5726
        %v5728 = vmul.f32 %v5710, 1.442695
        %v5729 = vpow.pop %v5728
        %v5730 = vmul.f32 %v5711, 1.442695
        %v5731 = vpow.pop %v5730
        %v5732 = vmul.f32 %v5712, 1.442695
        %v5733 = vpow.pop %v5732
        %v5734 = vmul.f32 %v5713, 1.442695
        %v5735 = vpow.pop %v5734
        %v5736 = vmul.f32 %v5714, 1.442695
        %v5737 = vpow.pop %v5736
        %v5738 = vmul.f32 %v5715, 1.442695
        %v5739 = vpow.pop %v5738
        %v5740 = vmul.f32 %v5716, 1.442695
        %v5741 = vpow.pop %v5740
        %v5742 = vmul.f32 %v5717, 1.442695
        %v5743 = vpow.pop %v5742
        %v5744 = vmul.f32 %v5718, 1.442695
        %v5745 = vpow.pop %v5744
        %v5746 = vmul.f32 %v5719, 1.442695
        %v5747 = vpow.pop %v5746
        %v5748 = vmul.f32 %v5720, 1.442695
        %v5749 = vpow.pop %v5748
        %v5750 = vmul.f32 %v5721, 1.442695
        %v5751 = vpow.pop %v5750
        %v5752 = vmul.f32 %v5722, 1.442695
        %v5753 = vpow.pop %v5752
        %v5754 = vmul.f32 %v5723, 1.442695
        %v5755 = vpow.pop %v5754
        %v5756 = vmul.f32 %v5677, %v4792
        %v5757 = vmul.f32 %v5679, %v4793
        %v5758 = vmul.f32 %v5681, %v4794
        %v5759 = vmul.f32 %v5683, %v4795
        %v5760 = vmul.f32 %v5685, %v4796
        %v5761 = vmul.f32 %v5687, %v4797
        %v5762 = vmul.f32 %v5689, %v4798
        %v5763 = vmul.f32 %v5691, %v4799
        %v5764 = vmul.f32 %v5693, %v4800
        %v5765 = vmul.f32 %v5695, %v4801
        %v5766 = vmul.f32 %v5697, %v4802
        %v5767 = vmul.f32 %v5699, %v4803
        %v5768 = vmul.f32 %v5701, %v4804
        %v5769 = vmul.f32 %v5703, %v4805
        %v5770 = vmul.f32 %v5705, %v4806
        %v5771 = vmul.f32 %v5707, %v4807
        %v5772 = vadd.f32 %v5756, %v5725
        %v5773 = vadd.f32 %v5757, %v5727
        %v5774 = vadd.f32 %v5758, %v5729
        %v5775 = vadd.f32 %v5759, %v5731
        %v5776 = vadd.f32 %v5760, %v5733
        %v5777 = vadd.f32 %v5761, %v5735
        %v5778 = vadd.f32 %v5762, %v5737
        %v5779 = vadd.f32 %v5763, %v5739
        %v5780 = vadd.f32 %v5764, %v5741
        %v5781 = vadd.f32 %v5765, %v5743
        %v5782 = vadd.f32 %v5766, %v5745
        %v5783 = vadd.f32 %v5767, %v5747
        %v5784 = vadd.f32 %v5768, %v5749
        %v5785 = vadd.f32 %v5769, %v5751
        %v5786 = vadd.f32 %v5770, %v5753
        %v5787 = vadd.f32 %v5771, %v5755
        %5789 = vset.pattern.permute.xlu0 0
        %5790 = vperm.xlu0 %5789, %v5677
        %v5791 = vpop.permute.xlu0 %5790
        %5794 = vset.pattern.permute.xlu0 0
        %5795 = vperm.xlu0 %5794, %v5679
        %v5796 = vpop.permute.xlu0 %5795
        %5799 = vset.pattern.permute.xlu0 0
        %5800 = vperm.xlu0 %5799, %v5681
        %v5801 = vpop.permute.xlu0 %5800
        %5804 = vset.pattern.permute.xlu0 0
        %5805 = vperm.xlu0 %5804, %v5683
        %v5806 = vpop.permute.xlu0 %5805
        %5809 = vset.pattern.permute.xlu0 0
        %5810 = vperm.xlu0 %5809, %v5685
        %v5811 = vpop.permute.xlu0 %5810
        %5814 = vset.pattern.permute.xlu0 0
        %5815 = vperm.xlu0 %5814, %v5687
        %v5816 = vpop.permute.xlu0 %5815
        %5819 = vset.pattern.permute.xlu0 0
        %5820 = vperm.xlu0 %5819, %v5689
        %v5821 = vpop.permute.xlu0 %5820
        %5824 = vset.pattern.permute.xlu0 0
        %5825 = vperm.xlu0 %5824, %v5691
        %v5826 = vpop.permute.xlu0 %5825
        %5829 = vset.pattern.permute.xlu0 0
        %5830 = vperm.xlu0 %5829, %v5693
        %v5831 = vpop.permute.xlu0 %5830
        %5834 = vset.pattern.permute.xlu0 0
        %5835 = vperm.xlu0 %5834, %v5695
        %v5836 = vpop.permute.xlu0 %5835
        %5839 = vset.pattern.permute.xlu0 0
        %5840 = vperm.xlu0 %5839, %v5697
        %v5841 = vpop.permute.xlu0 %5840
        %5844 = vset.pattern.permute.xlu0 0
        %5845 = vperm.xlu0 %5844, %v5699
        %v5846 = vpop.permute.xlu0 %5845
        %5849 = vset.pattern.permute.xlu0 0
        %5850 = vperm.xlu0 %5849, %v5701
        %v5851 = vpop.permute.xlu0 %5850
        %5854 = vset.pattern.permute.xlu0 0
        %5855 = vperm.xlu0 %5854, %v5703
        %v5856 = vpop.permute.xlu0 %5855
        %5859 = vset.pattern.permute.xlu0 0
        %5860 = vperm.xlu0 %5859, %v5705
        %v5861 = vpop.permute.xlu0 %5860
        %5864 = vset.pattern.permute.xlu0 0
        %5865 = vperm.xlu0 %5864, %v5707
        %v5866 = vpop.permute.xlu0 %5865
        %v5868 = vmul.f32 %v5791, %v5000
        %v5869 = vmul.f32 %v5796, %v5001
        %v5870 = vmul.f32 %v5801, %v5002
        %v5871 = vmul.f32 %v5806, %v5003
        %v5872 = vmul.f32 %v5811, %v5004
        %v5873 = vmul.f32 %v5816, %v5005
        %v5874 = vmul.f32 %v5821, %v5006
        %v5875 = vmul.f32 %v5826, %v5007
        %v5876 = vmul.f32 %v5831, %v5008
        %v5877 = vmul.f32 %v5836, %v5009
        %v5878 = vmul.f32 %v5841, %v5010
        %v5879 = vmul.f32 %v5846, %v5011
        %v5880 = vmul.f32 %v5851, %v5012
        %v5881 = vmul.f32 %v5856, %v5013
        %v5882 = vmul.f32 %v5861, %v5014
        %v5883 = vmul.f32 %v5866, %v5015
        %5885 = vset.pattern.permute.xlu0 0
        %5886 = vperm.xlu0 %5885, %v5725
        %v5887 = vpop.permute.xlu0 %5886
        %5890 = vset.pattern.permute.xlu0 0
        %5891 = vperm.xlu0 %5890, %v5727
        %v5892 = vpop.permute.xlu0 %5891
        %5895 = vset.pattern.permute.xlu0 0
        %5896 = vperm.xlu0 %5895, %v5729
        %v5897 = vpop.permute.xlu0 %5896
        %5900 = vset.pattern.permute.xlu0 0
        %5901 = vperm.xlu0 %5900, %v5731
        %v5902 = vpop.permute.xlu0 %5901
        %5905 = vset.pattern.permute.xlu0 0
        %5906 = vperm.xlu0 %5905, %v5733
        %v5907 = vpop.permute.xlu0 %5906
        %5910 = vset.pattern.permute.xlu0 0
        %5911 = vperm.xlu0 %5910, %v5735
        %v5912 = vpop.permute.xlu0 %5911
        %5915 = vset.pattern.permute.xlu0 0
        %5916 = vperm.xlu0 %5915, %v5737
        %v5917 = vpop.permute.xlu0 %5916
        %5920 = vset.pattern.permute.xlu0 0
        %5921 = vperm.xlu0 %5920, %v5739
        %v5922 = vpop.permute.xlu0 %5921
        %5925 = vset.pattern.permute.xlu0 0
        %5926 = vperm.xlu0 %5925, %v5741
        %v5927 = vpop.permute.xlu0 %5926
        %5930 = vset.pattern.permute.xlu0 0
        %5931 = vperm.xlu0 %5930, %v5743
        %v5932 = vpop.permute.xlu0 %5931
        %5935 = vset.pattern.permute.xlu0 0
        %5936 = vperm.xlu0 %5935, %v5745
        %v5937 = vpop.permute.xlu0 %5936
        %5940 = vset.pattern.permute.xlu0 0
        %5941 = vperm.xlu0 %5940, %v5747
        %v5942 = vpop.permute.xlu0 %5941
        %5945 = vset.pattern.permute.xlu0 0
        %5946 = vperm.xlu0 %5945, %v5749
        %v5947 = vpop.permute.xlu0 %5946
        %5950 = vset.pattern.permute.xlu0 0
        %5951 = vperm.xlu0 %5950, %v5751
        %v5952 = vpop.permute.xlu0 %5951
        %5955 = vset.pattern.permute.xlu0 0
        %5956 = vperm.xlu0 %5955, %v5753
        %v5957 = vpop.permute.xlu0 %5956
        %5960 = vset.pattern.permute.xlu0 0
        %5961 = vperm.xlu0 %5960, %v5755
        %v5962 = vpop.permute.xlu0 %5961
        %v5964 = vmul.f32 %v5887, %v5017
        %v5965 = vmul.f32 %v5892, %v5018
        %v5966 = vmul.f32 %v5897, %v5019
        %v5967 = vmul.f32 %v5902, %v5020
        %v5968 = vmul.f32 %v5907, %v5021
        %v5969 = vmul.f32 %v5912, %v5022
        %v5970 = vmul.f32 %v5917, %v5023
        %v5971 = vmul.f32 %v5922, %v5024
        %v5972 = vmul.f32 %v5927, %v5025
        %v5973 = vmul.f32 %v5932, %v5026
        %v5974 = vmul.f32 %v5937, %v5027
        %v5975 = vmul.f32 %v5942, %v5028
        %v5976 = vmul.f32 %v5947, %v5029
        %v5977 = vmul.f32 %v5952, %v5030
        %v5978 = vmul.f32 %v5957, %v5031
        %v5979 = vmul.f32 %v5962, %v5032
        %v5980 = vadd.f32 %v5868, %v5964
        %v5981 = vadd.f32 %v5869, %v5965
        %v5982 = vadd.f32 %v5870, %v5966
        %v5983 = vadd.f32 %v5871, %v5967
        %v5984 = vadd.f32 %v5872, %v5968
        %v5985 = vadd.f32 %v5873, %v5969
        %v5986 = vadd.f32 %v5874, %v5970
        %v5987 = vadd.f32 %v5875, %v5971
        %v5988 = vadd.f32 %v5876, %v5972
        %v5989 = vadd.f32 %v5877, %v5973
        %v5990 = vadd.f32 %v5878, %v5974
        %v5991 = vadd.f32 %v5879, %v5975
        %v5992 = vadd.f32 %v5880, %v5976
        %v5993 = vadd.f32 %v5881, %v5977
        %v5994 = vadd.f32 %v5882, %v5978
        %v5995 = vadd.f32 %v5883, %v5979
        %s5996 = scalar_lea.vmem %s824, 640 [#allocation2]
        %v5997 = vld [vmem:[%s5996] sm:$0xff]
        %v5998 = vld [vmem:[%s5996 + $0x8] sm:$0xff]
        %v5999 = vld [vmem:[%s5996 + $0x10] sm:$0xff]
        %v6000 = vld [vmem:[%s5996 + $0x18] sm:$0xff]
        %v6001 = vld [vmem:[%s5996 + $0x20] sm:$0xff]
        %v6002 = vld [vmem:[%s5996 + $0x28] sm:$0xff]
        %v6003 = vld [vmem:[%s5996 + $0x30] sm:$0xff]
        %v6004 = vld [vmem:[%s5996 + $0x38] sm:$0xff]
        %v6005 = vld [vmem:[%s5996 + $0x40] sm:$0xff]
        %v6006 = vld [vmem:[%s5996 + $0x48] sm:$0xff]
        %v6007 = vld [vmem:[%s5996 + $0x50] sm:$0xff]
        %v6008 = vld [vmem:[%s5996 + $0x58] sm:$0xff]
        %v6009 = vld [vmem:[%s5996 + $0x60] sm:$0xff]
        %v6010 = vld [vmem:[%s5996 + $0x68] sm:$0xff]
        %v6011 = vld [vmem:[%s5996 + $0x70] sm:$0xff]
        %v6012 = vld [vmem:[%s5996 + $0x78] sm:$0xff]
        %v6014 = vsel %vm913, %v5997, 0
        %v6017 = vsel %vm913, %v5998, 0
        %v6020 = vsel %vm913, %v5999, 0
        %v6023 = vsel %vm913, %v6000, 0
        %v6026 = vsel %vm913, %v6001, 0
        %v6029 = vsel %vm913, %v6002, 0
        %v6032 = vsel %vm913, %v6003, 0
        %v6035 = vsel %vm913, %v6004, 0
        %v6038 = vsel %vm913, %v6005, 0
        %v6041 = vsel %vm913, %v6006, 0
        %v6044 = vsel %vm913, %v6007, 0
        %v6047 = vsel %vm913, %v6008, 0
        %v6050 = vsel %vm913, %v6009, 0
        %v6053 = vsel %vm913, %v6010, 0
        %v6056 = vsel %vm913, %v6011, 0
        %v6059 = vsel %vm913, %v6012, 0
        %6061 = vmatprep.subr.mxu0 0.0
        %6062 = vmatpush1.msra.mxu0 %v889
        %6063 = vmatprep.subr.mxu0 0.0
        %6064 = vmatpush1.msra.mxu0 %v890
        %6065 = vmatprep.subr.mxu0 0.0
        %6066 = vmatpush1.msra.mxu0 %v891
        %6067 = vmatprep.subr.mxu0 0.0
        %6068 = vmatpush1.msra.mxu0 %v892
        %6069 = vmatprep.subr.mxu0 0.0
        %6070 = vmatpush1.msra.mxu0 0.0
        %6071 = vmatprep.subr.mxu0 0.0
        %6072 = vmatpush1.msra.mxu0 0.0
        %6073 = vmatprep.subr.mxu0 0.0
        %6074 = vmatpush1.msra.mxu0 0.0
        %6075 = vmatprep.subr.mxu0 0.0
        %6076 = vmatpush1.msra.mxu0 0.0
        %6077 = vmatprep.subr.mxu0 0.0
        %6078 = vmatpush1.msra.mxu0 0.0
        %6079 = vmatprep.subr.mxu0 0.0
        %6080 = vmatpush1.msra.mxu0 0.0
        %6081 = vmatprep.subr.mxu0 0.0
        %6082 = vmatpush1.msra.mxu0 0.0
        %6083 = vmatprep.subr.mxu0 0.0
        %6084 = vmatpush1.msra.mxu0 0.0
        %6085 = vmatprep.subr.mxu0 0.0
        %6086 = vmatpush1.msra.mxu0 0.0
        %6087 = vmatprep.subr.mxu0 0.0
        %6088 = vmatpush1.msra.mxu0 0.0
        %6089 = vmatprep.subr.mxu0 0.0
        %6090 = vmatpush1.msra.mxu0 0.0
        %6091 = vmatprep.subr.mxu0 0.0
        %6092 = vmatpush1.msra.mxu0 0.0
        %6093 = vmatprep.subr.mxu0 0.0
        %6094 = vmatpush1.msra.mxu0 0.0
        %6095 = vmatprep.subr.mxu0 0.0
        %6096 = vmatpush1.msra.mxu0 0.0
        %6097 = vmatprep.subr.mxu0 0.0
        %6098 = vmatpush1.msra.mxu0 0.0
        %6099 = vmatprep.subr.mxu0 0.0
        %6100 = vmatpush1.msra.mxu0 0.0
        %6101 = vmatprep.subr.mxu0 0.0
        %6102 = vmatpush1.msra.mxu0 0.0
        %6103 = vmatprep.subr.mxu0 0.0
        %6104 = vmatpush1.msra.mxu0 0.0
        %6105 = vmatprep.subr.mxu0 0.0
        %6106 = vmatpush1.msra.mxu0 0.0
        %6107 = vmatprep.subr.mxu0 0.0
        %6108 = vmatpush1.msra.mxu0 0.0
        %6109 = vmatprep.subr.mxu0 0.0
        %6110 = vmatpush1.msra.mxu0 0.0
        %6111 = vmatprep.subr.mxu0 0.0
        %6112 = vmatpush1.msra.mxu0 0.0
        %6113 = vmatprep.subr.mxu0 0.0
        %6114 = vmatpush1.msra.mxu0 0.0
        %6115 = vmatprep.subr.mxu0 0.0
        %6116 = vmatpush1.msra.mxu0 0.0
        %6117 = vmatprep.subr.mxu0 0.0
        %6118 = vmatpush1.msra.mxu0 0.0
        %6119 = vmatprep.subr.mxu0 0.0
        %6120 = vmatpush1.msra.mxu0 0.0
        %6121 = vmatprep.subr.mxu0 0.0
        %6122 = vmatpush1.msra.mxu0 0.0
        %6123 = vmatprep.subr.mxu0 0.0
        %6124 = vmatpush1.msra.mxu0 0.0
        %6125 = vmatprep.mubr.f32.mxu0 0.0
        %6126 = vmatmul.mubr.f32.gmra.mrb[0].mxu0 %v6014
        %v6127 = vpop.f32.mrb[0].mxu0
        %v6128 = vadd.f32 %v1029, %v6127
        %v6129 = vpop.f32.mrb[0].mxu0
        %6130 = vmatprep.mubr.f32.mxu0 0.0
        %6131 = vmatmul.mubr.f32.gmra.mrb[0].mxu0 %v6017
        %v6132 = vpop.f32.mrb[0].mxu0
        %v6133 = vadd.f32 %v1034, %v6132
        %v6134 = vpop.f32.mrb[0].mxu0
        %6135 = vmatprep.mubr.f32.mxu0 0.0
        %6136 = vmatmul.mubr.f32.gmra.mrb[0].mxu0 %v6020
        %v6137 = vpop.f32.mrb[0].mxu0
        %v6138 = vadd.f32 %v1039, %v6137
        %v6139 = vpop.f32.mrb[0].mxu0
        %6140 = vmatprep.mubr.f32.mxu0 0.0
        %6141 = vmatmul.mubr.f32.gmra.mrb[0].mxu0 %v6023
        %v6142 = vpop.f32.mrb[0].mxu0
        %v6143 = vadd.f32 %v1044, %v6142
        %v6144 = vpop.f32.mrb[0].mxu0
        %6145 = vmatprep.mubr.f32.mxu0 0.0
        %6146 = vmatmul.mubr.f32.gmra.mrb[0].mxu0 %v6026
        %v6147 = vpop.f32.mrb[0].mxu0
        %v6148 = vadd.f32 %v1049, %v6147
        %v6149 = vpop.f32.mrb[0].mxu0
        %6150 = vmatprep.mubr.f32.mxu0 0.0
        %6151 = vmatmul.mubr.f32.gmra.mrb[0].mxu0 %v6029
        %v6152 = vpop.f32.mrb[0].mxu0
        %v6153 = vadd.f32 %v1054, %v6152
        %v6154 = vpop.f32.mrb[0].mxu0
        %6155 = vmatprep.mubr.f32.mxu0 0.0
        %6156 = vmatmul.mubr.f32.gmra.mrb[0].mxu0 %v6032
        %v6157 = vpop.f32.mrb[0].mxu0
        %v6158 = vadd.f32 %v1059, %v6157
        %v6159 = vpop.f32.mrb[0].mxu0
        %6160 = vmatprep.mubr.f32.mxu0 0.0
        %6161 = vmatmul.mubr.f32.gmra.mrb[0].mxu0 %v6035
        %v6162 = vpop.f32.mrb[0].mxu0
        %v6163 = vadd.f32 %v1064, %v6162
        %v6164 = vpop.f32.mrb[0].mxu0
        %6165 = vmatprep.mubr.f32.mxu0 0.0
        %6166 = vmatmul.mubr.f32.gmra.mrb[0].mxu0 %v6038
        %v6167 = vpop.f32.mrb[0].mxu0
        %v6168 = vadd.f32 %v1069, %v6167
        %v6169 = vpop.f32.mrb[0].mxu0
        %6170 = vmatprep.mubr.f32.mxu0 0.0
        %6171 = vmatmul.mubr.f32.gmra.mrb[0].mxu0 %v6041
        %v6172 = vpop.f32.mrb[0].mxu0
        %v6173 = vadd.f32 %v1074, %v6172
        %v6174 = vpop.f32.mrb[0].mxu0
        %6175 = vmatprep.mubr.f32.mxu0 0.0
        %6176 = vmatmul.mubr.f32.gmra.mrb[0].mxu0 %v6044
        %v6177 = vpop.f32.mrb[0].mxu0
        %v6178 = vadd.f32 %v1079, %v6177
        %v6179 = vpop.f32.mrb[0].mxu0
        %6180 = vmatprep.mubr.f32.mxu0 0.0
        %6181 = vmatmul.mubr.f32.gmra.mrb[0].mxu0 %v6047
        %v6182 = vpop.f32.mrb[0].mxu0
        %v6183 = vadd.f32 %v1084, %v6182
        %v6184 = vpop.f32.mrb[0].mxu0
        %6185 = vmatprep.mubr.f32.mxu0 0.0
        %6186 = vmatmul.mubr.f32.gmra.mrb[0].mxu0 %v6050
        %v6187 = vpop.f32.mrb[0].mxu0
        %v6188 = vadd.f32 %v1089, %v6187
        %v6189 = vpop.f32.mrb[0].mxu0
        %6190 = vmatprep.mubr.f32.mxu0 0.0
        %6191 = vmatmul.mubr.f32.gmra.mrb[0].mxu0 %v6053
        %v6192 = vpop.f32.mrb[0].mxu0
        %v6193 = vadd.f32 %v1094, %v6192
        %v6194 = vpop.f32.mrb[0].mxu0
        %6195 = vmatprep.mubr.f32.mxu0 0.0
        %6196 = vmatmul.mubr.f32.gmra.mrb[0].mxu0 %v6056
        %v6197 = vpop.f32.mrb[0].mxu0
        %v6198 = vadd.f32 %v1099, %v6197
        %v6199 = vpop.f32.mrb[0].mxu0
        %6200 = vmatprep.mubr.f32.mxu0 0.0
        %6201 = vmatmul.mubr.f32.gmra.mrb[0].mxu0 %v6059
        %v6202 = vpop.f32.mrb[0].mxu0
        %v6203 = vadd.f32 %v1104, %v6202
        %v6204 = vpop.f32.mrb[0].mxu0
        %6205 = vdwg.mxu0
        %v6206 = vmax.f32 %v6128, 0.0
        %v6207 = vmax.f32 %v6133, 0.0
        %v6208 = vmax.f32 %v6138, 0.0
        %v6209 = vmax.f32 %v6143, 0.0
        %v6210 = vmax.f32 %v6148, 0.0
        %v6211 = vmax.f32 %v6153, 0.0
        %v6212 = vmax.f32 %v6158, 0.0
        %v6213 = vmax.f32 %v6163, 0.0
        %v6214 = vmax.f32 %v6168, 0.0
        %v6215 = vmax.f32 %v6173, 0.0
        %v6216 = vmax.f32 %v6178, 0.0
        %v6217 = vmax.f32 %v6183, 0.0
        %v6218 = vmax.f32 %v6188, 0.0
        %v6219 = vmax.f32 %v6193, 0.0
        %v6220 = vmax.f32 %v6198, 0.0
        %v6221 = vmax.f32 %v6203, 0.0
        %v6223 = vsel %vm913, %v6206, 0
        %v6226 = vsel %vm913, %v6207, 0
        %v6229 = vsel %vm913, %v6208, 0
        %v6232 = vsel %vm913, %v6209, 0
        %v6235 = vsel %vm913, %v6210, 0
        %v6238 = vsel %vm913, %v6211, 0
        %v6241 = vsel %vm913, %v6212, 0
        %v6244 = vsel %vm913, %v6213, 0
        %v6247 = vsel %vm913, %v6214, 0
        %v6250 = vsel %vm913, %v6215, 0
        %v6253 = vsel %vm913, %v6216, 0
        %v6256 = vsel %vm913, %v6217, 0
        %v6259 = vsel %vm913, %v6218, 0
        %v6262 = vsel %vm913, %v6219, 0
        %v6265 = vsel %vm913, %v6220, 0
        %v6268 = vsel %vm913, %v6221, 0
        %6270 = vmatprep.subr.mxu0 0.0
        %6271 = vmatpush1.msra.mxu0 %v893
        %6272 = vmatprep.subr.mxu0 0.0
        %6273 = vmatpush1.msra.mxu0 %v894
        %6274 = vmatprep.subr.mxu0 0.0
        %6275 = vmatpush1.msra.mxu0 %v895
        %6276 = vmatprep.subr.mxu0 0.0
        %6277 = vmatpush1.msra.mxu0 %v896
        %6278 = vmatprep.subr.mxu0 0.0
        %6279 = vmatpush1.msra.mxu0 0.0
        %6280 = vmatprep.subr.mxu0 0.0
        %6281 = vmatpush1.msra.mxu0 0.0
        %6282 = vmatprep.subr.mxu0 0.0
        %6283 = vmatpush1.msra.mxu0 0.0
        %6284 = vmatprep.subr.mxu0 0.0
        %6285 = vmatpush1.msra.mxu0 0.0
        %6286 = vmatprep.subr.mxu0 0.0
        %6287 = vmatpush1.msra.mxu0 0.0
        %6288 = vmatprep.subr.mxu0 0.0
        %6289 = vmatpush1.msra.mxu0 0.0
        %6290 = vmatprep.subr.mxu0 0.0
        %6291 = vmatpush1.msra.mxu0 0.0
        %6292 = vmatprep.subr.mxu0 0.0
        %6293 = vmatpush1.msra.mxu0 0.0
        %6294 = vmatprep.subr.mxu0 0.0
        %6295 = vmatpush1.msra.mxu0 0.0
        %6296 = vmatprep.subr.mxu0 0.0
        %6297 = vmatpush1.msra.mxu0 0.0
        %6298 = vmatprep.subr.mxu0 0.0
        %6299 = vmatpush1.msra.mxu0 0.0
        %6300 = vmatprep.subr.mxu0 0.0
        %6301 = vmatpush1.msra.mxu0 0.0
        %6302 = vmatprep.subr.mxu0 0.0
        %6303 = vmatpush1.msra.mxu0 0.0
        %6304 = vmatprep.subr.mxu0 0.0
        %6305 = vmatpush1.msra.mxu0 0.0
        %6306 = vmatprep.subr.mxu0 0.0
        %6307 = vmatpush1.msra.mxu0 0.0
        %6308 = vmatprep.subr.mxu0 0.0
        %6309 = vmatpush1.msra.mxu0 0.0
        %6310 = vmatprep.subr.mxu0 0.0
        %6311 = vmatpush1.msra.mxu0 0.0
        %6312 = vmatprep.subr.mxu0 0.0
        %6313 = vmatpush1.msra.mxu0 0.0
        %6314 = vmatprep.subr.mxu0 0.0
        %6315 = vmatpush1.msra.mxu0 0.0
        %6316 = vmatprep.subr.mxu0 0.0
        %6317 = vmatpush1.msra.mxu0 0.0
        %6318 = vmatprep.subr.mxu0 0.0
        %6319 = vmatpush1.msra.mxu0 0.0
        %6320 = vmatprep.subr.mxu0 0.0
        %6321 = vmatpush1.msra.mxu0 0.0
        %6322 = vmatprep.subr.mxu0 0.0
        %6323 = vmatpush1.msra.mxu0 0.0
        %6324 = vmatprep.subr.mxu0 0.0
        %6325 = vmatpush1.msra.mxu0 0.0
        %6326 = vmatprep.subr.mxu0 0.0
        %6327 = vmatpush1.msra.mxu0 0.0
        %6328 = vmatprep.subr.mxu0 0.0
        %6329 = vmatpush1.msra.mxu0 0.0
        %6330 = vmatprep.subr.mxu0 0.0
        %6331 = vmatpush1.msra.mxu0 0.0
        %6332 = vmatprep.subr.mxu0 0.0
        %6333 = vmatpush1.msra.mxu0 0.0
        %6334 = vmatprep.mubr.f32.mxu0 0.0
        %6335 = vmatmul.mubr.f32.gmra.mrb[0].mxu0 %v6223
        %v6336 = vpop.f32.mrb[0].mxu0
        %v6337 = vadd.f32 %v1336, %v6336
        %v6338 = vpop.f32.mrb[0].mxu0
        %6339 = vmatprep.mubr.f32.mxu0 0.0
        %6340 = vmatmul.mubr.f32.gmra.mrb[0].mxu0 %v6226
        %v6341 = vpop.f32.mrb[0].mxu0
        %v6342 = vadd.f32 %v1336, %v6341
        %v6343 = vpop.f32.mrb[0].mxu0
        %6344 = vmatprep.mubr.f32.mxu0 0.0
        %6345 = vmatmul.mubr.f32.gmra.mrb[0].mxu0 %v6229
        %v6346 = vpop.f32.mrb[0].mxu0
        %v6347 = vadd.f32 %v1336, %v6346
        %v6348 = vpop.f32.mrb[0].mxu0
        %6349 = vmatprep.mubr.f32.mxu0 0.0
        %6350 = vmatmul.mubr.f32.gmra.mrb[0].mxu0 %v6232
        %v6351 = vpop.f32.mrb[0].mxu0
        %v6352 = vadd.f32 %v1336, %v6351
        %v6353 = vpop.f32.mrb[0].mxu0
        %6354 = vmatprep.mubr.f32.mxu0 0.0
        %6355 = vmatmul.mubr.f32.gmra.mrb[0].mxu0 %v6235
        %v6356 = vpop.f32.mrb[0].mxu0
        %v6357 = vadd.f32 %v1336, %v6356
        %v6358 = vpop.f32.mrb[0].mxu0
        %6359 = vmatprep.mubr.f32.mxu0 0.0
        %6360 = vmatmul.mubr.f32.gmra.mrb[0].mxu0 %v6238
        %v6361 = vpop.f32.mrb[0].mxu0
        %v6362 = vadd.f32 %v1336, %v6361
        %v6363 = vpop.f32.mrb[0].mxu0
        %6364 = vmatprep.mubr.f32.mxu0 0.0
        %6365 = vmatmul.mubr.f32.gmra.mrb[0].mxu0 %v6241
        %v6366 = vpop.f32.mrb[0].mxu0
        %v6367 = vadd.f32 %v1336, %v6366
        %v6368 = vpop.f32.mrb[0].mxu0
        %6369 = vmatprep.mubr.f32.mxu0 0.0
        %6370 = vmatmul.mubr.f32.gmra.mrb[0].mxu0 %v6244
        %v6371 = vpop.f32.mrb[0].mxu0
        %v6372 = vadd.f32 %v1336, %v6371
        %v6373 = vpop.f32.mrb[0].mxu0
        %6374 = vmatprep.mubr.f32.mxu0 0.0
        %6375 = vmatmul.mubr.f32.gmra.mrb[0].mxu0 %v6247
        %v6376 = vpop.f32.mrb[0].mxu0
        %v6377 = vadd.f32 %v1336, %v6376
        %v6378 = vpop.f32.mrb[0].mxu0
        %6379 = vmatprep.mubr.f32.mxu0 0.0
        %6380 = vmatmul.mubr.f32.gmra.mrb[0].mxu0 %v6250
        %v6381 = vpop.f32.mrb[0].mxu0
        %v6382 = vadd.f32 %v1336, %v6381
        %v6383 = vpop.f32.mrb[0].mxu0
        %6384 = vmatprep.mubr.f32.mxu0 0.0
        %6385 = vmatmul.mubr.f32.gmra.mrb[0].mxu0 %v6253
        %v6386 = vpop.f32.mrb[0].mxu0
        %v6387 = vadd.f32 %v1336, %v6386
        %v6388 = vpop.f32.mrb[0].mxu0
        %6389 = vmatprep.mubr.f32.mxu0 0.0
        %6390 = vmatmul.mubr.f32.gmra.mrb[0].mxu0 %v6256
        %v6391 = vpop.f32.mrb[0].mxu0
        %v6392 = vadd.f32 %v1336, %v6391
        %v6393 = vpop.f32.mrb[0].mxu0
        %6394 = vmatprep.mubr.f32.mxu0 0.0
        %6395 = vmatmul.mubr.f32.gmra.mrb[0].mxu0 %v6259
        %v6396 = vpop.f32.mrb[0].mxu0
        %v6397 = vadd.f32 %v1336, %v6396
        %v6398 = vpop.f32.mrb[0].mxu0
        %6399 = vmatprep.mubr.f32.mxu0 0.0
        %6400 = vmatmul.mubr.f32.gmra.mrb[0].mxu0 %v6262
        %v6401 = vpop.f32.mrb[0].mxu0
        %v6402 = vadd.f32 %v1336, %v6401
        %v6403 = vpop.f32.mrb[0].mxu0
        %6404 = vmatprep.mubr.f32.mxu0 0.0
        %6405 = vmatmul.mubr.f32.gmra.mrb[0].mxu0 %v6265
        %v6406 = vpop.f32.mrb[0].mxu0
        %v6407 = vadd.f32 %v1336, %v6406
        %v6408 = vpop.f32.mrb[0].mxu0
        %6409 = vmatprep.mubr.f32.mxu0 0.0
        %6410 = vmatmul.mubr.f32.gmra.mrb[0].mxu0 %v6268
        %v6411 = vpop.f32.mrb[0].mxu0
        %v6412 = vadd.f32 %v1336, %v6411
        %v6413 = vpop.f32.mrb[0].mxu0
        %6414 = vdwg.mxu0
        %v6415 = vmax.f32 %v6337, 0.0
        %v6416 = vmax.f32 %v6342, 0.0
        %v6417 = vmax.f32 %v6347, 0.0
        %v6418 = vmax.f32 %v6352, 0.0
        %v6419 = vmax.f32 %v6357, 0.0
        %v6420 = vmax.f32 %v6362, 0.0
        %v6421 = vmax.f32 %v6367, 0.0
        %v6422 = vmax.f32 %v6372, 0.0
        %v6423 = vmax.f32 %v6377, 0.0
        %v6424 = vmax.f32 %v6382, 0.0
        %v6425 = vmax.f32 %v6387, 0.0
        %v6426 = vmax.f32 %v6392, 0.0
        %v6427 = vmax.f32 %v6397, 0.0
        %v6428 = vmax.f32 %v6402, 0.0
        %v6429 = vmax.f32 %v6407, 0.0
        %v6430 = vmax.f32 %v6412, 0.0
        %v6432 = vsel %vm913, %v6415, 0
        %v6435 = vsel %vm913, %v6416, 0
        %v6438 = vsel %vm913, %v6417, 0
        %v6441 = vsel %vm913, %v6418, 0
        %v6444 = vsel %vm913, %v6419, 0
        %v6447 = vsel %vm913, %v6420, 0
        %v6450 = vsel %vm913, %v6421, 0
        %v6453 = vsel %vm913, %v6422, 0
        %v6456 = vsel %vm913, %v6423, 0
        %v6459 = vsel %vm913, %v6424, 0
        %v6462 = vsel %vm913, %v6425, 0
        %v6465 = vsel %vm913, %v6426, 0
        %v6468 = vsel %vm913, %v6427, 0
        %v6471 = vsel %vm913, %v6428, 0
        %v6474 = vsel %vm913, %v6429, 0
        %v6477 = vsel %vm913, %v6430, 0
        %6479 = vmatprep.subr.mxu0 0.0
        %6480 = vmatpush1.msra.mxu0 %v897
        %6481 = vmatprep.subr.mxu0 0.0
        %6482 = vmatpush1.msra.mxu0 %v898
        %6483 = vmatprep.subr.mxu0 0.0
        %6484 = vmatpush1.msra.mxu0 %v899
        %6485 = vmatprep.subr.mxu0 0.0
        %6486 = vmatpush1.msra.mxu0 %v900
        %6487 = vmatprep.subr.mxu0 0.0
        %6488 = vmatpush1.msra.mxu0 0.0
        %6489 = vmatprep.subr.mxu0 0.0
        %6490 = vmatpush1.msra.mxu0 0.0
        %6491 = vmatprep.subr.mxu0 0.0
        %6492 = vmatpush1.msra.mxu0 0.0
        %6493 = vmatprep.subr.mxu0 0.0
        %6494 = vmatpush1.msra.mxu0 0.0
        %6495 = vmatprep.subr.mxu0 0.0
        %6496 = vmatpush1.msra.mxu0 0.0
        %6497 = vmatprep.subr.mxu0 0.0
        %6498 = vmatpush1.msra.mxu0 0.0
        %6499 = vmatprep.subr.mxu0 0.0
        %6500 = vmatpush1.msra.mxu0 0.0
        %6501 = vmatprep.subr.mxu0 0.0
        %6502 = vmatpush1.msra.mxu0 0.0
        %6503 = vmatprep.subr.mxu0 0.0
        %6504 = vmatpush1.msra.mxu0 0.0
        %6505 = vmatprep.subr.mxu0 0.0
        %6506 = vmatpush1.msra.mxu0 0.0
        %6507 = vmatprep.subr.mxu0 0.0
        %6508 = vmatpush1.msra.mxu0 0.0
        %6509 = vmatprep.subr.mxu0 0.0
        %6510 = vmatpush1.msra.mxu0 0.0
        %6511 = vmatprep.subr.mxu0 0.0
        %6512 = vmatpush1.msra.mxu0 0.0
        %6513 = vmatprep.subr.mxu0 0.0
        %6514 = vmatpush1.msra.mxu0 0.0
        %6515 = vmatprep.subr.mxu0 0.0
        %6516 = vmatpush1.msra.mxu0 0.0
        %6517 = vmatprep.subr.mxu0 0.0
        %6518 = vmatpush1.msra.mxu0 0.0
        %6519 = vmatprep.subr.mxu0 0.0
        %6520 = vmatpush1.msra.mxu0 0.0
        %6521 = vmatprep.subr.mxu0 0.0
        %6522 = vmatpush1.msra.mxu0 0.0
        %6523 = vmatprep.subr.mxu0 0.0
        %6524 = vmatpush1.msra.mxu0 0.0
        %6525 = vmatprep.subr.mxu0 0.0
        %6526 = vmatpush1.msra.mxu0 0.0
        %6527 = vmatprep.subr.mxu0 0.0
        %6528 = vmatpush1.msra.mxu0 0.0
        %6529 = vmatprep.subr.mxu0 0.0
        %6530 = vmatpush1.msra.mxu0 0.0
        %6531 = vmatprep.subr.mxu0 0.0
        %6532 = vmatpush1.msra.mxu0 0.0
        %6533 = vmatprep.subr.mxu0 0.0
        %6534 = vmatpush1.msra.mxu0 0.0
        %6535 = vmatprep.subr.mxu0 0.0
        %6536 = vmatpush1.msra.mxu0 0.0
        %6537 = vmatprep.subr.mxu0 0.0
        %6538 = vmatpush1.msra.mxu0 0.0
        %6539 = vmatprep.subr.mxu0 0.0
        %6540 = vmatpush1.msra.mxu0 0.0
        %6541 = vmatprep.subr.mxu0 0.0
        %6542 = vmatpush1.msra.mxu0 0.0
        %6543 = vmatprep.mubr.f32.mxu0 0.0
        %6544 = vmatmul.mubr.f32.gmra.mrb[0].mxu0 %v6432
        %v6545 = vpop.f32.mrb[0].mxu0
        %v6546 = vadd.f32 0.0, %v6545
        %v6547 = vpop.f32.mrb[0].mxu0
        %6548 = vmatprep.mubr.f32.mxu0 0.0
        %6549 = vmatmul.mubr.f32.gmra.mrb[0].mxu0 %v6435
        %v6550 = vpop.f32.mrb[0].mxu0
        %v6551 = vadd.f32 0.0, %v6550
        %v6552 = vpop.f32.mrb[0].mxu0
        %6553 = vmatprep.mubr.f32.mxu0 0.0
        %6554 = vmatmul.mubr.f32.gmra.mrb[0].mxu0 %v6438
        %v6555 = vpop.f32.mrb[0].mxu0
        %v6556 = vadd.f32 0.0, %v6555
        %v6557 = vpop.f32.mrb[0].mxu0
        %6558 = vmatprep.mubr.f32.mxu0 0.0
        %6559 = vmatmul.mubr.f32.gmra.mrb[0].mxu0 %v6441
        %v6560 = vpop.f32.mrb[0].mxu0
        %v6561 = vadd.f32 0.0, %v6560
        %v6562 = vpop.f32.mrb[0].mxu0
        %6563 = vmatprep.mubr.f32.mxu0 0.0
        %6564 = vmatmul.mubr.f32.gmra.mrb[0].mxu0 %v6444
        %v6565 = vpop.f32.mrb[0].mxu0
        %v6566 = vadd.f32 0.0, %v6565
        %v6567 = vpop.f32.mrb[0].mxu0
        %6568 = vmatprep.mubr.f32.mxu0 0.0
        %6569 = vmatmul.mubr.f32.gmra.mrb[0].mxu0 %v6447
        %v6570 = vpop.f32.mrb[0].mxu0
        %v6571 = vadd.f32 0.0, %v6570
        %v6572 = vpop.f32.mrb[0].mxu0
        %6573 = vmatprep.mubr.f32.mxu0 0.0
        %6574 = vmatmul.mubr.f32.gmra.mrb[0].mxu0 %v6450
        %v6575 = vpop.f32.mrb[0].mxu0
        %v6576 = vadd.f32 0.0, %v6575
        %v6577 = vpop.f32.mrb[0].mxu0
        %6578 = vmatprep.mubr.f32.mxu0 0.0
        %6579 = vmatmul.mubr.f32.gmra.mrb[0].mxu0 %v6453
        %v6580 = vpop.f32.mrb[0].mxu0
        %v6581 = vadd.f32 0.0, %v6580
        %v6582 = vpop.f32.mrb[0].mxu0
        %6583 = vmatprep.mubr.f32.mxu0 0.0
        %6584 = vmatmul.mubr.f32.gmra.mrb[0].mxu0 %v6456
        %v6585 = vpop.f32.mrb[0].mxu0
        %v6586 = vadd.f32 0.0, %v6585
        %v6587 = vpop.f32.mrb[0].mxu0
        %6588 = vmatprep.mubr.f32.mxu0 0.0
        %6589 = vmatmul.mubr.f32.gmra.mrb[0].mxu0 %v6459
        %v6590 = vpop.f32.mrb[0].mxu0
        %v6591 = vadd.f32 0.0, %v6590
        %v6592 = vpop.f32.mrb[0].mxu0
        %6593 = vmatprep.mubr.f32.mxu0 0.0
        %6594 = vmatmul.mubr.f32.gmra.mrb[0].mxu0 %v6462
        %v6595 = vpop.f32.mrb[0].mxu0
        %v6596 = vadd.f32 0.0, %v6595
        %v6597 = vpop.f32.mrb[0].mxu0
        %6598 = vmatprep.mubr.f32.mxu0 0.0
        %6599 = vmatmul.mubr.f32.gmra.mrb[0].mxu0 %v6465
        %v6600 = vpop.f32.mrb[0].mxu0
        %v6601 = vadd.f32 0.0, %v6600
        %v6602 = vpop.f32.mrb[0].mxu0
        %6603 = vmatprep.mubr.f32.mxu0 0.0
        %6604 = vmatmul.mubr.f32.gmra.mrb[0].mxu0 %v6468
        %v6605 = vpop.f32.mrb[0].mxu0
        %v6606 = vadd.f32 0.0, %v6605
        %v6607 = vpop.f32.mrb[0].mxu0
        %6608 = vmatprep.mubr.f32.mxu0 0.0
        %6609 = vmatmul.mubr.f32.gmra.mrb[0].mxu0 %v6471
        %v6610 = vpop.f32.mrb[0].mxu0
        %v6611 = vadd.f32 0.0, %v6610
        %v6612 = vpop.f32.mrb[0].mxu0
        %6613 = vmatprep.mubr.f32.mxu0 0.0
        %6614 = vmatmul.mubr.f32.gmra.mrb[0].mxu0 %v6474
        %v6615 = vpop.f32.mrb[0].mxu0
        %v6616 = vadd.f32 0.0, %v6615
        %v6617 = vpop.f32.mrb[0].mxu0
        %6618 = vmatprep.mubr.f32.mxu0 0.0
        %6619 = vmatmul.mubr.f32.gmra.mrb[0].mxu0 %v6477
        %v6620 = vpop.f32.mrb[0].mxu0
        %v6621 = vadd.f32 0.0, %v6620
        %v6622 = vpop.f32.mrb[0].mxu0
        %6623 = vdwg.mxu0
        %v6624 = vmax.f32 %v5644, %v6546
        %v6625 = vmax.f32 %v5645, %v6551
        %v6626 = vmax.f32 %v5646, %v6556
        %v6627 = vmax.f32 %v5647, %v6561
        %v6628 = vmax.f32 %v5648, %v6566
        %v6629 = vmax.f32 %v5649, %v6571
        %v6630 = vmax.f32 %v5650, %v6576
        %v6631 = vmax.f32 %v5651, %v6581
        %v6632 = vmax.f32 %v5652, %v6586
        %v6633 = vmax.f32 %v5653, %v6591
        %v6634 = vmax.f32 %v5654, %v6596
        %v6635 = vmax.f32 %v5655, %v6601
        %v6636 = vmax.f32 %v5656, %v6606
        %v6637 = vmax.f32 %v5657, %v6611
        %v6638 = vmax.f32 %v5658, %v6616
        %v6639 = vmax.f32 %v5659, %v6621
        %v6640 = vsub.f32 %v5644, %v6624
        %v6641 = vsub.f32 %v5645, %v6625
        %v6642 = vsub.f32 %v5646, %v6626
        %v6643 = vsub.f32 %v5647, %v6627
        %v6644 = vsub.f32 %v5648, %v6628
        %v6645 = vsub.f32 %v5649, %v6629
        %v6646 = vsub.f32 %v5650, %v6630
        %v6647 = vsub.f32 %v5651, %v6631
        %v6648 = vsub.f32 %v5652, %v6632
        %v6649 = vsub.f32 %v5653, %v6633
        %v6650 = vsub.f32 %v5654, %v6634
        %v6651 = vsub.f32 %v5655, %v6635
        %v6652 = vsub.f32 %v5656, %v6636
        %v6653 = vsub.f32 %v5657, %v6637
        %v6654 = vsub.f32 %v5658, %v6638
        %v6655 = vsub.f32 %v5659, %v6639
        %v6656 = vmul.f32 %v6640, 1.442695
        %v6657 = vpow.pop %v6656
        %v6658 = vmul.f32 %v6641, 1.442695
        %v6659 = vpow.pop %v6658
        %v6660 = vmul.f32 %v6642, 1.442695
        %v6661 = vpow.pop %v6660
        %v6662 = vmul.f32 %v6643, 1.442695
        %v6663 = vpow.pop %v6662
        %v6664 = vmul.f32 %v6644, 1.442695
        %v6665 = vpow.pop %v6664
        %v6666 = vmul.f32 %v6645, 1.442695
        %v6667 = vpow.pop %v6666
        %v6668 = vmul.f32 %v6646, 1.442695
        %v6669 = vpow.pop %v6668
        %v6670 = vmul.f32 %v6647, 1.442695
        %v6671 = vpow.pop %v6670
        %v6672 = vmul.f32 %v6648, 1.442695
        %v6673 = vpow.pop %v6672
        %v6674 = vmul.f32 %v6649, 1.442695
        %v6675 = vpow.pop %v6674
        %v6676 = vmul.f32 %v6650, 1.442695
        %v6677 = vpow.pop %v6676
        %v6678 = vmul.f32 %v6651, 1.442695
        %v6679 = vpow.pop %v6678
        %v6680 = vmul.f32 %v6652, 1.442695
        %v6681 = vpow.pop %v6680
        %v6682 = vmul.f32 %v6653, 1.442695
        %v6683 = vpow.pop %v6682
        %v6684 = vmul.f32 %v6654, 1.442695
        %v6685 = vpow.pop %v6684
        %v6686 = vmul.f32 %v6655, 1.442695
        %v6687 = vpow.pop %v6686
        %v6688 = vsub.f32 %v6546, %v6624
        %v6689 = vsub.f32 %v6551, %v6625
        %v6690 = vsub.f32 %v6556, %v6626
        %v6691 = vsub.f32 %v6561, %v6627
        %v6692 = vsub.f32 %v6566, %v6628
        %v6693 = vsub.f32 %v6571, %v6629
        %v6694 = vsub.f32 %v6576, %v6630
        %v6695 = vsub.f32 %v6581, %v6631
        %v6696 = vsub.f32 %v6586, %v6632
        %v6697 = vsub.f32 %v6591, %v6633
        %v6698 = vsub.f32 %v6596, %v6634
        %v6699 = vsub.f32 %v6601, %v6635
        %v6700 = vsub.f32 %v6606, %v6636
        %v6701 = vsub.f32 %v6611, %v6637
        %v6702 = vsub.f32 %v6616, %v6638
        %v6703 = vsub.f32 %v6621, %v6639
        %v6704 = vmul.f32 %v6688, 1.442695
        %v6705 = vpow.pop %v6704
        %v6706 = vmul.f32 %v6689, 1.442695
        %v6707 = vpow.pop %v6706
        %v6708 = vmul.f32 %v6690, 1.442695
        %v6709 = vpow.pop %v6708
        %v6710 = vmul.f32 %v6691, 1.442695
        %v6711 = vpow.pop %v6710
        %v6712 = vmul.f32 %v6692, 1.442695
        %v6713 = vpow.pop %v6712
        %v6714 = vmul.f32 %v6693, 1.442695
        %v6715 = vpow.pop %v6714
        %v6716 = vmul.f32 %v6694, 1.442695
        %v6717 = vpow.pop %v6716
        %v6718 = vmul.f32 %v6695, 1.442695
        %v6719 = vpow.pop %v6718
        %v6720 = vmul.f32 %v6696, 1.442695
        %v6721 = vpow.pop %v6720
        %v6722 = vmul.f32 %v6697, 1.442695
        %v6723 = vpow.pop %v6722
        %v6724 = vmul.f32 %v6698, 1.442695
        %v6725 = vpow.pop %v6724
        %v6726 = vmul.f32 %v6699, 1.442695
        %v6727 = vpow.pop %v6726
        %v6728 = vmul.f32 %v6700, 1.442695
        %v6729 = vpow.pop %v6728
        %v6730 = vmul.f32 %v6701, 1.442695
        %v6731 = vpow.pop %v6730
        %v6732 = vmul.f32 %v6702, 1.442695
        %v6733 = vpow.pop %v6732
        %v6734 = vmul.f32 %v6703, 1.442695
        %v6735 = vpow.pop %v6734
        %v6736 = vmul.f32 %v6657, %v5772
        %v6737 = vmul.f32 %v6659, %v5773
        %v6738 = vmul.f32 %v6661, %v5774
        %v6739 = vmul.f32 %v6663, %v5775
        %v6740 = vmul.f32 %v6665, %v5776
        %v6741 = vmul.f32 %v6667, %v5777
        %v6742 = vmul.f32 %v6669, %v5778
        %v6743 = vmul.f32 %v6671, %v5779
        %v6744 = vmul.f32 %v6673, %v5780
        %v6745 = vmul.f32 %v6675, %v5781
        %v6746 = vmul.f32 %v6677, %v5782
        %v6747 = vmul.f32 %v6679, %v5783
        %v6748 = vmul.f32 %v6681, %v5784
        %v6749 = vmul.f32 %v6683, %v5785
        %v6750 = vmul.f32 %v6685, %v5786
        %v6751 = vmul.f32 %v6687, %v5787
        %v6752 = vadd.f32 %v6736, %v6705
        %v6753 = vadd.f32 %v6737, %v6707
        %v6754 = vadd.f32 %v6738, %v6709
        %v6755 = vadd.f32 %v6739, %v6711
        %v6756 = vadd.f32 %v6740, %v6713
        %v6757 = vadd.f32 %v6741, %v6715
        %v6758 = vadd.f32 %v6742, %v6717
        %v6759 = vadd.f32 %v6743, %v6719
        %v6760 = vadd.f32 %v6744, %v6721
        %v6761 = vadd.f32 %v6745, %v6723
        %v6762 = vadd.f32 %v6746, %v6725
        %v6763 = vadd.f32 %v6747, %v6727
        %v6764 = vadd.f32 %v6748, %v6729
        %v6765 = vadd.f32 %v6749, %v6731
        %v6766 = vadd.f32 %v6750, %v6733
        %v6767 = vadd.f32 %v6751, %v6735
        %6769 = vset.pattern.permute.xlu0 0
        %6770 = vperm.xlu0 %6769, %v6657
        %v6771 = vpop.permute.xlu0 %6770
        %6774 = vset.pattern.permute.xlu0 0
        %6775 = vperm.xlu0 %6774, %v6659
        %v6776 = vpop.permute.xlu0 %6775
        %6779 = vset.pattern.permute.xlu0 0
        %6780 = vperm.xlu0 %6779, %v6661
        %v6781 = vpop.permute.xlu0 %6780
        %6784 = vset.pattern.permute.xlu0 0
        %6785 = vperm.xlu0 %6784, %v6663
        %v6786 = vpop.permute.xlu0 %6785
        %6789 = vset.pattern.permute.xlu0 0
        %6790 = vperm.xlu0 %6789, %v6665
        %v6791 = vpop.permute.xlu0 %6790
        %6794 = vset.pattern.permute.xlu0 0
        %6795 = vperm.xlu0 %6794, %v6667
        %v6796 = vpop.permute.xlu0 %6795
        %6799 = vset.pattern.permute.xlu0 0
        %6800 = vperm.xlu0 %6799, %v6669
        %v6801 = vpop.permute.xlu0 %6800
        %6804 = vset.pattern.permute.xlu0 0
        %6805 = vperm.xlu0 %6804, %v6671
        %v6806 = vpop.permute.xlu0 %6805
        %6809 = vset.pattern.permute.xlu0 0
        %6810 = vperm.xlu0 %6809, %v6673
        %v6811 = vpop.permute.xlu0 %6810
        %6814 = vset.pattern.permute.xlu0 0
        %6815 = vperm.xlu0 %6814, %v6675
        %v6816 = vpop.permute.xlu0 %6815
        %6819 = vset.pattern.permute.xlu0 0
        %6820 = vperm.xlu0 %6819, %v6677
        %v6821 = vpop.permute.xlu0 %6820
        %6824 = vset.pattern.permute.xlu0 0
        %6825 = vperm.xlu0 %6824, %v6679
        %v6826 = vpop.permute.xlu0 %6825
        %6829 = vset.pattern.permute.xlu0 0
        %6830 = vperm.xlu0 %6829, %v6681
        %v6831 = vpop.permute.xlu0 %6830
        %6834 = vset.pattern.permute.xlu0 0
        %6835 = vperm.xlu0 %6834, %v6683
        %v6836 = vpop.permute.xlu0 %6835
        %6839 = vset.pattern.permute.xlu0 0
        %6840 = vperm.xlu0 %6839, %v6685
        %v6841 = vpop.permute.xlu0 %6840
        %6844 = vset.pattern.permute.xlu0 0
        %6845 = vperm.xlu0 %6844, %v6687
        %v6846 = vpop.permute.xlu0 %6845
        %v6848 = vmul.f32 %v6771, %v5980
        %v6849 = vmul.f32 %v6776, %v5981
        %v6850 = vmul.f32 %v6781, %v5982
        %v6851 = vmul.f32 %v6786, %v5983
        %v6852 = vmul.f32 %v6791, %v5984
        %v6853 = vmul.f32 %v6796, %v5985
        %v6854 = vmul.f32 %v6801, %v5986
        %v6855 = vmul.f32 %v6806, %v5987
        %v6856 = vmul.f32 %v6811, %v5988
        %v6857 = vmul.f32 %v6816, %v5989
        %v6858 = vmul.f32 %v6821, %v5990
        %v6859 = vmul.f32 %v6826, %v5991
        %v6860 = vmul.f32 %v6831, %v5992
        %v6861 = vmul.f32 %v6836, %v5993
        %v6862 = vmul.f32 %v6841, %v5994
        %v6863 = vmul.f32 %v6846, %v5995
        %6865 = vset.pattern.permute.xlu0 0
        %6866 = vperm.xlu0 %6865, %v6705
        %v6867 = vpop.permute.xlu0 %6866
        %6870 = vset.pattern.permute.xlu0 0
        %6871 = vperm.xlu0 %6870, %v6707
        %v6872 = vpop.permute.xlu0 %6871
        %6875 = vset.pattern.permute.xlu0 0
        %6876 = vperm.xlu0 %6875, %v6709
        %v6877 = vpop.permute.xlu0 %6876
        %6880 = vset.pattern.permute.xlu0 0
        %6881 = vperm.xlu0 %6880, %v6711
        %v6882 = vpop.permute.xlu0 %6881
        %6885 = vset.pattern.permute.xlu0 0
        %6886 = vperm.xlu0 %6885, %v6713
        %v6887 = vpop.permute.xlu0 %6886
        %6890 = vset.pattern.permute.xlu0 0
        %6891 = vperm.xlu0 %6890, %v6715
        %v6892 = vpop.permute.xlu0 %6891
        %6895 = vset.pattern.permute.xlu0 0
        %6896 = vperm.xlu0 %6895, %v6717
        %v6897 = vpop.permute.xlu0 %6896
        %6900 = vset.pattern.permute.xlu0 0
        %6901 = vperm.xlu0 %6900, %v6719
        %v6902 = vpop.permute.xlu0 %6901
        %6905 = vset.pattern.permute.xlu0 0
        %6906 = vperm.xlu0 %6905, %v6721
        %v6907 = vpop.permute.xlu0 %6906
        %6910 = vset.pattern.permute.xlu0 0
        %6911 = vperm.xlu0 %6910, %v6723
        %v6912 = vpop.permute.xlu0 %6911
        %6915 = vset.pattern.permute.xlu0 0
        %6916 = vperm.xlu0 %6915, %v6725
        %v6917 = vpop.permute.xlu0 %6916
        %6920 = vset.pattern.permute.xlu0 0
        %6921 = vperm.xlu0 %6920, %v6727
        %v6922 = vpop.permute.xlu0 %6921
        %6925 = vset.pattern.permute.xlu0 0
        %6926 = vperm.xlu0 %6925, %v6729
        %v6927 = vpop.permute.xlu0 %6926
        %6930 = vset.pattern.permute.xlu0 0
        %6931 = vperm.xlu0 %6930, %v6731
        %v6932 = vpop.permute.xlu0 %6931
        %6935 = vset.pattern.permute.xlu0 0
        %6936 = vperm.xlu0 %6935, %v6733
        %v6937 = vpop.permute.xlu0 %6936
        %6940 = vset.pattern.permute.xlu0 0
        %6941 = vperm.xlu0 %6940, %v6735
        %v6942 = vpop.permute.xlu0 %6941
        %v6944 = vmul.f32 %v6867, %v5997
        %v6945 = vmul.f32 %v6872, %v5998
        %v6946 = vmul.f32 %v6877, %v5999
        %v6947 = vmul.f32 %v6882, %v6000
        %v6948 = vmul.f32 %v6887, %v6001
        %v6949 = vmul.f32 %v6892, %v6002
        %v6950 = vmul.f32 %v6897, %v6003
        %v6951 = vmul.f32 %v6902, %v6004
        %v6952 = vmul.f32 %v6907, %v6005
        %v6953 = vmul.f32 %v6912, %v6006
        %v6954 = vmul.f32 %v6917, %v6007
        %v6955 = vmul.f32 %v6922, %v6008
        %v6956 = vmul.f32 %v6927, %v6009
        %v6957 = vmul.f32 %v6932, %v6010
        %v6958 = vmul.f32 %v6937, %v6011
        %v6959 = vmul.f32 %v6942, %v6012
        %v6960 = vadd.f32 %v6848, %v6944
        %v6961 = vadd.f32 %v6849, %v6945
        %v6962 = vadd.f32 %v6850, %v6946
        %v6963 = vadd.f32 %v6851, %v6947
        %v6964 = vadd.f32 %v6852, %v6948
        %v6965 = vadd.f32 %v6853, %v6949
        %v6966 = vadd.f32 %v6854, %v6950
        %v6967 = vadd.f32 %v6855, %v6951
        %v6968 = vadd.f32 %v6856, %v6952
        %v6969 = vadd.f32 %v6857, %v6953
        %v6970 = vadd.f32 %v6858, %v6954
        %v6971 = vadd.f32 %v6859, %v6955
        %v6972 = vadd.f32 %v6860, %v6956
        %v6973 = vadd.f32 %v6861, %v6957
        %v6974 = vadd.f32 %v6862, %v6958
        %v6975 = vadd.f32 %v6863, %v6959
        %s6976 = scalar_lea.vmem %s824, 768 [#allocation2]
        %v6977 = vld [vmem:[%s6976] sm:$0xff]
        %v6978 = vld [vmem:[%s6976 + $0x8] sm:$0xff]
        %v6979 = vld [vmem:[%s6976 + $0x10] sm:$0xff]
        %v6980 = vld [vmem:[%s6976 + $0x18] sm:$0xff]
        %v6981 = vld [vmem:[%s6976 + $0x20] sm:$0xff]
        %v6982 = vld [vmem:[%s6976 + $0x28] sm:$0xff]
        %v6983 = vld [vmem:[%s6976 + $0x30] sm:$0xff]
        %v6984 = vld [vmem:[%s6976 + $0x38] sm:$0xff]
        %v6985 = vld [vmem:[%s6976 + $0x40] sm:$0xff]
        %v6986 = vld [vmem:[%s6976 + $0x48] sm:$0xff]
        %v6987 = vld [vmem:[%s6976 + $0x50] sm:$0xff]
        %v6988 = vld [vmem:[%s6976 + $0x58] sm:$0xff]
        %v6989 = vld [vmem:[%s6976 + $0x60] sm:$0xff]
        %v6990 = vld [vmem:[%s6976 + $0x68] sm:$0xff]
        %v6991 = vld [vmem:[%s6976 + $0x70] sm:$0xff]
        %v6992 = vld [vmem:[%s6976 + $0x78] sm:$0xff]
        %v6994 = vsel %vm913, %v6977, 0
        %v6997 = vsel %vm913, %v6978, 0
        %v7000 = vsel %vm913, %v6979, 0
        %v7003 = vsel %vm913, %v6980, 0
        %v7006 = vsel %vm913, %v6981, 0
        %v7009 = vsel %vm913, %v6982, 0
        %v7012 = vsel %vm913, %v6983, 0
        %v7015 = vsel %vm913, %v6984, 0
        %v7018 = vsel %vm913, %v6985, 0
        %v7021 = vsel %vm913, %v6986, 0
        %v7024 = vsel %vm913, %v6987, 0
        %v7027 = vsel %vm913, %v6988, 0
        %v7030 = vsel %vm913, %v6989, 0
        %v7033 = vsel %vm913, %v6990, 0
        %v7036 = vsel %vm913, %v6991, 0
        %v7039 = vsel %vm913, %v6992, 0
        %7041 = vmatprep.subr.mxu0 0.0
        %7042 = vmatpush1.msra.mxu0 %v889
        %7043 = vmatprep.subr.mxu0 0.0
        %7044 = vmatpush1.msra.mxu0 %v890
        %7045 = vmatprep.subr.mxu0 0.0
        %7046 = vmatpush1.msra.mxu0 %v891
        %7047 = vmatprep.subr.mxu0 0.0
        %7048 = vmatpush1.msra.mxu0 %v892
        %7049 = vmatprep.subr.mxu0 0.0
        %7050 = vmatpush1.msra.mxu0 0.0
        %7051 = vmatprep.subr.mxu0 0.0
        %7052 = vmatpush1.msra.mxu0 0.0
        %7053 = vmatprep.subr.mxu0 0.0
        %7054 = vmatpush1.msra.mxu0 0.0
        %7055 = vmatprep.subr.mxu0 0.0
        %7056 = vmatpush1.msra.mxu0 0.0
        %7057 = vmatprep.subr.mxu0 0.0
        %7058 = vmatpush1.msra.mxu0 0.0
        %7059 = vmatprep.subr.mxu0 0.0
        %7060 = vmatpush1.msra.mxu0 0.0
        %7061 = vmatprep.subr.mxu0 0.0
        %7062 = vmatpush1.msra.mxu0 0.0
        %7063 = vmatprep.subr.mxu0 0.0
        %7064 = vmatpush1.msra.mxu0 0.0
        %7065 = vmatprep.subr.mxu0 0.0
        %7066 = vmatpush1.msra.mxu0 0.0
        %7067 = vmatprep.subr.mxu0 0.0
        %7068 = vmatpush1.msra.mxu0 0.0
        %7069 = vmatprep.subr.mxu0 0.0
        %7070 = vmatpush1.msra.mxu0 0.0
        %7071 = vmatprep.subr.mxu0 0.0
        %7072 = vmatpush1.msra.mxu0 0.0
        %7073 = vmatprep.subr.mxu0 0.0
        %7074 = vmatpush1.msra.mxu0 0.0
        %7075 = vmatprep.subr.mxu0 0.0
        %7076 = vmatpush1.msra.mxu0 0.0
        %7077 = vmatprep.subr.mxu0 0.0
        %7078 = vmatpush1.msra.mxu0 0.0
        %7079 = vmatprep.subr.mxu0 0.0
        %7080 = vmatpush1.msra.mxu0 0.0
        %7081 = vmatprep.subr.mxu0 0.0
        %7082 = vmatpush1.msra.mxu0 0.0
        %7083 = vmatprep.subr.mxu0 0.0
        %7084 = vmatpush1.msra.mxu0 0.0
        %7085 = vmatprep.subr.mxu0 0.0
        %7086 = vmatpush1.msra.mxu0 0.0
        %7087 = vmatprep.subr.mxu0 0.0
        %7088 = vmatpush1.msra.mxu0 0.0
        %7089 = vmatprep.subr.mxu0 0.0
        %7090 = vmatpush1.msra.mxu0 0.0
        %7091 = vmatprep.subr.mxu0 0.0
        %7092 = vmatpush1.msra.mxu0 0.0
        %7093 = vmatprep.subr.mxu0 0.0
        %7094 = vmatpush1.msra.mxu0 0.0
        %7095 = vmatprep.subr.mxu0 0.0
        %7096 = vmatpush1.msra.mxu0 0.0
        %7097 = vmatprep.subr.mxu0 0.0
        %7098 = vmatpush1.msra.mxu0 0.0
        %7099 = vmatprep.subr.mxu0 0.0
        %7100 = vmatpush1.msra.mxu0 0.0
        %7101 = vmatprep.subr.mxu0 0.0
        %7102 = vmatpush1.msra.mxu0 0.0
        %7103 = vmatprep.subr.mxu0 0.0
        %7104 = vmatpush1.msra.mxu0 0.0
        %7105 = vmatprep.mubr.f32.mxu0 0.0
        %7106 = vmatmul.mubr.f32.gmra.mrb[0].mxu0 %v6994
        %v7107 = vpop.f32.mrb[0].mxu0
        %v7108 = vadd.f32 %v1029, %v7107
        %v7109 = vpop.f32.mrb[0].mxu0
        %7110 = vmatprep.mubr.f32.mxu0 0.0
        %7111 = vmatmul.mubr.f32.gmra.mrb[0].mxu0 %v6997
        %v7112 = vpop.f32.mrb[0].mxu0
        %v7113 = vadd.f32 %v1034, %v7112
        %v7114 = vpop.f32.mrb[0].mxu0
        %7115 = vmatprep.mubr.f32.mxu0 0.0
        %7116 = vmatmul.mubr.f32.gmra.mrb[0].mxu0 %v7000
        %v7117 = vpop.f32.mrb[0].mxu0
        %v7118 = vadd.f32 %v1039, %v7117
        %v7119 = vpop.f32.mrb[0].mxu0
        %7120 = vmatprep.mubr.f32.mxu0 0.0
        %7121 = vmatmul.mubr.f32.gmra.mrb[0].mxu0 %v7003
        %v7122 = vpop.f32.mrb[0].mxu0
        %v7123 = vadd.f32 %v1044, %v7122
        %v7124 = vpop.f32.mrb[0].mxu0
        %7125 = vmatprep.mubr.f32.mxu0 0.0
        %7126 = vmatmul.mubr.f32.gmra.mrb[0].mxu0 %v7006
        %v7127 = vpop.f32.mrb[0].mxu0
        %v7128 = vadd.f32 %v1049, %v7127
        %v7129 = vpop.f32.mrb[0].mxu0
        %7130 = vmatprep.mubr.f32.mxu0 0.0
        %7131 = vmatmul.mubr.f32.gmra.mrb[0].mxu0 %v7009
        %v7132 = vpop.f32.mrb[0].mxu0
        %v7133 = vadd.f32 %v1054, %v7132
        %v7134 = vpop.f32.mrb[0].mxu0
        %7135 = vmatprep.mubr.f32.mxu0 0.0
        %7136 = vmatmul.mubr.f32.gmra.mrb[0].mxu0 %v7012
        %v7137 = vpop.f32.mrb[0].mxu0
        %v7138 = vadd.f32 %v1059, %v7137
        %v7139 = vpop.f32.mrb[0].mxu0
        %7140 = vmatprep.mubr.f32.mxu0 0.0
        %7141 = vmatmul.mubr.f32.gmra.mrb[0].mxu0 %v7015
        %v7142 = vpop.f32.mrb[0].mxu0
        %v7143 = vadd.f32 %v1064, %v7142
        %v7144 = vpop.f32.mrb[0].mxu0
        %7145 = vmatprep.mubr.f32.mxu0 0.0
        %7146 = vmatmul.mubr.f32.gmra.mrb[0].mxu0 %v7018
        %v7147 = vpop.f32.mrb[0].mxu0
        %v7148 = vadd.f32 %v1069, %v7147
        %v7149 = vpop.f32.mrb[0].mxu0
        %7150 = vmatprep.mubr.f32.mxu0 0.0
        %7151 = vmatmul.mubr.f32.gmra.mrb[0].mxu0 %v7021
        %v7152 = vpop.f32.mrb[0].mxu0
        %v7153 = vadd.f32 %v1074, %v7152
        %v7154 = vpop.f32.mrb[0].mxu0
        %7155 = vmatprep.mubr.f32.mxu0 0.0
        %7156 = vmatmul.mubr.f32.gmra.mrb[0].mxu0 %v7024
        %v7157 = vpop.f32.mrb[0].mxu0
        %v7158 = vadd.f32 %v1079, %v7157
        %v7159 = vpop.f32.mrb[0].mxu0
        %7160 = vmatprep.mubr.f32.mxu0 0.0
        %7161 = vmatmul.mubr.f32.gmra.mrb[0].mxu0 %v7027
        %v7162 = vpop.f32.mrb[0].mxu0
        %v7163 = vadd.f32 %v1084, %v7162
        %v7164 = vpop.f32.mrb[0].mxu0
        %7165 = vmatprep.mubr.f32.mxu0 0.0
        %7166 = vmatmul.mubr.f32.gmra.mrb[0].mxu0 %v7030
        %v7167 = vpop.f32.mrb[0].mxu0
        %v7168 = vadd.f32 %v1089, %v7167
        %v7169 = vpop.f32.mrb[0].mxu0
        %7170 = vmatprep.mubr.f32.mxu0 0.0
        %7171 = vmatmul.mubr.f32.gmra.mrb[0].mxu0 %v7033
        %v7172 = vpop.f32.mrb[0].mxu0
        %v7173 = vadd.f32 %v1094, %v7172
        %v7174 = vpop.f32.mrb[0].mxu0
        %7175 = vmatprep.mubr.f32.mxu0 0.0
        %7176 = vmatmul.mubr.f32.gmra.mrb[0].mxu0 %v7036
        %v7177 = vpop.f32.mrb[0].mxu0
        %v7178 = vadd.f32 %v1099, %v7177
        %v7179 = vpop.f32.mrb[0].mxu0
        %7180 = vmatprep.mubr.f32.mxu0 0.0
        %7181 = vmatmul.mubr.f32.gmra.mrb[0].mxu0 %v7039
        %v7182 = vpop.f32.mrb[0].mxu0
        %v7183 = vadd.f32 %v1104, %v7182
        %v7184 = vpop.f32.mrb[0].mxu0
        %7185 = vdwg.mxu0
        %v7186 = vmax.f32 %v7108, 0.0
        %v7187 = vmax.f32 %v7113, 0.0
        %v7188 = vmax.f32 %v7118, 0.0
        %v7189 = vmax.f32 %v7123, 0.0
        %v7190 = vmax.f32 %v7128, 0.0
        %v7191 = vmax.f32 %v7133, 0.0
        %v7192 = vmax.f32 %v7138, 0.0
        %v7193 = vmax.f32 %v7143, 0.0
        %v7194 = vmax.f32 %v7148, 0.0
        %v7195 = vmax.f32 %v7153, 0.0
        %v7196 = vmax.f32 %v7158, 0.0
        %v7197 = vmax.f32 %v7163, 0.0
        %v7198 = vmax.f32 %v7168, 0.0
        %v7199 = vmax.f32 %v7173, 0.0
        %v7200 = vmax.f32 %v7178, 0.0
        %v7201 = vmax.f32 %v7183, 0.0
        %v7203 = vsel %vm913, %v7186, 0
        %v7206 = vsel %vm913, %v7187, 0
        %v7209 = vsel %vm913, %v7188, 0
        %v7212 = vsel %vm913, %v7189, 0
        %v7215 = vsel %vm913, %v7190, 0
        %v7218 = vsel %vm913, %v7191, 0
        %v7221 = vsel %vm913, %v7192, 0
        %v7224 = vsel %vm913, %v7193, 0
        %v7227 = vsel %vm913, %v7194, 0
        %v7230 = vsel %vm913, %v7195, 0
        %v7233 = vsel %vm913, %v7196, 0
        %v7236 = vsel %vm913, %v7197, 0
        %v7239 = vsel %vm913, %v7198, 0
        %v7242 = vsel %vm913, %v7199, 0
        %v7245 = vsel %vm913, %v7200, 0
        %v7248 = vsel %vm913, %v7201, 0
        %7250 = vmatprep.subr.mxu0 0.0
        %7251 = vmatpush1.msra.mxu0 %v893
        %7252 = vmatprep.subr.mxu0 0.0
        %7253 = vmatpush1.msra.mxu0 %v894
        %7254 = vmatprep.subr.mxu0 0.0
        %7255 = vmatpush1.msra.mxu0 %v895
        %7256 = vmatprep.subr.mxu0 0.0
        %7257 = vmatpush1.msra.mxu0 %v896
        %7258 = vmatprep.subr.mxu0 0.0
        %7259 = vmatpush1.msra.mxu0 0.0
        %7260 = vmatprep.subr.mxu0 0.0
        %7261 = vmatpush1.msra.mxu0 0.0
        %7262 = vmatprep.subr.mxu0 0.0
        %7263 = vmatpush1.msra.mxu0 0.0
        %7264 = vmatprep.subr.mxu0 0.0
        %7265 = vmatpush1.msra.mxu0 0.0
        %7266 = vmatprep.subr.mxu0 0.0
        %7267 = vmatpush1.msra.mxu0 0.0
        %7268 = vmatprep.subr.mxu0 0.0
        %7269 = vmatpush1.msra.mxu0 0.0
        %7270 = vmatprep.subr.mxu0 0.0
        %7271 = vmatpush1.msra.mxu0 0.0
        %7272 = vmatprep.subr.mxu0 0.0
        %7273 = vmatpush1.msra.mxu0 0.0
        %7274 = vmatprep.subr.mxu0 0.0
        %7275 = vmatpush1.msra.mxu0 0.0
        %7276 = vmatprep.subr.mxu0 0.0
        %7277 = vmatpush1.msra.mxu0 0.0
        %7278 = vmatprep.subr.mxu0 0.0
        %7279 = vmatpush1.msra.mxu0 0.0
        %7280 = vmatprep.subr.mxu0 0.0
        %7281 = vmatpush1.msra.mxu0 0.0
        %7282 = vmatprep.subr.mxu0 0.0
        %7283 = vmatpush1.msra.mxu0 0.0
        %7284 = vmatprep.subr.mxu0 0.0
        %7285 = vmatpush1.msra.mxu0 0.0
        %7286 = vmatprep.subr.mxu0 0.0
        %7287 = vmatpush1.msra.mxu0 0.0
        %7288 = vmatprep.subr.mxu0 0.0
        %7289 = vmatpush1.msra.mxu0 0.0
        %7290 = vmatprep.subr.mxu0 0.0
        %7291 = vmatpush1.msra.mxu0 0.0
        %7292 = vmatprep.subr.mxu0 0.0
        %7293 = vmatpush1.msra.mxu0 0.0
        %7294 = vmatprep.subr.mxu0 0.0
        %7295 = vmatpush1.msra.mxu0 0.0
        %7296 = vmatprep.subr.mxu0 0.0
        %7297 = vmatpush1.msra.mxu0 0.0
        %7298 = vmatprep.subr.mxu0 0.0
        %7299 = vmatpush1.msra.mxu0 0.0
        %7300 = vmatprep.subr.mxu0 0.0
        %7301 = vmatpush1.msra.mxu0 0.0
        %7302 = vmatprep.subr.mxu0 0.0
        %7303 = vmatpush1.msra.mxu0 0.0
        %7304 = vmatprep.subr.mxu0 0.0
        %7305 = vmatpush1.msra.mxu0 0.0
        %7306 = vmatprep.subr.mxu0 0.0
        %7307 = vmatpush1.msra.mxu0 0.0
        %7308 = vmatprep.subr.mxu0 0.0
        %7309 = vmatpush1.msra.mxu0 0.0
        %7310 = vmatprep.subr.mxu0 0.0
        %7311 = vmatpush1.msra.mxu0 0.0
        %7312 = vmatprep.subr.mxu0 0.0
        %7313 = vmatpush1.msra.mxu0 0.0
        %7314 = vmatprep.mubr.f32.mxu0 0.0
        %7315 = vmatmul.mubr.f32.gmra.mrb[0].mxu0 %v7203
        %v7316 = vpop.f32.mrb[0].mxu0
        %v7317 = vadd.f32 %v1336, %v7316
        %v7318 = vpop.f32.mrb[0].mxu0
        %7319 = vmatprep.mubr.f32.mxu0 0.0
        %7320 = vmatmul.mubr.f32.gmra.mrb[0].mxu0 %v7206
        %v7321 = vpop.f32.mrb[0].mxu0
        %v7322 = vadd.f32 %v1336, %v7321
        %v7323 = vpop.f32.mrb[0].mxu0
        %7324 = vmatprep.mubr.f32.mxu0 0.0
        %7325 = vmatmul.mubr.f32.gmra.mrb[0].mxu0 %v7209
        %v7326 = vpop.f32.mrb[0].mxu0
        %v7327 = vadd.f32 %v1336, %v7326
        %v7328 = vpop.f32.mrb[0].mxu0
        %7329 = vmatprep.mubr.f32.mxu0 0.0
        %7330 = vmatmul.mubr.f32.gmra.mrb[0].mxu0 %v7212
        %v7331 = vpop.f32.mrb[0].mxu0
        %v7332 = vadd.f32 %v1336, %v7331
        %v7333 = vpop.f32.mrb[0].mxu0
        %7334 = vmatprep.mubr.f32.mxu0 0.0
        %7335 = vmatmul.mubr.f32.gmra.mrb[0].mxu0 %v7215
        %v7336 = vpop.f32.mrb[0].mxu0
        %v7337 = vadd.f32 %v1336, %v7336
        %v7338 = vpop.f32.mrb[0].mxu0
        %7339 = vmatprep.mubr.f32.mxu0 0.0
        %7340 = vmatmul.mubr.f32.gmra.mrb[0].mxu0 %v7218
        %v7341 = vpop.f32.mrb[0].mxu0
        %v7342 = vadd.f32 %v1336, %v7341
        %v7343 = vpop.f32.mrb[0].mxu0
        %7344 = vmatprep.mubr.f32.mxu0 0.0
        %7345 = vmatmul.mubr.f32.gmra.mrb[0].mxu0 %v7221
        %v7346 = vpop.f32.mrb[0].mxu0
        %v7347 = vadd.f32 %v1336, %v7346
        %v7348 = vpop.f32.mrb[0].mxu0
        %7349 = vmatprep.mubr.f32.mxu0 0.0
        %7350 = vmatmul.mubr.f32.gmra.mrb[0].mxu0 %v7224
        %v7351 = vpop.f32.mrb[0].mxu0
        %v7352 = vadd.f32 %v1336, %v7351
        %v7353 = vpop.f32.mrb[0].mxu0
        %7354 = vmatprep.mubr.f32.mxu0 0.0
        %7355 = vmatmul.mubr.f32.gmra.mrb[0].mxu0 %v7227
        %v7356 = vpop.f32.mrb[0].mxu0
        %v7357 = vadd.f32 %v1336, %v7356
        %v7358 = vpop.f32.mrb[0].mxu0
        %7359 = vmatprep.mubr.f32.mxu0 0.0
        %7360 = vmatmul.mubr.f32.gmra.mrb[0].mxu0 %v7230
        %v7361 = vpop.f32.mrb[0].mxu0
        %v7362 = vadd.f32 %v1336, %v7361
        %v7363 = vpop.f32.mrb[0].mxu0
        %7364 = vmatprep.mubr.f32.mxu0 0.0
        %7365 = vmatmul.mubr.f32.gmra.mrb[0].mxu0 %v7233
        %v7366 = vpop.f32.mrb[0].mxu0
        %v7367 = vadd.f32 %v1336, %v7366
        %v7368 = vpop.f32.mrb[0].mxu0
        %7369 = vmatprep.mubr.f32.mxu0 0.0
        %7370 = vmatmul.mubr.f32.gmra.mrb[0].mxu0 %v7236
        %v7371 = vpop.f32.mrb[0].mxu0
        %v7372 = vadd.f32 %v1336, %v7371
        %v7373 = vpop.f32.mrb[0].mxu0
        %7374 = vmatprep.mubr.f32.mxu0 0.0
        %7375 = vmatmul.mubr.f32.gmra.mrb[0].mxu0 %v7239
        %v7376 = vpop.f32.mrb[0].mxu0
        %v7377 = vadd.f32 %v1336, %v7376
        %v7378 = vpop.f32.mrb[0].mxu0
        %7379 = vmatprep.mubr.f32.mxu0 0.0
        %7380 = vmatmul.mubr.f32.gmra.mrb[0].mxu0 %v7242
        %v7381 = vpop.f32.mrb[0].mxu0
        %v7382 = vadd.f32 %v1336, %v7381
        %v7383 = vpop.f32.mrb[0].mxu0
        %7384 = vmatprep.mubr.f32.mxu0 0.0
        %7385 = vmatmul.mubr.f32.gmra.mrb[0].mxu0 %v7245
        %v7386 = vpop.f32.mrb[0].mxu0
        %v7387 = vadd.f32 %v1336, %v7386
        %v7388 = vpop.f32.mrb[0].mxu0
        %7389 = vmatprep.mubr.f32.mxu0 0.0
        %7390 = vmatmul.mubr.f32.gmra.mrb[0].mxu0 %v7248
        %v7391 = vpop.f32.mrb[0].mxu0
        %v7392 = vadd.f32 %v1336, %v7391
        %v7393 = vpop.f32.mrb[0].mxu0
        %7394 = vdwg.mxu0
        %v7395 = vmax.f32 %v7317, 0.0
        %v7396 = vmax.f32 %v7322, 0.0
        %v7397 = vmax.f32 %v7327, 0.0
        %v7398 = vmax.f32 %v7332, 0.0
        %v7399 = vmax.f32 %v7337, 0.0
        %v7400 = vmax.f32 %v7342, 0.0
        %v7401 = vmax.f32 %v7347, 0.0
        %v7402 = vmax.f32 %v7352, 0.0
        %v7403 = vmax.f32 %v7357, 0.0
        %v7404 = vmax.f32 %v7362, 0.0
        %v7405 = vmax.f32 %v7367, 0.0
        %v7406 = vmax.f32 %v7372, 0.0
        %v7407 = vmax.f32 %v7377, 0.0
        %v7408 = vmax.f32 %v7382, 0.0
        %v7409 = vmax.f32 %v7387, 0.0
        %v7410 = vmax.f32 %v7392, 0.0
        %v7412 = vsel %vm913, %v7395, 0
        %v7415 = vsel %vm913, %v7396, 0
        %v7418 = vsel %vm913, %v7397, 0
        %v7421 = vsel %vm913, %v7398, 0
        %v7424 = vsel %vm913, %v7399, 0
        %v7427 = vsel %vm913, %v7400, 0
        %v7430 = vsel %vm913, %v7401, 0
        %v7433 = vsel %vm913, %v7402, 0
        %v7436 = vsel %vm913, %v7403, 0
        %v7439 = vsel %vm913, %v7404, 0
        %v7442 = vsel %vm913, %v7405, 0
        %v7445 = vsel %vm913, %v7406, 0
        %v7448 = vsel %vm913, %v7407, 0
        %v7451 = vsel %vm913, %v7408, 0
        %v7454 = vsel %vm913, %v7409, 0
        %v7457 = vsel %vm913, %v7410, 0
        %7459 = vmatprep.subr.mxu0 0.0
        %7460 = vmatpush1.msra.mxu0 %v897
        %7461 = vmatprep.subr.mxu0 0.0
        %7462 = vmatpush1.msra.mxu0 %v898
        %7463 = vmatprep.subr.mxu0 0.0
        %7464 = vmatpush1.msra.mxu0 %v899
        %7465 = vmatprep.subr.mxu0 0.0
        %7466 = vmatpush1.msra.mxu0 %v900
        %7467 = vmatprep.subr.mxu0 0.0
        %7468 = vmatpush1.msra.mxu0 0.0
        %7469 = vmatprep.subr.mxu0 0.0
        %7470 = vmatpush1.msra.mxu0 0.0
        %7471 = vmatprep.subr.mxu0 0.0
        %7472 = vmatpush1.msra.mxu0 0.0
        %7473 = vmatprep.subr.mxu0 0.0
        %7474 = vmatpush1.msra.mxu0 0.0
        %7475 = vmatprep.subr.mxu0 0.0
        %7476 = vmatpush1.msra.mxu0 0.0
        %7477 = vmatprep.subr.mxu0 0.0
        %7478 = vmatpush1.msra.mxu0 0.0
        %7479 = vmatprep.subr.mxu0 0.0
        %7480 = vmatpush1.msra.mxu0 0.0
        %7481 = vmatprep.subr.mxu0 0.0
        %7482 = vmatpush1.msra.mxu0 0.0
        %7483 = vmatprep.subr.mxu0 0.0
        %7484 = vmatpush1.msra.mxu0 0.0
        %7485 = vmatprep.subr.mxu0 0.0
        %7486 = vmatpush1.msra.mxu0 0.0
        %7487 = vmatprep.subr.mxu0 0.0
        %7488 = vmatpush1.msra.mxu0 0.0
        %7489 = vmatprep.subr.mxu0 0.0
        %7490 = vmatpush1.msra.mxu0 0.0
        %7491 = vmatprep.subr.mxu0 0.0
        %7492 = vmatpush1.msra.mxu0 0.0
        %7493 = vmatprep.subr.mxu0 0.0
        %7494 = vmatpush1.msra.mxu0 0.0
        %7495 = vmatprep.subr.mxu0 0.0
        %7496 = vmatpush1.msra.mxu0 0.0
        %7497 = vmatprep.subr.mxu0 0.0
        %7498 = vmatpush1.msra.mxu0 0.0
        %7499 = vmatprep.subr.mxu0 0.0
        %7500 = vmatpush1.msra.mxu0 0.0
        %7501 = vmatprep.subr.mxu0 0.0
        %7502 = vmatpush1.msra.mxu0 0.0
        %7503 = vmatprep.subr.mxu0 0.0
        %7504 = vmatpush1.msra.mxu0 0.0
        %7505 = vmatprep.subr.mxu0 0.0
        %7506 = vmatpush1.msra.mxu0 0.0
        %7507 = vmatprep.subr.mxu0 0.0
        %7508 = vmatpush1.msra.mxu0 0.0
        %7509 = vmatprep.subr.mxu0 0.0
        %7510 = vmatpush1.msra.mxu0 0.0
        %7511 = vmatprep.subr.mxu0 0.0
        %7512 = vmatpush1.msra.mxu0 0.0
        %7513 = vmatprep.subr.mxu0 0.0
        %7514 = vmatpush1.msra.mxu0 0.0
        %7515 = vmatprep.subr.mxu0 0.0
        %7516 = vmatpush1.msra.mxu0 0.0
        %7517 = vmatprep.subr.mxu0 0.0
        %7518 = vmatpush1.msra.mxu0 0.0
        %7519 = vmatprep.subr.mxu0 0.0
        %7520 = vmatpush1.msra.mxu0 0.0
        %7521 = vmatprep.subr.mxu0 0.0
        %7522 = vmatpush1.msra.mxu0 0.0
        %7523 = vmatprep.mubr.f32.mxu0 0.0
        %7524 = vmatmul.mubr.f32.gmra.mrb[0].mxu0 %v7412
        %v7525 = vpop.f32.mrb[0].mxu0
        %v7526 = vadd.f32 0.0, %v7525
        %v7527 = vpop.f32.mrb[0].mxu0
        %7528 = vmatprep.mubr.f32.mxu0 0.0
        %7529 = vmatmul.mubr.f32.gmra.mrb[0].mxu0 %v7415
        %v7530 = vpop.f32.mrb[0].mxu0
        %v7531 = vadd.f32 0.0, %v7530
        %v7532 = vpop.f32.mrb[0].mxu0
        %7533 = vmatprep.mubr.f32.mxu0 0.0
        %7534 = vmatmul.mubr.f32.gmra.mrb[0].mxu0 %v7418
        %v7535 = vpop.f32.mrb[0].mxu0
        %v7536 = vadd.f32 0.0, %v7535
        %v7537 = vpop.f32.mrb[0].mxu0
        %7538 = vmatprep.mubr.f32.mxu0 0.0
        %7539 = vmatmul.mubr.f32.gmra.mrb[0].mxu0 %v7421
        %v7540 = vpop.f32.mrb[0].mxu0
        %v7541 = vadd.f32 0.0, %v7540
        %v7542 = vpop.f32.mrb[0].mxu0
        %7543 = vmatprep.mubr.f32.mxu0 0.0
        %7544 = vmatmul.mubr.f32.gmra.mrb[0].mxu0 %v7424
        %v7545 = vpop.f32.mrb[0].mxu0
        %v7546 = vadd.f32 0.0, %v7545
        %v7547 = vpop.f32.mrb[0].mxu0
        %7548 = vmatprep.mubr.f32.mxu0 0.0
        %7549 = vmatmul.mubr.f32.gmra.mrb[0].mxu0 %v7427
        %v7550 = vpop.f32.mrb[0].mxu0
        %v7551 = vadd.f32 0.0, %v7550
        %v7552 = vpop.f32.mrb[0].mxu0
        %7553 = vmatprep.mubr.f32.mxu0 0.0
        %7554 = vmatmul.mubr.f32.gmra.mrb[0].mxu0 %v7430
        %v7555 = vpop.f32.mrb[0].mxu0
        %v7556 = vadd.f32 0.0, %v7555
        %v7557 = vpop.f32.mrb[0].mxu0
        %7558 = vmatprep.mubr.f32.mxu0 0.0
        %7559 = vmatmul.mubr.f32.gmra.mrb[0].mxu0 %v7433
        %v7560 = vpop.f32.mrb[0].mxu0
        %v7561 = vadd.f32 0.0, %v7560
        %v7562 = vpop.f32.mrb[0].mxu0
        %7563 = vmatprep.mubr.f32.mxu0 0.0
        %7564 = vmatmul.mubr.f32.gmra.mrb[0].mxu0 %v7436
        %v7565 = vpop.f32.mrb[0].mxu0
        %v7566 = vadd.f32 0.0, %v7565
        %v7567 = vpop.f32.mrb[0].mxu0
        %7568 = vmatprep.mubr.f32.mxu0 0.0
        %7569 = vmatmul.mubr.f32.gmra.mrb[0].mxu0 %v7439
        %v7570 = vpop.f32.mrb[0].mxu0
        %v7571 = vadd.f32 0.0, %v7570
        %v7572 = vpop.f32.mrb[0].mxu0
        %7573 = vmatprep.mubr.f32.mxu0 0.0
        %7574 = vmatmul.mubr.f32.gmra.mrb[0].mxu0 %v7442
        %v7575 = vpop.f32.mrb[0].mxu0
        %v7576 = vadd.f32 0.0, %v7575
        %v7577 = vpop.f32.mrb[0].mxu0
        %7578 = vmatprep.mubr.f32.mxu0 0.0
        %7579 = vmatmul.mubr.f32.gmra.mrb[0].mxu0 %v7445
        %v7580 = vpop.f32.mrb[0].mxu0
        %v7581 = vadd.f32 0.0, %v7580
        %v7582 = vpop.f32.mrb[0].mxu0
        %7583 = vmatprep.mubr.f32.mxu0 0.0
        %7584 = vmatmul.mubr.f32.gmra.mrb[0].mxu0 %v7448
        %v7585 = vpop.f32.mrb[0].mxu0
        %v7586 = vadd.f32 0.0, %v7585
        %v7587 = vpop.f32.mrb[0].mxu0
        %7588 = vmatprep.mubr.f32.mxu0 0.0
        %7589 = vmatmul.mubr.f32.gmra.mrb[0].mxu0 %v7451
        %v7590 = vpop.f32.mrb[0].mxu0
        %v7591 = vadd.f32 0.0, %v7590
        %v7592 = vpop.f32.mrb[0].mxu0
        %7593 = vmatprep.mubr.f32.mxu0 0.0
        %7594 = vmatmul.mubr.f32.gmra.mrb[0].mxu0 %v7454
        %v7595 = vpop.f32.mrb[0].mxu0
        %v7596 = vadd.f32 0.0, %v7595
        %v7597 = vpop.f32.mrb[0].mxu0
        %7598 = vmatprep.mubr.f32.mxu0 0.0
        %7599 = vmatmul.mubr.f32.gmra.mrb[0].mxu0 %v7457
        %v7600 = vpop.f32.mrb[0].mxu0
        %v7601 = vadd.f32 0.0, %v7600
        %v7602 = vpop.f32.mrb[0].mxu0
        %7603 = vdwg.mxu0
        %v7604 = vmax.f32 %v6624, %v7526
        %v7605 = vmax.f32 %v6625, %v7531
        %v7606 = vmax.f32 %v6626, %v7536
        %v7607 = vmax.f32 %v6627, %v7541
        %v7608 = vmax.f32 %v6628, %v7546
        %v7609 = vmax.f32 %v6629, %v7551
        %v7610 = vmax.f32 %v6630, %v7556
        %v7611 = vmax.f32 %v6631, %v7561
        %v7612 = vmax.f32 %v6632, %v7566
        %v7613 = vmax.f32 %v6633, %v7571
        %v7614 = vmax.f32 %v6634, %v7576
        %v7615 = vmax.f32 %v6635, %v7581
        %v7616 = vmax.f32 %v6636, %v7586
        %v7617 = vmax.f32 %v6637, %v7591
        %v7618 = vmax.f32 %v6638, %v7596
        %v7619 = vmax.f32 %v6639, %v7601
        %v7620 = vsub.f32 %v6624, %v7604
        %v7621 = vsub.f32 %v6625, %v7605
        %v7622 = vsub.f32 %v6626, %v7606
        %v7623 = vsub.f32 %v6627, %v7607
        %v7624 = vsub.f32 %v6628, %v7608
        %v7625 = vsub.f32 %v6629, %v7609
        %v7626 = vsub.f32 %v6630, %v7610
        %v7627 = vsub.f32 %v6631, %v7611
        %v7628 = vsub.f32 %v6632, %v7612
        %v7629 = vsub.f32 %v6633, %v7613
        %v7630 = vsub.f32 %v6634, %v7614
        %v7631 = vsub.f32 %v6635, %v7615
        %v7632 = vsub.f32 %v6636, %v7616
        %v7633 = vsub.f32 %v6637, %v7617
        %v7634 = vsub.f32 %v6638, %v7618
        %v7635 = vsub.f32 %v6639, %v7619
        %v7636 = vmul.f32 %v7620, 1.442695
        %v7637 = vpow.pop %v7636
        %v7638 = vmul.f32 %v7621, 1.442695
        %v7639 = vpow.pop %v7638
        %v7640 = vmul.f32 %v7622, 1.442695
        %v7641 = vpow.pop %v7640
        %v7642 = vmul.f32 %v7623, 1.442695
        %v7643 = vpow.pop %v7642
        %v7644 = vmul.f32 %v7624, 1.442695
        %v7645 = vpow.pop %v7644
        %v7646 = vmul.f32 %v7625, 1.442695
        %v7647 = vpow.pop %v7646
        %v7648 = vmul.f32 %v7626, 1.442695
        %v7649 = vpow.pop %v7648
        %v7650 = vmul.f32 %v7627, 1.442695
        %v7651 = vpow.pop %v7650
        %v7652 = vmul.f32 %v7628, 1.442695
        %v7653 = vpow.pop %v7652
        %v7654 = vmul.f32 %v7629, 1.442695
        %v7655 = vpow.pop %v7654
        %v7656 = vmul.f32 %v7630, 1.442695
        %v7657 = vpow.pop %v7656
        %v7658 = vmul.f32 %v7631, 1.442695
        %v7659 = vpow.pop %v7658
        %v7660 = vmul.f32 %v7632, 1.442695
        %v7661 = vpow.pop %v7660
        %v7662 = vmul.f32 %v7633, 1.442695
        %v7663 = vpow.pop %v7662
        %v7664 = vmul.f32 %v7634, 1.442695
        %v7665 = vpow.pop %v7664
        %v7666 = vmul.f32 %v7635, 1.442695
        %v7667 = vpow.pop %v7666
        %v7668 = vsub.f32 %v7526, %v7604
        %v7669 = vsub.f32 %v7531, %v7605
        %v7670 = vsub.f32 %v7536, %v7606
        %v7671 = vsub.f32 %v7541, %v7607
        %v7672 = vsub.f32 %v7546, %v7608
        %v7673 = vsub.f32 %v7551, %v7609
        %v7674 = vsub.f32 %v7556, %v7610
        %v7675 = vsub.f32 %v7561, %v7611
        %v7676 = vsub.f32 %v7566, %v7612
        %v7677 = vsub.f32 %v7571, %v7613
        %v7678 = vsub.f32 %v7576, %v7614
        %v7679 = vsub.f32 %v7581, %v7615
        %v7680 = vsub.f32 %v7586, %v7616
        %v7681 = vsub.f32 %v7591, %v7617
        %v7682 = vsub.f32 %v7596, %v7618
        %v7683 = vsub.f32 %v7601, %v7619
        %v7684 = vmul.f32 %v7668, 1.442695
        %v7685 = vpow.pop %v7684
        %v7686 = vmul.f32 %v7669, 1.442695
        %v7687 = vpow.pop %v7686
        %v7688 = vmul.f32 %v7670, 1.442695
        %v7689 = vpow.pop %v7688
        %v7690 = vmul.f32 %v7671, 1.442695
        %v7691 = vpow.pop %v7690
        %v7692 = vmul.f32 %v7672, 1.442695
        %v7693 = vpow.pop %v7692
        %v7694 = vmul.f32 %v7673, 1.442695
        %v7695 = vpow.pop %v7694
        %v7696 = vmul.f32 %v7674, 1.442695
        %v7697 = vpow.pop %v7696
        %v7698 = vmul.f32 %v7675, 1.442695
        %v7699 = vpow.pop %v7698
        %v7700 = vmul.f32 %v7676, 1.442695
        %v7701 = vpow.pop %v7700
        %v7702 = vmul.f32 %v7677, 1.442695
        %v7703 = vpow.pop %v7702
        %v7704 = vmul.f32 %v7678, 1.442695
        %v7705 = vpow.pop %v7704
        %v7706 = vmul.f32 %v7679, 1.442695
        %v7707 = vpow.pop %v7706
        %v7708 = vmul.f32 %v7680, 1.442695
        %v7709 = vpow.pop %v7708
        %v7710 = vmul.f32 %v7681, 1.442695
        %v7711 = vpow.pop %v7710
        %v7712 = vmul.f32 %v7682, 1.442695
        %v7713 = vpow.pop %v7712
        %v7714 = vmul.f32 %v7683, 1.442695
        %v7715 = vpow.pop %v7714
        %v7716 = vmul.f32 %v7637, %v6752
        %v7717 = vmul.f32 %v7639, %v6753
        %v7718 = vmul.f32 %v7641, %v6754
        %v7719 = vmul.f32 %v7643, %v6755
        %v7720 = vmul.f32 %v7645, %v6756
        %v7721 = vmul.f32 %v7647, %v6757
        %v7722 = vmul.f32 %v7649, %v6758
        %v7723 = vmul.f32 %v7651, %v6759
        %v7724 = vmul.f32 %v7653, %v6760
        %v7725 = vmul.f32 %v7655, %v6761
        %v7726 = vmul.f32 %v7657, %v6762
        %v7727 = vmul.f32 %v7659, %v6763
        %v7728 = vmul.f32 %v7661, %v6764
        %v7729 = vmul.f32 %v7663, %v6765
        %v7730 = vmul.f32 %v7665, %v6766
        %v7731 = vmul.f32 %v7667, %v6767
        %v7732 = vadd.f32 %v7716, %v7685
        %v7733 = vadd.f32 %v7717, %v7687
        %v7734 = vadd.f32 %v7718, %v7689
        %v7735 = vadd.f32 %v7719, %v7691
        %v7736 = vadd.f32 %v7720, %v7693
        %v7737 = vadd.f32 %v7721, %v7695
        %v7738 = vadd.f32 %v7722, %v7697
        %v7739 = vadd.f32 %v7723, %v7699
        %v7740 = vadd.f32 %v7724, %v7701
        %v7741 = vadd.f32 %v7725, %v7703
        %v7742 = vadd.f32 %v7726, %v7705
        %v7743 = vadd.f32 %v7727, %v7707
        %v7744 = vadd.f32 %v7728, %v7709
        %v7745 = vadd.f32 %v7729, %v7711
        %v7746 = vadd.f32 %v7730, %v7713
        %v7747 = vadd.f32 %v7731, %v7715
        %7749 = vset.pattern.permute.xlu0 0
        %7750 = vperm.xlu0 %7749, %v7637
        %v7751 = vpop.permute.xlu0 %7750
        %7754 = vset.pattern.permute.xlu0 0
        %7755 = vperm.xlu0 %7754, %v7639
        %v7756 = vpop.permute.xlu0 %7755
        %7759 = vset.pattern.permute.xlu0 0
        %7760 = vperm.xlu0 %7759, %v7641
        %v7761 = vpop.permute.xlu0 %7760
        %7764 = vset.pattern.permute.xlu0 0
        %7765 = vperm.xlu0 %7764, %v7643
        %v7766 = vpop.permute.xlu0 %7765
        %7769 = vset.pattern.permute.xlu0 0
        %7770 = vperm.xlu0 %7769, %v7645
        %v7771 = vpop.permute.xlu0 %7770
        %7774 = vset.pattern.permute.xlu0 0
        %7775 = vperm.xlu0 %7774, %v7647
        %v7776 = vpop.permute.xlu0 %7775
        %7779 = vset.pattern.permute.xlu0 0
        %7780 = vperm.xlu0 %7779, %v7649
        %v7781 = vpop.permute.xlu0 %7780
        %7784 = vset.pattern.permute.xlu0 0
        %7785 = vperm.xlu0 %7784, %v7651
        %v7786 = vpop.permute.xlu0 %7785
        %7789 = vset.pattern.permute.xlu0 0
        %7790 = vperm.xlu0 %7789, %v7653
        %v7791 = vpop.permute.xlu0 %7790
        %7794 = vset.pattern.permute.xlu0 0
        %7795 = vperm.xlu0 %7794, %v7655
        %v7796 = vpop.permute.xlu0 %7795
        %7799 = vset.pattern.permute.xlu0 0
        %7800 = vperm.xlu0 %7799, %v7657
        %v7801 = vpop.permute.xlu0 %7800
        %7804 = vset.pattern.permute.xlu0 0
        %7805 = vperm.xlu0 %7804, %v7659
        %v7806 = vpop.permute.xlu0 %7805
        %7809 = vset.pattern.permute.xlu0 0
        %7810 = vperm.xlu0 %7809, %v7661
        %v7811 = vpop.permute.xlu0 %7810
        %7814 = vset.pattern.permute.xlu0 0
        %7815 = vperm.xlu0 %7814, %v7663
        %v7816 = vpop.permute.xlu0 %7815
        %7819 = vset.pattern.permute.xlu0 0
        %7820 = vperm.xlu0 %7819, %v7665
        %v7821 = vpop.permute.xlu0 %7820
        %7824 = vset.pattern.permute.xlu0 0
        %7825 = vperm.xlu0 %7824, %v7667
        %v7826 = vpop.permute.xlu0 %7825
        %v7828 = vmul.f32 %v7751, %v6960
        %v7829 = vmul.f32 %v7756, %v6961
        %v7830 = vmul.f32 %v7761, %v6962
        %v7831 = vmul.f32 %v7766, %v6963
        %v7832 = vmul.f32 %v7771, %v6964
        %v7833 = vmul.f32 %v7776, %v6965
        %v7834 = vmul.f32 %v7781, %v6966
        %v7835 = vmul.f32 %v7786, %v6967
        %v7836 = vmul.f32 %v7791, %v6968
        %v7837 = vmul.f32 %v7796, %v6969
        %v7838 = vmul.f32 %v7801, %v6970
        %v7839 = vmul.f32 %v7806, %v6971
        %v7840 = vmul.f32 %v7811, %v6972
        %v7841 = vmul.f32 %v7816, %v6973
        %v7842 = vmul.f32 %v7821, %v6974
        %v7843 = vmul.f32 %v7826, %v6975
        %7845 = vset.pattern.permute.xlu0 0
        %7846 = vperm.xlu0 %7845, %v7685
        %v7847 = vpop.permute.xlu0 %7846
        %7850 = vset.pattern.permute.xlu0 0
        %7851 = vperm.xlu0 %7850, %v7687
        %v7852 = vpop.permute.xlu0 %7851
        %7855 = vset.pattern.permute.xlu0 0
        %7856 = vperm.xlu0 %7855, %v7689
        %v7857 = vpop.permute.xlu0 %7856
        %7860 = vset.pattern.permute.xlu0 0
        %7861 = vperm.xlu0 %7860, %v7691
        %v7862 = vpop.permute.xlu0 %7861
        %7865 = vset.pattern.permute.xlu0 0
        %7866 = vperm.xlu0 %7865, %v7693
        %v7867 = vpop.permute.xlu0 %7866
        %7870 = vset.pattern.permute.xlu0 0
        %7871 = vperm.xlu0 %7870, %v7695
        %v7872 = vpop.permute.xlu0 %7871
        %7875 = vset.pattern.permute.xlu0 0
        %7876 = vperm.xlu0 %7875, %v7697
        %v7877 = vpop.permute.xlu0 %7876
        %7880 = vset.pattern.permute.xlu0 0
        %7881 = vperm.xlu0 %7880, %v7699
        %v7882 = vpop.permute.xlu0 %7881
        %7885 = vset.pattern.permute.xlu0 0
        %7886 = vperm.xlu0 %7885, %v7701
        %v7887 = vpop.permute.xlu0 %7886
        %7890 = vset.pattern.permute.xlu0 0
        %7891 = vperm.xlu0 %7890, %v7703
        %v7892 = vpop.permute.xlu0 %7891
        %7895 = vset.pattern.permute.xlu0 0
        %7896 = vperm.xlu0 %7895, %v7705
        %v7897 = vpop.permute.xlu0 %7896
        %7900 = vset.pattern.permute.xlu0 0
        %7901 = vperm.xlu0 %7900, %v7707
        %v7902 = vpop.permute.xlu0 %7901
        %7905 = vset.pattern.permute.xlu0 0
        %7906 = vperm.xlu0 %7905, %v7709
        %v7907 = vpop.permute.xlu0 %7906
        %7910 = vset.pattern.permute.xlu0 0
        %7911 = vperm.xlu0 %7910, %v7711
        %v7912 = vpop.permute.xlu0 %7911
        %7915 = vset.pattern.permute.xlu0 0
        %7916 = vperm.xlu0 %7915, %v7713
        %v7917 = vpop.permute.xlu0 %7916
        %7920 = vset.pattern.permute.xlu0 0
        %7921 = vperm.xlu0 %7920, %v7715
        %v7922 = vpop.permute.xlu0 %7921
        %v7924 = vmul.f32 %v7847, %v6977
        %v7925 = vmul.f32 %v7852, %v6978
        %v7926 = vmul.f32 %v7857, %v6979
        %v7927 = vmul.f32 %v7862, %v6980
        %v7928 = vmul.f32 %v7867, %v6981
        %v7929 = vmul.f32 %v7872, %v6982
        %v7930 = vmul.f32 %v7877, %v6983
        %v7931 = vmul.f32 %v7882, %v6984
        %v7932 = vmul.f32 %v7887, %v6985
        %v7933 = vmul.f32 %v7892, %v6986
        %v7934 = vmul.f32 %v7897, %v6987
        %v7935 = vmul.f32 %v7902, %v6988
        %v7936 = vmul.f32 %v7907, %v6989
        %v7937 = vmul.f32 %v7912, %v6990
        %v7938 = vmul.f32 %v7917, %v6991
        %v7939 = vmul.f32 %v7922, %v6992
        %v7940 = vadd.f32 %v7828, %v7924
        %v7941 = vadd.f32 %v7829, %v7925
        %v7942 = vadd.f32 %v7830, %v7926
        %v7943 = vadd.f32 %v7831, %v7927
        %v7944 = vadd.f32 %v7832, %v7928
        %v7945 = vadd.f32 %v7833, %v7929
        %v7946 = vadd.f32 %v7834, %v7930
        %v7947 = vadd.f32 %v7835, %v7931
        %v7948 = vadd.f32 %v7836, %v7932
        %v7949 = vadd.f32 %v7837, %v7933
        %v7950 = vadd.f32 %v7838, %v7934
        %v7951 = vadd.f32 %v7839, %v7935
        %v7952 = vadd.f32 %v7840, %v7936
        %v7953 = vadd.f32 %v7841, %v7937
        %v7954 = vadd.f32 %v7842, %v7938
        %v7955 = vadd.f32 %v7843, %v7939
        %s7956 = scalar_lea.vmem %s824, 896 [#allocation2]
        %v7957 = vld [vmem:[%s7956] sm:$0xff]
        %v7958 = vld [vmem:[%s7956 + $0x8] sm:$0xff]
        %v7959 = vld [vmem:[%s7956 + $0x10] sm:$0xff]
        %v7960 = vld [vmem:[%s7956 + $0x18] sm:$0xff]
        %v7961 = vld [vmem:[%s7956 + $0x20] sm:$0xff]
        %v7962 = vld [vmem:[%s7956 + $0x28] sm:$0xff]
        %v7963 = vld [vmem:[%s7956 + $0x30] sm:$0xff]
        %v7964 = vld [vmem:[%s7956 + $0x38] sm:$0xff]
        %v7965 = vld [vmem:[%s7956 + $0x40] sm:$0xff]
        %v7966 = vld [vmem:[%s7956 + $0x48] sm:$0xff]
        %v7967 = vld [vmem:[%s7956 + $0x50] sm:$0xff]
        %v7968 = vld [vmem:[%s7956 + $0x58] sm:$0xff]
        %v7969 = vld [vmem:[%s7956 + $0x60] sm:$0xff]
        %v7970 = vld [vmem:[%s7956 + $0x68] sm:$0xff]
        %v7971 = vld [vmem:[%s7956 + $0x70] sm:$0xff]
        %v7972 = vld [vmem:[%s7956 + $0x78] sm:$0xff]
        %v7974 = vsel %vm913, %v7957, 0
        %v7977 = vsel %vm913, %v7958, 0
        %v7980 = vsel %vm913, %v7959, 0
        %v7983 = vsel %vm913, %v7960, 0
        %v7986 = vsel %vm913, %v7961, 0
        %v7989 = vsel %vm913, %v7962, 0
        %v7992 = vsel %vm913, %v7963, 0
        %v7995 = vsel %vm913, %v7964, 0
        %v7998 = vsel %vm913, %v7965, 0
        %v8001 = vsel %vm913, %v7966, 0
        %v8004 = vsel %vm913, %v7967, 0
        %v8007 = vsel %vm913, %v7968, 0
        %v8010 = vsel %vm913, %v7969, 0
        %v8013 = vsel %vm913, %v7970, 0
        %v8016 = vsel %vm913, %v7971, 0
        %v8019 = vsel %vm913, %v7972, 0
        %8021 = vmatprep.subr.mxu0 0.0
        %8022 = vmatpush1.msra.mxu0 %v889
        %8023 = vmatprep.subr.mxu0 0.0
        %8024 = vmatpush1.msra.mxu0 %v890
        %8025 = vmatprep.subr.mxu0 0.0
        %8026 = vmatpush1.msra.mxu0 %v891
        %8027 = vmatprep.subr.mxu0 0.0
        %8028 = vmatpush1.msra.mxu0 %v892
        %8029 = vmatprep.subr.mxu0 0.0
        %8030 = vmatpush1.msra.mxu0 0.0
        %8031 = vmatprep.subr.mxu0 0.0
        %8032 = vmatpush1.msra.mxu0 0.0
        %8033 = vmatprep.subr.mxu0 0.0
        %8034 = vmatpush1.msra.mxu0 0.0
        %8035 = vmatprep.subr.mxu0 0.0
        %8036 = vmatpush1.msra.mxu0 0.0
        %8037 = vmatprep.subr.mxu0 0.0
        %8038 = vmatpush1.msra.mxu0 0.0
        %8039 = vmatprep.subr.mxu0 0.0
        %8040 = vmatpush1.msra.mxu0 0.0
        %8041 = vmatprep.subr.mxu0 0.0
        %8042 = vmatpush1.msra.mxu0 0.0
        %8043 = vmatprep.subr.mxu0 0.0
        %8044 = vmatpush1.msra.mxu0 0.0
        %8045 = vmatprep.subr.mxu0 0.0
        %8046 = vmatpush1.msra.mxu0 0.0
        %8047 = vmatprep.subr.mxu0 0.0
        %8048 = vmatpush1.msra.mxu0 0.0
        %8049 = vmatprep.subr.mxu0 0.0
        %8050 = vmatpush1.msra.mxu0 0.0
        %8051 = vmatprep.subr.mxu0 0.0
        %8052 = vmatpush1.msra.mxu0 0.0
        %8053 = vmatprep.subr.mxu0 0.0
        %8054 = vmatpush1.msra.mxu0 0.0
        %8055 = vmatprep.subr.mxu0 0.0
        %8056 = vmatpush1.msra.mxu0 0.0
        %8057 = vmatprep.subr.mxu0 0.0
        %8058 = vmatpush1.msra.mxu0 0.0
        %8059 = vmatprep.subr.mxu0 0.0
        %8060 = vmatpush1.msra.mxu0 0.0
        %8061 = vmatprep.subr.mxu0 0.0
        %8062 = vmatpush1.msra.mxu0 0.0
        %8063 = vmatprep.subr.mxu0 0.0
        %8064 = vmatpush1.msra.mxu0 0.0
        %8065 = vmatprep.subr.mxu0 0.0
        %8066 = vmatpush1.msra.mxu0 0.0
        %8067 = vmatprep.subr.mxu0 0.0
        %8068 = vmatpush1.msra.mxu0 0.0
        %8069 = vmatprep.subr.mxu0 0.0
        %8070 = vmatpush1.msra.mxu0 0.0
        %8071 = vmatprep.subr.mxu0 0.0
        %8072 = vmatpush1.msra.mxu0 0.0
        %8073 = vmatprep.subr.mxu0 0.0
        %8074 = vmatpush1.msra.mxu0 0.0
        %8075 = vmatprep.subr.mxu0 0.0
        %8076 = vmatpush1.msra.mxu0 0.0
        %8077 = vmatprep.subr.mxu0 0.0
        %8078 = vmatpush1.msra.mxu0 0.0
        %8079 = vmatprep.subr.mxu0 0.0
        %8080 = vmatpush1.msra.mxu0 0.0
        %8081 = vmatprep.subr.mxu0 0.0
        %8082 = vmatpush1.msra.mxu0 0.0
        %8083 = vmatprep.subr.mxu0 0.0
        %8084 = vmatpush1.msra.mxu0 0.0
        %8085 = vmatprep.mubr.f32.mxu0 0.0
        %8086 = vmatmul.mubr.f32.gmra.mrb[0].mxu0 %v7974
        %v8087 = vpop.f32.mrb[0].mxu0
        %v8088 = vadd.f32 %v1029, %v8087
        %v8089 = vpop.f32.mrb[0].mxu0
        %8090 = vmatprep.mubr.f32.mxu0 0.0
        %8091 = vmatmul.mubr.f32.gmra.mrb[0].mxu0 %v7977
        %v8092 = vpop.f32.mrb[0].mxu0
        %v8093 = vadd.f32 %v1034, %v8092
        %v8094 = vpop.f32.mrb[0].mxu0
        %8095 = vmatprep.mubr.f32.mxu0 0.0
        %8096 = vmatmul.mubr.f32.gmra.mrb[0].mxu0 %v7980
        %v8097 = vpop.f32.mrb[0].mxu0
        %v8098 = vadd.f32 %v1039, %v8097
        %v8099 = vpop.f32.mrb[0].mxu0
        %8100 = vmatprep.mubr.f32.mxu0 0.0
        %8101 = vmatmul.mubr.f32.gmra.mrb[0].mxu0 %v7983
        %v8102 = vpop.f32.mrb[0].mxu0
        %v8103 = vadd.f32 %v1044, %v8102
        %v8104 = vpop.f32.mrb[0].mxu0
        %8105 = vmatprep.mubr.f32.mxu0 0.0
        %8106 = vmatmul.mubr.f32.gmra.mrb[0].mxu0 %v7986
        %v8107 = vpop.f32.mrb[0].mxu0
        %v8108 = vadd.f32 %v1049, %v8107
        %v8109 = vpop.f32.mrb[0].mxu0
        %8110 = vmatprep.mubr.f32.mxu0 0.0
        %8111 = vmatmul.mubr.f32.gmra.mrb[0].mxu0 %v7989
        %v8112 = vpop.f32.mrb[0].mxu0
        %v8113 = vadd.f32 %v1054, %v8112
        %v8114 = vpop.f32.mrb[0].mxu0
        %8115 = vmatprep.mubr.f32.mxu0 0.0
        %8116 = vmatmul.mubr.f32.gmra.mrb[0].mxu0 %v7992
        %v8117 = vpop.f32.mrb[0].mxu0
        %v8118 = vadd.f32 %v1059, %v8117
        %v8119 = vpop.f32.mrb[0].mxu0
        %8120 = vmatprep.mubr.f32.mxu0 0.0
        %8121 = vmatmul.mubr.f32.gmra.mrb[0].mxu0 %v7995
        %v8122 = vpop.f32.mrb[0].mxu0
        %v8123 = vadd.f32 %v1064, %v8122
        %v8124 = vpop.f32.mrb[0].mxu0
        %8125 = vmatprep.mubr.f32.mxu0 0.0
        %8126 = vmatmul.mubr.f32.gmra.mrb[0].mxu0 %v7998
        %v8127 = vpop.f32.mrb[0].mxu0
        %v8128 = vadd.f32 %v1069, %v8127
        %v8129 = vpop.f32.mrb[0].mxu0
        %8130 = vmatprep.mubr.f32.mxu0 0.0
        %8131 = vmatmul.mubr.f32.gmra.mrb[0].mxu0 %v8001
        %v8132 = vpop.f32.mrb[0].mxu0
        %v8133 = vadd.f32 %v1074, %v8132
        %v8134 = vpop.f32.mrb[0].mxu0
        %8135 = vmatprep.mubr.f32.mxu0 0.0
        %8136 = vmatmul.mubr.f32.gmra.mrb[0].mxu0 %v8004
        %v8137 = vpop.f32.mrb[0].mxu0
        %v8138 = vadd.f32 %v1079, %v8137
        %v8139 = vpop.f32.mrb[0].mxu0
        %8140 = vmatprep.mubr.f32.mxu0 0.0
        %8141 = vmatmul.mubr.f32.gmra.mrb[0].mxu0 %v8007
        %v8142 = vpop.f32.mrb[0].mxu0
        %v8143 = vadd.f32 %v1084, %v8142
        %v8144 = vpop.f32.mrb[0].mxu0
        %8145 = vmatprep.mubr.f32.mxu0 0.0
        %8146 = vmatmul.mubr.f32.gmra.mrb[0].mxu0 %v8010
        %v8147 = vpop.f32.mrb[0].mxu0
        %v8148 = vadd.f32 %v1089, %v8147
        %v8149 = vpop.f32.mrb[0].mxu0
        %8150 = vmatprep.mubr.f32.mxu0 0.0
        %8151 = vmatmul.mubr.f32.gmra.mrb[0].mxu0 %v8013
        %v8152 = vpop.f32.mrb[0].mxu0
        %v8153 = vadd.f32 %v1094, %v8152
        %v8154 = vpop.f32.mrb[0].mxu0
        %8155 = vmatprep.mubr.f32.mxu0 0.0
        %8156 = vmatmul.mubr.f32.gmra.mrb[0].mxu0 %v8016
        %v8157 = vpop.f32.mrb[0].mxu0
        %v8158 = vadd.f32 %v1099, %v8157
        %v8159 = vpop.f32.mrb[0].mxu0
        %8160 = vmatprep.mubr.f32.mxu0 0.0
        %8161 = vmatmul.mubr.f32.gmra.mrb[0].mxu0 %v8019
        %v8162 = vpop.f32.mrb[0].mxu0
        %v8163 = vadd.f32 %v1104, %v8162
        %v8164 = vpop.f32.mrb[0].mxu0
        %8165 = vdwg.mxu0
        %v8166 = vmax.f32 %v8088, 0.0
        %v8167 = vmax.f32 %v8093, 0.0
        %v8168 = vmax.f32 %v8098, 0.0
        %v8169 = vmax.f32 %v8103, 0.0
        %v8170 = vmax.f32 %v8108, 0.0
        %v8171 = vmax.f32 %v8113, 0.0
        %v8172 = vmax.f32 %v8118, 0.0
        %v8173 = vmax.f32 %v8123, 0.0
        %v8174 = vmax.f32 %v8128, 0.0
        %v8175 = vmax.f32 %v8133, 0.0
        %v8176 = vmax.f32 %v8138, 0.0
        %v8177 = vmax.f32 %v8143, 0.0
        %v8178 = vmax.f32 %v8148, 0.0
        %v8179 = vmax.f32 %v8153, 0.0
        %v8180 = vmax.f32 %v8158, 0.0
        %v8181 = vmax.f32 %v8163, 0.0
        %v8183 = vsel %vm913, %v8166, 0
        %v8186 = vsel %vm913, %v8167, 0
        %v8189 = vsel %vm913, %v8168, 0
        %v8192 = vsel %vm913, %v8169, 0
        %v8195 = vsel %vm913, %v8170, 0
        %v8198 = vsel %vm913, %v8171, 0
        %v8201 = vsel %vm913, %v8172, 0
        %v8204 = vsel %vm913, %v8173, 0
        %v8207 = vsel %vm913, %v8174, 0
        %v8210 = vsel %vm913, %v8175, 0
        %v8213 = vsel %vm913, %v8176, 0
        %v8216 = vsel %vm913, %v8177, 0
        %v8219 = vsel %vm913, %v8178, 0
        %v8222 = vsel %vm913, %v8179, 0
        %v8225 = vsel %vm913, %v8180, 0
        %v8228 = vsel %vm913, %v8181, 0
        %8230 = vmatprep.subr.mxu0 0.0
        %8231 = vmatpush1.msra.mxu0 %v893
        %8232 = vmatprep.subr.mxu0 0.0
        %8233 = vmatpush1.msra.mxu0 %v894
        %8234 = vmatprep.subr.mxu0 0.0
        %8235 = vmatpush1.msra.mxu0 %v895
        %8236 = vmatprep.subr.mxu0 0.0
        %8237 = vmatpush1.msra.mxu0 %v896
        %8238 = vmatprep.subr.mxu0 0.0
        %8239 = vmatpush1.msra.mxu0 0.0
        %8240 = vmatprep.subr.mxu0 0.0
        %8241 = vmatpush1.msra.mxu0 0.0
        %8242 = vmatprep.subr.mxu0 0.0
        %8243 = vmatpush1.msra.mxu0 0.0
        %8244 = vmatprep.subr.mxu0 0.0
        %8245 = vmatpush1.msra.mxu0 0.0
        %8246 = vmatprep.subr.mxu0 0.0
        %8247 = vmatpush1.msra.mxu0 0.0
        %8248 = vmatprep.subr.mxu0 0.0
        %8249 = vmatpush1.msra.mxu0 0.0
        %8250 = vmatprep.subr.mxu0 0.0
        %8251 = vmatpush1.msra.mxu0 0.0
        %8252 = vmatprep.subr.mxu0 0.0
        %8253 = vmatpush1.msra.mxu0 0.0
        %8254 = vmatprep.subr.mxu0 0.0
        %8255 = vmatpush1.msra.mxu0 0.0
        %8256 = vmatprep.subr.mxu0 0.0
        %8257 = vmatpush1.msra.mxu0 0.0
        %8258 = vmatprep.subr.mxu0 0.0
        %8259 = vmatpush1.msra.mxu0 0.0
        %8260 = vmatprep.subr.mxu0 0.0
        %8261 = vmatpush1.msra.mxu0 0.0
        %8262 = vmatprep.subr.mxu0 0.0
        %8263 = vmatpush1.msra.mxu0 0.0
        %8264 = vmatprep.subr.mxu0 0.0
        %8265 = vmatpush1.msra.mxu0 0.0
        %8266 = vmatprep.subr.mxu0 0.0
        %8267 = vmatpush1.msra.mxu0 0.0
        %8268 = vmatprep.subr.mxu0 0.0
        %8269 = vmatpush1.msra.mxu0 0.0
        %8270 = vmatprep.subr.mxu0 0.0
        %8271 = vmatpush1.msra.mxu0 0.0
        %8272 = vmatprep.subr.mxu0 0.0
        %8273 = vmatpush1.msra.mxu0 0.0
        %8274 = vmatprep.subr.mxu0 0.0
        %8275 = vmatpush1.msra.mxu0 0.0
        %8276 = vmatprep.subr.mxu0 0.0
        %8277 = vmatpush1.msra.mxu0 0.0
        %8278 = vmatprep.subr.mxu0 0.0
        %8279 = vmatpush1.msra.mxu0 0.0
        %8280 = vmatprep.subr.mxu0 0.0
        %8281 = vmatpush1.msra.mxu0 0.0
        %8282 = vmatprep.subr.mxu0 0.0
        %8283 = vmatpush1.msra.mxu0 0.0
        %8284 = vmatprep.subr.mxu0 0.0
        %8285 = vmatpush1.msra.mxu0 0.0
        %8286 = vmatprep.subr.mxu0 0.0
        %8287 = vmatpush1.msra.mxu0 0.0
        %8288 = vmatprep.subr.mxu0 0.0
        %8289 = vmatpush1.msra.mxu0 0.0
        %8290 = vmatprep.subr.mxu0 0.0
        %8291 = vmatpush1.msra.mxu0 0.0
        %8292 = vmatprep.subr.mxu0 0.0
        %8293 = vmatpush1.msra.mxu0 0.0
        %8294 = vmatprep.mubr.f32.mxu0 0.0
        %8295 = vmatmul.mubr.f32.gmra.mrb[0].mxu0 %v8183
        %v8296 = vpop.f32.mrb[0].mxu0
        %v8297 = vadd.f32 %v1336, %v8296
        %v8298 = vpop.f32.mrb[0].mxu0
        %8299 = vmatprep.mubr.f32.mxu0 0.0
        %8300 = vmatmul.mubr.f32.gmra.mrb[0].mxu0 %v8186
        %v8301 = vpop.f32.mrb[0].mxu0
        %v8302 = vadd.f32 %v1336, %v8301
        %v8303 = vpop.f32.mrb[0].mxu0
        %8304 = vmatprep.mubr.f32.mxu0 0.0
        %8305 = vmatmul.mubr.f32.gmra.mrb[0].mxu0 %v8189
        %v8306 = vpop.f32.mrb[0].mxu0
        %v8307 = vadd.f32 %v1336, %v8306
        %v8308 = vpop.f32.mrb[0].mxu0
        %8309 = vmatprep.mubr.f32.mxu0 0.0
        %8310 = vmatmul.mubr.f32.gmra.mrb[0].mxu0 %v8192
        %v8311 = vpop.f32.mrb[0].mxu0
        %v8312 = vadd.f32 %v1336, %v8311
        %v8313 = vpop.f32.mrb[0].mxu0
        %8314 = vmatprep.mubr.f32.mxu0 0.0
        %8315 = vmatmul.mubr.f32.gmra.mrb[0].mxu0 %v8195
        %v8316 = vpop.f32.mrb[0].mxu0
        %v8317 = vadd.f32 %v1336, %v8316
        %v8318 = vpop.f32.mrb[0].mxu0
        %8319 = vmatprep.mubr.f32.mxu0 0.0
        %8320 = vmatmul.mubr.f32.gmra.mrb[0].mxu0 %v8198
        %v8321 = vpop.f32.mrb[0].mxu0
        %v8322 = vadd.f32 %v1336, %v8321
        %v8323 = vpop.f32.mrb[0].mxu0
        %8324 = vmatprep.mubr.f32.mxu0 0.0
        %8325 = vmatmul.mubr.f32.gmra.mrb[0].mxu0 %v8201
        %v8326 = vpop.f32.mrb[0].mxu0
        %v8327 = vadd.f32 %v1336, %v8326
        %v8328 = vpop.f32.mrb[0].mxu0
        %8329 = vmatprep.mubr.f32.mxu0 0.0
        %8330 = vmatmul.mubr.f32.gmra.mrb[0].mxu0 %v8204
        %v8331 = vpop.f32.mrb[0].mxu0
        %v8332 = vadd.f32 %v1336, %v8331
        %v8333 = vpop.f32.mrb[0].mxu0
        %8334 = vmatprep.mubr.f32.mxu0 0.0
        %8335 = vmatmul.mubr.f32.gmra.mrb[0].mxu0 %v8207
        %v8336 = vpop.f32.mrb[0].mxu0
        %v8337 = vadd.f32 %v1336, %v8336
        %v8338 = vpop.f32.mrb[0].mxu0
        %8339 = vmatprep.mubr.f32.mxu0 0.0
        %8340 = vmatmul.mubr.f32.gmra.mrb[0].mxu0 %v8210
        %v8341 = vpop.f32.mrb[0].mxu0
        %v8342 = vadd.f32 %v1336, %v8341
        %v8343 = vpop.f32.mrb[0].mxu0
        %8344 = vmatprep.mubr.f32.mxu0 0.0
        %8345 = vmatmul.mubr.f32.gmra.mrb[0].mxu0 %v8213
        %v8346 = vpop.f32.mrb[0].mxu0
        %v8347 = vadd.f32 %v1336, %v8346
        %v8348 = vpop.f32.mrb[0].mxu0
        %8349 = vmatprep.mubr.f32.mxu0 0.0
        %8350 = vmatmul.mubr.f32.gmra.mrb[0].mxu0 %v8216
        %v8351 = vpop.f32.mrb[0].mxu0
        %v8352 = vadd.f32 %v1336, %v8351
        %v8353 = vpop.f32.mrb[0].mxu0
        %8354 = vmatprep.mubr.f32.mxu0 0.0
        %8355 = vmatmul.mubr.f32.gmra.mrb[0].mxu0 %v8219
        %v8356 = vpop.f32.mrb[0].mxu0
        %v8357 = vadd.f32 %v1336, %v8356
        %v8358 = vpop.f32.mrb[0].mxu0
        %8359 = vmatprep.mubr.f32.mxu0 0.0
        %8360 = vmatmul.mubr.f32.gmra.mrb[0].mxu0 %v8222
        %v8361 = vpop.f32.mrb[0].mxu0
        %v8362 = vadd.f32 %v1336, %v8361
        %v8363 = vpop.f32.mrb[0].mxu0
        %8364 = vmatprep.mubr.f32.mxu0 0.0
        %8365 = vmatmul.mubr.f32.gmra.mrb[0].mxu0 %v8225
        %v8366 = vpop.f32.mrb[0].mxu0
        %v8367 = vadd.f32 %v1336, %v8366
        %v8368 = vpop.f32.mrb[0].mxu0
        %8369 = vmatprep.mubr.f32.mxu0 0.0
        %8370 = vmatmul.mubr.f32.gmra.mrb[0].mxu0 %v8228
        %v8371 = vpop.f32.mrb[0].mxu0
        %v8372 = vadd.f32 %v1336, %v8371
        %v8373 = vpop.f32.mrb[0].mxu0
        %8374 = vdwg.mxu0
        %v8375 = vmax.f32 %v8297, 0.0
        %v8376 = vmax.f32 %v8302, 0.0
        %v8377 = vmax.f32 %v8307, 0.0
        %v8378 = vmax.f32 %v8312, 0.0
        %v8379 = vmax.f32 %v8317, 0.0
        %v8380 = vmax.f32 %v8322, 0.0
        %v8381 = vmax.f32 %v8327, 0.0
        %v8382 = vmax.f32 %v8332, 0.0
        %v8383 = vmax.f32 %v8337, 0.0
        %v8384 = vmax.f32 %v8342, 0.0
        %v8385 = vmax.f32 %v8347, 0.0
        %v8386 = vmax.f32 %v8352, 0.0
        %v8387 = vmax.f32 %v8357, 0.0
        %v8388 = vmax.f32 %v8362, 0.0
        %v8389 = vmax.f32 %v8367, 0.0
        %v8390 = vmax.f32 %v8372, 0.0
        %v8392 = vsel %vm913, %v8375, 0
        %v8395 = vsel %vm913, %v8376, 0
        %v8398 = vsel %vm913, %v8377, 0
        %v8401 = vsel %vm913, %v8378, 0
        %v8404 = vsel %vm913, %v8379, 0
        %v8407 = vsel %vm913, %v8380, 0
        %v8410 = vsel %vm913, %v8381, 0
        %v8413 = vsel %vm913, %v8382, 0
        %v8416 = vsel %vm913, %v8383, 0
        %v8419 = vsel %vm913, %v8384, 0
        %v8422 = vsel %vm913, %v8385, 0
        %v8425 = vsel %vm913, %v8386, 0
        %v8428 = vsel %vm913, %v8387, 0
        %v8431 = vsel %vm913, %v8388, 0
        %v8434 = vsel %vm913, %v8389, 0
        %v8437 = vsel %vm913, %v8390, 0
        %8439 = vmatprep.subr.mxu0 0.0
        %8440 = vmatpush1.msra.mxu0 %v897
        %8441 = vmatprep.subr.mxu0 0.0
        %8442 = vmatpush1.msra.mxu0 %v898
        %8443 = vmatprep.subr.mxu0 0.0
        %8444 = vmatpush1.msra.mxu0 %v899
        %8445 = vmatprep.subr.mxu0 0.0
        %8446 = vmatpush1.msra.mxu0 %v900
        %8447 = vmatprep.subr.mxu0 0.0
        %8448 = vmatpush1.msra.mxu0 0.0
        %8449 = vmatprep.subr.mxu0 0.0
        %8450 = vmatpush1.msra.mxu0 0.0
        %8451 = vmatprep.subr.mxu0 0.0
        %8452 = vmatpush1.msra.mxu0 0.0
        %8453 = vmatprep.subr.mxu0 0.0
        %8454 = vmatpush1.msra.mxu0 0.0
        %8455 = vmatprep.subr.mxu0 0.0
        %8456 = vmatpush1.msra.mxu0 0.0
        %8457 = vmatprep.subr.mxu0 0.0
        %8458 = vmatpush1.msra.mxu0 0.0
        %8459 = vmatprep.subr.mxu0 0.0
        %8460 = vmatpush1.msra.mxu0 0.0
        %8461 = vmatprep.subr.mxu0 0.0
        %8462 = vmatpush1.msra.mxu0 0.0
        %8463 = vmatprep.subr.mxu0 0.0
        %8464 = vmatpush1.msra.mxu0 0.0
        %8465 = vmatprep.subr.mxu0 0.0
        %8466 = vmatpush1.msra.mxu0 0.0
        %8467 = vmatprep.subr.mxu0 0.0
        %8468 = vmatpush1.msra.mxu0 0.0
        %8469 = vmatprep.subr.mxu0 0.0
        %8470 = vmatpush1.msra.mxu0 0.0
        %8471 = vmatprep.subr.mxu0 0.0
        %8472 = vmatpush1.msra.mxu0 0.0
        %8473 = vmatprep.subr.mxu0 0.0
        %8474 = vmatpush1.msra.mxu0 0.0
        %8475 = vmatprep.subr.mxu0 0.0
        %8476 = vmatpush1.msra.mxu0 0.0
        %8477 = vmatprep.subr.mxu0 0.0
        %8478 = vmatpush1.msra.mxu0 0.0
        %8479 = vmatprep.subr.mxu0 0.0
        %8480 = vmatpush1.msra.mxu0 0.0
        %8481 = vmatprep.subr.mxu0 0.0
        %8482 = vmatpush1.msra.mxu0 0.0
        %8483 = vmatprep.subr.mxu0 0.0
        %8484 = vmatpush1.msra.mxu0 0.0
        %8485 = vmatprep.subr.mxu0 0.0
        %8486 = vmatpush1.msra.mxu0 0.0
        %8487 = vmatprep.subr.mxu0 0.0
        %8488 = vmatpush1.msra.mxu0 0.0
        %8489 = vmatprep.subr.mxu0 0.0
        %8490 = vmatpush1.msra.mxu0 0.0
        %8491 = vmatprep.subr.mxu0 0.0
        %8492 = vmatpush1.msra.mxu0 0.0
        %8493 = vmatprep.subr.mxu0 0.0
        %8494 = vmatpush1.msra.mxu0 0.0
        %8495 = vmatprep.subr.mxu0 0.0
        %8496 = vmatpush1.msra.mxu0 0.0
        %8497 = vmatprep.subr.mxu0 0.0
        %8498 = vmatpush1.msra.mxu0 0.0
        %8499 = vmatprep.subr.mxu0 0.0
        %8500 = vmatpush1.msra.mxu0 0.0
        %8501 = vmatprep.subr.mxu0 0.0
        %8502 = vmatpush1.msra.mxu0 0.0
        %8503 = vmatprep.mubr.f32.mxu0 0.0
        %8504 = vmatmul.mubr.f32.gmra.mrb[0].mxu0 %v8392
        %v8505 = vpop.f32.mrb[0].mxu0
        %v8506 = vadd.f32 0.0, %v8505
        %v8507 = vpop.f32.mrb[0].mxu0
        %8508 = vmatprep.mubr.f32.mxu0 0.0
        %8509 = vmatmul.mubr.f32.gmra.mrb[0].mxu0 %v8395
        %v8510 = vpop.f32.mrb[0].mxu0
        %v8511 = vadd.f32 0.0, %v8510
        %v8512 = vpop.f32.mrb[0].mxu0
        %8513 = vmatprep.mubr.f32.mxu0 0.0
        %8514 = vmatmul.mubr.f32.gmra.mrb[0].mxu0 %v8398
        %v8515 = vpop.f32.mrb[0].mxu0
        %v8516 = vadd.f32 0.0, %v8515
        %v8517 = vpop.f32.mrb[0].mxu0
        %8518 = vmatprep.mubr.f32.mxu0 0.0
        %8519 = vmatmul.mubr.f32.gmra.mrb[0].mxu0 %v8401
        %v8520 = vpop.f32.mrb[0].mxu0
        %v8521 = vadd.f32 0.0, %v8520
        %v8522 = vpop.f32.mrb[0].mxu0
        %8523 = vmatprep.mubr.f32.mxu0 0.0
        %8524 = vmatmul.mubr.f32.gmra.mrb[0].mxu0 %v8404
        %v8525 = vpop.f32.mrb[0].mxu0
        %v8526 = vadd.f32 0.0, %v8525
        %v8527 = vpop.f32.mrb[0].mxu0
        %8528 = vmatprep.mubr.f32.mxu0 0.0
        %8529 = vmatmul.mubr.f32.gmra.mrb[0].mxu0 %v8407
        %v8530 = vpop.f32.mrb[0].mxu0
        %v8531 = vadd.f32 0.0, %v8530
        %v8532 = vpop.f32.mrb[0].mxu0
        %8533 = vmatprep.mubr.f32.mxu0 0.0
        %8534 = vmatmul.mubr.f32.gmra.mrb[0].mxu0 %v8410
        %v8535 = vpop.f32.mrb[0].mxu0
        %v8536 = vadd.f32 0.0, %v8535
        %v8537 = vpop.f32.mrb[0].mxu0
        %8538 = vmatprep.mubr.f32.mxu0 0.0
        %8539 = vmatmul.mubr.f32.gmra.mrb[0].mxu0 %v8413
        %v8540 = vpop.f32.mrb[0].mxu0
        %v8541 = vadd.f32 0.0, %v8540
        %v8542 = vpop.f32.mrb[0].mxu0
        %8543 = vmatprep.mubr.f32.mxu0 0.0
        %8544 = vmatmul.mubr.f32.gmra.mrb[0].mxu0 %v8416
        %v8545 = vpop.f32.mrb[0].mxu0
        %v8546 = vadd.f32 0.0, %v8545
        %v8547 = vpop.f32.mrb[0].mxu0
        %8548 = vmatprep.mubr.f32.mxu0 0.0
        %8549 = vmatmul.mubr.f32.gmra.mrb[0].mxu0 %v8419
        %v8550 = vpop.f32.mrb[0].mxu0
        %v8551 = vadd.f32 0.0, %v8550
        %v8552 = vpop.f32.mrb[0].mxu0
        %8553 = vmatprep.mubr.f32.mxu0 0.0
        %8554 = vmatmul.mubr.f32.gmra.mrb[0].mxu0 %v8422
        %v8555 = vpop.f32.mrb[0].mxu0
        %v8556 = vadd.f32 0.0, %v8555
        %v8557 = vpop.f32.mrb[0].mxu0
        %8558 = vmatprep.mubr.f32.mxu0 0.0
        %8559 = vmatmul.mubr.f32.gmra.mrb[0].mxu0 %v8425
        %v8560 = vpop.f32.mrb[0].mxu0
        %v8561 = vadd.f32 0.0, %v8560
        %v8562 = vpop.f32.mrb[0].mxu0
        %8563 = vmatprep.mubr.f32.mxu0 0.0
        %8564 = vmatmul.mubr.f32.gmra.mrb[0].mxu0 %v8428
        %v8565 = vpop.f32.mrb[0].mxu0
        %v8566 = vadd.f32 0.0, %v8565
        %v8567 = vpop.f32.mrb[0].mxu0
        %8568 = vmatprep.mubr.f32.mxu0 0.0
        %8569 = vmatmul.mubr.f32.gmra.mrb[0].mxu0 %v8431
        %v8570 = vpop.f32.mrb[0].mxu0
        %v8571 = vadd.f32 0.0, %v8570
        %v8572 = vpop.f32.mrb[0].mxu0
        %8573 = vmatprep.mubr.f32.mxu0 0.0
        %8574 = vmatmul.mubr.f32.gmra.mrb[0].mxu0 %v8434
        %v8575 = vpop.f32.mrb[0].mxu0
        %v8576 = vadd.f32 0.0, %v8575
        %v8577 = vpop.f32.mrb[0].mxu0
        %8578 = vmatprep.mubr.f32.mxu0 0.0
        %8579 = vmatmul.mubr.f32.gmra.mrb[0].mxu0 %v8437
        %v8580 = vpop.f32.mrb[0].mxu0
        %v8581 = vadd.f32 0.0, %v8580
        %v8582 = vpop.f32.mrb[0].mxu0
        %8583 = vdwg.mxu0
        %v8584 = vmax.f32 %v7604, %v8506
        %v8585 = vmax.f32 %v7605, %v8511
        %v8586 = vmax.f32 %v7606, %v8516
        %v8587 = vmax.f32 %v7607, %v8521
        %v8588 = vmax.f32 %v7608, %v8526
        %v8589 = vmax.f32 %v7609, %v8531
        %v8590 = vmax.f32 %v7610, %v8536
        %v8591 = vmax.f32 %v7611, %v8541
        %v8592 = vmax.f32 %v7612, %v8546
        %v8593 = vmax.f32 %v7613, %v8551
        %v8594 = vmax.f32 %v7614, %v8556
        %v8595 = vmax.f32 %v7615, %v8561
        %v8596 = vmax.f32 %v7616, %v8566
        %v8597 = vmax.f32 %v7617, %v8571
        %v8598 = vmax.f32 %v7618, %v8576
        %v8599 = vmax.f32 %v7619, %v8581
        %v8600 = vsub.f32 %v7604, %v8584
        %v8601 = vsub.f32 %v7605, %v8585
        %v8602 = vsub.f32 %v7606, %v8586
        %v8603 = vsub.f32 %v7607, %v8587
        %v8604 = vsub.f32 %v7608, %v8588
        %v8605 = vsub.f32 %v7609, %v8589
        %v8606 = vsub.f32 %v7610, %v8590
        %v8607 = vsub.f32 %v7611, %v8591
        %v8608 = vsub.f32 %v7612, %v8592
        %v8609 = vsub.f32 %v7613, %v8593
        %v8610 = vsub.f32 %v7614, %v8594
        %v8611 = vsub.f32 %v7615, %v8595
        %v8612 = vsub.f32 %v7616, %v8596
        %v8613 = vsub.f32 %v7617, %v8597
        %v8614 = vsub.f32 %v7618, %v8598
        %v8615 = vsub.f32 %v7619, %v8599
        %v8616 = vmul.f32 %v8600, 1.442695
        %v8617 = vpow.pop %v8616
        %v8618 = vmul.f32 %v8601, 1.442695
        %v8619 = vpow.pop %v8618
        %v8620 = vmul.f32 %v8602, 1.442695
        %v8621 = vpow.pop %v8620
        %v8622 = vmul.f32 %v8603, 1.442695
        %v8623 = vpow.pop %v8622
        %v8624 = vmul.f32 %v8604, 1.442695
        %v8625 = vpow.pop %v8624
        %v8626 = vmul.f32 %v8605, 1.442695
        %v8627 = vpow.pop %v8626
        %v8628 = vmul.f32 %v8606, 1.442695
        %v8629 = vpow.pop %v8628
        %v8630 = vmul.f32 %v8607, 1.442695
        %v8631 = vpow.pop %v8630
        %v8632 = vmul.f32 %v8608, 1.442695
        %v8633 = vpow.pop %v8632
        %v8634 = vmul.f32 %v8609, 1.442695
        %v8635 = vpow.pop %v8634
        %v8636 = vmul.f32 %v8610, 1.442695
        %v8637 = vpow.pop %v8636
        %v8638 = vmul.f32 %v8611, 1.442695
        %v8639 = vpow.pop %v8638
        %v8640 = vmul.f32 %v8612, 1.442695
        %v8641 = vpow.pop %v8640
        %v8642 = vmul.f32 %v8613, 1.442695
        %v8643 = vpow.pop %v8642
        %v8644 = vmul.f32 %v8614, 1.442695
        %v8645 = vpow.pop %v8644
        %v8646 = vmul.f32 %v8615, 1.442695
        %v8647 = vpow.pop %v8646
        %v8648 = vsub.f32 %v8506, %v8584
        %v8649 = vsub.f32 %v8511, %v8585
        %v8650 = vsub.f32 %v8516, %v8586
        %v8651 = vsub.f32 %v8521, %v8587
        %v8652 = vsub.f32 %v8526, %v8588
        %v8653 = vsub.f32 %v8531, %v8589
        %v8654 = vsub.f32 %v8536, %v8590
        %v8655 = vsub.f32 %v8541, %v8591
        %v8656 = vsub.f32 %v8546, %v8592
        %v8657 = vsub.f32 %v8551, %v8593
        %v8658 = vsub.f32 %v8556, %v8594
        %v8659 = vsub.f32 %v8561, %v8595
        %v8660 = vsub.f32 %v8566, %v8596
        %v8661 = vsub.f32 %v8571, %v8597
        %v8662 = vsub.f32 %v8576, %v8598
        %v8663 = vsub.f32 %v8581, %v8599
        %v8664 = vmul.f32 %v8648, 1.442695
        %v8665 = vpow.pop %v8664
        %v8666 = vmul.f32 %v8649, 1.442695
        %v8667 = vpow.pop %v8666
        %v8668 = vmul.f32 %v8650, 1.442695
        %v8669 = vpow.pop %v8668
        %v8670 = vmul.f32 %v8651, 1.442695
        %v8671 = vpow.pop %v8670
        %v8672 = vmul.f32 %v8652, 1.442695
        %v8673 = vpow.pop %v8672
        %v8674 = vmul.f32 %v8653, 1.442695
        %v8675 = vpow.pop %v8674
        %v8676 = vmul.f32 %v8654, 1.442695
        %v8677 = vpow.pop %v8676
        %v8678 = vmul.f32 %v8655, 1.442695
        %v8679 = vpow.pop %v8678
        %v8680 = vmul.f32 %v8656, 1.442695
        %v8681 = vpow.pop %v8680
        %v8682 = vmul.f32 %v8657, 1.442695
        %v8683 = vpow.pop %v8682
        %v8684 = vmul.f32 %v8658, 1.442695
        %v8685 = vpow.pop %v8684
        %v8686 = vmul.f32 %v8659, 1.442695
        %v8687 = vpow.pop %v8686
        %v8688 = vmul.f32 %v8660, 1.442695
        %v8689 = vpow.pop %v8688
        %v8690 = vmul.f32 %v8661, 1.442695
        %v8691 = vpow.pop %v8690
        %v8692 = vmul.f32 %v8662, 1.442695
        %v8693 = vpow.pop %v8692
        %v8694 = vmul.f32 %v8663, 1.442695
        %v8695 = vpow.pop %v8694
        %v8696 = vmul.f32 %v8617, %v7732
        %v8697 = vmul.f32 %v8619, %v7733
        %v8698 = vmul.f32 %v8621, %v7734
        %v8699 = vmul.f32 %v8623, %v7735
        %v8700 = vmul.f32 %v8625, %v7736
        %v8701 = vmul.f32 %v8627, %v7737
        %v8702 = vmul.f32 %v8629, %v7738
        %v8703 = vmul.f32 %v8631, %v7739
        %v8704 = vmul.f32 %v8633, %v7740
        %v8705 = vmul.f32 %v8635, %v7741
        %v8706 = vmul.f32 %v8637, %v7742
        %v8707 = vmul.f32 %v8639, %v7743
        %v8708 = vmul.f32 %v8641, %v7744
        %v8709 = vmul.f32 %v8643, %v7745
        %v8710 = vmul.f32 %v8645, %v7746
        %v8711 = vmul.f32 %v8647, %v7747
        %v8712 = vadd.f32 %v8696, %v8665
        %v8713 = vadd.f32 %v8697, %v8667
        %v8714 = vadd.f32 %v8698, %v8669
        %v8715 = vadd.f32 %v8699, %v8671
        %v8716 = vadd.f32 %v8700, %v8673
        %v8717 = vadd.f32 %v8701, %v8675
        %v8718 = vadd.f32 %v8702, %v8677
        %v8719 = vadd.f32 %v8703, %v8679
        %v8720 = vadd.f32 %v8704, %v8681
        %v8721 = vadd.f32 %v8705, %v8683
        %v8722 = vadd.f32 %v8706, %v8685
        %v8723 = vadd.f32 %v8707, %v8687
        %v8724 = vadd.f32 %v8708, %v8689
        %v8725 = vadd.f32 %v8709, %v8691
        %v8726 = vadd.f32 %v8710, %v8693
        %v8727 = vadd.f32 %v8711, %v8695
        %8729 = vset.pattern.permute.xlu0 0
        %8730 = vperm.xlu0 %8729, %v8617
        %v8731 = vpop.permute.xlu0 %8730
        %8734 = vset.pattern.permute.xlu0 0
        %8735 = vperm.xlu0 %8734, %v8619
        %v8736 = vpop.permute.xlu0 %8735
        %8739 = vset.pattern.permute.xlu0 0
        %8740 = vperm.xlu0 %8739, %v8621
        %v8741 = vpop.permute.xlu0 %8740
        %8744 = vset.pattern.permute.xlu0 0
        %8745 = vperm.xlu0 %8744, %v8623
        %v8746 = vpop.permute.xlu0 %8745
        %8749 = vset.pattern.permute.xlu0 0
        %8750 = vperm.xlu0 %8749, %v8625
        %v8751 = vpop.permute.xlu0 %8750
        %8754 = vset.pattern.permute.xlu0 0
        %8755 = vperm.xlu0 %8754, %v8627
        %v8756 = vpop.permute.xlu0 %8755
        %8759 = vset.pattern.permute.xlu0 0
        %8760 = vperm.xlu0 %8759, %v8629
        %v8761 = vpop.permute.xlu0 %8760
        %8764 = vset.pattern.permute.xlu0 0
        %8765 = vperm.xlu0 %8764, %v8631
        %v8766 = vpop.permute.xlu0 %8765
        %8769 = vset.pattern.permute.xlu0 0
        %8770 = vperm.xlu0 %8769, %v8633
        %v8771 = vpop.permute.xlu0 %8770
        %8774 = vset.pattern.permute.xlu0 0
        %8775 = vperm.xlu0 %8774, %v8635
        %v8776 = vpop.permute.xlu0 %8775
        %8779 = vset.pattern.permute.xlu0 0
        %8780 = vperm.xlu0 %8779, %v8637
        %v8781 = vpop.permute.xlu0 %8780
        %8784 = vset.pattern.permute.xlu0 0
        %8785 = vperm.xlu0 %8784, %v8639
        %v8786 = vpop.permute.xlu0 %8785
        %8789 = vset.pattern.permute.xlu0 0
        %8790 = vperm.xlu0 %8789, %v8641
        %v8791 = vpop.permute.xlu0 %8790
        %8794 = vset.pattern.permute.xlu0 0
        %8795 = vperm.xlu0 %8794, %v8643
        %v8796 = vpop.permute.xlu0 %8795
        %8799 = vset.pattern.permute.xlu0 0
        %8800 = vperm.xlu0 %8799, %v8645
        %v8801 = vpop.permute.xlu0 %8800
        %8804 = vset.pattern.permute.xlu0 0
        %8805 = vperm.xlu0 %8804, %v8647
        %v8806 = vpop.permute.xlu0 %8805
        %v8808 = vmul.f32 %v8731, %v7940
        %v8809 = vmul.f32 %v8736, %v7941
        %v8810 = vmul.f32 %v8741, %v7942
        %v8811 = vmul.f32 %v8746, %v7943
        %v8812 = vmul.f32 %v8751, %v7944
        %v8813 = vmul.f32 %v8756, %v7945
        %v8814 = vmul.f32 %v8761, %v7946
        %v8815 = vmul.f32 %v8766, %v7947
        %v8816 = vmul.f32 %v8771, %v7948
        %v8817 = vmul.f32 %v8776, %v7949
        %v8818 = vmul.f32 %v8781, %v7950
        %v8819 = vmul.f32 %v8786, %v7951
        %v8820 = vmul.f32 %v8791, %v7952
        %v8821 = vmul.f32 %v8796, %v7953
        %v8822 = vmul.f32 %v8801, %v7954
        %v8823 = vmul.f32 %v8806, %v7955
        %8825 = vset.pattern.permute.xlu0 0
        %8826 = vperm.xlu0 %8825, %v8665
        %v8827 = vpop.permute.xlu0 %8826
        %8830 = vset.pattern.permute.xlu0 0
        %8831 = vperm.xlu0 %8830, %v8667
        %v8832 = vpop.permute.xlu0 %8831
        %8835 = vset.pattern.permute.xlu0 0
        %8836 = vperm.xlu0 %8835, %v8669
        %v8837 = vpop.permute.xlu0 %8836
        %8840 = vset.pattern.permute.xlu0 0
        %8841 = vperm.xlu0 %8840, %v8671
        %v8842 = vpop.permute.xlu0 %8841
        %8845 = vset.pattern.permute.xlu0 0
        %8846 = vperm.xlu0 %8845, %v8673
        %v8847 = vpop.permute.xlu0 %8846
        %8850 = vset.pattern.permute.xlu0 0
        %8851 = vperm.xlu0 %8850, %v8675
        %v8852 = vpop.permute.xlu0 %8851
        %8855 = vset.pattern.permute.xlu0 0
        %8856 = vperm.xlu0 %8855, %v8677
        %v8857 = vpop.permute.xlu0 %8856
        %8860 = vset.pattern.permute.xlu0 0
        %8861 = vperm.xlu0 %8860, %v8679
        %v8862 = vpop.permute.xlu0 %8861
        %8865 = vset.pattern.permute.xlu0 0
        %8866 = vperm.xlu0 %8865, %v8681
        %v8867 = vpop.permute.xlu0 %8866
        %8870 = vset.pattern.permute.xlu0 0
        %8871 = vperm.xlu0 %8870, %v8683
        %v8872 = vpop.permute.xlu0 %8871
        %8875 = vset.pattern.permute.xlu0 0
        %8876 = vperm.xlu0 %8875, %v8685
        %v8877 = vpop.permute.xlu0 %8876
        %8880 = vset.pattern.permute.xlu0 0
        %8881 = vperm.xlu0 %8880, %v8687
        %v8882 = vpop.permute.xlu0 %8881
        %8885 = vset.pattern.permute.xlu0 0
        %8886 = vperm.xlu0 %8885, %v8689
        %v8887 = vpop.permute.xlu0 %8886
        %8890 = vset.pattern.permute.xlu0 0
        %8891 = vperm.xlu0 %8890, %v8691
        %v8892 = vpop.permute.xlu0 %8891
        %8895 = vset.pattern.permute.xlu0 0
        %8896 = vperm.xlu0 %8895, %v8693
        %v8897 = vpop.permute.xlu0 %8896
        %8900 = vset.pattern.permute.xlu0 0
        %8901 = vperm.xlu0 %8900, %v8695
        %v8902 = vpop.permute.xlu0 %8901
        %v8904 = vmul.f32 %v8827, %v7957
        %v8905 = vmul.f32 %v8832, %v7958
        %v8906 = vmul.f32 %v8837, %v7959
        %v8907 = vmul.f32 %v8842, %v7960
        %v8908 = vmul.f32 %v8847, %v7961
        %v8909 = vmul.f32 %v8852, %v7962
        %v8910 = vmul.f32 %v8857, %v7963
        %v8911 = vmul.f32 %v8862, %v7964
        %v8912 = vmul.f32 %v8867, %v7965
        %v8913 = vmul.f32 %v8872, %v7966
        %v8914 = vmul.f32 %v8877, %v7967
        %v8915 = vmul.f32 %v8882, %v7968
        %v8916 = vmul.f32 %v8887, %v7969
        %v8917 = vmul.f32 %v8892, %v7970
        %v8918 = vmul.f32 %v8897, %v7971
        %v8919 = vmul.f32 %v8902, %v7972
        %v8920 = vadd.f32 %v8808, %v8904
        %v8921 = vadd.f32 %v8809, %v8905
        %v8922 = vadd.f32 %v8810, %v8906
        %v8923 = vadd.f32 %v8811, %v8907
        %v8924 = vadd.f32 %v8812, %v8908
        %v8925 = vadd.f32 %v8813, %v8909
        %v8926 = vadd.f32 %v8814, %v8910
        %v8927 = vadd.f32 %v8815, %v8911
        %v8928 = vadd.f32 %v8816, %v8912
        %v8929 = vadd.f32 %v8817, %v8913
        %v8930 = vadd.f32 %v8818, %v8914
        %v8931 = vadd.f32 %v8819, %v8915
        %v8932 = vadd.f32 %v8820, %v8916
        %v8933 = vadd.f32 %v8821, %v8917
        %v8934 = vadd.f32 %v8822, %v8918
        %v8935 = vadd.f32 %v8823, %v8919
        %v8936 = vrcp.pop %v8712
        %v8937 = vrcp.pop %v8713
        %v8938 = vrcp.pop %v8714
        %v8939 = vrcp.pop %v8715
        %v8940 = vrcp.pop %v8716
        %v8941 = vrcp.pop %v8717
        %v8942 = vrcp.pop %v8718
        %v8943 = vrcp.pop %v8719
        %v8944 = vrcp.pop %v8720
        %v8945 = vrcp.pop %v8721
        %v8946 = vrcp.pop %v8722
        %v8947 = vrcp.pop %v8723
        %v8948 = vrcp.pop %v8724
        %v8949 = vrcp.pop %v8725
        %v8950 = vrcp.pop %v8726
        %v8951 = vrcp.pop %v8727
        %8953 = vset.pattern.permute.xlu0 0
        %8954 = vperm.xlu0 %8953, %v8936
        %v8955 = vpop.permute.xlu0 %8954
        %8958 = vset.pattern.permute.xlu0 0
        %8959 = vperm.xlu0 %8958, %v8937
        %v8960 = vpop.permute.xlu0 %8959
        %8963 = vset.pattern.permute.xlu0 0
        %8964 = vperm.xlu0 %8963, %v8938
        %v8965 = vpop.permute.xlu0 %8964
        %8968 = vset.pattern.permute.xlu0 0
        %8969 = vperm.xlu0 %8968, %v8939
        %v8970 = vpop.permute.xlu0 %8969
        %8973 = vset.pattern.permute.xlu0 0
        %8974 = vperm.xlu0 %8973, %v8940
        %v8975 = vpop.permute.xlu0 %8974
        %8978 = vset.pattern.permute.xlu0 0
        %8979 = vperm.xlu0 %8978, %v8941
        %v8980 = vpop.permute.xlu0 %8979
        %8983 = vset.pattern.permute.xlu0 0
        %8984 = vperm.xlu0 %8983, %v8942
        %v8985 = vpop.permute.xlu0 %8984
        %8988 = vset.pattern.permute.xlu0 0
        %8989 = vperm.xlu0 %8988, %v8943
        %v8990 = vpop.permute.xlu0 %8989
        %8993 = vset.pattern.permute.xlu0 0
        %8994 = vperm.xlu0 %8993, %v8944
        %v8995 = vpop.permute.xlu0 %8994
        %8998 = vset.pattern.permute.xlu0 0
        %8999 = vperm.xlu0 %8998, %v8945
        %v9000 = vpop.permute.xlu0 %8999
        %9003 = vset.pattern.permute.xlu0 0
        %9004 = vperm.xlu0 %9003, %v8946
        %v9005 = vpop.permute.xlu0 %9004
        %9008 = vset.pattern.permute.xlu0 0
        %9009 = vperm.xlu0 %9008, %v8947
        %v9010 = vpop.permute.xlu0 %9009
        %9013 = vset.pattern.permute.xlu0 0
        %9014 = vperm.xlu0 %9013, %v8948
        %v9015 = vpop.permute.xlu0 %9014
        %9018 = vset.pattern.permute.xlu0 0
        %9019 = vperm.xlu0 %9018, %v8949
        %v9020 = vpop.permute.xlu0 %9019
        %9023 = vset.pattern.permute.xlu0 0
        %9024 = vperm.xlu0 %9023, %v8950
        %v9025 = vpop.permute.xlu0 %9024
        %9028 = vset.pattern.permute.xlu0 0
        %9029 = vperm.xlu0 %9028, %v8951
        %v9030 = vpop.permute.xlu0 %9029
        %v9032 = vmul.f32 %v8920, %v8955
        %v9033 = vmul.f32 %v8921, %v8960
        %v9034 = vmul.f32 %v8922, %v8965
        %v9035 = vmul.f32 %v8923, %v8970
        %v9036 = vmul.f32 %v8924, %v8975
        %v9037 = vmul.f32 %v8925, %v8980
        %v9038 = vmul.f32 %v8926, %v8985
        %v9039 = vmul.f32 %v8927, %v8990
        %v9040 = vmul.f32 %v8928, %v8995
        %v9041 = vmul.f32 %v8929, %v9000
        %v9042 = vmul.f32 %v8930, %v9005
        %v9043 = vmul.f32 %v8931, %v9010
        %v9044 = vmul.f32 %v8932, %v9015
        %v9045 = vmul.f32 %v8933, %v9020
        %v9046 = vmul.f32 %v8934, %v9025
        %v9047 = vmul.f32 %v8935, %v9030
        %9048 = vst.msk [vmem:[%s871] sm:$0xff] %vm913, %v9032
        %9049 = vst.msk [vmem:[%s871 + $0x8] sm:$0xff] %vm913, %v9033
        %9050 = vst.msk [vmem:[%s871 + $0x10] sm:$0xff] %vm913, %v9034
        %9051 = vst.msk [vmem:[%s871 + $0x18] sm:$0xff] %vm913, %v9035
        %9052 = vst.msk [vmem:[%s871 + $0x20] sm:$0xff] %vm913, %v9036
        %9053 = vst.msk [vmem:[%s871 + $0x28] sm:$0xff] %vm913, %v9037
        %9054 = vst.msk [vmem:[%s871 + $0x30] sm:$0xff] %vm913, %v9038
        %9055 = vst.msk [vmem:[%s871 + $0x38] sm:$0xff] %vm913, %v9039
        %9056 = vst.msk [vmem:[%s871 + $0x40] sm:$0xff] %vm913, %v9040
        %9057 = vst.msk [vmem:[%s871 + $0x48] sm:$0xff] %vm913, %v9041
        %9058 = vst.msk [vmem:[%s871 + $0x50] sm:$0xff] %vm913, %v9042
        %9059 = vst.msk [vmem:[%s871 + $0x58] sm:$0xff] %vm913, %v9043
        %9060 = vst.msk [vmem:[%s871 + $0x60] sm:$0xff] %vm913, %v9044
        %9061 = vst.msk [vmem:[%s871 + $0x68] sm:$0xff] %vm913, %v9045
        %9062 = vst.msk [vmem:[%s871 + $0x70] sm:$0xff] %vm913, %v9046
        %9063 = vst.msk [vmem:[%s871 + $0x78] sm:$0xff] %vm913, %v9047
        %s9064 = smul.u32 16, %s19
        %p9065 = scmp.lt.s32.totalorder %s9064, 31
        %s9066 = scalar_select %p9065, %s9064, 31
        %s9067 = smul.addr %s9066, 8
        %s9068 = scalar_lea.vmem %s8, %s9067
        // Predicated region
        $region91: #{tpu_custom_call.1} parent=85 // pred_check
          %p9069 = pneg %p215
        $region92: #{tpu_custom_call.1} parent=85 // pred_check_branch
          %9071 = sbr.rel (%p9069) target = $region94
        $region93: #{tpu_custom_call.1} parent=85 // pred_region
          %s9072 = smul.u32 16, %s19
        $region94: #{tpu_custom_call.1} parent=85 // pred_fallthru
          _
      $region86: #{tpu_custom_call.1} parent=5 // pred_fallthru
        _
      %p9073 = scmp.le.s32.totalorder 2, %s14
      // Predicated region
      $region95: #{tpu_custom_call.1} parent=5 // pred_check
        %p9074 = pneg %p9073
      $region96: #{tpu_custom_call.1} parent=5 // pred_check_branch
        %9076 = sbr.rel (%p9074) target = $region98
      $region97: #{tpu_custom_call.1} parent=5 // pred_region
        %s9077 = ssub.s32 %s14, 2
        // Predicated region
        $region99: #{tpu_custom_call.1} parent=97 // pred_check
          %p9078 = pneg %p221
        $region100: #{tpu_custom_call.1} parent=97 // pred_check_branch
          %9080 = sbr.rel (%p9078) target = $region102
        $region101: #{tpu_custom_call.1} parent=97 // pred_region
          %s9081 = smul.u32 16, %s20
          %p9082 = scmp.lt.s32.totalorder %s9081, 31
          %s9083 = scalar_select %p9082, %s9081, 31
          %s9084 = smul.addr %s9083, 8
          %s9085 = scalar_lea.vmem %s8, %s9084
        $region102: #{tpu_custom_call.1} parent=97 // pred_fallthru
          _
      $region98: #{tpu_custom_call.1} parent=5 // pred_fallthru
        _
    $region6: #{tpu_custom_call.1} parent=1 // loop_footer
      %s18 = sadd.s32 1, %s14
    $region7: #{tpu_custom_call.1} parent=1 // loop_footer_branch
      %13 = sbr.rel target = $region3
    $region8: #{tpu_custom_call.1} parent=1 // loop_exit
      _

</llo_original>
